<compile_context>
chip_gen: v6e
topology: v6e:2x2x1
jax: 0.10.0
libtpu: 0.0.40
codegen_flags: <defaults>
</compile_context>

<pallas_src>
import functools

import jax
import jax.numpy as jnp
from jax.experimental import pallas as pl
from jax.experimental.pallas import tpu as pltpu

EPS = 1e-6          # vector-neuron epsilon (d_norm_sq stabilizer)
EPS_SQ = 1e-12      # stabilizer for rsqrt(||p||^2 + eps)
BN_EPS = 1e-5       # torch.nn.BatchNorm default eps


def _ceil_to(x, m):
    return ((x + m - 1) // m) * m


def _resident_spec(arr):
    """Whole-array block, same block for every grid step (weights / BN params)."""
    zero_idx = (0,) * arr.ndim
    return pl.BlockSpec(arr.shape, lambda *_: zero_idx)


def _conv_budget():
    """(max_tile_n, vmem_limit_bytes) per TPU generation."""
    kind = ""
    try:
        kind = jax.devices()[0].device_kind.lower()
    except Exception:
        pass
    if "v7" in kind:                       # 64 MiB physical VMEM per TC
        return 512, 48 * 1024 * 1024
    if "v6" in kind:                       # 128 MiB physical VMEM
        return 1024, 96 * 1024 * 1024
    if "v5" in kind:                       # 16 MiB *default scoped* limit -> raise it
        return 512, 56 * 1024 * 1024
    return 512, 48 * 1024 * 1024


# ----------------------------- conv-stage kernel --------------------------- #

def _vn_layer(xs, w_s, scale, shift):
    """One VNLinearLeakyReLU (+ folded eval-mode BN) on three (C_in, T) slabs.

    xs     : list of 3 (C_in, T) bf16 slabs (one per vector component).
    w_s    : (2*C_out, C_in) bf16, [map_to_feat ; map_to_dir] stacked on sublanes.
    scale, shift : (C_out, 1) f32 folded BN affine.
    Returns a list of three (C_out, T) f32 slabs.
    """
    c_out = w_s.shape[0] // 2
    y = [jnp.dot(w_s, xk, preferred_element_type=jnp.float32) for xk in xs]
    p = [yk[:c_out, :] for yk in y]
    dv = [yk[c_out:, :] for yk in y]

    # Eval-mode VNBatchNorm on the per-channel vector norm: factor = scale + shift/||p||.
    normsq = p[0] * p[0] + p[1] * p[1] + p[2] * p[2]
    factor = scale + shift * jax.lax.rsqrt(normsq + EPS_SQ)
    p = [pk * factor for pk in p]

    # VN leaky-ReLU specialized for negative_slope == 0:
    #   out = p - min(<p,d>/(||d||^2+eps), 0) * d
    dotpd = p[0] * dv[0] + p[1] * dv[1] + p[2] * dv[2]
    dnsq = dv[0] * dv[0] + dv[1] * dv[1] + dv[2] * dv[2]
    coef = jnp.minimum(dotpd * pl.reciprocal(dnsq + EPS, approx=True), 0.0)
    return [p[k] - coef * dv[k] for k in range(3)]


def _fused_conv_pool_kernel(x_ref, w1_ref, s1_ref, b1_ref,
                            w2_ref, s2_ref, b2_ref,
                            w3_ref, s3_ref, b3_ref, out_ref):
    """conv1 -> conv2 -> conv3 -> partial point-sum for one (split, batch, tile) step.

    x_ref   : (d, 3, tile_n) input tile (original PyTorch layout, batch squeezed)
    out_ref : (C3p, 3)       partial pooled-sum accumulator, resident over the tile axis
    """
    x = x_ref[...]                                                    # (d, 3, T)
    xs = [x[:, k, :].astype(jnp.bfloat16) for k in range(3)]          # 3 x (d, T)

    h = _vn_layer(xs, w1_ref[...], s1_ref[...], b1_ref[...])
    h = _vn_layer([a.astype(jnp.bfloat16) for a in h],
                  w2_ref[...], s2_ref[...], b2_ref[...])
    h = _vn_layer([a.astype(jnp.bfloat16) for a in h],
                  w3_ref[...], s3_ref[...], b3_ref[...])              # 3 x (C3p, T)

    step = jnp.concatenate(
        [jnp.sum(a, axis=-1, keepdims=True) for a in h], axis=-1)     # (C3p, 3)

    @pl.when(pl.program_id(2) == 0)
    def _init():
        out_ref[...] = jnp.zeros_like(out_ref)

    out_ref[...] += step


def _fused_conv_pool(x, prep, *, tile_n, n_split, vmem_limit_bytes):
    B, d, three, n_pad = x.shape
    assert three == 3 and n_pad % tile_n == 0
    n_tiles = n_pad // tile_n
    assert n_tiles % n_split == 0
    tps = n_tiles // n_split
    c3p = prep["conv3"]["w_s"].shape[0] // 2

    in_specs = [pl.BlockSpec((None, d, 3, tile_n),
                             lambda s, b, n: (b, 0, 0, s * tps + n))]
    args = [x]
    for name in ("conv1", "conv2", "conv3"):
        for key in ("w_s", "scale", "shift"):
            arr = prep[name][key]
            in_specs.append(_resident_spec(arr))
            args.append(arr)

    return pl.pallas_call(
        _fused_conv_pool_kernel,
        out_shape=jax.ShapeDtypeStruct((n_split, B, c3p, 3), jnp.float32),
        grid=(n_split, B, tps),
        in_specs=in_specs,
        out_specs=pl.BlockSpec((None, None, c3p, 3), lambda s, b, n: (s, b, 0, 0)),
        compiler_params=pltpu.CompilerParams(
            dimension_semantics=("parallel", "parallel", "arbitrary"),
            vmem_limit_bytes=vmem_limit_bytes),
    )(*args)


# ------------------------------ fc-stage kernel ----------------------------- #

def _vn_col_layer(x, w_s, scale, shift):
    """VNLinearLeakyReLU(+BN) on a single (C_in, 3) column slab (pooled features)."""
    c_out = w_s.shape[0] // 2
    y = jnp.dot(w_s, x, preferred_element_type=jnp.float32)          # (2*C_out, 3)
    p, dv = y[:c_out, :], y[c_out:, :]
    normsq = jnp.sum(p * p, axis=-1, keepdims=True)
    factor = scale + shift * jax.lax.rsqrt(normsq + EPS_SQ)
    p = p * factor
    dotpd = jnp.sum(p * dv, axis=-1, keepdims=True)
    dnsq = jnp.sum(dv * dv, axis=-1, keepdims=True)
    coef = jnp.minimum(dotpd * pl.reciprocal(dnsq + EPS, approx=True), 0.0)
    return p - coef * dv


def _fused_fc_kernel(part_ref, w1_ref, s1_ref, b1_ref,
                     w2_ref, s2_ref, b2_ref, w3_ref, out_ref, *, inv_n):
    # part_ref: (n_split, C3p, 3) partial pooled sums for this batch; out_ref: (dp, 3)
    pooled = jnp.sum(part_ref[...], axis=0) * inv_n                  # (C3p, 3)
    h = _vn_col_layer(pooled, w1_ref[...], s1_ref[...], b1_ref[...])
    h = _vn_col_layer(h, w2_ref[...], s2_ref[...], b2_ref[...])
    out_ref[...] = jnp.dot(w3_ref[...], h, preferred_element_type=jnp.float32)


def _fused_fc(partials, prep, *, inv_n):
    n_split, B, c3p, _ = partials.shape
    dp = prep["fc3"]["w"].shape[0]
    args = [partials,
            prep["fc1"]["w_s"], prep["fc1"]["scale"], prep["fc1"]["shift"],
            prep["fc2"]["w_s"], prep["fc2"]["scale"], prep["fc2"]["shift"],
            prep["fc3"]["w"]]
    in_specs = [pl.BlockSpec((n_split, None, c3p, 3), lambda b: (0, b, 0, 0))]
    in_specs += [_resident_spec(a) for a in args[1:]]
    return pl.pallas_call(
        functools.partial(_fused_fc_kernel, inv_n=inv_n),
        out_shape=jax.ShapeDtypeStruct((B, dp, 3), jnp.float32),
        grid=(B,),
        in_specs=in_specs,
        out_specs=pl.BlockSpec((None, dp, 3), lambda b: (b, 0, 0)),
        compiler_params=pltpu.CompilerParams(dimension_semantics=("parallel",)),
    )(*args)


# -------------------------------- wrapper ----------------------------------- #

def stnkd_forward(x_pt, prep, *, max_tile=None, vmem_limit_bytes=None):
    """x_pt: [B, d, 3, N] (PyTorch layout) -> [B, d, 3]."""
    B, d, three, N = x_pt.shape
    assert three == 3
    if max_tile is None or vmem_limit_bytes is None:
        mt, vl = _conv_budget()
        max_tile = max_tile or mt
        vmem_limit_bytes = vmem_limit_bytes or vl

    # Adaptive tile: keep zero-point padding below ~one lane-tile of waste.
    n_chunks = max(1, -(-N // max_tile))
    tile_n = _ceil_to(-(-N // n_chunks), 128)
    n_pad = _ceil_to(N, tile_n)
    if n_pad != N:
        # zero-padded points stay exactly zero through the VN layers and do not
        # affect the pooled mean (the fc kernel divides by the real N).
        x_pt = jnp.pad(x_pt, ((0, 0), (0, 0), (0, 0), (0, n_pad - N)))
    n_tiles = n_pad // tile_n
    # Split the point reduction into 2 parallel partial sums when possible so
    # both v7x TensorCores are used even at B=1 (harmless on single-TC chips).
    n_split = 2 if (n_tiles >= 2 and n_tiles % 2 == 0) else 1

    partials = _fused_conv_pool(x_pt, prep, tile_n=tile_n, n_split=n_split,
                                vmem_limit_bytes=vmem_limit_bytes)   # (S, B, C3p, 3)
    out = _fused_fc(partials, prep, inv_n=1.0 / float(N))            # (B, dp, 3)
    return out[:, :d, :]


# --------------------------------- params ----------------------------------- #

def _linear_w(key, out_c, in_c):
    bound = 1.0 / float(in_c) ** 0.5
    return jax.random.uniform(key, (out_c, in_c), jnp.float32, -bound, bound)


def _bn_affine(key, c):
    k1, k2, k3, k4 = jax.random.split(key, 4)
    gamma = 1.0 + 0.1 * jax.random.normal(k1, (c,), jnp.float32)
    beta = 0.1 * jax.random.normal(k2, (c,), jnp.float32)
    rmean = 0.1 * jax.random.normal(k3, (c,), jnp.float32)
    rvar = 1.0 + 0.1 * jnp.abs(jax.random.normal(k4, (c,), jnp.float32))
    scale = gamma / jnp.sqrt(rvar + BN_EPS)
    shift = beta - rmean * scale
    return scale.reshape(c, 1), shift.reshape(c, 1)


def init_params(key, d):
    layer_dims = [("conv1", d, 64 // 3),
                  ("conv2", 64 // 3, 128 // 3),
                  ("conv3", 128 // 3, 1024 // 3),
                  ("fc1", 1024 // 3, 512 // 3),
                  ("fc2", 512 // 3, 256 // 3)]
    keys = jax.random.split(key, len(layer_dims) + 1)
    params = {}
    for k_i, (name, cin, cout) in zip(keys[:-1], layer_dims):
        kf, kd, kb = jax.random.split(k_i, 3)
        scale, shift = _bn_affine(kb, cout)
        params[name] = dict(wf=_linear_w(kf, cout, cin),
                            wd=_linear_w(kd, cout, cin),
                            scale=scale, shift=shift)
    params["fc3"] = dict(w=_linear_w(keys[-1], d, 256 // 3))
    return params


def _pad_to(a, shape):
    pads = [(0, s - c) for c, s in zip(a.shape, shape)]
    return jnp.pad(a, pads)


def prepare_kernel_params(params, d):
    """Pad channels to multiples of 8 and stack wf/wd into one (2*C_out, C_in) weight."""
    prep = {}
    cin = d
    for name in ("conv1", "conv2", "conv3"):
        p = params[name]
        coutp = _ceil_to(p["wf"].shape[0], 8)
        wf = _pad_to(p["wf"], (coutp, cin))
        wd = _pad_to(p["wd"], (coutp, cin))
        prep[name] = dict(
            w_s=jnp.concatenate([wf, wd], axis=0).astype(jnp.bfloat16),
            scale=_pad_to(p["scale"], (coutp, 1)).astype(jnp.float32),
            shift=_pad_to(p["shift"], (coutp, 1)).astype(jnp.float32))
        cin = coutp
    for name in ("fc1", "fc2"):
        p = params[name]
        coutp = _ceil_to(p["wf"].shape[0], 8)
        wf = _pad_to(p["wf"], (coutp, cin))
        wd = _pad_to(p["wd"], (coutp, cin))
        prep[name] = dict(
            w_s=jnp.concatenate([wf, wd], axis=0).astype(jnp.float32),
            scale=_pad_to(p["scale"], (coutp, 1)).astype(jnp.float32),
            shift=_pad_to(p["shift"], (coutp, 1)).astype(jnp.float32))
        cin = coutp
    dp = _ceil_to(d, 8)
    prep["fc3"] = dict(w=_pad_to(params["fc3"]["w"], (dp, cin)).astype(jnp.float32))
    return prep


# ----------------------------------- main ------------------------------------ #

if __name__ == "__main__":
    B, d, N = 2, 64, 16
    key = jax.random.PRNGKey(0)
    kx, kp = jax.random.split(key)
    x_pt = jax.random.normal(kx, (B, d, 3, N), dtype=jnp.float32)
    params = init_params(kp, d)
    prep = prepare_kernel_params(params, d)

    fwd = jax.jit(lambda xx: stnkd_forward(xx, prep))
    out = jax.block_until_ready(fwd(x_pt))

    assert out.shape == (B, d, 3), out.shape
    assert bool(jnp.all(jnp.isfinite(out)))
    print("KERNEL_OK")
</pallas_src>

<mosaic_0001>
module attributes {stable_mosaic.version = 11 : i64} {
  func.func @_fused_fc_kernel(%arg0: i32, %arg1: memref<1x1x344x3xf32, #tpu.memory_space<vmem>>, %arg2: memref<352x344xf32, #tpu.memory_space<vmem>>, %arg3: memref<176x1xf32, #tpu.memory_space<vmem>>, %arg4: memref<176x1xf32, #tpu.memory_space<vmem>>, %arg5: memref<176x176xf32, #tpu.memory_space<vmem>>, %arg6: memref<88x1xf32, #tpu.memory_space<vmem>>, %arg7: memref<88x1xf32, #tpu.memory_space<vmem>>, %arg8: memref<64x88xf32, #tpu.memory_space<vmem>>, %arg9: memref<1x64x3xf32, #tpu.memory_space<vmem>>) attributes {dimension_semantics = [#tpu.dimension_semantics<parallel>], iteration_bounds = array<i64: 2>, scalar_prefetch = 0 : i64, scratch_operands = 0 : i64, tpu.core_type = #tpu.core_type<tc>, window_params = [{transform_indices = @transform_0, window_bounds = array<i64: 1, 1, 344, 3>}, {pipeline_mode = #tpu.pipeline_mode<synchronous>, transform_indices = @transform_1, window_bounds = array<i64: 352, 344>}, {pipeline_mode = #tpu.pipeline_mode<synchronous>, transform_indices = @transform_2, window_bounds = array<i64: 176, 1>}, {pipeline_mode = #tpu.pipeline_mode<synchronous>, transform_indices = @transform_3, window_bounds = array<i64: 176, 1>}, {pipeline_mode = #tpu.pipeline_mode<synchronous>, transform_indices = @transform_4, window_bounds = array<i64: 176, 176>}, {pipeline_mode = #tpu.pipeline_mode<synchronous>, transform_indices = @transform_5, window_bounds = array<i64: 88, 1>}, {pipeline_mode = #tpu.pipeline_mode<synchronous>, transform_indices = @transform_6, window_bounds = array<i64: 88, 1>}, {pipeline_mode = #tpu.pipeline_mode<synchronous>, transform_indices = @transform_7, window_bounds = array<i64: 64, 88>}, {transform_indices = @transform_8, window_bounds = array<i64: 1, 64, 3>}]} {
    %c0 = arith.constant 0 : index
    %c0_0 = arith.constant 0 : index
    %c0_1 = arith.constant 0 : index
    %c0_2 = arith.constant 0 : index
    %0 = vector.load %arg1[%c0, %c0_0, %c0_1, %c0_2] : memref<1x1x344x3xf32, #tpu.memory_space<vmem>>, vector<1x1x344x3xf32>
    %1 = vector.shape_cast %0 : vector<1x1x344x3xf32> to vector<1x344x3xf32>
    %cst = arith.constant dense<0.000000e+00> : vector<344x3xf32>
    %2 = vector.multi_reduction <add>, %1, %cst [0] : vector<1x344x3xf32> to vector<344x3xf32>
    %cst_3 = arith.constant 6.250000e-02 : f32
    %3 = vector.broadcast %cst_3 : f32 to vector<344x3xf32>
    %4 = arith.mulf %2, %3 : vector<344x3xf32>
    %c0_4 = arith.constant 0 : index
    %c0_5 = arith.constant 0 : index
    %5 = vector.load %arg2[%c0_4, %c0_5] : memref<352x344xf32, #tpu.memory_space<vmem>>, vector<352x344xf32>
    %c0_6 = arith.constant 0 : index
    %c0_7 = arith.constant 0 : index
    %6 = vector.load %arg3[%c0_6, %c0_7] : memref<176x1xf32, #tpu.memory_space<vmem>>, vector<176x1xf32>
    %c0_8 = arith.constant 0 : index
    %c0_9 = arith.constant 0 : index
    %7 = vector.load %arg4[%c0_8, %c0_9] : memref<176x1xf32, #tpu.memory_space<vmem>>, vector<176x1xf32>
    %cst_10 = arith.constant dense<0.000000e+00> : vector<352x3xf32>
    %8 = tpu.matmul %5, %4, %cst_10 {dimension_numbers = #tpu.dot_dimension_numbers<[1], [0], [0], [1], [0, 0, 1, 1], [], []>} : vector<352x344xf32>, vector<344x3xf32>, vector<352x3xf32> -> vector<352x3xf32>
    %9 = vector.extract_strided_slice %8 {offsets = [0, 0], sizes = [176, 3], strides = [1, 1]} : vector<352x3xf32> to vector<176x3xf32>
    %10 = vector.extract_strided_slice %8 {offsets = [176, 0], sizes = [176, 3], strides = [1, 1]} : vector<352x3xf32> to vector<176x3xf32>
    %11 = arith.mulf %9, %9 : vector<176x3xf32>
    %cst_11 = arith.constant dense<0.000000e+00> : vector<176xf32>
    %12 = vector.multi_reduction <add>, %11, %cst_11 [1] : vector<176x3xf32> to vector<176xf32>
    %13 = vector.shape_cast %12 : vector<176xf32> to vector<176x1xf32>
    %cst_12 = arith.constant 9.99999996E-13 : f32
    %14 = vector.broadcast %cst_12 : f32 to vector<176x1xf32>
    %15 = arith.addf %13, %14 : vector<176x1xf32>
    %16 = math.rsqrt %15 : vector<176x1xf32>
    %17 = arith.mulf %7, %16 : vector<176x1xf32>
    %18 = arith.addf %6, %17 : vector<176x1xf32>
    %19 = vector.broadcast %18 : vector<176x1xf32> to vector<176x3xf32>
    %20 = arith.mulf %9, %19 : vector<176x3xf32>
    %21 = arith.mulf %20, %10 : vector<176x3xf32>
    %cst_13 = arith.constant dense<0.000000e+00> : vector<176xf32>
    %22 = vector.multi_reduction <add>, %21, %cst_13 [1] : vector<176x3xf32> to vector<176xf32>
    %23 = vector.shape_cast %22 : vector<176xf32> to vector<176x1xf32>
    %24 = arith.mulf %10, %10 : vector<176x3xf32>
    %cst_14 = arith.constant dense<0.000000e+00> : vector<176xf32>
    %25 = vector.multi_reduction <add>, %24, %cst_14 [1] : vector<176x3xf32> to vector<176xf32>
    %26 = vector.shape_cast %25 : vector<176xf32> to vector<176x1xf32>
    %cst_15 = arith.constant 9.99999997E-7 : f32
    %27 = vector.broadcast %cst_15 : f32 to vector<176x1xf32>
    %28 = arith.addf %26, %27 : vector<176x1xf32>
    %29 = tpu.reciprocal %28 {approx = true} : vector<176x1xf32> -> vector<176x1xf32>
    %30 = arith.mulf %23, %29 : vector<176x1xf32>
    %cst_16 = arith.constant 0.000000e+00 : f32
    %31 = vector.broadcast %cst_16 : f32 to vector<176x1xf32>
    %32 = arith.minimumf %30, %31 : vector<176x1xf32>
    %33 = vector.broadcast %32 : vector<176x1xf32> to vector<176x3xf32>
    %34 = arith.mulf %33, %10 : vector<176x3xf32>
    %35 = arith.subf %20, %34 : vector<176x3xf32>
    %c0_17 = arith.constant 0 : index
    %c0_18 = arith.constant 0 : index
    %36 = vector.load %arg5[%c0_17, %c0_18] : memref<176x176xf32, #tpu.memory_space<vmem>>, vector<176x176xf32>
    %c0_19 = arith.constant 0 : index
    %c0_20 = arith.constant 0 : index
    %37 = vector.load %arg6[%c0_19, %c0_20] : memref<88x1xf32, #tpu.memory_space<vmem>>, vector<88x1xf32>
    %c0_21 = arith.constant 0 : index
    %c0_22 = arith.constant 0 : index
    %38 = vector.load %arg7[%c0_21, %c0_22] : memref<88x1xf32, #tpu.memory_space<vmem>>, vector<88x1xf32>
    %cst_23 = arith.constant dense<0.000000e+00> : vector<176x3xf32>
    %39 = tpu.matmul %36, %35, %cst_23 {dimension_numbers = #tpu.dot_dimension_numbers<[1], [0], [0], [1], [0, 0, 1, 1], [], []>} : vector<176x176xf32>, vector<176x3xf32>, vector<176x3xf32> -> vector<176x3xf32>
    %40 = vector.extract_strided_slice %39 {offsets = [0, 0], sizes = [88, 3], strides = [1, 1]} : vector<176x3xf32> to vector<88x3xf32>
    %41 = vector.extract_strided_slice %39 {offsets = [88, 0], sizes = [88, 3], strides = [1, 1]} : vector<176x3xf32> to vector<88x3xf32>
    %42 = arith.mulf %40, %40 : vector<88x3xf32>
    %cst_24 = arith.constant dense<0.000000e+00> : vector<88xf32>
    %43 = vector.multi_reduction <add>, %42, %cst_24 [1] : vector<88x3xf32> to vector<88xf32>
    %44 = vector.shape_cast %43 : vector<88xf32> to vector<88x1xf32>
    %cst_25 = arith.constant 9.99999996E-13 : f32
    %45 = vector.broadcast %cst_25 : f32 to vector<88x1xf32>
    %46 = arith.addf %44, %45 : vector<88x1xf32>
    %47 = math.rsqrt %46 : vector<88x1xf32>
    %48 = arith.mulf %38, %47 : vector<88x1xf32>
    %49 = arith.addf %37, %48 : vector<88x1xf32>
    %50 = vector.broadcast %49 : vector<88x1xf32> to vector<88x3xf32>
    %51 = arith.mulf %40, %50 : vector<88x3xf32>
    %52 = arith.mulf %51, %41 : vector<88x3xf32>
    %cst_26 = arith.constant dense<0.000000e+00> : vector<88xf32>
    %53 = vector.multi_reduction <add>, %52, %cst_26 [1] : vector<88x3xf32> to vector<88xf32>
    %54 = vector.shape_cast %53 : vector<88xf32> to vector<88x1xf32>
    %55 = arith.mulf %41, %41 : vector<88x3xf32>
    %cst_27 = arith.constant dense<0.000000e+00> : vector<88xf32>
    %56 = vector.multi_reduction <add>, %55, %cst_27 [1] : vector<88x3xf32> to vector<88xf32>
    %57 = vector.shape_cast %56 : vector<88xf32> to vector<88x1xf32>
    %cst_28 = arith.constant 9.99999997E-7 : f32
    %58 = vector.broadcast %cst_28 : f32 to vector<88x1xf32>
    %59 = arith.addf %57, %58 : vector<88x1xf32>
    %60 = tpu.reciprocal %59 {approx = true} : vector<88x1xf32> -> vector<88x1xf32>
    %61 = arith.mulf %54, %60 : vector<88x1xf32>
    %cst_29 = arith.constant 0.000000e+00 : f32
    %62 = vector.broadcast %cst_29 : f32 to vector<88x1xf32>
    %63 = arith.minimumf %61, %62 : vector<88x1xf32>
    %64 = vector.broadcast %63 : vector<88x1xf32> to vector<88x3xf32>
    %65 = arith.mulf %64, %41 : vector<88x3xf32>
    %66 = arith.subf %51, %65 : vector<88x3xf32>
    %c0_30 = arith.constant 0 : index
    %c0_31 = arith.constant 0 : index
    %67 = vector.load %arg8[%c0_30, %c0_31] : memref<64x88xf32, #tpu.memory_space<vmem>>, vector<64x88xf32>
    %cst_32 = arith.constant dense<0.000000e+00> : vector<64x3xf32>
    %68 = tpu.matmul %67, %66, %cst_32 {dimension_numbers = #tpu.dot_dimension_numbers<[1], [0], [0], [1], [0, 0, 1, 1], [], []>} : vector<64x88xf32>, vector<88x3xf32>, vector<64x3xf32> -> vector<64x3xf32>
    %c0_33 = arith.constant 0 : index
    %c0_34 = arith.constant 0 : index
    %c0_35 = arith.constant 0 : index
    %69 = vector.load %arg9[%c0_33, %c0_34, %c0_35] : memref<1x64x3xf32, #tpu.memory_space<vmem>>, vector<1x64x3xf32>
    %70 = vector.shape_cast %69 : vector<1x64x3xf32> to vector<64x3xf32>
    %71 = vector.shape_cast %68 : vector<64x3xf32> to vector<1x64x3xf32>
    tpu.vector_store %arg9[%c0_33, %c0_34, %c0_35], %71 {strides = array<i32>} : memref<1x64x3xf32, #tpu.memory_space<vmem>>, vector<1x64x3xf32>,
    return
  }
  func.func @transform_0(%arg0: i32) -> (i32, i32, i32, i32) {
    %c0_i32 = arith.constant 0 : i32
    %c0_i32_0 = arith.constant 0 : i32
    %c0_i32_1 = arith.constant 0 : i32
    %c0_i32_2 = arith.constant 0 : i32
    return %c0_i32, %arg0, %c0_i32_0, %c0_i32_1 : i32, i32, i32, i32
  }
  func.func @transform_1(%arg0: i32) -> (i32, i32) {
    %c0_i32 = arith.constant 0 : i32
    %c0_i32_0 = arith.constant 0 : i32
    %c0_i32_1 = arith.constant 0 : i32
    return %c0_i32, %c0_i32_0 : i32, i32
  }
  func.func @transform_2(%arg0: i32) -> (i32, i32) {
    %c0_i32 = arith.constant 0 : i32
    %c0_i32_0 = arith.constant 0 : i32
    %c0_i32_1 = arith.constant 0 : i32
    return %c0_i32, %c0_i32_0 : i32, i32
  }
  func.func @transform_3(%arg0: i32) -> (i32, i32) {
    %c0_i32 = arith.constant 0 : i32
    %c0_i32_0 = arith.constant 0 : i32
    %c0_i32_1 = arith.constant 0 : i32
    return %c0_i32, %c0_i32_0 : i32, i32
  }
  func.func @transform_4(%arg0: i32) -> (i32, i32) {
    %c0_i32 = arith.constant 0 : i32
    %c0_i32_0 = arith.constant 0 : i32
    %c0_i32_1 = arith.constant 0 : i32
    return %c0_i32, %c0_i32_0 : i32, i32
  }
  func.func @transform_5(%arg0: i32) -> (i32, i32) {
    %c0_i32 = arith.constant 0 : i32
    %c0_i32_0 = arith.constant 0 : i32
    %c0_i32_1 = arith.constant 0 : i32
    return %c0_i32, %c0_i32_0 : i32, i32
  }
  func.func @transform_6(%arg0: i32) -> (i32, i32) {
    %c0_i32 = arith.constant 0 : i32
    %c0_i32_0 = arith.constant 0 : i32
    %c0_i32_1 = arith.constant 0 : i32
    return %c0_i32, %c0_i32_0 : i32, i32
  }
  func.func @transform_7(%arg0: i32) -> (i32, i32) {
    %c0_i32 = arith.constant 0 : i32
    %c0_i32_0 = arith.constant 0 : i32
    %c0_i32_1 = arith.constant 0 : i32
    return %c0_i32, %c0_i32_0 : i32, i32
  }
  func.func @transform_8(%arg0: i32) -> (i32, i32, i32) {
    %c0_i32 = arith.constant 0 : i32
    %c0_i32_0 = arith.constant 0 : i32
    %c0_i32_1 = arith.constant 0 : i32
    return %arg0, %c0_i32, %c0_i32_0 : i32, i32, i32
  }
}

module attributes {stable_mosaic.version = 11 : i64} {
  func.func @_fused_conv_pool_kernel(%arg0: i32, %arg1: i32, %arg2: i32, %arg3: memref<1x64x3x128xf32, #tpu.memory_space<vmem>>, %arg4: memref<48x64xbf16, #tpu.memory_space<vmem>>, %arg5: memref<24x1xf32, #tpu.memory_space<vmem>>, %arg6: memref<24x1xf32, #tpu.memory_space<vmem>>, %arg7: memref<96x24xbf16, #tpu.memory_space<vmem>>, %arg8: memref<48x1xf32, #tpu.memory_space<vmem>>, %arg9: memref<48x1xf32, #tpu.memory_space<vmem>>, %arg10: memref<688x48xbf16, #tpu.memory_space<vmem>>, %arg11: memref<344x1xf32, #tpu.memory_space<vmem>>, %arg12: memref<344x1xf32, #tpu.memory_space<vmem>>, %arg13: memref<1x1x344x3xf32, #tpu.memory_space<vmem>>) attributes {dimension_semantics = [#tpu.dimension_semantics<parallel>, #tpu.dimension_semantics<parallel>, #tpu.dimension_semantics<arbitrary>], iteration_bounds = array<i64: 1, 2, 1>, scalar_prefetch = 0 : i64, scratch_operands = 0 : i64, tpu.core_type = #tpu.core_type<tc>, window_params = [{transform_indices = @transform_0, window_bounds = array<i64: 1, 64, 3, 128>}, {pipeline_mode = #tpu.pipeline_mode<synchronous>, transform_indices = @transform_1, window_bounds = array<i64: 48, 64>}, {pipeline_mode = #tpu.pipeline_mode<synchronous>, transform_indices = @transform_2, window_bounds = array<i64: 24, 1>}, {pipeline_mode = #tpu.pipeline_mode<synchronous>, transform_indices = @transform_3, window_bounds = array<i64: 24, 1>}, {pipeline_mode = #tpu.pipeline_mode<synchronous>, transform_indices = @transform_4, window_bounds = array<i64: 96, 24>}, {pipeline_mode = #tpu.pipeline_mode<synchronous>, transform_indices = @transform_5, window_bounds = array<i64: 48, 1>}, {pipeline_mode = #tpu.pipeline_mode<synchronous>, transform_indices = @transform_6, window_bounds = array<i64: 48, 1>}, {pipeline_mode = #tpu.pipeline_mode<synchronous>, transform_indices = @transform_7, window_bounds = array<i64: 688, 48>}, {pipeline_mode = #tpu.pipeline_mode<synchronous>, transform_indices = @transform_8, window_bounds = array<i64: 344, 1>}, {pipeline_mode = #tpu.pipeline_mode<synchronous>, transform_indices = @transform_9, window_bounds = array<i64: 344, 1>}, {transform_indices = @transform_10, window_bounds = array<i64: 1, 1, 344, 3>}]} {
    %c0 = arith.constant 0 : index
    %c0_0 = arith.constant 0 : index
    %c0_1 = arith.constant 0 : index
    %c0_2 = arith.constant 0 : index
    %0 = vector.load %arg3[%c0, %c0_0, %c0_1, %c0_2] : memref<1x64x3x128xf32, #tpu.memory_space<vmem>>, vector<1x64x3x128xf32>
    %1 = vector.shape_cast %0 : vector<1x64x3x128xf32> to vector<64x3x128xf32>
    %2 = vector.extract_strided_slice %1 {offsets = [0, 0, 0], sizes = [64, 1, 128], strides = [1, 1, 1]} : vector<64x3x128xf32> to vector<64x1x128xf32>
    %3 = vector.shape_cast %2 : vector<64x1x128xf32> to vector<64x128xf32>
    %4 = arith.truncf %3 : vector<64x128xf32> to vector<64x128xbf16>
    %5 = vector.extract_strided_slice %1 {offsets = [0, 1, 0], sizes = [64, 1, 128], strides = [1, 1, 1]} : vector<64x3x128xf32> to vector<64x1x128xf32>
    %6 = vector.shape_cast %5 : vector<64x1x128xf32> to vector<64x128xf32>
    %7 = arith.truncf %6 : vector<64x128xf32> to vector<64x128xbf16>
    %8 = vector.extract_strided_slice %1 {offsets = [0, 2, 0], sizes = [64, 1, 128], strides = [1, 1, 1]} : vector<64x3x128xf32> to vector<64x1x128xf32>
    %9 = vector.shape_cast %8 : vector<64x1x128xf32> to vector<64x128xf32>
    %10 = arith.truncf %9 : vector<64x128xf32> to vector<64x128xbf16>
    %c0_3 = arith.constant 0 : index
    %c0_4 = arith.constant 0 : index
    %11 = vector.load %arg4[%c0_3, %c0_4] : memref<48x64xbf16, #tpu.memory_space<vmem>>, vector<48x64xbf16>
    %c0_5 = arith.constant 0 : index
    %c0_6 = arith.constant 0 : index
    %12 = vector.load %arg5[%c0_5, %c0_6] : memref<24x1xf32, #tpu.memory_space<vmem>>, vector<24x1xf32>
    %c0_7 = arith.constant 0 : index
    %c0_8 = arith.constant 0 : index
    %13 = vector.load %arg6[%c0_7, %c0_8] : memref<24x1xf32, #tpu.memory_space<vmem>>, vector<24x1xf32>
    %cst = arith.constant dense<0.000000e+00> : vector<48x128xf32>
    %14 = tpu.matmul %11, %4, %cst {dimension_numbers = #tpu.dot_dimension_numbers<[1], [0], [0], [1], [0, 0, 1, 1], [], []>} : vector<48x64xbf16>, vector<64x128xbf16>, vector<48x128xf32> -> vector<48x128xf32>
    %cst_9 = arith.constant dense<0.000000e+00> : vector<48x128xf32>
    %15 = tpu.matmul %11, %7, %cst_9 {dimension_numbers = #tpu.dot_dimension_numbers<[1], [0], [0], [1], [0, 0, 1, 1], [], []>} : vector<48x64xbf16>, vector<64x128xbf16>, vector<48x128xf32> -> vector<48x128xf32>
    %cst_10 = arith.constant dense<0.000000e+00> : vector<48x128xf32>
    %16 = tpu.matmul %11, %10, %cst_10 {dimension_numbers = #tpu.dot_dimension_numbers<[1], [0], [0], [1], [0, 0, 1, 1], [], []>} : vector<48x64xbf16>, vector<64x128xbf16>, vector<48x128xf32> -> vector<48x128xf32>
    %17 = vector.extract_strided_slice %14 {offsets = [0, 0], sizes = [24, 128], strides = [1, 1]} : vector<48x128xf32> to vector<24x128xf32>
    %18 = vector.extract_strided_slice %15 {offsets = [0, 0], sizes = [24, 128], strides = [1, 1]} : vector<48x128xf32> to vector<24x128xf32>
    %19 = vector.extract_strided_slice %16 {offsets = [0, 0], sizes = [24, 128], strides = [1, 1]} : vector<48x128xf32> to vector<24x128xf32>
    %20 = vector.extract_strided_slice %14 {offsets = [24, 0], sizes = [24, 128], strides = [1, 1]} : vector<48x128xf32> to vector<24x128xf32>
    %21 = vector.extract_strided_slice %15 {offsets = [24, 0], sizes = [24, 128], strides = [1, 1]} : vector<48x128xf32> to vector<24x128xf32>
    %22 = vector.extract_strided_slice %16 {offsets = [24, 0], sizes = [24, 128], strides = [1, 1]} : vector<48x128xf32> to vector<24x128xf32>
    %23 = arith.mulf %17, %17 : vector<24x128xf32>
    %24 = arith.mulf %18, %18 : vector<24x128xf32>
    %25 = arith.addf %23, %24 : vector<24x128xf32>
    %26 = arith.mulf %19, %19 : vector<24x128xf32>
    %27 = arith.addf %25, %26 : vector<24x128xf32>
    %cst_11 = arith.constant 9.99999996E-13 : f32
    %28 = vector.broadcast %cst_11 : f32 to vector<24x128xf32>
    %29 = arith.addf %27, %28 : vector<24x128xf32>
    %30 = math.rsqrt %29 : vector<24x128xf32>
    %31 = vector.broadcast %13 : vector<24x1xf32> to vector<24x128xf32>
    %32 = arith.mulf %31, %30 : vector<24x128xf32>
    %33 = vector.broadcast %12 : vector<24x1xf32> to vector<24x128xf32>
    %34 = arith.addf %33, %32 : vector<24x128xf32>
    %35 = arith.mulf %17, %34 : vector<24x128xf32>
    %36 = arith.mulf %18, %34 : vector<24x128xf32>
    %37 = arith.mulf %19, %34 : vector<24x128xf32>
    %38 = arith.mulf %35, %20 : vector<24x128xf32>
    %39 = arith.mulf %36, %21 : vector<24x128xf32>
    %40 = arith.addf %38, %39 : vector<24x128xf32>
    %41 = arith.mulf %37, %22 : vector<24x128xf32>
    %42 = arith.addf %40, %41 : vector<24x128xf32>
    %43 = arith.mulf %20, %20 : vector<24x128xf32>
    %44 = arith.mulf %21, %21 : vector<24x128xf32>
    %45 = arith.addf %43, %44 : vector<24x128xf32>
    %46 = arith.mulf %22, %22 : vector<24x128xf32>
    %47 = arith.addf %45, %46 : vector<24x128xf32>
    %cst_12 = arith.constant 9.99999997E-7 : f32
    %48 = vector.broadcast %cst_12 : f32 to vector<24x128xf32>
    %49 = arith.addf %47, %48 : vector<24x128xf32>
    %50 = tpu.reciprocal %49 {approx = true} : vector<24x128xf32> -> vector<24x128xf32>
    %51 = arith.mulf %42, %50 : vector<24x128xf32>
    %cst_13 = arith.constant 0.000000e+00 : f32
    %52 = vector.broadcast %cst_13 : f32 to vector<24x128xf32>
    %53 = arith.minimumf %51, %52 : vector<24x128xf32>
    %54 = arith.mulf %53, %20 : vector<24x128xf32>
    %55 = arith.subf %35, %54 : vector<24x128xf32>
    %56 = arith.mulf %53, %21 : vector<24x128xf32>
    %57 = arith.subf %36, %56 : vector<24x128xf32>
    %58 = arith.mulf %53, %22 : vector<24x128xf32>
    %59 = arith.subf %37, %58 : vector<24x128xf32>
    %60 = arith.truncf %55 : vector<24x128xf32> to vector<24x128xbf16>
    %61 = arith.truncf %57 : vector<24x128xf32> to vector<24x128xbf16>
    %62 = arith.truncf %59 : vector<24x128xf32> to vector<24x128xbf16>
    %c0_14 = arith.constant 0 : index
    %c0_15 = arith.constant 0 : index
    %63 = vector.load %arg7[%c0_14, %c0_15] : memref<96x24xbf16, #tpu.memory_space<vmem>>, vector<96x24xbf16>
    %c0_16 = arith.constant 0 : index
    %c0_17 = arith.constant 0 : index
    %64 = vector.load %arg8[%c0_16, %c0_17] : memref<48x1xf32, #tpu.memory_space<vmem>>, vector<48x1xf32>
    %c0_18 = arith.constant 0 : index
    %c0_19 = arith.constant 0 : index
    %65 = vector.load %arg9[%c0_18, %c0_19] : memref<48x1xf32, #tpu.memory_space<vmem>>, vector<48x1xf32>
    %cst_20 = arith.constant dense<0.000000e+00> : vector<96x128xf32>
    %66 = tpu.matmul %63, %60, %cst_20 {dimension_numbers = #tpu.dot_dimension_numbers<[1], [0], [0], [1], [0, 0, 1, 1], [], []>} : vector<96x24xbf16>, vector<24x128xbf16>, vector<96x128xf32> -> vector<96x128xf32>
    %cst_21 = arith.constant dense<0.000000e+00> : vector<96x128xf32>
    %67 = tpu.matmul %63, %61, %cst_21 {dimension_numbers = #tpu.dot_dimension_numbers<[1], [0], [0], [1], [0, 0, 1, 1], [], []>} : vector<96x24xbf16>, vector<24x128xbf16>, vector<96x128xf32> -> vector<96x128xf32>
    %cst_22 = arith.constant dense<0.000000e+00> : vector<96x128xf32>
    %68 = tpu.matmul %63, %62, %cst_22 {dimension_numbers = #tpu.dot_dimension_numbers<[1], [0], [0], [1], [0, 0, 1, 1], [], []>} : vector<96x24xbf16>, vector<24x128xbf16>, vector<96x128xf32> -> vector<96x128xf32>
    %69 = vector.extract_strided_slice %66 {offsets = [0, 0], sizes = [48, 128], strides = [1, 1]} : vector<96x128xf32> to vector<48x128xf32>
    %70 = vector.extract_strided_slice %67 {offsets = [0, 0], sizes = [48, 128], strides = [1, 1]} : vector<96x128xf32> to vector<48x128xf32>
    %71 = vector.extract_strided_slice %68 {offsets = [0, 0], sizes = [48, 128], strides = [1, 1]} : vector<96x128xf32> to vector<48x128xf32>
    %72 = vector.extract_strided_slice %66 {offsets = [48, 0], sizes = [48, 128], strides = [1, 1]} : vector<96x128xf32> to vector<48x128xf32>
    %73 = vector.extract_strided_slice %67 {offsets = [48, 0], sizes = [48, 128], strides = [1, 1]} : vector<96x128xf32> to vector<48x128xf32>
    %74 = vector.extract_strided_slice %68 {offsets = [48, 0], sizes = [48, 128], strides = [1, 1]} : vector<96x128xf32> to vector<48x128xf32>
    %75 = arith.mulf %69, %69 : vector<48x128xf32>
    %76 = arith.mulf %70, %70 : vector<48x128xf32>
    %77 = arith.addf %75, %76 : vector<48x128xf32>
    %78 = arith.mulf %71, %71 : vector<48x128xf32>
    %79 = arith.addf %77, %78 : vector<48x128xf32>
    %cst_23 = arith.constant 9.99999996E-13 : f32
    %80 = vector.broadcast %cst_23 : f32 to vector<48x128xf32>
    %81 = arith.addf %79, %80 : vector<48x128xf32>
    %82 = math.rsqrt %81 : vector<48x128xf32>
    %83 = vector.broadcast %65 : vector<48x1xf32> to vector<48x128xf32>
    %84 = arith.mulf %83, %82 : vector<48x128xf32>
    %85 = vector.broadcast %64 : vector<48x1xf32> to vector<48x128xf32>
    %86 = arith.addf %85, %84 : vector<48x128xf32>
    %87 = arith.mulf %69, %86 : vector<48x128xf32>
    %88 = arith.mulf %70, %86 : vector<48x128xf32>
    %89 = arith.mulf %71, %86 : vector<48x128xf32>
    %90 = arith.mulf %87, %72 : vector<48x128xf32>
    %91 = arith.mulf %88, %73 : vector<48x128xf32>
    %92 = arith.addf %90, %91 : vector<48x128xf32>
    %93 = arith.mulf %89, %74 : vector<48x128xf32>
    %94 = arith.addf %92, %93 : vector<48x128xf32>
    %95 = arith.mulf %72, %72 : vector<48x128xf32>
    %96 = arith.mulf %73, %73 : vector<48x128xf32>
    %97 = arith.addf %95, %96 : vector<48x128xf32>
    %98 = arith.mulf %74, %74 : vector<48x128xf32>
    %99 = arith.addf %97, %98 : vector<48x128xf32>
    %cst_24 = arith.constant 9.99999997E-7 : f32
    %100 = vector.broadcast %cst_24 : f32 to vector<48x128xf32>
    %101 = arith.addf %99, %100 : vector<48x128xf32>
    %102 = tpu.reciprocal %101 {approx = true} : vector<48x128xf32> -> vector<48x128xf32>
    %103 = arith.mulf %94, %102 : vector<48x128xf32>
    %cst_25 = arith.constant 0.000000e+00 : f32
    %104 = vector.broadcast %cst_25 : f32 to vector<48x128xf32>
    %105 = arith.minimumf %103, %104 : vector<48x128xf32>
    %106 = arith.mulf %105, %72 : vector<48x128xf32>
    %107 = arith.subf %87, %106 : vector<48x128xf32>
    %108 = arith.mulf %105, %73 : vector<48x128xf32>
    %109 = arith.subf %88, %108 : vector<48x128xf32>
    %110 = arith.mulf %105, %74 : vector<48x128xf32>
    %111 = arith.subf %89, %110 : vector<48x128xf32>
    %112 = arith.truncf %107 : vector<48x128xf32> to vector<48x128xbf16>
    %113 = arith.truncf %109 : vector<48x128xf32> to vector<48x128xbf16>
    %114 = arith.truncf %111 : vector<48x128xf32> to vector<48x128xbf16>
    %c0_26 = arith.constant 0 : index
    %c0_27 = arith.constant 0 : index
    %115 = vector.load %arg10[%c0_26, %c0_27] : memref<688x48xbf16, #tpu.memory_space<vmem>>, vector<688x48xbf16>
    %c0_28 = arith.constant 0 : index
    %c0_29 = arith.constant 0 : index
    %116 = vector.load %arg11[%c0_28, %c0_29] : memref<344x1xf32, #tpu.memory_space<vmem>>, vector<344x1xf32>
    %c0_30 = arith.constant 0 : index
    %c0_31 = arith.constant 0 : index
    %117 = vector.load %arg12[%c0_30, %c0_31] : memref<344x1xf32, #tpu.memory_space<vmem>>, vector<344x1xf32>
    %cst_32 = arith.constant dense<0.000000e+00> : vector<688x128xf32>
    %118 = tpu.matmul %115, %112, %cst_32 {dimension_numbers = #tpu.dot_dimension_numbers<[1], [0], [0], [1], [0, 0, 1, 1], [], []>} : vector<688x48xbf16>, vector<48x128xbf16>, vector<688x128xf32> -> vector<688x128xf32>
    %cst_33 = arith.constant dense<0.000000e+00> : vector<688x128xf32>
    %119 = tpu.matmul %115, %113, %cst_33 {dimension_numbers = #tpu.dot_dimension_numbers<[1], [0], [0], [1], [0, 0, 1, 1], [], []>} : vector<688x48xbf16>, vector<48x128xbf16>, vector<688x128xf32> -> vector<688x128xf32>
    %cst_34 = arith.constant dense<0.000000e+00> : vector<688x128xf32>
    %120 = tpu.matmul %115, %114, %cst_34 {dimension_numbers = #tpu.dot_dimension_numbers<[1], [0], [0], [1], [0, 0, 1, 1], [], []>} : vector<688x48xbf16>, vector<48x128xbf16>, vector<688x128xf32> -> vector<688x128xf32>
    %121 = vector.extract_strided_slice %118 {offsets = [0, 0], sizes = [344, 128], strides = [1, 1]} : vector<688x128xf32> to vector<344x128xf32>
    %122 = vector.extract_strided_slice %119 {offsets = [0, 0], sizes = [344, 128], strides = [1, 1]} : vector<688x128xf32> to vector<344x128xf32>
    %123 = vector.extract_strided_slice %120 {offsets = [0, 0], sizes = [344, 128], strides = [1, 1]} : vector<688x128xf32> to vector<344x128xf32>
    %124 = vector.extract_strided_slice %118 {offsets = [344, 0], sizes = [344, 128], strides = [1, 1]} : vector<688x128xf32> to vector<344x128xf32>
    %125 = vector.extract_strided_slice %119 {offsets = [344, 0], sizes = [344, 128], strides = [1, 1]} : vector<688x128xf32> to vector<344x128xf32>
    %126 = vector.extract_strided_slice %120 {offsets = [344, 0], sizes = [344, 128], strides = [1, 1]} : vector<688x128xf32> to vector<344x128xf32>
    %127 = arith.mulf %121, %121 : vector<344x128xf32>
    %128 = arith.mulf %122, %122 : vector<344x128xf32>
    %129 = arith.addf %127, %128 : vector<344x128xf32>
    %130 = arith.mulf %123, %123 : vector<344x128xf32>
    %131 = arith.addf %129, %130 : vector<344x128xf32>
    %cst_35 = arith.constant 9.99999996E-13 : f32
    %132 = vector.broadcast %cst_35 : f32 to vector<344x128xf32>
    %133 = arith.addf %131, %132 : vector<344x128xf32>
    %134 = math.rsqrt %133 : vector<344x128xf32>
    %135 = vector.broadcast %117 : vector<344x1xf32> to vector<344x128xf32>
    %136 = arith.mulf %135, %134 : vector<344x128xf32>
    %137 = vector.broadcast %116 : vector<344x1xf32> to vector<344x128xf32>
    %138 = arith.addf %137, %136 : vector<344x128xf32>
    %139 = arith.mulf %121, %138 : vector<344x128xf32>
    %140 = arith.mulf %122, %138 : vector<344x128xf32>
    %141 = arith.mulf %123, %138 : vector<344x128xf32>
    %142 = arith.mulf %139, %124 : vector<344x128xf32>
    %143 = arith.mulf %140, %125 : vector<344x128xf32>
    %144 = arith.addf %142, %143 : vector<344x128xf32>
    %145 = arith.mulf %141, %126 : vector<344x128xf32>
    %146 = arith.addf %144, %145 : vector<344x128xf32>
    %147 = arith.mulf %124, %124 : vector<344x128xf32>
    %148 = arith.mulf %125, %125 : vector<344x128xf32>
    %149 = arith.addf %147, %148 : vector<344x128xf32>
    %150 = arith.mulf %126, %126 : vector<344x128xf32>
    %151 = arith.addf %149, %150 : vector<344x128xf32>
    %cst_36 = arith.constant 9.99999997E-7 : f32
    %152 = vector.broadcast %cst_36 : f32 to vector<344x128xf32>
    %153 = arith.addf %151, %152 : vector<344x128xf32>
    %154 = tpu.reciprocal %153 {approx = true} : vector<344x128xf32> -> vector<344x128xf32>
    %155 = arith.mulf %146, %154 : vector<344x128xf32>
    %cst_37 = arith.constant 0.000000e+00 : f32
    %156 = vector.broadcast %cst_37 : f32 to vector<344x128xf32>
    %157 = arith.minimumf %155, %156 : vector<344x128xf32>
    %158 = arith.mulf %157, %124 : vector<344x128xf32>
    %159 = arith.subf %139, %158 : vector<344x128xf32>
    %160 = arith.mulf %157, %125 : vector<344x128xf32>
    %161 = arith.subf %140, %160 : vector<344x128xf32>
    %162 = arith.mulf %157, %126 : vector<344x128xf32>
    %163 = arith.subf %141, %162 : vector<344x128xf32>
    %cst_38 = arith.constant dense<0.000000e+00> : vector<344xf32>
    %164 = vector.multi_reduction <add>, %159, %cst_38 [1] : vector<344x128xf32> to vector<344xf32>
    %165 = vector.shape_cast %164 : vector<344xf32> to vector<344x1xf32>
    %cst_39 = arith.constant dense<0.000000e+00> : vector<344xf32>
    %166 = vector.multi_reduction <add>, %161, %cst_39 [1] : vector<344x128xf32> to vector<344xf32>
    %167 = vector.shape_cast %166 : vector<344xf32> to vector<344x1xf32>
    %cst_40 = arith.constant dense<0.000000e+00> : vector<344xf32>
    %168 = vector.multi_reduction <add>, %163, %cst_40 [1] : vector<344x128xf32> to vector<344xf32>
    %169 = vector.shape_cast %168 : vector<344xf32> to vector<344x1xf32>
    %170 = tpu.concatenate %165, %167, %169 in 1 : vector<344x1xf32>, vector<344x1xf32>, vector<344x1xf32> -> vector<344x3xf32>
    %c0_i32 = arith.constant 0 : i32
    %171 = arith.cmpi eq, %arg2, %c0_i32 : i32
    %172 = arith.extui %171 : i1 to i32
    %c0_i32_41 = arith.constant 0 : i32
    %173 = arith.cmpi ne, %172, %c0_i32_41 : i32
    scf.if %173 {
      %cst_50 = arith.constant 0.000000e+00 : f32
      %180 = vector.broadcast %cst_50 : f32 to vector<344x3xf32>
      %c0_51 = arith.constant 0 : index
      %c0_52 = arith.constant 0 : index
      %c0_53 = arith.constant 0 : index
      %c0_54 = arith.constant 0 : index
      %181 = vector.load %arg13[%c0_51, %c0_52, %c0_53, %c0_54] : memref<1x1x344x3xf32, #tpu.memory_space<vmem>>, vector<1x1x344x3xf32>
      %182 = vector.shape_cast %181 : vector<1x1x344x3xf32> to vector<344x3xf32>
      %183 = vector.shape_cast %180 : vector<344x3xf32> to vector<1x1x344x3xf32>
      tpu.vector_store %arg13[%c0_51, %c0_52, %c0_53, %c0_54], %183 {strides = array<i32>} : memref<1x1x344x3xf32, #tpu.memory_space<vmem>>, vector<1x1x344x3xf32>,
    } else {
    }
    %c0_42 = arith.constant 0 : index
    %c0_43 = arith.constant 0 : index
    %c0_44 = arith.constant 0 : index
    %c0_45 = arith.constant 0 : index
    %174 = vector.load %arg13[%c0_42, %c0_43, %c0_44, %c0_45] : memref<1x1x344x3xf32, #tpu.memory_space<vmem>>, vector<1x1x344x3xf32>
    %175 = vector.shape_cast %174 : vector<1x1x344x3xf32> to vector<344x3xf32>
    %176 = arith.addf %175, %170 : vector<344x3xf32>
    %c0_46 = arith.constant 0 : index
    %c0_47 = arith.constant 0 : index
    %c0_48 = arith.constant 0 : index
    %c0_49 = arith.constant 0 : index
    %177 = vector.load %arg13[%c0_46, %c0_47, %c0_48, %c0_49] : memref<1x1x344x3xf32, #tpu.memory_space<vmem>>, vector<1x1x344x3xf32>
    %178 = vector.shape_cast %177 : vector<1x1x344x3xf32> to vector<344x3xf32>
    %179 = vector.shape_cast %176 : vector<344x3xf32> to vector<1x1x344x3xf32>
    tpu.vector_store %arg13[%c0_46, %c0_47, %c0_48, %c0_49], %179 {strides = array<i32>} : memref<1x1x344x3xf32, #tpu.memory_space<vmem>>, vector<1x1x344x3xf32>,
    return
  }
  func.func @transform_0(%arg0: i32, %arg1: i32, %arg2: i32) -> (i32, i32, i32, i32) {
    %c1_i32 = arith.constant 1 : i32
    %0 = arith.muli %arg0, %c1_i32 : i32
    %1 = arith.addi %0, %arg2 : i32
    %c0_i32 = arith.constant 0 : i32
    %c0_i32_0 = arith.constant 0 : i32
    %c0_i32_1 = arith.constant 0 : i32
    return %arg1, %c0_i32, %c0_i32_0, %1 : i32, i32, i32, i32
  }
  func.func @transform_1(%arg0: i32, %arg1: i32, %arg2: i32) -> (i32, i32) {
    %c0_i32 = arith.constant 0 : i32
    %c0_i32_0 = arith.constant 0 : i32
    %c0_i32_1 = arith.constant 0 : i32
    return %c0_i32, %c0_i32_0 : i32, i32
  }
  func.func @transform_2(%arg0: i32, %arg1: i32, %arg2: i32) -> (i32, i32) {
    %c0_i32 = arith.constant 0 : i32
    %c0_i32_0 = arith.constant 0 : i32
    %c0_i32_1 = arith.constant 0 : i32
    return %c0_i32, %c0_i32_0 : i32, i32
  }
  func.func @transform_3(%arg0: i32, %arg1: i32, %arg2: i32) -> (i32, i32) {
    %c0_i32 = arith.constant 0 : i32
    %c0_i32_0 = arith.constant 0 : i32
    %c0_i32_1 = arith.constant 0 : i32
    return %c0_i32, %c0_i32_0 : i32, i32
  }
  func.func @transform_4(%arg0: i32, %arg1: i32, %arg2: i32) -> (i32, i32) {
    %c0_i32 = arith.constant 0 : i32
    %c0_i32_0 = arith.constant 0 : i32
    %c0_i32_1 = arith.constant 0 : i32
    return %c0_i32, %c0_i32_0 : i32, i32
  }
  func.func @transform_5(%arg0: i32, %arg1: i32, %arg2: i32) -> (i32, i32) {
    %c0_i32 = arith.constant 0 : i32
    %c0_i32_0 = arith.constant 0 : i32
    %c0_i32_1 = arith.constant 0 : i32
    return %c0_i32, %c0_i32_0 : i32, i32
  }
  func.func @transform_6(%arg0: i32, %arg1: i32, %arg2: i32) -> (i32, i32) {
    %c0_i32 = arith.constant 0 : i32
    %c0_i32_0 = arith.constant 0 : i32
    %c0_i32_1 = arith.constant 0 : i32
    return %c0_i32, %c0_i32_0 : i32, i32
  }
  func.func @transform_7(%arg0: i32, %arg1: i32, %arg2: i32) -> (i32, i32) {
    %c0_i32 = arith.constant 0 : i32
    %c0_i32_0 = arith.constant 0 : i32
    %c0_i32_1 = arith.constant 0 : i32
    return %c0_i32, %c0_i32_0 : i32, i32
  }
  func.func @transform_8(%arg0: i32, %arg1: i32, %arg2: i32) -> (i32, i32) {
    %c0_i32 = arith.constant 0 : i32
    %c0_i32_0 = arith.constant 0 : i32
    %c0_i32_1 = arith.constant 0 : i32
    return %c0_i32, %c0_i32_0 : i32, i32
  }
  func.func @transform_9(%arg0: i32, %arg1: i32, %arg2: i32) -> (i32, i32) {
    %c0_i32 = arith.constant 0 : i32
    %c0_i32_0 = arith.constant 0 : i32
    %c0_i32_1 = arith.constant 0 : i32
    return %c0_i32, %c0_i32_0 : i32, i32
  }
  func.func @transform_10(%arg0: i32, %arg1: i32, %arg2: i32) -> (i32, i32, i32, i32) {
    %c0_i32 = arith.constant 0 : i32
    %c0_i32_0 = arith.constant 0 : i32
    %c0_i32_1 = arith.constant 0 : i32
    return %arg0, %arg1, %c0_i32, %c0_i32_0 : i32, i32, i32, i32
  }
}

</mosaic_0001>

<llo_original>
// kernel: _lambda_.3
$region0: #{_lambda_.3}
  #allocation0 [shape = 'u32[]', space=smem, size = 0x4, offset = 0x4, fixed_abs, tag = 'smem constant byte address 0x4 - core index']
  #allocation1 [shape = 'u32[144,128]{1,0:T(1,128)}', space=vmem, size = 0x12000, scoped, tag = 'internal scratch']
  %s0 = inlined_call_operand.vmem [shape: f32[1,2,344,3], index: 0, kind: input, shape index: {}]
  %s1 = inlined_call_operand.vmem [shape: f32[352,344], index: 1, kind: input, shape index: {}]
  %s2 = inlined_call_operand.vmem [shape: f32[176,1], index: 2, kind: input, shape index: {}]
  %s3 = inlined_call_operand.vmem [shape: f32[176,1], index: 3, kind: input, shape index: {}]
  %s4 = inlined_call_operand.vmem [shape: f32[176,176], index: 4, kind: input, shape index: {}]
  %s5 = inlined_call_operand.vmem [shape: f32[88,1], index: 5, kind: input, shape index: {}]
  %s6 = inlined_call_operand.vmem [shape: f32[88,1], index: 6, kind: input, shape index: {}]
  %s7 = inlined_call_operand.vmem [shape: f32[64,88], index: 7, kind: input, shape index: {}]
  %s8 = inlined_call_operand.vmem [shape: f32[2,64,3], index: 8, kind: output, shape index: {}]
  %s9 = sld [smem:[#allocation0]]
  $region65: #{_lambda_.3} parent=0
    _
  %s11 = ssub.s32 1, %s9
  %s12 = scalar_select 0, %s11, %s9
  loop: start=0, step=1, limit=4
  $region2: #{_lambda_.3} parent=0 // loop_pre_header
    _
  $region3: #{_lambda_.3} parent=0 // loop_header
    %s14 = sphi 0, %s18
    %p15 = scmp.ge.s32.totalorder %s14, 4
    %s24 = sphi 0, %s26
    %s27 = sphi 0, %s24
    %s28 = sphi 0, %s27
    %s44 = sphi 0, %s28
    %s48 = sphi 0, %s48
    %s50 = sphi 0, %s48
    %s51 = sphi 0, %s50
    %s65 = sphi 0, %s51
    %s69 = sphi 0, %s69
    %s71 = sphi 0, %s69
    %s72 = sphi 0, %s71
    %s86 = sphi 0, %s72
    %s90 = sphi 0, %s90
    %s92 = sphi 0, %s90
    %s93 = sphi 0, %s92
    %s107 = sphi 0, %s93
    %s111 = sphi 0, %s111
    %s113 = sphi 0, %s111
    %s114 = sphi 0, %s113
    %s128 = sphi 0, %s114
    %s132 = sphi 0, %s132
    %s134 = sphi 0, %s132
    %s135 = sphi 0, %s134
    %s149 = sphi 0, %s135
    %s153 = sphi 0, %s153
    %s155 = sphi 0, %s153
    %s156 = sphi 0, %s155
    %s170 = sphi 0, %s156
    %s174 = sphi 0, %s174
    %s176 = sphi 0, %s174
    %s177 = sphi 0, %s176
    %s191 = sphi 0, %s177
    %s197 = sphi 0, %s199
    %s200 = sphi 0, %s197
    %s201 = sphi 0, %s200
    %s217 = sphi 0, %s201
  $region4: #{_lambda_.3} parent=0 // loop_header_branch
    %17 = sbr.rel (%p15) target = $region8
  $region5: #{_lambda_.3} parent=0 // loop_body
    %s19 = ssub.s32 %s14, 1
    %s20 = ssub.s32 %s14, 2
    %s21 = sadd.s32 %s14, 1
    %s22 = ssub.s32 %s14, %s21
    %p23 = scmp.eq.s32.totalorder %s22, 0
    %s25 = sadd.s32 %s24, 1
    %s26 = scalar_select %p23, %s24, %s25
    %p29 = pneg %p23
    %p30 = scmp.eq.s32.totalorder %s14, 1
    %p31 = por %p29, %p30
    %p32 = scmp.ne.s32.totalorder %s24, %s27
    %p33 = scmp.eq.s32.totalorder %s14, 0
    %p34 = por %p32, %p33
    %p35 = scmp.ne.s32.totalorder %s24, %s27
    %p36 = scmp.eq.s32.totalorder %s19, 1
    %p37 = por %p35, %p36
    %p38 = scmp.ne.s32.totalorder %s27, %s28
    %p39 = scmp.eq.s32.totalorder %s19, 0
    %p40 = por %p38, %p39
    %p41 = scmp.ne.s32.totalorder %s27, %s28
    %p42 = scmp.eq.s32.totalorder %s20, 1
    %p43 = por %p41, %p42
    %p45 = scmp.ne.s32.totalorder %s28, %s44
    %p46 = scmp.eq.s32.totalorder %s20, 0
    %p47 = por %p45, %p46
    %s49 = sadd.s32 %s48, 1
    %p52 = scmp.eq.s32.totalorder %s14, 1
    %p53 = scmp.ne.s32.totalorder %s48, %s50
    %p54 = scmp.eq.s32.totalorder %s14, 0
    %p55 = por %p53, %p54
    %p56 = scmp.ne.s32.totalorder %s48, %s50
    %p57 = scmp.eq.s32.totalorder %s19, 1
    %p58 = por %p56, %p57
    %p59 = scmp.ne.s32.totalorder %s50, %s51
    %p60 = scmp.eq.s32.totalorder %s19, 0
    %p61 = por %p59, %p60
    %p62 = scmp.ne.s32.totalorder %s50, %s51
    %p63 = scmp.eq.s32.totalorder %s20, 1
    %p64 = por %p62, %p63
    %p66 = scmp.ne.s32.totalorder %s51, %s65
    %p67 = scmp.eq.s32.totalorder %s20, 0
    %p68 = por %p66, %p67
    %s70 = sadd.s32 %s69, 1
    %p73 = scmp.eq.s32.totalorder %s14, 1
    %p74 = scmp.ne.s32.totalorder %s69, %s71
    %p75 = scmp.eq.s32.totalorder %s14, 0
    %p76 = por %p74, %p75
    %p77 = scmp.ne.s32.totalorder %s69, %s71
    %p78 = scmp.eq.s32.totalorder %s19, 1
    %p79 = por %p77, %p78
    %p80 = scmp.ne.s32.totalorder %s71, %s72
    %p81 = scmp.eq.s32.totalorder %s19, 0
    %p82 = por %p80, %p81
    %p83 = scmp.ne.s32.totalorder %s71, %s72
    %p84 = scmp.eq.s32.totalorder %s20, 1
    %p85 = por %p83, %p84
    %p87 = scmp.ne.s32.totalorder %s72, %s86
    %p88 = scmp.eq.s32.totalorder %s20, 0
    %p89 = por %p87, %p88
    %s91 = sadd.s32 %s90, 1
    %p94 = scmp.eq.s32.totalorder %s14, 1
    %p95 = scmp.ne.s32.totalorder %s90, %s92
    %p96 = scmp.eq.s32.totalorder %s14, 0
    %p97 = por %p95, %p96
    %p98 = scmp.ne.s32.totalorder %s90, %s92
    %p99 = scmp.eq.s32.totalorder %s19, 1
    %p100 = por %p98, %p99
    %p101 = scmp.ne.s32.totalorder %s92, %s93
    %p102 = scmp.eq.s32.totalorder %s19, 0
    %p103 = por %p101, %p102
    %p104 = scmp.ne.s32.totalorder %s92, %s93
    %p105 = scmp.eq.s32.totalorder %s20, 1
    %p106 = por %p104, %p105
    %p108 = scmp.ne.s32.totalorder %s93, %s107
    %p109 = scmp.eq.s32.totalorder %s20, 0
    %p110 = por %p108, %p109
    %s112 = sadd.s32 %s111, 1
    %p115 = scmp.eq.s32.totalorder %s14, 1
    %p116 = scmp.ne.s32.totalorder %s111, %s113
    %p117 = scmp.eq.s32.totalorder %s14, 0
    %p118 = por %p116, %p117
    %p119 = scmp.ne.s32.totalorder %s111, %s113
    %p120 = scmp.eq.s32.totalorder %s19, 1
    %p121 = por %p119, %p120
    %p122 = scmp.ne.s32.totalorder %s113, %s114
    %p123 = scmp.eq.s32.totalorder %s19, 0
    %p124 = por %p122, %p123
    %p125 = scmp.ne.s32.totalorder %s113, %s114
    %p126 = scmp.eq.s32.totalorder %s20, 1
    %p127 = por %p125, %p126
    %p129 = scmp.ne.s32.totalorder %s114, %s128
    %p130 = scmp.eq.s32.totalorder %s20, 0
    %p131 = por %p129, %p130
    %s133 = sadd.s32 %s132, 1
    %p136 = scmp.eq.s32.totalorder %s14, 1
    %p137 = scmp.ne.s32.totalorder %s132, %s134
    %p138 = scmp.eq.s32.totalorder %s14, 0
    %p139 = por %p137, %p138
    %p140 = scmp.ne.s32.totalorder %s132, %s134
    %p141 = scmp.eq.s32.totalorder %s19, 1
    %p142 = por %p140, %p141
    %p143 = scmp.ne.s32.totalorder %s134, %s135
    %p144 = scmp.eq.s32.totalorder %s19, 0
    %p145 = por %p143, %p144
    %p146 = scmp.ne.s32.totalorder %s134, %s135
    %p147 = scmp.eq.s32.totalorder %s20, 1
    %p148 = por %p146, %p147
    %p150 = scmp.ne.s32.totalorder %s135, %s149
    %p151 = scmp.eq.s32.totalorder %s20, 0
    %p152 = por %p150, %p151
    %s154 = sadd.s32 %s153, 1
    %p157 = scmp.eq.s32.totalorder %s14, 1
    %p158 = scmp.ne.s32.totalorder %s153, %s155
    %p159 = scmp.eq.s32.totalorder %s14, 0
    %p160 = por %p158, %p159
    %p161 = scmp.ne.s32.totalorder %s153, %s155
    %p162 = scmp.eq.s32.totalorder %s19, 1
    %p163 = por %p161, %p162
    %p164 = scmp.ne.s32.totalorder %s155, %s156
    %p165 = scmp.eq.s32.totalorder %s19, 0
    %p166 = por %p164, %p165
    %p167 = scmp.ne.s32.totalorder %s155, %s156
    %p168 = scmp.eq.s32.totalorder %s20, 1
    %p169 = por %p167, %p168
    %p171 = scmp.ne.s32.totalorder %s156, %s170
    %p172 = scmp.eq.s32.totalorder %s20, 0
    %p173 = por %p171, %p172
    %s175 = sadd.s32 %s174, 1
    %p178 = scmp.eq.s32.totalorder %s14, 1
    %p179 = scmp.ne.s32.totalorder %s174, %s176
    %p180 = scmp.eq.s32.totalorder %s14, 0
    %p181 = por %p179, %p180
    %p182 = scmp.ne.s32.totalorder %s174, %s176
    %p183 = scmp.eq.s32.totalorder %s19, 1
    %p184 = por %p182, %p183
    %p185 = scmp.ne.s32.totalorder %s176, %s177
    %p186 = scmp.eq.s32.totalorder %s19, 0
    %p187 = por %p185, %p186
    %p188 = scmp.ne.s32.totalorder %s176, %s177
    %p189 = scmp.eq.s32.totalorder %s20, 1
    %p190 = por %p188, %p189
    %p192 = scmp.ne.s32.totalorder %s177, %s191
    %p193 = scmp.eq.s32.totalorder %s20, 0
    %p194 = por %p192, %p193
    %s195 = ssub.s32 %s14, %s21
    %p196 = scmp.eq.s32.totalorder %s195, 0
    %s198 = sadd.s32 %s197, 1
    %s199 = scalar_select %p196, %s197, %s198
    %p202 = pneg %p196
    %p203 = scmp.eq.s32.totalorder %s14, 1
    %p204 = por %p202, %p203
    %p205 = scmp.ne.s32.totalorder %s197, %s200
    %p206 = scmp.eq.s32.totalorder %s14, 0
    %p207 = por %p205, %p206
    %p208 = scmp.ne.s32.totalorder %s197, %s200
    %p209 = scmp.eq.s32.totalorder %s19, 1
    %p210 = por %p208, %p209
    %p211 = scmp.ne.s32.totalorder %s200, %s201
    %p212 = scmp.eq.s32.totalorder %s19, 0
    %p213 = por %p211, %p212
    %p214 = scmp.ne.s32.totalorder %s200, %s201
    %p215 = scmp.eq.s32.totalorder %s20, 1
    %p216 = por %p214, %p215
    %p218 = scmp.ne.s32.totalorder %s201, %s217
    %p219 = scmp.eq.s32.totalorder %s20, 0
    %p220 = por %p218, %p219
    %p221 = scmp.le.s32.totalorder 1, %s14
    %p222 = scmp.lt.s32.totalorder %s14, 3
    %p223 = pnand %p221, %p222
    %p224 = pneg %p223
    // Predicated region
    $region9: #{_lambda_.3} parent=5 // pred_check
      _
    $region10: #{_lambda_.3} parent=5 // pred_check_branch
      %226 = sbr.rel (%p223) target = $region12
    $region11: #{_lambda_.3} parent=5 // pred_region
      %s227 = ssub.s32 %s14, 1
      // Predicated region
      $region13: #{_lambda_.3} parent=11 // pred_check
        %p228 = pneg %p61
      $region14: #{_lambda_.3} parent=11 // pred_check_branch
        %230 = sbr.rel (%p228) target = $region16
      $region15: #{_lambda_.3} parent=11 // pred_region
        _
      $region16: #{_lambda_.3} parent=11 // pred_fallthru
        _
      // Predicated region
      $region17: #{_lambda_.3} parent=11 // pred_check
        %p231 = pneg %p82
      $region18: #{_lambda_.3} parent=11 // pred_check_branch
        %233 = sbr.rel (%p231) target = $region20
      $region19: #{_lambda_.3} parent=11 // pred_region
        _
      $region20: #{_lambda_.3} parent=11 // pred_fallthru
        _
      // Predicated region
      $region21: #{_lambda_.3} parent=11 // pred_check
        %p234 = pneg %p103
      $region22: #{_lambda_.3} parent=11 // pred_check_branch
        %236 = sbr.rel (%p234) target = $region24
      $region23: #{_lambda_.3} parent=11 // pred_region
        _
      $region24: #{_lambda_.3} parent=11 // pred_fallthru
        _
      // Predicated region
      $region25: #{_lambda_.3} parent=11 // pred_check
        %p237 = pneg %p124
      $region26: #{_lambda_.3} parent=11 // pred_check_branch
        %239 = sbr.rel (%p237) target = $region28
      $region27: #{_lambda_.3} parent=11 // pred_region
        _
      $region28: #{_lambda_.3} parent=11 // pred_fallthru
        _
      // Predicated region
      $region29: #{_lambda_.3} parent=11 // pred_check
        %p240 = pneg %p145
      $region30: #{_lambda_.3} parent=11 // pred_check_branch
        %242 = sbr.rel (%p240) target = $region32
      $region31: #{_lambda_.3} parent=11 // pred_region
        _
      $region32: #{_lambda_.3} parent=11 // pred_fallthru
        _
      // Predicated region
      $region33: #{_lambda_.3} parent=11 // pred_check
        %p243 = pneg %p166
      $region34: #{_lambda_.3} parent=11 // pred_check_branch
        %245 = sbr.rel (%p243) target = $region36
      $region35: #{_lambda_.3} parent=11 // pred_region
        _
      $region36: #{_lambda_.3} parent=11 // pred_fallthru
        _
      // Predicated region
      $region37: #{_lambda_.3} parent=11 // pred_check
        %p246 = pneg %p187
      $region38: #{_lambda_.3} parent=11 // pred_check_branch
        %248 = sbr.rel (%p246) target = $region40
      $region39: #{_lambda_.3} parent=11 // pred_region
        _
      $region40: #{_lambda_.3} parent=11 // pred_fallthru
        _
    $region12: #{_lambda_.3} parent=5 // pred_fallthru
      _
    %p249 = scmp.lt.s32.totalorder %s14, 2
    // Predicated region
    $region41: #{_lambda_.3} parent=5 // pred_check
      %p250 = pneg %p249
    $region42: #{_lambda_.3} parent=5 // pred_check_branch
      %252 = sbr.rel (%p250) target = $region44
    $region43: #{_lambda_.3} parent=5 // pred_region
      // Predicated region
      $region45: #{_lambda_.3} parent=43 // pred_check
        %p253 = pneg %p34
      $region46: #{_lambda_.3} parent=43 // pred_check_branch
        %255 = sbr.rel (%p253) target = $region48
      $region47: #{_lambda_.3} parent=43 // pred_region
        %p256 = scmp.lt.s32.totalorder %s14, 1
        %s257 = scalar_select %p256, %s14, 1
        %s258 = smul.addr %s257, 43
        %s259 = smul.addr %s258, 8
        %s260 = scalar_lea.vmem %s0, %s259
      $region48: #{_lambda_.3} parent=43 // pred_fallthru
        _
    $region44: #{_lambda_.3} parent=5 // pred_fallthru
      _
    %p261 = scmp.le.s32.totalorder 1, %s14
    %p262 = scmp.lt.s32.totalorder %s14, 3
    %p263 = pnand %p261, %p262
    %p264 = pneg %p263
    // Predicated region
    $region49: #{_lambda_.3} parent=5 // pred_check
      _
    $region50: #{_lambda_.3} parent=5 // pred_check_branch
      %266 = sbr.rel (%p263) target = $region52
    $region51: #{_lambda_.3} parent=5 // pred_region
      %s267 = ssub.s32 %s14, 1
      %p268 = scmp.lt.s32.totalorder %s19, 1
      %s269 = scalar_select %p268, %s19, 1
      %s270 = smul.addr %s269, 43
      %s271 = smul.addr %s270, 8
      %s272 = scalar_lea.vmem %s0, %s271
      %p273 = pneg %p40
      %p274 = pneg %p37
      %p275 = pneg %p61
      %p276 = pneg %p58
      %p277 = pneg %p82
      %p278 = pneg %p79
      %p279 = pneg %p103
      %p280 = pneg %p100
      %p281 = pneg %p124
      %p282 = pneg %p121
      %p283 = pneg %p145
      %p284 = pneg %p142
      %p285 = pneg %p166
      %p286 = pneg %p163
      %p287 = pneg %p187
      %p288 = pneg %p184
      %p289 = pneg %p213
      %p290 = pneg %p210
      %p291 = scmp.lt.s32.totalorder %s19, 1
      %s292 = scalar_select %p291, %s19, 1
      %s293 = smul.addr %s292, 8
      %s294 = smul.addr %s293, 8
      %s295 = scalar_lea.vmem %s8, %s294
      %p296 = scmp.lt.s32.totalorder %s19, 1
      %s297 = scalar_select %p296, %s19, 1
      %s298 = smul.addr %s297, 43
      %s299 = smul.addr %s298, 8
      %s300 = scalar_lea.vmem %s0, %s299
      %p301 = scmp.lt.s32.totalorder %s19, 1
      %s302 = scalar_select %p301, %s19, 1
      %s303 = smul.addr %s302, 8
      %s304 = smul.addr %s303, 8
      %s305 = scalar_lea.vmem %s8, %s304
      %v306 = vld [vmem:[%s300] sm:$0xff]
      %v307 = vld [vmem:[%s300 + $0x8] sm:$0xff]
      %v308 = vld [vmem:[%s300 + $0x10] sm:$0xff]
      %v309 = vld [vmem:[%s300 + $0x18] sm:$0xff]
      %v310 = vld [vmem:[%s300 + $0x20] sm:$0xff]
      %v311 = vld [vmem:[%s300 + $0x28] sm:$0xff]
      %v312 = vld [vmem:[%s300 + $0x30] sm:$0xff]
      %v313 = vld [vmem:[%s300 + $0x38] sm:$0xff]
      %v314 = vld [vmem:[%s300 + $0x40] sm:$0xff]
      %v315 = vld [vmem:[%s300 + $0x48] sm:$0xff]
      %v316 = vld [vmem:[%s300 + $0x50] sm:$0xff]
      %v317 = vld [vmem:[%s300 + $0x58] sm:$0xff]
      %v318 = vld [vmem:[%s300 + $0x60] sm:$0xff]
      %v319 = vld [vmem:[%s300 + $0x68] sm:$0xff]
      %v320 = vld [vmem:[%s300 + $0x70] sm:$0xff]
      %v321 = vld [vmem:[%s300 + $0x78] sm:$0xff]
      %v322 = vld [vmem:[%s300 + $0x80] sm:$0xff]
      %v323 = vld [vmem:[%s300 + $0x88] sm:$0xff]
      %v324 = vld [vmem:[%s300 + $0x90] sm:$0xff]
      %v325 = vld [vmem:[%s300 + $0x98] sm:$0xff]
      %v326 = vld [vmem:[%s300 + $0xa0] sm:$0xff]
      %v327 = vld [vmem:[%s300 + $0xa8] sm:$0xff]
      %v328 = vld [vmem:[%s300 + $0xb0] sm:$0xff]
      %v329 = vld [vmem:[%s300 + $0xb8] sm:$0xff]
      %v330 = vld [vmem:[%s300 + $0xc0] sm:$0xff]
      %v331 = vld [vmem:[%s300 + $0xc8] sm:$0xff]
      %v332 = vld [vmem:[%s300 + $0xd0] sm:$0xff]
      %v333 = vld [vmem:[%s300 + $0xd8] sm:$0xff]
      %v334 = vld [vmem:[%s300 + $0xe0] sm:$0xff]
      %v335 = vld [vmem:[%s300 + $0xe8] sm:$0xff]
      %v336 = vld [vmem:[%s300 + $0xf0] sm:$0xff]
      %v337 = vld [vmem:[%s300 + $0xf8] sm:$0xff]
      %v338 = vld [vmem:[%s300 + $0x100] sm:$0xff]
      %v339 = vld [vmem:[%s300 + $0x108] sm:$0xff]
      %v340 = vld [vmem:[%s300 + $0x110] sm:$0xff]
      %v341 = vld [vmem:[%s300 + $0x118] sm:$0xff]
      %v342 = vld [vmem:[%s300 + $0x120] sm:$0xff]
      %v343 = vld [vmem:[%s300 + $0x128] sm:$0xff]
      %v344 = vld [vmem:[%s300 + $0x130] sm:$0xff]
      %v345 = vld [vmem:[%s300 + $0x138] sm:$0xff]
      %v346 = vld [vmem:[%s300 + $0x140] sm:$0xff]
      %v347 = vld [vmem:[%s300 + $0x148] sm:$0xff]
      %v348 = vld [vmem:[%s300 + $0x150] sm:$0xff]
      %v349 = vadd.f32 %v306, 0.0
      %v350 = vadd.f32 %v307, 0.0
      %v351 = vadd.f32 %v308, 0.0
      %v352 = vadd.f32 %v309, 0.0
      %v353 = vadd.f32 %v310, 0.0
      %v354 = vadd.f32 %v311, 0.0
      %v355 = vadd.f32 %v312, 0.0
      %v356 = vadd.f32 %v313, 0.0
      %v357 = vadd.f32 %v314, 0.0
      %v358 = vadd.f32 %v315, 0.0
      %v359 = vadd.f32 %v316, 0.0
      %v360 = vadd.f32 %v317, 0.0
      %v361 = vadd.f32 %v318, 0.0
      %v362 = vadd.f32 %v319, 0.0
      %v363 = vadd.f32 %v320, 0.0
      %v364 = vadd.f32 %v321, 0.0
      %v365 = vadd.f32 %v322, 0.0
      %v366 = vadd.f32 %v323, 0.0
      %v367 = vadd.f32 %v324, 0.0
      %v368 = vadd.f32 %v325, 0.0
      %v369 = vadd.f32 %v326, 0.0
      %v370 = vadd.f32 %v327, 0.0
      %v371 = vadd.f32 %v328, 0.0
      %v372 = vadd.f32 %v329, 0.0
      %v373 = vadd.f32 %v330, 0.0
      %v374 = vadd.f32 %v331, 0.0
      %v375 = vadd.f32 %v332, 0.0
      %v376 = vadd.f32 %v333, 0.0
      %v377 = vadd.f32 %v334, 0.0
      %v378 = vadd.f32 %v335, 0.0
      %v379 = vadd.f32 %v336, 0.0
      %v380 = vadd.f32 %v337, 0.0
      %v381 = vadd.f32 %v338, 0.0
      %v382 = vadd.f32 %v339, 0.0
      %v383 = vadd.f32 %v340, 0.0
      %v384 = vadd.f32 %v341, 0.0
      %v385 = vadd.f32 %v342, 0.0
      %v386 = vadd.f32 %v343, 0.0
      %v387 = vadd.f32 %v344, 0.0
      %v388 = vadd.f32 %v345, 0.0
      %v389 = vadd.f32 %v346, 0.0
      %v390 = vadd.f32 %v347, 0.0
      %v391 = vadd.f32 %v348, 0.0
      %v392 = vmul.f32 %v349, 0.0625
      %v393 = vmul.f32 %v350, 0.0625
      %v394 = vmul.f32 %v351, 0.0625
      %v395 = vmul.f32 %v352, 0.0625
      %v396 = vmul.f32 %v353, 0.0625
      %v397 = vmul.f32 %v354, 0.0625
      %v398 = vmul.f32 %v355, 0.0625
      %v399 = vmul.f32 %v356, 0.0625
      %v400 = vmul.f32 %v357, 0.0625
      %v401 = vmul.f32 %v358, 0.0625
      %v402 = vmul.f32 %v359, 0.0625
      %v403 = vmul.f32 %v360, 0.0625
      %v404 = vmul.f32 %v361, 0.0625
      %v405 = vmul.f32 %v362, 0.0625
      %v406 = vmul.f32 %v363, 0.0625
      %v407 = vmul.f32 %v364, 0.0625
      %v408 = vmul.f32 %v365, 0.0625
      %v409 = vmul.f32 %v366, 0.0625
      %v410 = vmul.f32 %v367, 0.0625
      %v411 = vmul.f32 %v368, 0.0625
      %v412 = vmul.f32 %v369, 0.0625
      %v413 = vmul.f32 %v370, 0.0625
      %v414 = vmul.f32 %v371, 0.0625
      %v415 = vmul.f32 %v372, 0.0625
      %v416 = vmul.f32 %v373, 0.0625
      %v417 = vmul.f32 %v374, 0.0625
      %v418 = vmul.f32 %v375, 0.0625
      %v419 = vmul.f32 %v376, 0.0625
      %v420 = vmul.f32 %v377, 0.0625
      %v421 = vmul.f32 %v378, 0.0625
      %v422 = vmul.f32 %v379, 0.0625
      %v423 = vmul.f32 %v380, 0.0625
      %v424 = vmul.f32 %v381, 0.0625
      %v425 = vmul.f32 %v382, 0.0625
      %v426 = vmul.f32 %v383, 0.0625
      %v427 = vmul.f32 %v384, 0.0625
      %v428 = vmul.f32 %v385, 0.0625
      %v429 = vmul.f32 %v386, 0.0625
      %v430 = vmul.f32 %v387, 0.0625
      %v431 = vmul.f32 %v388, 0.0625
      %v432 = vmul.f32 %v389, 0.0625
      %v433 = vmul.f32 %v390, 0.0625
      %v434 = vmul.f32 %v391, 0.0625
      %v435 = vld [vmem:[%s1] sm:$0xff]
      %v436 = vld [vmem:[%s1 + $0x8] sm:$0xff]
      %v437 = vld [vmem:[%s1 + $0x10] sm:$0xff]
      %v438 = vld [vmem:[%s1 + $0x18] sm:$0xff]
      %v439 = vld [vmem:[%s1 + $0x20] sm:$0xff]
      %v440 = vld [vmem:[%s1 + $0x28] sm:$0xff]
      %v441 = vld [vmem:[%s1 + $0x30] sm:$0xff]
      %v442 = vld [vmem:[%s1 + $0x38] sm:$0xff]
      %v443 = vld [vmem:[%s1 + $0x40] sm:$0xff]
      %v444 = vld [vmem:[%s1 + $0x48] sm:$0xff]
      %v445 = vld [vmem:[%s1 + $0x50] sm:$0xff]
      %v446 = vld [vmem:[%s1 + $0x58] sm:$0xff]
      %v447 = vld [vmem:[%s1 + $0x60] sm:$0xff]
      %v448 = vld [vmem:[%s1 + $0x68] sm:$0xff]
      %v449 = vld [vmem:[%s1 + $0x70] sm:$0xff]
      %v450 = vld [vmem:[%s1 + $0x78] sm:$0xff]
      %v451 = vld [vmem:[%s1 + $0x80] sm:$0xff]
      %v452 = vld [vmem:[%s1 + $0x88] sm:$0xff]
      %v453 = vld [vmem:[%s1 + $0x90] sm:$0xff]
      %v454 = vld [vmem:[%s1 + $0x98] sm:$0xff]
      %v455 = vld [vmem:[%s1 + $0xa0] sm:$0xff]
      %v456 = vld [vmem:[%s1 + $0xa8] sm:$0xff]
      %v457 = vld [vmem:[%s1 + $0xb0] sm:$0xff]
      %v458 = vld [vmem:[%s1 + $0xb8] sm:$0xff]
      %v459 = vld [vmem:[%s1 + $0xc0] sm:$0xff]
      %v460 = vld [vmem:[%s1 + $0xc8] sm:$0xff]
      %v461 = vld [vmem:[%s1 + $0xd0] sm:$0xff]
      %v462 = vld [vmem:[%s1 + $0xd8] sm:$0xff]
      %v463 = vld [vmem:[%s1 + $0xe0] sm:$0xff]
      %v464 = vld [vmem:[%s1 + $0xe8] sm:$0xff]
      %v465 = vld [vmem:[%s1 + $0xf0] sm:$0xff]
      %v466 = vld [vmem:[%s1 + $0xf8] sm:$0xff]
      %v467 = vld [vmem:[%s1 + $0x100] sm:$0xff]
      %v468 = vld [vmem:[%s1 + $0x108] sm:$0xff]
      %v469 = vld [vmem:[%s1 + $0x110] sm:$0xff]
      %v470 = vld [vmem:[%s1 + $0x118] sm:$0xff]
      %v471 = vld [vmem:[%s1 + $0x120] sm:$0xff]
      %v472 = vld [vmem:[%s1 + $0x128] sm:$0xff]
      %v473 = vld [vmem:[%s1 + $0x130] sm:$0xff]
      %v474 = vld [vmem:[%s1 + $0x138] sm:$0xff]
      %v475 = vld [vmem:[%s1 + $0x140] sm:$0xff]
      %v476 = vld [vmem:[%s1 + $0x148] sm:$0xff]
      %v477 = vld [vmem:[%s1 + $0x150] sm:$0xff]
      %v478 = vld [vmem:[%s1 + $0x158] sm:$0xff]
      %v479 = vld [vmem:[%s1 + $0x160] sm:$0xff]
      %v480 = vld [vmem:[%s1 + $0x168] sm:$0xff]
      %v481 = vld [vmem:[%s1 + $0x170] sm:$0xff]
      %v482 = vld [vmem:[%s1 + $0x178] sm:$0xff]
      %v483 = vld [vmem:[%s1 + $0x180] sm:$0xff]
      %v484 = vld [vmem:[%s1 + $0x188] sm:$0xff]
      %v485 = vld [vmem:[%s1 + $0x190] sm:$0xff]
      %v486 = vld [vmem:[%s1 + $0x198] sm:$0xff]
      %v487 = vld [vmem:[%s1 + $0x1a0] sm:$0xff]
      %v488 = vld [vmem:[%s1 + $0x1a8] sm:$0xff]
      %v489 = vld [vmem:[%s1 + $0x1b0] sm:$0xff]
      %v490 = vld [vmem:[%s1 + $0x1b8] sm:$0xff]
      %v491 = vld [vmem:[%s1 + $0x1c0] sm:$0xff]
      %v492 = vld [vmem:[%s1 + $0x1c8] sm:$0xff]
      %v493 = vld [vmem:[%s1 + $0x1d0] sm:$0xff]
      %v494 = vld [vmem:[%s1 + $0x1d8] sm:$0xff]
      %v495 = vld [vmem:[%s1 + $0x1e0] sm:$0xff]
      %v496 = vld [vmem:[%s1 + $0x1e8] sm:$0xff]
      %v497 = vld [vmem:[%s1 + $0x1f0] sm:$0xff]
      %v498 = vld [vmem:[%s1 + $0x1f8] sm:$0xff]
      %v499 = vld [vmem:[%s1 + $0x200] sm:$0xff]
      %v500 = vld [vmem:[%s1 + $0x208] sm:$0xff]
      %v501 = vld [vmem:[%s1 + $0x210] sm:$0xff]
      %v502 = vld [vmem:[%s1 + $0x218] sm:$0xff]
      %v503 = vld [vmem:[%s1 + $0x220] sm:$0xff]
      %v504 = vld [vmem:[%s1 + $0x228] sm:$0xff]
      %v505 = vld [vmem:[%s1 + $0x230] sm:$0xff]
      %v506 = vld [vmem:[%s1 + $0x238] sm:$0xff]
      %v507 = vld [vmem:[%s1 + $0x240] sm:$0xff]
      %v508 = vld [vmem:[%s1 + $0x248] sm:$0xff]
      %v509 = vld [vmem:[%s1 + $0x250] sm:$0xff]
      %v510 = vld [vmem:[%s1 + $0x258] sm:$0xff]
      %v511 = vld [vmem:[%s1 + $0x260] sm:$0xff]
      %v512 = vld [vmem:[%s1 + $0x268] sm:$0xff]
      %v513 = vld [vmem:[%s1 + $0x270] sm:$0xff]
      %v514 = vld [vmem:[%s1 + $0x278] sm:$0xff]
      %v515 = vld [vmem:[%s1 + $0x280] sm:$0xff]
      %v516 = vld [vmem:[%s1 + $0x288] sm:$0xff]
      %v517 = vld [vmem:[%s1 + $0x290] sm:$0xff]
      %v518 = vld [vmem:[%s1 + $0x298] sm:$0xff]
      %v519 = vld [vmem:[%s1 + $0x2a0] sm:$0xff]
      %v520 = vld [vmem:[%s1 + $0x2a8] sm:$0xff]
      %v521 = vld [vmem:[%s1 + $0x2b0] sm:$0xff]
      %v522 = vld [vmem:[%s1 + $0x2b8] sm:$0xff]
      %v523 = vld [vmem:[%s1 + $0x2c0] sm:$0xff]
      %v524 = vld [vmem:[%s1 + $0x2c8] sm:$0xff]
      %v525 = vld [vmem:[%s1 + $0x2d0] sm:$0xff]
      %v526 = vld [vmem:[%s1 + $0x2d8] sm:$0xff]
      %v527 = vld [vmem:[%s1 + $0x2e0] sm:$0xff]
      %v528 = vld [vmem:[%s1 + $0x2e8] sm:$0xff]
      %v529 = vld [vmem:[%s1 + $0x2f0] sm:$0xff]
      %v530 = vld [vmem:[%s1 + $0x2f8] sm:$0xff]
      %v531 = vld [vmem:[%s1 + $0x300] sm:$0xff]
      %v532 = vld [vmem:[%s1 + $0x308] sm:$0xff]
      %v533 = vld [vmem:[%s1 + $0x310] sm:$0xff]
      %v534 = vld [vmem:[%s1 + $0x318] sm:$0xff]
      %v535 = vld [vmem:[%s1 + $0x320] sm:$0xff]
      %v536 = vld [vmem:[%s1 + $0x328] sm:$0xff]
      %v537 = vld [vmem:[%s1 + $0x330] sm:$0xff]
      %v538 = vld [vmem:[%s1 + $0x338] sm:$0xff]
      %v539 = vld [vmem:[%s1 + $0x340] sm:$0xff]
      %v540 = vld [vmem:[%s1 + $0x348] sm:$0xff]
      %v541 = vld [vmem:[%s1 + $0x350] sm:$0xff]
      %v542 = vld [vmem:[%s1 + $0x358] sm:$0xff]
      %v543 = vld [vmem:[%s1 + $0x360] sm:$0xff]
      %v544 = vld [vmem:[%s1 + $0x368] sm:$0xff]
      %v545 = vld [vmem:[%s1 + $0x370] sm:$0xff]
      %v546 = vld [vmem:[%s1 + $0x378] sm:$0xff]
      %v547 = vld [vmem:[%s1 + $0x380] sm:$0xff]
      %v548 = vld [vmem:[%s1 + $0x388] sm:$0xff]
      %v549 = vld [vmem:[%s1 + $0x390] sm:$0xff]
      %v550 = vld [vmem:[%s1 + $0x398] sm:$0xff]
      %v551 = vld [vmem:[%s1 + $0x3a0] sm:$0xff]
      %v552 = vld [vmem:[%s1 + $0x3a8] sm:$0xff]
      %v553 = vld [vmem:[%s1 + $0x3b0] sm:$0xff]
      %v554 = vld [vmem:[%s1 + $0x3b8] sm:$0xff]
      %v555 = vld [vmem:[%s1 + $0x3c0] sm:$0xff]
      %v556 = vld [vmem:[%s1 + $0x3c8] sm:$0xff]
      %v557 = vld [vmem:[%s1 + $0x3d0] sm:$0xff]
      %v558 = vld [vmem:[%s1 + $0x3d8] sm:$0xff]
      %v559 = vld [vmem:[%s1 + $0x3e0] sm:$0xff]
      %v560 = vld [vmem:[%s1 + $0x3e8] sm:$0xff]
      %v561 = vld [vmem:[%s1 + $0x3f0] sm:$0xff]
      %v562 = vld [vmem:[%s1 + $0x3f8] sm:$0xff]
      %v563 = vld [vmem:[%s1 + $0x400] sm:$0xff]
      %v564 = vld [vmem:[%s1 + $0x408] sm:$0xff]
      %v565 = vld [vmem:[%s1 + $0x410] sm:$0xff]
      %v566 = vld [vmem:[%s1 + $0x418] sm:$0xff]
      %v567 = vld [vmem:[%s2] sm:$0xff]
      %v568 = vld [vmem:[%s2 + $0x8] sm:$0xff]
      %v569 = vld [vmem:[%s2 + $0x10] sm:$0xff]
      %v570 = vld [vmem:[%s2 + $0x18] sm:$0xff]
      %v571 = vld [vmem:[%s2 + $0x20] sm:$0xff]
      %v572 = vld [vmem:[%s2 + $0x28] sm:$0xff]
      %v573 = vld [vmem:[%s2 + $0x30] sm:$0xff]
      %v574 = vld [vmem:[%s2 + $0x38] sm:$0xff]
      %v575 = vld [vmem:[%s2 + $0x40] sm:$0xff]
      %v576 = vld [vmem:[%s2 + $0x48] sm:$0xff]
      %v577 = vld [vmem:[%s2 + $0x50] sm:$0xff]
      %v578 = vld [vmem:[%s2 + $0x58] sm:$0xff]
      %v579 = vld [vmem:[%s2 + $0x60] sm:$0xff]
      %v580 = vld [vmem:[%s2 + $0x68] sm:$0xff]
      %v581 = vld [vmem:[%s2 + $0x70] sm:$0xff]
      %v582 = vld [vmem:[%s2 + $0x78] sm:$0xff]
      %v583 = vld [vmem:[%s2 + $0x80] sm:$0xff]
      %v584 = vld [vmem:[%s2 + $0x88] sm:$0xff]
      %v585 = vld [vmem:[%s2 + $0x90] sm:$0xff]
      %v586 = vld [vmem:[%s2 + $0x98] sm:$0xff]
      %v587 = vld [vmem:[%s2 + $0xa0] sm:$0xff]
      %v588 = vld [vmem:[%s2 + $0xa8] sm:$0xff]
      %v589 = vld [vmem:[%s3] sm:$0xff]
      %v590 = vld [vmem:[%s3 + $0x8] sm:$0xff]
      %v591 = vld [vmem:[%s3 + $0x10] sm:$0xff]
      %v592 = vld [vmem:[%s3 + $0x18] sm:$0xff]
      %v593 = vld [vmem:[%s3 + $0x20] sm:$0xff]
      %v594 = vld [vmem:[%s3 + $0x28] sm:$0xff]
      %v595 = vld [vmem:[%s3 + $0x30] sm:$0xff]
      %v596 = vld [vmem:[%s3 + $0x38] sm:$0xff]
      %v597 = vld [vmem:[%s3 + $0x40] sm:$0xff]
      %v598 = vld [vmem:[%s3 + $0x48] sm:$0xff]
      %v599 = vld [vmem:[%s3 + $0x50] sm:$0xff]
      %v600 = vld [vmem:[%s3 + $0x58] sm:$0xff]
      %v601 = vld [vmem:[%s3 + $0x60] sm:$0xff]
      %v602 = vld [vmem:[%s3 + $0x68] sm:$0xff]
      %v603 = vld [vmem:[%s3 + $0x70] sm:$0xff]
      %v604 = vld [vmem:[%s3 + $0x78] sm:$0xff]
      %v605 = vld [vmem:[%s3 + $0x80] sm:$0xff]
      %v606 = vld [vmem:[%s3 + $0x88] sm:$0xff]
      %v607 = vld [vmem:[%s3 + $0x90] sm:$0xff]
      %v608 = vld [vmem:[%s3 + $0x98] sm:$0xff]
      %v609 = vld [vmem:[%s3 + $0xa0] sm:$0xff]
      %v610 = vld [vmem:[%s3 + $0xa8] sm:$0xff]
      %vm611 = vcmask 719872
      %v613 = vsel %vm611, %v437, 0
      %v616 = vsel %vm611, %v440, 0
      %v619 = vsel %vm611, %v443, 0
      %v622 = vsel %vm611, %v446, 0
      %v625 = vsel %vm611, %v449, 0
      %v628 = vsel %vm611, %v452, 0
      %v631 = vsel %vm611, %v455, 0
      %v634 = vsel %vm611, %v458, 0
      %v637 = vsel %vm611, %v461, 0
      %v640 = vsel %vm611, %v464, 0
      %v643 = vsel %vm611, %v467, 0
      %v646 = vsel %vm611, %v470, 0
      %v649 = vsel %vm611, %v473, 0
      %v652 = vsel %vm611, %v476, 0
      %v655 = vsel %vm611, %v479, 0
      %v658 = vsel %vm611, %v482, 0
      %v661 = vsel %vm611, %v485, 0
      %v664 = vsel %vm611, %v488, 0
      %v667 = vsel %vm611, %v491, 0
      %v670 = vsel %vm611, %v494, 0
      %v673 = vsel %vm611, %v497, 0
      %v676 = vsel %vm611, %v500, 0
      %v679 = vsel %vm611, %v503, 0
      %v682 = vsel %vm611, %v506, 0
      %v685 = vsel %vm611, %v509, 0
      %v688 = vsel %vm611, %v512, 0
      %v691 = vsel %vm611, %v515, 0
      %v694 = vsel %vm611, %v518, 0
      %v697 = vsel %vm611, %v521, 0
      %v700 = vsel %vm611, %v524, 0
      %v703 = vsel %vm611, %v527, 0
      %v706 = vsel %vm611, %v530, 0
      %v709 = vsel %vm611, %v533, 0
      %v712 = vsel %vm611, %v536, 0
      %v715 = vsel %vm611, %v539, 0
      %v718 = vsel %vm611, %v542, 0
      %v721 = vsel %vm611, %v545, 0
      %v724 = vsel %vm611, %v548, 0
      %v727 = vsel %vm611, %v551, 0
      %v730 = vsel %vm611, %v554, 0
      %v733 = vsel %vm611, %v557, 0
      %v736 = vsel %vm611, %v560, 0
      %v739 = vsel %vm611, %v563, 0
      %v742 = vsel %vm611, %v566, 0
      %744 = vmatprep.subr.mxu0 0.0
      %745 = vmatpush1.msra.mxu0 %v407
      %746 = vmatprep.subr.mxu0 0.0
      %747 = vmatpush1.msra.mxu0 %v406
      %748 = vmatprep.subr.mxu0 0.0
      %749 = vmatpush1.msra.mxu0 %v405
      %750 = vmatprep.subr.mxu0 0.0
      %751 = vmatpush1.msra.mxu0 %v404
      %752 = vmatprep.subr.mxu0 0.0
      %753 = vmatpush1.msra.mxu0 %v403
      %754 = vmatprep.subr.mxu0 0.0
      %755 = vmatpush1.msra.mxu0 %v402
      %756 = vmatprep.subr.mxu0 0.0
      %757 = vmatpush1.msra.mxu0 %v401
      %758 = vmatprep.subr.mxu0 0.0
      %759 = vmatpush1.msra.mxu0 %v400
      %760 = vmatprep.subr.mxu0 0.0
      %761 = vmatpush1.msra.mxu0 %v399
      %762 = vmatprep.subr.mxu0 0.0
      %763 = vmatpush1.msra.mxu0 %v398
      %764 = vmatprep.subr.mxu0 0.0
      %765 = vmatpush1.msra.mxu0 %v397
      %766 = vmatprep.subr.mxu0 0.0
      %767 = vmatpush1.msra.mxu0 %v396
      %768 = vmatprep.subr.mxu0 0.0
      %769 = vmatpush1.msra.mxu0 %v395
      %770 = vmatprep.subr.mxu0 0.0
      %771 = vmatpush1.msra.mxu0 %v394
      %772 = vmatprep.subr.mxu0 0.0
      %773 = vmatpush1.msra.mxu0 %v393
      %774 = vmatprep.subr.mxu0 0.0
      %775 = vmatpush1.msra.mxu0 %v392
      %776 = vmatprep.subr.mxu0 0.0
      %777 = vmatpush2.msra.mxu0 %v423
      %778 = vmatprep.subr.mxu0 0.0
      %779 = vmatpush2.msra.mxu0 %v422
      %780 = vmatprep.subr.mxu0 0.0
      %781 = vmatpush2.msra.mxu0 %v421
      %782 = vmatprep.subr.mxu0 0.0
      %783 = vmatpush2.msra.mxu0 %v420
      %784 = vmatprep.subr.mxu0 0.0
      %785 = vmatpush2.msra.mxu0 %v419
      %786 = vmatprep.subr.mxu0 0.0
      %787 = vmatpush2.msra.mxu0 %v418
      %788 = vmatprep.subr.mxu0 0.0
      %789 = vmatpush2.msra.mxu0 %v417
      %790 = vmatprep.subr.mxu0 0.0
      %791 = vmatpush2.msra.mxu0 %v416
      %792 = vmatprep.subr.mxu0 0.0
      %793 = vmatpush2.msra.mxu0 %v415
      %794 = vmatprep.subr.mxu0 0.0
      %795 = vmatpush2.msra.mxu0 %v414
      %796 = vmatprep.subr.mxu0 0.0
      %797 = vmatpush2.msra.mxu0 %v413
      %798 = vmatprep.subr.mxu0 0.0
      %799 = vmatpush2.msra.mxu0 %v412
      %800 = vmatprep.subr.mxu0 0.0
      %801 = vmatpush2.msra.mxu0 %v411
      %802 = vmatprep.subr.mxu0 0.0
      %803 = vmatpush2.msra.mxu0 %v410
      %804 = vmatprep.subr.mxu0 0.0
      %805 = vmatpush2.msra.mxu0 %v409
      %806 = vmatprep.subr.mxu0 0.0
      %807 = vmatpush2.msra.mxu0 %v408
      %808 = vmatprep.mubr.f32.mxu0 %v436
      %809 = vmatmul.mubr.f32.gmra.mxu0 %v435
      %v810 = vpop.f32.mrf.mxu0
      %v811 = vadd.f32 0.0, %v810
      %v812 = vpop.f32.mrf.mxu0
      %813 = vmatprep.mubr.f32.mxu0 %v439
      %814 = vmatmul.mubr.f32.gmra.mxu0 %v438
      %v815 = vpop.f32.mrf.mxu0
      %v816 = vadd.f32 0.0, %v815
      %v817 = vpop.f32.mrf.mxu0
      %818 = vmatprep.mubr.f32.mxu0 %v442
      %819 = vmatmul.mubr.f32.gmra.mxu0 %v441
      %v820 = vpop.f32.mrf.mxu0
      %v821 = vadd.f32 0.0, %v820
      %v822 = vpop.f32.mrf.mxu0
      %823 = vmatprep.mubr.f32.mxu0 %v445
      %824 = vmatmul.mubr.f32.gmra.mxu0 %v444
      %v825 = vpop.f32.mrf.mxu0
      %v826 = vadd.f32 0.0, %v825
      %v827 = vpop.f32.mrf.mxu0
      %828 = vmatprep.mubr.f32.mxu0 %v448
      %829 = vmatmul.mubr.f32.gmra.mxu0 %v447
      %v830 = vpop.f32.mrf.mxu0
      %v831 = vadd.f32 0.0, %v830
      %v832 = vpop.f32.mrf.mxu0
      %833 = vmatprep.mubr.f32.mxu0 %v451
      %834 = vmatmul.mubr.f32.gmra.mxu0 %v450
      %v835 = vpop.f32.mrf.mxu0
      %v836 = vadd.f32 0.0, %v835
      %v837 = vpop.f32.mrf.mxu0
      %838 = vmatprep.mubr.f32.mxu0 %v454
      %839 = vmatmul.mubr.f32.gmra.mxu0 %v453
      %v840 = vpop.f32.mrf.mxu0
      %v841 = vadd.f32 0.0, %v840
      %v842 = vpop.f32.mrf.mxu0
      %843 = vmatprep.mubr.f32.mxu0 %v457
      %844 = vmatmul.mubr.f32.gmra.mxu0 %v456
      %v845 = vpop.f32.mrf.mxu0
      %v846 = vadd.f32 0.0, %v845
      %v847 = vpop.f32.mrf.mxu0
      %848 = vmatprep.mubr.f32.mxu0 %v460
      %849 = vmatmul.mubr.f32.gmra.mxu0 %v459
      %v850 = vpop.f32.mrf.mxu0
      %v851 = vadd.f32 0.0, %v850
      %v852 = vpop.f32.mrf.mxu0
      %853 = vmatprep.mubr.f32.mxu0 %v463
      %854 = vmatmul.mubr.f32.gmra.mxu0 %v462
      %v855 = vpop.f32.mrf.mxu0
      %v856 = vadd.f32 0.0, %v855
      %v857 = vpop.f32.mrf.mxu0
      %858 = vmatprep.mubr.f32.mxu0 %v466
      %859 = vmatmul.mubr.f32.gmra.mxu0 %v465
      %v860 = vpop.f32.mrf.mxu0
      %v861 = vadd.f32 0.0, %v860
      %v862 = vpop.f32.mrf.mxu0
      %863 = vmatprep.mubr.f32.mxu0 %v469
      %864 = vmatmul.mubr.f32.gmra.mxu0 %v468
      %v865 = vpop.f32.mrf.mxu0
      %v866 = vadd.f32 0.0, %v865
      %v867 = vpop.f32.mrf.mxu0
      %868 = vmatprep.mubr.f32.mxu0 %v472
      %869 = vmatmul.mubr.f32.gmra.mxu0 %v471
      %v870 = vpop.f32.mrf.mxu0
      %v871 = vadd.f32 0.0, %v870
      %v872 = vpop.f32.mrf.mxu0
      %873 = vmatprep.mubr.f32.mxu0 %v475
      %874 = vmatmul.mubr.f32.gmra.mxu0 %v474
      %v875 = vpop.f32.mrf.mxu0
      %v876 = vadd.f32 0.0, %v875
      %v877 = vpop.f32.mrf.mxu0
      %878 = vmatprep.mubr.f32.mxu0 %v478
      %879 = vmatmul.mubr.f32.gmra.mxu0 %v477
      %v880 = vpop.f32.mrf.mxu0
      %v881 = vadd.f32 0.0, %v880
      %v882 = vpop.f32.mrf.mxu0
      %883 = vmatprep.mubr.f32.mxu0 %v481
      %884 = vmatmul.mubr.f32.gmra.mxu0 %v480
      %v885 = vpop.f32.mrf.mxu0
      %v886 = vadd.f32 0.0, %v885
      %v887 = vpop.f32.mrf.mxu0
      %888 = vmatprep.mubr.f32.mxu0 %v484
      %889 = vmatmul.mubr.f32.gmra.mxu0 %v483
      %v890 = vpop.f32.mrf.mxu0
      %v891 = vadd.f32 0.0, %v890
      %v892 = vpop.f32.mrf.mxu0
      %893 = vmatprep.mubr.f32.mxu0 %v487
      %894 = vmatmul.mubr.f32.gmra.mxu0 %v486
      %v895 = vpop.f32.mrf.mxu0
      %v896 = vadd.f32 0.0, %v895
      %v897 = vpop.f32.mrf.mxu0
      %898 = vmatprep.mubr.f32.mxu0 %v490
      %899 = vmatmul.mubr.f32.gmra.mxu0 %v489
      %v900 = vpop.f32.mrf.mxu0
      %v901 = vadd.f32 0.0, %v900
      %v902 = vpop.f32.mrf.mxu0
      %903 = vmatprep.mubr.f32.mxu0 %v493
      %904 = vmatmul.mubr.f32.gmra.mxu0 %v492
      %v905 = vpop.f32.mrf.mxu0
      %v906 = vadd.f32 0.0, %v905
      %v907 = vpop.f32.mrf.mxu0
      %908 = vmatprep.mubr.f32.mxu0 %v496
      %909 = vmatmul.mubr.f32.gmra.mxu0 %v495
      %v910 = vpop.f32.mrf.mxu0
      %v911 = vadd.f32 0.0, %v910
      %v912 = vpop.f32.mrf.mxu0
      %913 = vmatprep.mubr.f32.mxu0 %v499
      %914 = vmatmul.mubr.f32.gmra.mxu0 %v498
      %v915 = vpop.f32.mrf.mxu0
      %v916 = vadd.f32 0.0, %v915
      %v917 = vpop.f32.mrf.mxu0
      %918 = vmatprep.mubr.f32.mxu0 %v502
      %919 = vmatmul.mubr.f32.gmra.mxu0 %v501
      %v920 = vpop.f32.mrf.mxu0
      %v921 = vadd.f32 0.0, %v920
      %v922 = vpop.f32.mrf.mxu0
      %923 = vmatprep.mubr.f32.mxu0 %v505
      %924 = vmatmul.mubr.f32.gmra.mxu0 %v504
      %v925 = vpop.f32.mrf.mxu0
      %v926 = vadd.f32 0.0, %v925
      %v927 = vpop.f32.mrf.mxu0
      %928 = vmatprep.mubr.f32.mxu0 %v508
      %929 = vmatmul.mubr.f32.gmra.mxu0 %v507
      %v930 = vpop.f32.mrf.mxu0
      %v931 = vadd.f32 0.0, %v930
      %v932 = vpop.f32.mrf.mxu0
      %933 = vmatprep.mubr.f32.mxu0 %v511
      %934 = vmatmul.mubr.f32.gmra.mxu0 %v510
      %v935 = vpop.f32.mrf.mxu0
      %v936 = vadd.f32 0.0, %v935
      %v937 = vpop.f32.mrf.mxu0
      %938 = vmatprep.mubr.f32.mxu0 %v514
      %939 = vmatmul.mubr.f32.gmra.mxu0 %v513
      %v940 = vpop.f32.mrf.mxu0
      %v941 = vadd.f32 0.0, %v940
      %v942 = vpop.f32.mrf.mxu0
      %943 = vmatprep.mubr.f32.mxu0 %v517
      %944 = vmatmul.mubr.f32.gmra.mxu0 %v516
      %v945 = vpop.f32.mrf.mxu0
      %v946 = vadd.f32 0.0, %v945
      %v947 = vpop.f32.mrf.mxu0
      %948 = vmatprep.mubr.f32.mxu0 %v520
      %949 = vmatmul.mubr.f32.gmra.mxu0 %v519
      %v950 = vpop.f32.mrf.mxu0
      %v951 = vadd.f32 0.0, %v950
      %v952 = vpop.f32.mrf.mxu0
      %953 = vmatprep.mubr.f32.mxu0 %v523
      %954 = vmatmul.mubr.f32.gmra.mxu0 %v522
      %v955 = vpop.f32.mrf.mxu0
      %v956 = vadd.f32 0.0, %v955
      %v957 = vpop.f32.mrf.mxu0
      %958 = vmatprep.mubr.f32.mxu0 %v526
      %959 = vmatmul.mubr.f32.gmra.mxu0 %v525
      %v960 = vpop.f32.mrf.mxu0
      %v961 = vadd.f32 0.0, %v960
      %v962 = vpop.f32.mrf.mxu0
      %963 = vmatprep.mubr.f32.mxu0 %v529
      %964 = vmatmul.mubr.f32.gmra.mxu0 %v528
      %v965 = vpop.f32.mrf.mxu0
      %v966 = vadd.f32 0.0, %v965
      %v967 = vpop.f32.mrf.mxu0
      %968 = vmatprep.mubr.f32.mxu0 %v532
      %969 = vmatmul.mubr.f32.gmra.mxu0 %v531
      %v970 = vpop.f32.mrf.mxu0
      %v971 = vadd.f32 0.0, %v970
      %v972 = vpop.f32.mrf.mxu0
      %973 = vmatprep.mubr.f32.mxu0 %v535
      %974 = vmatmul.mubr.f32.gmra.mxu0 %v534
      %v975 = vpop.f32.mrf.mxu0
      %v976 = vadd.f32 0.0, %v975
      %v977 = vpop.f32.mrf.mxu0
      %978 = vmatprep.mubr.f32.mxu0 %v538
      %979 = vmatmul.mubr.f32.gmra.mxu0 %v537
      %v980 = vpop.f32.mrf.mxu0
      %v981 = vadd.f32 0.0, %v980
      %v982 = vpop.f32.mrf.mxu0
      %983 = vmatprep.mubr.f32.mxu0 %v541
      %984 = vmatmul.mubr.f32.gmra.mxu0 %v540
      %v985 = vpop.f32.mrf.mxu0
      %v986 = vadd.f32 0.0, %v985
      %v987 = vpop.f32.mrf.mxu0
      %988 = vmatprep.mubr.f32.mxu0 %v544
      %989 = vmatmul.mubr.f32.gmra.mxu0 %v543
      %v990 = vpop.f32.mrf.mxu0
      %v991 = vadd.f32 0.0, %v990
      %v992 = vpop.f32.mrf.mxu0
      %993 = vmatprep.mubr.f32.mxu0 %v547
      %994 = vmatmul.mubr.f32.gmra.mxu0 %v546
      %v995 = vpop.f32.mrf.mxu0
      %v996 = vadd.f32 0.0, %v995
      %v997 = vpop.f32.mrf.mxu0
      %998 = vmatprep.mubr.f32.mxu0 %v550
      %999 = vmatmul.mubr.f32.gmra.mxu0 %v549
      %v1000 = vpop.f32.mrf.mxu0
      %v1001 = vadd.f32 0.0, %v1000
      %v1002 = vpop.f32.mrf.mxu0
      %1003 = vmatprep.mubr.f32.mxu0 %v553
      %1004 = vmatmul.mubr.f32.gmra.mxu0 %v552
      %v1005 = vpop.f32.mrf.mxu0
      %v1006 = vadd.f32 0.0, %v1005
      %v1007 = vpop.f32.mrf.mxu0
      %1008 = vmatprep.mubr.f32.mxu0 %v556
      %1009 = vmatmul.mubr.f32.gmra.mxu0 %v555
      %v1010 = vpop.f32.mrf.mxu0
      %v1011 = vadd.f32 0.0, %v1010
      %v1012 = vpop.f32.mrf.mxu0
      %1013 = vmatprep.mubr.f32.mxu0 %v559
      %1014 = vmatmul.mubr.f32.gmra.mxu0 %v558
      %v1015 = vpop.f32.mrf.mxu0
      %v1016 = vadd.f32 0.0, %v1015
      %v1017 = vpop.f32.mrf.mxu0
      %1018 = vmatprep.mubr.f32.mxu0 %v562
      %1019 = vmatmul.mubr.f32.gmra.mxu0 %v561
      %v1020 = vpop.f32.mrf.mxu0
      %v1021 = vadd.f32 0.0, %v1020
      %v1022 = vpop.f32.mrf.mxu0
      %1023 = vmatprep.mubr.f32.mxu0 %v565
      %1024 = vmatmul.mubr.f32.gmra.mxu0 %v564
      %v1025 = vpop.f32.mrf.mxu0
      %v1026 = vadd.f32 0.0, %v1025
      %v1027 = vpop.f32.mrf.mxu0
      %1028 = vdwg.mxu0
      %1029 = vmatprep.subr.mxu0 0.0
      %1030 = vmatpush1.msra.mxu0 0.0
      %1031 = vmatprep.subr.mxu0 0.0
      %1032 = vmatpush1.msra.mxu0 0.0
      %1033 = vmatprep.subr.mxu0 0.0
      %1034 = vmatpush1.msra.mxu0 0.0
      %1035 = vmatprep.subr.mxu0 0.0
      %1036 = vmatpush1.msra.mxu0 0.0
      %1037 = vmatprep.subr.mxu0 0.0
      %1038 = vmatpush1.msra.mxu0 0.0
      %1039 = vmatprep.subr.mxu0 0.0
      %1040 = vmatpush1.msra.mxu0 %v434
      %1041 = vmatprep.subr.mxu0 0.0
      %1042 = vmatpush1.msra.mxu0 %v433
      %1043 = vmatprep.subr.mxu0 0.0
      %1044 = vmatpush1.msra.mxu0 %v432
      %1045 = vmatprep.subr.mxu0 0.0
      %1046 = vmatpush1.msra.mxu0 %v431
      %1047 = vmatprep.subr.mxu0 0.0
      %1048 = vmatpush1.msra.mxu0 %v430
      %1049 = vmatprep.subr.mxu0 0.0
      %1050 = vmatpush1.msra.mxu0 %v429
      %1051 = vmatprep.subr.mxu0 0.0
      %1052 = vmatpush1.msra.mxu0 %v428
      %1053 = vmatprep.subr.mxu0 0.0
      %1054 = vmatpush1.msra.mxu0 %v427
      %1055 = vmatprep.subr.mxu0 0.0
      %1056 = vmatpush1.msra.mxu0 %v426
      %1057 = vmatprep.subr.mxu0 0.0
      %1058 = vmatpush1.msra.mxu0 %v425
      %1059 = vmatprep.subr.mxu0 0.0
      %1060 = vmatpush1.msra.mxu0 %v424
      %1061 = vmatprep.subr.mxu0 0.0
      %1062 = vmatpush2.msra.mxu0 0.0
      %1063 = vmatprep.subr.mxu0 0.0
      %1064 = vmatpush2.msra.mxu0 0.0
      %1065 = vmatprep.subr.mxu0 0.0
      %1066 = vmatpush2.msra.mxu0 0.0
      %1067 = vmatprep.subr.mxu0 0.0
      %1068 = vmatpush2.msra.mxu0 0.0
      %1069 = vmatprep.subr.mxu0 0.0
      %1070 = vmatpush2.msra.mxu0 0.0
      %1071 = vmatprep.subr.mxu0 0.0
      %1072 = vmatpush2.msra.mxu0 0.0
      %1073 = vmatprep.subr.mxu0 0.0
      %1074 = vmatpush2.msra.mxu0 0.0
      %1075 = vmatprep.subr.mxu0 0.0
      %1076 = vmatpush2.msra.mxu0 0.0
      %1077 = vmatprep.subr.mxu0 0.0
      %1078 = vmatpush2.msra.mxu0 0.0
      %1079 = vmatprep.subr.mxu0 0.0
      %1080 = vmatpush2.msra.mxu0 0.0
      %1081 = vmatprep.subr.mxu0 0.0
      %1082 = vmatpush2.msra.mxu0 0.0
      %1083 = vmatprep.subr.mxu0 0.0
      %1084 = vmatpush2.msra.mxu0 0.0
      %1085 = vmatprep.subr.mxu0 0.0
      %1086 = vmatpush2.msra.mxu0 0.0
      %1087 = vmatprep.subr.mxu0 0.0
      %1088 = vmatpush2.msra.mxu0 0.0
      %1089 = vmatprep.subr.mxu0 0.0
      %1090 = vmatpush2.msra.mxu0 0.0
      %1091 = vmatprep.subr.mxu0 0.0
      %1092 = vmatpush2.msra.mxu0 0.0
      %1093 = vmatprep.mubr.f32.mxu0 0.0
      %1094 = vmatmul.mubr.f32.gmra.mxu0 %v613
      %v1095 = vpop.f32.mrf.mxu0
      %v1096 = vadd.f32 %v811, %v1095
      %v1097 = vpop.f32.mrf.mxu0
      %1098 = vmatprep.mubr.f32.mxu0 0.0
      %1099 = vmatmul.mubr.f32.gmra.mxu0 %v616
      %v1100 = vpop.f32.mrf.mxu0
      %v1101 = vadd.f32 %v816, %v1100
      %v1102 = vpop.f32.mrf.mxu0
      %1103 = vmatprep.mubr.f32.mxu0 0.0
      %1104 = vmatmul.mubr.f32.gmra.mxu0 %v619
      %v1105 = vpop.f32.mrf.mxu0
      %v1106 = vadd.f32 %v821, %v1105
      %v1107 = vpop.f32.mrf.mxu0
      %1108 = vmatprep.mubr.f32.mxu0 0.0
      %1109 = vmatmul.mubr.f32.gmra.mxu0 %v622
      %v1110 = vpop.f32.mrf.mxu0
      %v1111 = vadd.f32 %v826, %v1110
      %v1112 = vpop.f32.mrf.mxu0
      %1113 = vmatprep.mubr.f32.mxu0 0.0
      %1114 = vmatmul.mubr.f32.gmra.mxu0 %v625
      %v1115 = vpop.f32.mrf.mxu0
      %v1116 = vadd.f32 %v831, %v1115
      %v1117 = vpop.f32.mrf.mxu0
      %1118 = vmatprep.mubr.f32.mxu0 0.0
      %1119 = vmatmul.mubr.f32.gmra.mxu0 %v628
      %v1120 = vpop.f32.mrf.mxu0
      %v1121 = vadd.f32 %v836, %v1120
      %v1122 = vpop.f32.mrf.mxu0
      %1123 = vmatprep.mubr.f32.mxu0 0.0
      %1124 = vmatmul.mubr.f32.gmra.mxu0 %v631
      %v1125 = vpop.f32.mrf.mxu0
      %v1126 = vadd.f32 %v841, %v1125
      %v1127 = vpop.f32.mrf.mxu0
      %1128 = vmatprep.mubr.f32.mxu0 0.0
      %1129 = vmatmul.mubr.f32.gmra.mxu0 %v634
      %v1130 = vpop.f32.mrf.mxu0
      %v1131 = vadd.f32 %v846, %v1130
      %v1132 = vpop.f32.mrf.mxu0
      %1133 = vmatprep.mubr.f32.mxu0 0.0
      %1134 = vmatmul.mubr.f32.gmra.mxu0 %v637
      %v1135 = vpop.f32.mrf.mxu0
      %v1136 = vadd.f32 %v851, %v1135
      %v1137 = vpop.f32.mrf.mxu0
      %1138 = vmatprep.mubr.f32.mxu0 0.0
      %1139 = vmatmul.mubr.f32.gmra.mxu0 %v640
      %v1140 = vpop.f32.mrf.mxu0
      %v1141 = vadd.f32 %v856, %v1140
      %v1142 = vpop.f32.mrf.mxu0
      %1143 = vmatprep.mubr.f32.mxu0 0.0
      %1144 = vmatmul.mubr.f32.gmra.mxu0 %v643
      %v1145 = vpop.f32.mrf.mxu0
      %v1146 = vadd.f32 %v861, %v1145
      %v1147 = vpop.f32.mrf.mxu0
      %1148 = vmatprep.mubr.f32.mxu0 0.0
      %1149 = vmatmul.mubr.f32.gmra.mxu0 %v646
      %v1150 = vpop.f32.mrf.mxu0
      %v1151 = vadd.f32 %v866, %v1150
      %v1152 = vpop.f32.mrf.mxu0
      %1153 = vmatprep.mubr.f32.mxu0 0.0
      %1154 = vmatmul.mubr.f32.gmra.mxu0 %v649
      %v1155 = vpop.f32.mrf.mxu0
      %v1156 = vadd.f32 %v871, %v1155
      %v1157 = vpop.f32.mrf.mxu0
      %1158 = vmatprep.mubr.f32.mxu0 0.0
      %1159 = vmatmul.mubr.f32.gmra.mxu0 %v652
      %v1160 = vpop.f32.mrf.mxu0
      %v1161 = vadd.f32 %v876, %v1160
      %v1162 = vpop.f32.mrf.mxu0
      %1163 = vmatprep.mubr.f32.mxu0 0.0
      %1164 = vmatmul.mubr.f32.gmra.mxu0 %v655
      %v1165 = vpop.f32.mrf.mxu0
      %v1166 = vadd.f32 %v881, %v1165
      %v1167 = vpop.f32.mrf.mxu0
      %1168 = vmatprep.mubr.f32.mxu0 0.0
      %1169 = vmatmul.mubr.f32.gmra.mxu0 %v658
      %v1170 = vpop.f32.mrf.mxu0
      %v1171 = vadd.f32 %v886, %v1170
      %v1172 = vpop.f32.mrf.mxu0
      %1173 = vmatprep.mubr.f32.mxu0 0.0
      %1174 = vmatmul.mubr.f32.gmra.mxu0 %v661
      %v1175 = vpop.f32.mrf.mxu0
      %v1176 = vadd.f32 %v891, %v1175
      %v1177 = vpop.f32.mrf.mxu0
      %1178 = vmatprep.mubr.f32.mxu0 0.0
      %1179 = vmatmul.mubr.f32.gmra.mxu0 %v664
      %v1180 = vpop.f32.mrf.mxu0
      %v1181 = vadd.f32 %v896, %v1180
      %v1182 = vpop.f32.mrf.mxu0
      %1183 = vmatprep.mubr.f32.mxu0 0.0
      %1184 = vmatmul.mubr.f32.gmra.mxu0 %v667
      %v1185 = vpop.f32.mrf.mxu0
      %v1186 = vadd.f32 %v901, %v1185
      %v1187 = vpop.f32.mrf.mxu0
      %1188 = vmatprep.mubr.f32.mxu0 0.0
      %1189 = vmatmul.mubr.f32.gmra.mxu0 %v670
      %v1190 = vpop.f32.mrf.mxu0
      %v1191 = vadd.f32 %v906, %v1190
      %v1192 = vpop.f32.mrf.mxu0
      %1193 = vmatprep.mubr.f32.mxu0 0.0
      %1194 = vmatmul.mubr.f32.gmra.mxu0 %v673
      %v1195 = vpop.f32.mrf.mxu0
      %v1196 = vadd.f32 %v911, %v1195
      %v1197 = vpop.f32.mrf.mxu0
      %1198 = vmatprep.mubr.f32.mxu0 0.0
      %1199 = vmatmul.mubr.f32.gmra.mxu0 %v676
      %v1200 = vpop.f32.mrf.mxu0
      %v1201 = vadd.f32 %v916, %v1200
      %v1202 = vpop.f32.mrf.mxu0
      %1203 = vmatprep.mubr.f32.mxu0 0.0
      %1204 = vmatmul.mubr.f32.gmra.mxu0 %v679
      %v1205 = vpop.f32.mrf.mxu0
      %v1206 = vadd.f32 %v921, %v1205
      %v1207 = vpop.f32.mrf.mxu0
      %1208 = vmatprep.mubr.f32.mxu0 0.0
      %1209 = vmatmul.mubr.f32.gmra.mxu0 %v682
      %v1210 = vpop.f32.mrf.mxu0
      %v1211 = vadd.f32 %v926, %v1210
      %v1212 = vpop.f32.mrf.mxu0
      %1213 = vmatprep.mubr.f32.mxu0 0.0
      %1214 = vmatmul.mubr.f32.gmra.mxu0 %v685
      %v1215 = vpop.f32.mrf.mxu0
      %v1216 = vadd.f32 %v931, %v1215
      %v1217 = vpop.f32.mrf.mxu0
      %1218 = vmatprep.mubr.f32.mxu0 0.0
      %1219 = vmatmul.mubr.f32.gmra.mxu0 %v688
      %v1220 = vpop.f32.mrf.mxu0
      %v1221 = vadd.f32 %v936, %v1220
      %v1222 = vpop.f32.mrf.mxu0
      %1223 = vmatprep.mubr.f32.mxu0 0.0
      %1224 = vmatmul.mubr.f32.gmra.mxu0 %v691
      %v1225 = vpop.f32.mrf.mxu0
      %v1226 = vadd.f32 %v941, %v1225
      %v1227 = vpop.f32.mrf.mxu0
      %1228 = vmatprep.mubr.f32.mxu0 0.0
      %1229 = vmatmul.mubr.f32.gmra.mxu0 %v694
      %v1230 = vpop.f32.mrf.mxu0
      %v1231 = vadd.f32 %v946, %v1230
      %v1232 = vpop.f32.mrf.mxu0
      %1233 = vmatprep.mubr.f32.mxu0 0.0
      %1234 = vmatmul.mubr.f32.gmra.mxu0 %v697
      %v1235 = vpop.f32.mrf.mxu0
      %v1236 = vadd.f32 %v951, %v1235
      %v1237 = vpop.f32.mrf.mxu0
      %1238 = vmatprep.mubr.f32.mxu0 0.0
      %1239 = vmatmul.mubr.f32.gmra.mxu0 %v700
      %v1240 = vpop.f32.mrf.mxu0
      %v1241 = vadd.f32 %v956, %v1240
      %v1242 = vpop.f32.mrf.mxu0
      %1243 = vmatprep.mubr.f32.mxu0 0.0
      %1244 = vmatmul.mubr.f32.gmra.mxu0 %v703
      %v1245 = vpop.f32.mrf.mxu0
      %v1246 = vadd.f32 %v961, %v1245
      %v1247 = vpop.f32.mrf.mxu0
      %1248 = vmatprep.mubr.f32.mxu0 0.0
      %1249 = vmatmul.mubr.f32.gmra.mxu0 %v706
      %v1250 = vpop.f32.mrf.mxu0
      %v1251 = vadd.f32 %v966, %v1250
      %v1252 = vpop.f32.mrf.mxu0
      %1253 = vmatprep.mubr.f32.mxu0 0.0
      %1254 = vmatmul.mubr.f32.gmra.mxu0 %v709
      %v1255 = vpop.f32.mrf.mxu0
      %v1256 = vadd.f32 %v971, %v1255
      %v1257 = vpop.f32.mrf.mxu0
      %1258 = vmatprep.mubr.f32.mxu0 0.0
      %1259 = vmatmul.mubr.f32.gmra.mxu0 %v712
      %v1260 = vpop.f32.mrf.mxu0
      %v1261 = vadd.f32 %v976, %v1260
      %v1262 = vpop.f32.mrf.mxu0
      %1263 = vmatprep.mubr.f32.mxu0 0.0
      %1264 = vmatmul.mubr.f32.gmra.mxu0 %v715
      %v1265 = vpop.f32.mrf.mxu0
      %v1266 = vadd.f32 %v981, %v1265
      %v1267 = vpop.f32.mrf.mxu0
      %1268 = vmatprep.mubr.f32.mxu0 0.0
      %1269 = vmatmul.mubr.f32.gmra.mxu0 %v718
      %v1270 = vpop.f32.mrf.mxu0
      %v1271 = vadd.f32 %v986, %v1270
      %v1272 = vpop.f32.mrf.mxu0
      %1273 = vmatprep.mubr.f32.mxu0 0.0
      %1274 = vmatmul.mubr.f32.gmra.mxu0 %v721
      %v1275 = vpop.f32.mrf.mxu0
      %v1276 = vadd.f32 %v991, %v1275
      %v1277 = vpop.f32.mrf.mxu0
      %1278 = vmatprep.mubr.f32.mxu0 0.0
      %1279 = vmatmul.mubr.f32.gmra.mxu0 %v724
      %v1280 = vpop.f32.mrf.mxu0
      %v1281 = vadd.f32 %v996, %v1280
      %v1282 = vpop.f32.mrf.mxu0
      %1283 = vmatprep.mubr.f32.mxu0 0.0
      %1284 = vmatmul.mubr.f32.gmra.mxu0 %v727
      %v1285 = vpop.f32.mrf.mxu0
      %v1286 = vadd.f32 %v1001, %v1285
      %v1287 = vpop.f32.mrf.mxu0
      %1288 = vmatprep.mubr.f32.mxu0 0.0
      %1289 = vmatmul.mubr.f32.gmra.mxu0 %v730
      %v1290 = vpop.f32.mrf.mxu0
      %v1291 = vadd.f32 %v1006, %v1290
      %v1292 = vpop.f32.mrf.mxu0
      %1293 = vmatprep.mubr.f32.mxu0 0.0
      %1294 = vmatmul.mubr.f32.gmra.mxu0 %v733
      %v1295 = vpop.f32.mrf.mxu0
      %v1296 = vadd.f32 %v1011, %v1295
      %v1297 = vpop.f32.mrf.mxu0
      %1298 = vmatprep.mubr.f32.mxu0 0.0
      %1299 = vmatmul.mubr.f32.gmra.mxu0 %v736
      %v1300 = vpop.f32.mrf.mxu0
      %v1301 = vadd.f32 %v1016, %v1300
      %v1302 = vpop.f32.mrf.mxu0
      %1303 = vmatprep.mubr.f32.mxu0 0.0
      %1304 = vmatmul.mubr.f32.gmra.mxu0 %v739
      %v1305 = vpop.f32.mrf.mxu0
      %v1306 = vadd.f32 %v1021, %v1305
      %v1307 = vpop.f32.mrf.mxu0
      %1308 = vmatprep.mubr.f32.mxu0 0.0
      %1309 = vmatmul.mubr.f32.gmra.mxu0 %v742
      %v1310 = vpop.f32.mrf.mxu0
      %v1311 = vadd.f32 %v1026, %v1310
      %v1312 = vpop.f32.mrf.mxu0
      %1313 = vdwg.mxu0
      %v1314 = vmul.f32 %v1096, %v1096
      %v1315 = vmul.f32 %v1101, %v1101
      %v1316 = vmul.f32 %v1106, %v1106
      %v1317 = vmul.f32 %v1111, %v1111
      %v1318 = vmul.f32 %v1116, %v1116
      %v1319 = vmul.f32 %v1121, %v1121
      %v1320 = vmul.f32 %v1126, %v1126
      %v1321 = vmul.f32 %v1131, %v1131
      %v1322 = vmul.f32 %v1136, %v1136
      %v1323 = vmul.f32 %v1141, %v1141
      %v1324 = vmul.f32 %v1146, %v1146
      %v1325 = vmul.f32 %v1151, %v1151
      %v1326 = vmul.f32 %v1156, %v1156
      %v1327 = vmul.f32 %v1161, %v1161
      %v1328 = vmul.f32 %v1166, %v1166
      %v1329 = vmul.f32 %v1171, %v1171
      %v1330 = vmul.f32 %v1176, %v1176
      %v1331 = vmul.f32 %v1181, %v1181
      %v1332 = vmul.f32 %v1186, %v1186
      %v1333 = vmul.f32 %v1191, %v1191
      %v1334 = vmul.f32 %v1196, %v1196
      %v1335 = vmul.f32 %v1201, %v1201
      %vm1336 = vcmask 23552
      %v1337 = vsel %vm1336, %v1314, 0.0
      %1338 = vadd.xlane.f32.xlu0 %v1337
      %v1339 = vpop.xlane.xlu0 %1338
      %v1340 = vsel %vm1336, %v1315, 0.0
      %1341 = vadd.xlane.f32.xlu0 %v1340
      %v1342 = vpop.xlane.xlu0 %1341
      %v1343 = vsel %vm1336, %v1316, 0.0
      %1344 = vadd.xlane.f32.xlu0 %v1343
      %v1345 = vpop.xlane.xlu0 %1344
      %v1346 = vsel %vm1336, %v1317, 0.0
      %1347 = vadd.xlane.f32.xlu0 %v1346
      %v1348 = vpop.xlane.xlu0 %1347
      %v1349 = vsel %vm1336, %v1318, 0.0
      %1350 = vadd.xlane.f32.xlu0 %v1349
      %v1351 = vpop.xlane.xlu0 %1350
      %v1352 = vsel %vm1336, %v1319, 0.0
      %1353 = vadd.xlane.f32.xlu0 %v1352
      %v1354 = vpop.xlane.xlu0 %1353
      %v1355 = vsel %vm1336, %v1320, 0.0
      %1356 = vadd.xlane.f32.xlu0 %v1355
      %v1357 = vpop.xlane.xlu0 %1356
      %v1358 = vsel %vm1336, %v1321, 0.0
      %1359 = vadd.xlane.f32.xlu0 %v1358
      %v1360 = vpop.xlane.xlu0 %1359
      %v1361 = vsel %vm1336, %v1322, 0.0
      %1362 = vadd.xlane.f32.xlu0 %v1361
      %v1363 = vpop.xlane.xlu0 %1362
      %v1364 = vsel %vm1336, %v1323, 0.0
      %1365 = vadd.xlane.f32.xlu0 %v1364
      %v1366 = vpop.xlane.xlu0 %1365
      %v1367 = vsel %vm1336, %v1324, 0.0
      %1368 = vadd.xlane.f32.xlu0 %v1367
      %v1369 = vpop.xlane.xlu0 %1368
      %v1370 = vsel %vm1336, %v1325, 0.0
      %1371 = vadd.xlane.f32.xlu0 %v1370
      %v1372 = vpop.xlane.xlu0 %1371
      %v1373 = vsel %vm1336, %v1326, 0.0
      %1374 = vadd.xlane.f32.xlu0 %v1373
      %v1375 = vpop.xlane.xlu0 %1374
      %v1376 = vsel %vm1336, %v1327, 0.0
      %1377 = vadd.xlane.f32.xlu0 %v1376
      %v1378 = vpop.xlane.xlu0 %1377
      %v1379 = vsel %vm1336, %v1328, 0.0
      %1380 = vadd.xlane.f32.xlu0 %v1379
      %v1381 = vpop.xlane.xlu0 %1380
      %v1382 = vsel %vm1336, %v1329, 0.0
      %1383 = vadd.xlane.f32.xlu0 %v1382
      %v1384 = vpop.xlane.xlu0 %1383
      %v1385 = vsel %vm1336, %v1330, 0.0
      %1386 = vadd.xlane.f32.xlu0 %v1385
      %v1387 = vpop.xlane.xlu0 %1386
      %v1388 = vsel %vm1336, %v1331, 0.0
      %1389 = vadd.xlane.f32.xlu0 %v1388
      %v1390 = vpop.xlane.xlu0 %1389
      %v1391 = vsel %vm1336, %v1332, 0.0
      %1392 = vadd.xlane.f32.xlu0 %v1391
      %v1393 = vpop.xlane.xlu0 %1392
      %v1394 = vsel %vm1336, %v1333, 0.0
      %1395 = vadd.xlane.f32.xlu0 %v1394
      %v1396 = vpop.xlane.xlu0 %1395
      %v1397 = vsel %vm1336, %v1334, 0.0
      %1398 = vadd.xlane.f32.xlu0 %v1397
      %v1399 = vpop.xlane.xlu0 %1398
      %v1400 = vsel %vm1336, %v1335, 0.0
      %1401 = vadd.xlane.f32.xlu0 %v1400
      %v1402 = vpop.xlane.xlu0 %1401
      %v1403 = vadd.f32 %v1339, 1e-12
      %v1404 = vadd.f32 %v1342, 1e-12
      %v1405 = vadd.f32 %v1345, 1e-12
      %v1406 = vadd.f32 %v1348, 1e-12
      %v1407 = vadd.f32 %v1351, 1e-12
      %v1408 = vadd.f32 %v1354, 1e-12
      %v1409 = vadd.f32 %v1357, 1e-12
      %v1410 = vadd.f32 %v1360, 1e-12
      %v1411 = vadd.f32 %v1363, 1e-12
      %v1412 = vadd.f32 %v1366, 1e-12
      %v1413 = vadd.f32 %v1369, 1e-12
      %v1414 = vadd.f32 %v1372, 1e-12
      %v1415 = vadd.f32 %v1375, 1e-12
      %v1416 = vadd.f32 %v1378, 1e-12
      %v1417 = vadd.f32 %v1381, 1e-12
      %v1418 = vadd.f32 %v1384, 1e-12
      %v1419 = vadd.f32 %v1387, 1e-12
      %v1420 = vadd.f32 %v1390, 1e-12
      %v1421 = vadd.f32 %v1393, 1e-12
      %v1422 = vadd.f32 %v1396, 1e-12
      %v1423 = vadd.f32 %v1399, 1e-12
      %v1424 = vadd.f32 %v1402, 1e-12
      %v1425 = vrsqrt.pop %v1403
      %v1426 = vrsqrt.pop %v1404
      %v1427 = vrsqrt.pop %v1405
      %v1428 = vrsqrt.pop %v1406
      %v1429 = vrsqrt.pop %v1407
      %v1430 = vrsqrt.pop %v1408
      %v1431 = vrsqrt.pop %v1409
      %v1432 = vrsqrt.pop %v1410
      %v1433 = vrsqrt.pop %v1411
      %v1434 = vrsqrt.pop %v1412
      %v1435 = vrsqrt.pop %v1413
      %v1436 = vrsqrt.pop %v1414
      %v1437 = vrsqrt.pop %v1415
      %v1438 = vrsqrt.pop %v1416
      %v1439 = vrsqrt.pop %v1417
      %v1440 = vrsqrt.pop %v1418
      %v1441 = vrsqrt.pop %v1419
      %v1442 = vrsqrt.pop %v1420
      %v1443 = vrsqrt.pop %v1421
      %v1444 = vrsqrt.pop %v1422
      %v1445 = vrsqrt.pop %v1423
      %v1446 = vrsqrt.pop %v1424
      %v1447 = vmul.f32 %v589, %v1425
      %v1448 = vmul.f32 %v590, %v1426
      %v1449 = vmul.f32 %v591, %v1427
      %v1450 = vmul.f32 %v592, %v1428
      %v1451 = vmul.f32 %v593, %v1429
      %v1452 = vmul.f32 %v594, %v1430
      %v1453 = vmul.f32 %v595, %v1431
      %v1454 = vmul.f32 %v596, %v1432
      %v1455 = vmul.f32 %v597, %v1433
      %v1456 = vmul.f32 %v598, %v1434
      %v1457 = vmul.f32 %v599, %v1435
      %v1458 = vmul.f32 %v600, %v1436
      %v1459 = vmul.f32 %v601, %v1437
      %v1460 = vmul.f32 %v602, %v1438
      %v1461 = vmul.f32 %v603, %v1439
      %v1462 = vmul.f32 %v604, %v1440
      %v1463 = vmul.f32 %v605, %v1441
      %v1464 = vmul.f32 %v606, %v1442
      %v1465 = vmul.f32 %v607, %v1443
      %v1466 = vmul.f32 %v608, %v1444
      %v1467 = vmul.f32 %v609, %v1445
      %v1468 = vmul.f32 %v610, %v1446
      %v1469 = vadd.f32 %v567, %v1447
      %v1470 = vadd.f32 %v568, %v1448
      %v1471 = vadd.f32 %v569, %v1449
      %v1472 = vadd.f32 %v570, %v1450
      %v1473 = vadd.f32 %v571, %v1451
      %v1474 = vadd.f32 %v572, %v1452
      %v1475 = vadd.f32 %v573, %v1453
      %v1476 = vadd.f32 %v574, %v1454
      %v1477 = vadd.f32 %v575, %v1455
      %v1478 = vadd.f32 %v576, %v1456
      %v1479 = vadd.f32 %v577, %v1457
      %v1480 = vadd.f32 %v578, %v1458
      %v1481 = vadd.f32 %v579, %v1459
      %v1482 = vadd.f32 %v580, %v1460
      %v1483 = vadd.f32 %v581, %v1461
      %v1484 = vadd.f32 %v582, %v1462
      %v1485 = vadd.f32 %v583, %v1463
      %v1486 = vadd.f32 %v584, %v1464
      %v1487 = vadd.f32 %v585, %v1465
      %v1488 = vadd.f32 %v586, %v1466
      %v1489 = vadd.f32 %v587, %v1467
      %v1490 = vadd.f32 %v588, %v1468
      %1492 = vset.pattern.permute.xlu0 0
      %1493 = vperm.xlu0 %1492, %v1469
      %v1494 = vpop.permute.xlu0 %1493
      %1497 = vset.pattern.permute.xlu0 0
      %1498 = vperm.xlu0 %1497, %v1470
      %v1499 = vpop.permute.xlu0 %1498
      %1502 = vset.pattern.permute.xlu0 0
      %1503 = vperm.xlu0 %1502, %v1471
      %v1504 = vpop.permute.xlu0 %1503
      %1507 = vset.pattern.permute.xlu0 0
      %1508 = vperm.xlu0 %1507, %v1472
      %v1509 = vpop.permute.xlu0 %1508
      %1512 = vset.pattern.permute.xlu0 0
      %1513 = vperm.xlu0 %1512, %v1473
      %v1514 = vpop.permute.xlu0 %1513
      %1517 = vset.pattern.permute.xlu0 0
      %1518 = vperm.xlu0 %1517, %v1474
      %v1519 = vpop.permute.xlu0 %1518
      %1522 = vset.pattern.permute.xlu0 0
      %1523 = vperm.xlu0 %1522, %v1475
      %v1524 = vpop.permute.xlu0 %1523
      %1527 = vset.pattern.permute.xlu0 0
      %1528 = vperm.xlu0 %1527, %v1476
      %v1529 = vpop.permute.xlu0 %1528
      %1532 = vset.pattern.permute.xlu0 0
      %1533 = vperm.xlu0 %1532, %v1477
      %v1534 = vpop.permute.xlu0 %1533
      %1537 = vset.pattern.permute.xlu0 0
      %1538 = vperm.xlu0 %1537, %v1478
      %v1539 = vpop.permute.xlu0 %1538
      %1542 = vset.pattern.permute.xlu0 0
      %1543 = vperm.xlu0 %1542, %v1479
      %v1544 = vpop.permute.xlu0 %1543
      %1547 = vset.pattern.permute.xlu0 0
      %1548 = vperm.xlu0 %1547, %v1480
      %v1549 = vpop.permute.xlu0 %1548
      %1552 = vset.pattern.permute.xlu0 0
      %1553 = vperm.xlu0 %1552, %v1481
      %v1554 = vpop.permute.xlu0 %1553
      %1557 = vset.pattern.permute.xlu0 0
      %1558 = vperm.xlu0 %1557, %v1482
      %v1559 = vpop.permute.xlu0 %1558
      %1562 = vset.pattern.permute.xlu0 0
      %1563 = vperm.xlu0 %1562, %v1483
      %v1564 = vpop.permute.xlu0 %1563
      %1567 = vset.pattern.permute.xlu0 0
      %1568 = vperm.xlu0 %1567, %v1484
      %v1569 = vpop.permute.xlu0 %1568
      %1572 = vset.pattern.permute.xlu0 0
      %1573 = vperm.xlu0 %1572, %v1485
      %v1574 = vpop.permute.xlu0 %1573
      %1577 = vset.pattern.permute.xlu0 0
      %1578 = vperm.xlu0 %1577, %v1486
      %v1579 = vpop.permute.xlu0 %1578
      %1582 = vset.pattern.permute.xlu0 0
      %1583 = vperm.xlu0 %1582, %v1487
      %v1584 = vpop.permute.xlu0 %1583
      %1587 = vset.pattern.permute.xlu0 0
      %1588 = vperm.xlu0 %1587, %v1488
      %v1589 = vpop.permute.xlu0 %1588
      %1592 = vset.pattern.permute.xlu0 0
      %1593 = vperm.xlu0 %1592, %v1489
      %v1594 = vpop.permute.xlu0 %1593
      %1597 = vset.pattern.permute.xlu0 0
      %1598 = vperm.xlu0 %1597, %v1490
      %v1599 = vpop.permute.xlu0 %1598
      %v1601 = vmul.f32 %v1096, %v1494
      %v1602 = vmul.f32 %v1101, %v1499
      %v1603 = vmul.f32 %v1106, %v1504
      %v1604 = vmul.f32 %v1111, %v1509
      %v1605 = vmul.f32 %v1116, %v1514
      %v1606 = vmul.f32 %v1121, %v1519
      %v1607 = vmul.f32 %v1126, %v1524
      %v1608 = vmul.f32 %v1131, %v1529
      %v1609 = vmul.f32 %v1136, %v1534
      %v1610 = vmul.f32 %v1141, %v1539
      %v1611 = vmul.f32 %v1146, %v1544
      %v1612 = vmul.f32 %v1151, %v1549
      %v1613 = vmul.f32 %v1156, %v1554
      %v1614 = vmul.f32 %v1161, %v1559
      %v1615 = vmul.f32 %v1166, %v1564
      %v1616 = vmul.f32 %v1171, %v1569
      %v1617 = vmul.f32 %v1176, %v1574
      %v1618 = vmul.f32 %v1181, %v1579
      %v1619 = vmul.f32 %v1186, %v1584
      %v1620 = vmul.f32 %v1191, %v1589
      %v1621 = vmul.f32 %v1196, %v1594
      %v1622 = vmul.f32 %v1201, %v1599
      %v1623 = vmul.f32 %v1601, %v1206
      %v1624 = vmul.f32 %v1602, %v1211
      %v1625 = vmul.f32 %v1603, %v1216
      %v1626 = vmul.f32 %v1604, %v1221
      %v1627 = vmul.f32 %v1605, %v1226
      %v1628 = vmul.f32 %v1606, %v1231
      %v1629 = vmul.f32 %v1607, %v1236
      %v1630 = vmul.f32 %v1608, %v1241
      %v1631 = vmul.f32 %v1609, %v1246
      %v1632 = vmul.f32 %v1610, %v1251
      %v1633 = vmul.f32 %v1611, %v1256
      %v1634 = vmul.f32 %v1612, %v1261
      %v1635 = vmul.f32 %v1613, %v1266
      %v1636 = vmul.f32 %v1614, %v1271
      %v1637 = vmul.f32 %v1615, %v1276
      %v1638 = vmul.f32 %v1616, %v1281
      %v1639 = vmul.f32 %v1617, %v1286
      %v1640 = vmul.f32 %v1618, %v1291
      %v1641 = vmul.f32 %v1619, %v1296
      %v1642 = vmul.f32 %v1620, %v1301
      %v1643 = vmul.f32 %v1621, %v1306
      %v1644 = vmul.f32 %v1622, %v1311
      %v1645 = vsel %vm1336, %v1623, 0.0
      %1646 = vadd.xlane.f32.xlu0 %v1645
      %v1647 = vpop.xlane.xlu0 %1646
      %v1648 = vsel %vm1336, %v1624, 0.0
      %1649 = vadd.xlane.f32.xlu0 %v1648
      %v1650 = vpop.xlane.xlu0 %1649
      %v1651 = vsel %vm1336, %v1625, 0.0
      %1652 = vadd.xlane.f32.xlu0 %v1651
      %v1653 = vpop.xlane.xlu0 %1652
      %v1654 = vsel %vm1336, %v1626, 0.0
      %1655 = vadd.xlane.f32.xlu0 %v1654
      %v1656 = vpop.xlane.xlu0 %1655
      %v1657 = vsel %vm1336, %v1627, 0.0
      %1658 = vadd.xlane.f32.xlu0 %v1657
      %v1659 = vpop.xlane.xlu0 %1658
      %v1660 = vsel %vm1336, %v1628, 0.0
      %1661 = vadd.xlane.f32.xlu0 %v1660
      %v1662 = vpop.xlane.xlu0 %1661
      %v1663 = vsel %vm1336, %v1629, 0.0
      %1664 = vadd.xlane.f32.xlu0 %v1663
      %v1665 = vpop.xlane.xlu0 %1664
      %v1666 = vsel %vm1336, %v1630, 0.0
      %1667 = vadd.xlane.f32.xlu0 %v1666
      %v1668 = vpop.xlane.xlu0 %1667
      %v1669 = vsel %vm1336, %v1631, 0.0
      %1670 = vadd.xlane.f32.xlu0 %v1669
      %v1671 = vpop.xlane.xlu0 %1670
      %v1672 = vsel %vm1336, %v1632, 0.0
      %1673 = vadd.xlane.f32.xlu0 %v1672
      %v1674 = vpop.xlane.xlu0 %1673
      %v1675 = vsel %vm1336, %v1633, 0.0
      %1676 = vadd.xlane.f32.xlu0 %v1675
      %v1677 = vpop.xlane.xlu0 %1676
      %v1678 = vsel %vm1336, %v1634, 0.0
      %1679 = vadd.xlane.f32.xlu0 %v1678
      %v1680 = vpop.xlane.xlu0 %1679
      %v1681 = vsel %vm1336, %v1635, 0.0
      %1682 = vadd.xlane.f32.xlu0 %v1681
      %v1683 = vpop.xlane.xlu0 %1682
      %v1684 = vsel %vm1336, %v1636, 0.0
      %1685 = vadd.xlane.f32.xlu0 %v1684
      %v1686 = vpop.xlane.xlu0 %1685
      %v1687 = vsel %vm1336, %v1637, 0.0
      %1688 = vadd.xlane.f32.xlu0 %v1687
      %v1689 = vpop.xlane.xlu0 %1688
      %v1690 = vsel %vm1336, %v1638, 0.0
      %1691 = vadd.xlane.f32.xlu0 %v1690
      %v1692 = vpop.xlane.xlu0 %1691
      %v1693 = vsel %vm1336, %v1639, 0.0
      %1694 = vadd.xlane.f32.xlu0 %v1693
      %v1695 = vpop.xlane.xlu0 %1694
      %v1696 = vsel %vm1336, %v1640, 0.0
      %1697 = vadd.xlane.f32.xlu0 %v1696
      %v1698 = vpop.xlane.xlu0 %1697
      %v1699 = vsel %vm1336, %v1641, 0.0
      %1700 = vadd.xlane.f32.xlu0 %v1699
      %v1701 = vpop.xlane.xlu0 %1700
      %v1702 = vsel %vm1336, %v1642, 0.0
      %1703 = vadd.xlane.f32.xlu0 %v1702
      %v1704 = vpop.xlane.xlu0 %1703
      %v1705 = vsel %vm1336, %v1643, 0.0
      %1706 = vadd.xlane.f32.xlu0 %v1705
      %v1707 = vpop.xlane.xlu0 %1706
      %v1708 = vsel %vm1336, %v1644, 0.0
      %1709 = vadd.xlane.f32.xlu0 %v1708
      %v1710 = vpop.xlane.xlu0 %1709
      %v1711 = vmul.f32 %v1206, %v1206
      %v1712 = vmul.f32 %v1211, %v1211
      %v1713 = vmul.f32 %v1216, %v1216
      %v1714 = vmul.f32 %v1221, %v1221
      %v1715 = vmul.f32 %v1226, %v1226
      %v1716 = vmul.f32 %v1231, %v1231
      %v1717 = vmul.f32 %v1236, %v1236
      %v1718 = vmul.f32 %v1241, %v1241
      %v1719 = vmul.f32 %v1246, %v1246
      %v1720 = vmul.f32 %v1251, %v1251
      %v1721 = vmul.f32 %v1256, %v1256
      %v1722 = vmul.f32 %v1261, %v1261
      %v1723 = vmul.f32 %v1266, %v1266
      %v1724 = vmul.f32 %v1271, %v1271
      %v1725 = vmul.f32 %v1276, %v1276
      %v1726 = vmul.f32 %v1281, %v1281
      %v1727 = vmul.f32 %v1286, %v1286
      %v1728 = vmul.f32 %v1291, %v1291
      %v1729 = vmul.f32 %v1296, %v1296
      %v1730 = vmul.f32 %v1301, %v1301
      %v1731 = vmul.f32 %v1306, %v1306
      %v1732 = vmul.f32 %v1311, %v1311
      %v1733 = vsel %vm1336, %v1711, 0.0
      %1734 = vadd.xlane.f32.xlu0 %v1733
      %v1735 = vpop.xlane.xlu0 %1734
      %v1736 = vsel %vm1336, %v1712, 0.0
      %1737 = vadd.xlane.f32.xlu0 %v1736
      %v1738 = vpop.xlane.xlu0 %1737
      %v1739 = vsel %vm1336, %v1713, 0.0
      %1740 = vadd.xlane.f32.xlu0 %v1739
      %v1741 = vpop.xlane.xlu0 %1740
      %v1742 = vsel %vm1336, %v1714, 0.0
      %1743 = vadd.xlane.f32.xlu0 %v1742
      %v1744 = vpop.xlane.xlu0 %1743
      %v1745 = vsel %vm1336, %v1715, 0.0
      %1746 = vadd.xlane.f32.xlu0 %v1745
      %v1747 = vpop.xlane.xlu0 %1746
      %v1748 = vsel %vm1336, %v1716, 0.0
      %1749 = vadd.xlane.f32.xlu0 %v1748
      %v1750 = vpop.xlane.xlu0 %1749
      %v1751 = vsel %vm1336, %v1717, 0.0
      %1752 = vadd.xlane.f32.xlu0 %v1751
      %v1753 = vpop.xlane.xlu0 %1752
      %v1754 = vsel %vm1336, %v1718, 0.0
      %1755 = vadd.xlane.f32.xlu0 %v1754
      %v1756 = vpop.xlane.xlu0 %1755
      %v1757 = vsel %vm1336, %v1719, 0.0
      %1758 = vadd.xlane.f32.xlu0 %v1757
      %v1759 = vpop.xlane.xlu0 %1758
      %v1760 = vsel %vm1336, %v1720, 0.0
      %1761 = vadd.xlane.f32.xlu0 %v1760
      %v1762 = vpop.xlane.xlu0 %1761
      %v1763 = vsel %vm1336, %v1721, 0.0
      %1764 = vadd.xlane.f32.xlu0 %v1763
      %v1765 = vpop.xlane.xlu0 %1764
      %v1766 = vsel %vm1336, %v1722, 0.0
      %1767 = vadd.xlane.f32.xlu0 %v1766
      %v1768 = vpop.xlane.xlu0 %1767
      %v1769 = vsel %vm1336, %v1723, 0.0
      %1770 = vadd.xlane.f32.xlu0 %v1769
      %v1771 = vpop.xlane.xlu0 %1770
      %v1772 = vsel %vm1336, %v1724, 0.0
      %1773 = vadd.xlane.f32.xlu0 %v1772
      %v1774 = vpop.xlane.xlu0 %1773
      %v1775 = vsel %vm1336, %v1725, 0.0
      %1776 = vadd.xlane.f32.xlu0 %v1775
      %v1777 = vpop.xlane.xlu0 %1776
      %v1778 = vsel %vm1336, %v1726, 0.0
      %1779 = vadd.xlane.f32.xlu0 %v1778
      %v1780 = vpop.xlane.xlu0 %1779
      %v1781 = vsel %vm1336, %v1727, 0.0
      %1782 = vadd.xlane.f32.xlu0 %v1781
      %v1783 = vpop.xlane.xlu0 %1782
      %v1784 = vsel %vm1336, %v1728, 0.0
      %1785 = vadd.xlane.f32.xlu0 %v1784
      %v1786 = vpop.xlane.xlu0 %1785
      %v1787 = vsel %vm1336, %v1729, 0.0
      %1788 = vadd.xlane.f32.xlu0 %v1787
      %v1789 = vpop.xlane.xlu0 %1788
      %v1790 = vsel %vm1336, %v1730, 0.0
      %1791 = vadd.xlane.f32.xlu0 %v1790
      %v1792 = vpop.xlane.xlu0 %1791
      %v1793 = vsel %vm1336, %v1731, 0.0
      %1794 = vadd.xlane.f32.xlu0 %v1793
      %v1795 = vpop.xlane.xlu0 %1794
      %v1796 = vsel %vm1336, %v1732, 0.0
      %1797 = vadd.xlane.f32.xlu0 %v1796
      %v1798 = vpop.xlane.xlu0 %1797
      %v1799 = vadd.f32 %v1735, 1e-06
      %v1800 = vadd.f32 %v1738, 1e-06
      %v1801 = vadd.f32 %v1741, 1e-06
      %v1802 = vadd.f32 %v1744, 1e-06
      %v1803 = vadd.f32 %v1747, 1e-06
      %v1804 = vadd.f32 %v1750, 1e-06
      %v1805 = vadd.f32 %v1753, 1e-06
      %v1806 = vadd.f32 %v1756, 1e-06
      %v1807 = vadd.f32 %v1759, 1e-06
      %v1808 = vadd.f32 %v1762, 1e-06
      %v1809 = vadd.f32 %v1765, 1e-06
      %v1810 = vadd.f32 %v1768, 1e-06
      %v1811 = vadd.f32 %v1771, 1e-06
      %v1812 = vadd.f32 %v1774, 1e-06
      %v1813 = vadd.f32 %v1777, 1e-06
      %v1814 = vadd.f32 %v1780, 1e-06
      %v1815 = vadd.f32 %v1783, 1e-06
      %v1816 = vadd.f32 %v1786, 1e-06
      %v1817 = vadd.f32 %v1789, 1e-06
      %v1818 = vadd.f32 %v1792, 1e-06
      %v1819 = vadd.f32 %v1795, 1e-06
      %v1820 = vadd.f32 %v1798, 1e-06
      %v1821 = vrcp.pop %v1799
      %v1822 = vrcp.pop %v1800
      %v1823 = vrcp.pop %v1801
      %v1824 = vrcp.pop %v1802
      %v1825 = vrcp.pop %v1803
      %v1826 = vrcp.pop %v1804
      %v1827 = vrcp.pop %v1805
      %v1828 = vrcp.pop %v1806
      %v1829 = vrcp.pop %v1807
      %v1830 = vrcp.pop %v1808
      %v1831 = vrcp.pop %v1809
      %v1832 = vrcp.pop %v1810
      %v1833 = vrcp.pop %v1811
      %v1834 = vrcp.pop %v1812
      %v1835 = vrcp.pop %v1813
      %v1836 = vrcp.pop %v1814
      %v1837 = vrcp.pop %v1815
      %v1838 = vrcp.pop %v1816
      %v1839 = vrcp.pop %v1817
      %v1840 = vrcp.pop %v1818
      %v1841 = vrcp.pop %v1819
      %v1842 = vrcp.pop %v1820
      %v1843 = vmul.f32 %v1647, %v1821
      %v1844 = vmul.f32 %v1650, %v1822
      %v1845 = vmul.f32 %v1653, %v1823
      %v1846 = vmul.f32 %v1656, %v1824
      %v1847 = vmul.f32 %v1659, %v1825
      %v1848 = vmul.f32 %v1662, %v1826
      %v1849 = vmul.f32 %v1665, %v1827
      %v1850 = vmul.f32 %v1668, %v1828
      %v1851 = vmul.f32 %v1671, %v1829
      %v1852 = vmul.f32 %v1674, %v1830
      %v1853 = vmul.f32 %v1677, %v1831
      %v1854 = vmul.f32 %v1680, %v1832
      %v1855 = vmul.f32 %v1683, %v1833
      %v1856 = vmul.f32 %v1686, %v1834
      %v1857 = vmul.f32 %v1689, %v1835
      %v1858 = vmul.f32 %v1692, %v1836
      %v1859 = vmul.f32 %v1695, %v1837
      %v1860 = vmul.f32 %v1698, %v1838
      %v1861 = vmul.f32 %v1701, %v1839
      %v1862 = vmul.f32 %v1704, %v1840
      %v1863 = vmul.f32 %v1707, %v1841
      %v1864 = vmul.f32 %v1710, %v1842
      %v1865 = vmin.f32 %v1843, 0.0
      %v1866 = vmin.f32 %v1844, 0.0
      %v1867 = vmin.f32 %v1845, 0.0
      %v1868 = vmin.f32 %v1846, 0.0
      %v1869 = vmin.f32 %v1847, 0.0
      %v1870 = vmin.f32 %v1848, 0.0
      %v1871 = vmin.f32 %v1849, 0.0
      %v1872 = vmin.f32 %v1850, 0.0
      %v1873 = vmin.f32 %v1851, 0.0
      %v1874 = vmin.f32 %v1852, 0.0
      %v1875 = vmin.f32 %v1853, 0.0
      %v1876 = vmin.f32 %v1854, 0.0
      %v1877 = vmin.f32 %v1855, 0.0
      %v1878 = vmin.f32 %v1856, 0.0
      %v1879 = vmin.f32 %v1857, 0.0
      %v1880 = vmin.f32 %v1858, 0.0
      %v1881 = vmin.f32 %v1859, 0.0
      %v1882 = vmin.f32 %v1860, 0.0
      %v1883 = vmin.f32 %v1861, 0.0
      %v1884 = vmin.f32 %v1862, 0.0
      %v1885 = vmin.f32 %v1863, 0.0
      %v1886 = vmin.f32 %v1864, 0.0
      %v1887 = vmul.f32 %v1865, %v1206
      %v1888 = vmul.f32 %v1866, %v1211
      %v1889 = vmul.f32 %v1867, %v1216
      %v1890 = vmul.f32 %v1868, %v1221
      %v1891 = vmul.f32 %v1869, %v1226
      %v1892 = vmul.f32 %v1870, %v1231
      %v1893 = vmul.f32 %v1871, %v1236
      %v1894 = vmul.f32 %v1872, %v1241
      %v1895 = vmul.f32 %v1873, %v1246
      %v1896 = vmul.f32 %v1874, %v1251
      %v1897 = vmul.f32 %v1875, %v1256
      %v1898 = vmul.f32 %v1876, %v1261
      %v1899 = vmul.f32 %v1877, %v1266
      %v1900 = vmul.f32 %v1878, %v1271
      %v1901 = vmul.f32 %v1879, %v1276
      %v1902 = vmul.f32 %v1880, %v1281
      %v1903 = vmul.f32 %v1881, %v1286
      %v1904 = vmul.f32 %v1882, %v1291
      %v1905 = vmul.f32 %v1883, %v1296
      %v1906 = vmul.f32 %v1884, %v1301
      %v1907 = vmul.f32 %v1885, %v1306
      %v1908 = vmul.f32 %v1886, %v1311
      %v1909 = vsub.f32 %v1601, %v1887
      %v1910 = vsub.f32 %v1602, %v1888
      %v1911 = vsub.f32 %v1603, %v1889
      %v1912 = vsub.f32 %v1604, %v1890
      %v1913 = vsub.f32 %v1605, %v1891
      %v1914 = vsub.f32 %v1606, %v1892
      %v1915 = vsub.f32 %v1607, %v1893
      %v1916 = vsub.f32 %v1608, %v1894
      %v1917 = vsub.f32 %v1609, %v1895
      %v1918 = vsub.f32 %v1610, %v1896
      %v1919 = vsub.f32 %v1611, %v1897
      %v1920 = vsub.f32 %v1612, %v1898
      %v1921 = vsub.f32 %v1613, %v1899
      %v1922 = vsub.f32 %v1614, %v1900
      %v1923 = vsub.f32 %v1615, %v1901
      %v1924 = vsub.f32 %v1616, %v1902
      %v1925 = vsub.f32 %v1617, %v1903
      %v1926 = vsub.f32 %v1618, %v1904
      %v1927 = vsub.f32 %v1619, %v1905
      %v1928 = vsub.f32 %v1620, %v1906
      %v1929 = vsub.f32 %v1621, %v1907
      %v1930 = vsub.f32 %v1622, %v1908
      %v1931 = vld [vmem:[%s4] sm:$0xff]
      %v1932 = vld [vmem:[%s4 + $0x8] sm:$0xff]
      %v1933 = vld [vmem:[%s4 + $0x10] sm:$0xff]
      %v1934 = vld [vmem:[%s4 + $0x18] sm:$0xff]
      %v1935 = vld [vmem:[%s4 + $0x20] sm:$0xff]
      %v1936 = vld [vmem:[%s4 + $0x28] sm:$0xff]
      %v1937 = vld [vmem:[%s4 + $0x30] sm:$0xff]
      %v1938 = vld [vmem:[%s4 + $0x38] sm:$0xff]
      %v1939 = vld [vmem:[%s4 + $0x40] sm:$0xff]
      %v1940 = vld [vmem:[%s4 + $0x48] sm:$0xff]
      %v1941 = vld [vmem:[%s4 + $0x50] sm:$0xff]
      %v1942 = vld [vmem:[%s4 + $0x58] sm:$0xff]
      %v1943 = vld [vmem:[%s4 + $0x60] sm:$0xff]
      %v1944 = vld [vmem:[%s4 + $0x68] sm:$0xff]
      %v1945 = vld [vmem:[%s4 + $0x70] sm:$0xff]
      %v1946 = vld [vmem:[%s4 + $0x78] sm:$0xff]
      %v1947 = vld [vmem:[%s4 + $0x80] sm:$0xff]
      %v1948 = vld [vmem:[%s4 + $0x88] sm:$0xff]
      %v1949 = vld [vmem:[%s4 + $0x90] sm:$0xff]
      %v1950 = vld [vmem:[%s4 + $0x98] sm:$0xff]
      %v1951 = vld [vmem:[%s4 + $0xa0] sm:$0xff]
      %v1952 = vld [vmem:[%s4 + $0xa8] sm:$0xff]
      %v1953 = vld [vmem:[%s4 + $0xb0] sm:$0xff]
      %v1954 = vld [vmem:[%s4 + $0xb8] sm:$0xff]
      %v1955 = vld [vmem:[%s4 + $0xc0] sm:$0xff]
      %v1956 = vld [vmem:[%s4 + $0xc8] sm:$0xff]
      %v1957 = vld [vmem:[%s4 + $0xd0] sm:$0xff]
      %v1958 = vld [vmem:[%s4 + $0xd8] sm:$0xff]
      %v1959 = vld [vmem:[%s4 + $0xe0] sm:$0xff]
      %v1960 = vld [vmem:[%s4 + $0xe8] sm:$0xff]
      %v1961 = vld [vmem:[%s4 + $0xf0] sm:$0xff]
      %v1962 = vld [vmem:[%s4 + $0xf8] sm:$0xff]
      %v1963 = vld [vmem:[%s4 + $0x100] sm:$0xff]
      %v1964 = vld [vmem:[%s4 + $0x108] sm:$0xff]
      %v1965 = vld [vmem:[%s4 + $0x110] sm:$0xff]
      %v1966 = vld [vmem:[%s4 + $0x118] sm:$0xff]
      %v1967 = vld [vmem:[%s4 + $0x120] sm:$0xff]
      %v1968 = vld [vmem:[%s4 + $0x128] sm:$0xff]
      %v1969 = vld [vmem:[%s4 + $0x130] sm:$0xff]
      %v1970 = vld [vmem:[%s4 + $0x138] sm:$0xff]
      %v1971 = vld [vmem:[%s4 + $0x140] sm:$0xff]
      %v1972 = vld [vmem:[%s4 + $0x148] sm:$0xff]
      %v1973 = vld [vmem:[%s4 + $0x150] sm:$0xff]
      %v1974 = vld [vmem:[%s4 + $0x158] sm:$0xff]
      %v1975 = vld [vmem:[%s5] sm:$0xff]
      %v1976 = vld [vmem:[%s5 + $0x8] sm:$0xff]
      %v1977 = vld [vmem:[%s5 + $0x10] sm:$0xff]
      %v1978 = vld [vmem:[%s5 + $0x18] sm:$0xff]
      %v1979 = vld [vmem:[%s5 + $0x20] sm:$0xff]
      %v1980 = vld [vmem:[%s5 + $0x28] sm:$0xff]
      %v1981 = vld [vmem:[%s5 + $0x30] sm:$0xff]
      %v1982 = vld [vmem:[%s5 + $0x38] sm:$0xff]
      %v1983 = vld [vmem:[%s5 + $0x40] sm:$0xff]
      %v1984 = vld [vmem:[%s5 + $0x48] sm:$0xff]
      %v1985 = vld [vmem:[%s5 + $0x50] sm:$0xff]
      %v1986 = vld [vmem:[%s6] sm:$0xff]
      %v1987 = vld [vmem:[%s6 + $0x8] sm:$0xff]
      %v1988 = vld [vmem:[%s6 + $0x10] sm:$0xff]
      %v1989 = vld [vmem:[%s6 + $0x18] sm:$0xff]
      %v1990 = vld [vmem:[%s6 + $0x20] sm:$0xff]
      %v1991 = vld [vmem:[%s6 + $0x28] sm:$0xff]
      %v1992 = vld [vmem:[%s6 + $0x30] sm:$0xff]
      %v1993 = vld [vmem:[%s6 + $0x38] sm:$0xff]
      %v1994 = vld [vmem:[%s6 + $0x40] sm:$0xff]
      %v1995 = vld [vmem:[%s6 + $0x48] sm:$0xff]
      %v1996 = vld [vmem:[%s6 + $0x50] sm:$0xff]
      %vm1997 = vcmask 392192
      %v1999 = vsel %vm1997, %v1932, 0
      %v2002 = vsel %vm1997, %v1934, 0
      %v2005 = vsel %vm1997, %v1936, 0
      %v2008 = vsel %vm1997, %v1938, 0
      %v2011 = vsel %vm1997, %v1940, 0
      %v2014 = vsel %vm1997, %v1942, 0
      %v2017 = vsel %vm1997, %v1944, 0
      %v2020 = vsel %vm1997, %v1946, 0
      %v2023 = vsel %vm1997, %v1948, 0
      %v2026 = vsel %vm1997, %v1950, 0
      %v2029 = vsel %vm1997, %v1952, 0
      %v2032 = vsel %vm1997, %v1954, 0
      %v2035 = vsel %vm1997, %v1956, 0
      %v2038 = vsel %vm1997, %v1958, 0
      %v2041 = vsel %vm1997, %v1960, 0
      %v2044 = vsel %vm1997, %v1962, 0
      %v2047 = vsel %vm1997, %v1964, 0
      %v2050 = vsel %vm1997, %v1966, 0
      %v2053 = vsel %vm1997, %v1968, 0
      %v2056 = vsel %vm1997, %v1970, 0
      %v2059 = vsel %vm1997, %v1972, 0
      %v2062 = vsel %vm1997, %v1974, 0
      %2064 = vmatprep.subr.mxu0 0.0
      %2065 = vmatpush1.msra.mxu0 %v1924
      %2066 = vmatprep.subr.mxu0 0.0
      %2067 = vmatpush1.msra.mxu0 %v1923
      %2068 = vmatprep.subr.mxu0 0.0
      %2069 = vmatpush1.msra.mxu0 %v1922
      %2070 = vmatprep.subr.mxu0 0.0
      %2071 = vmatpush1.msra.mxu0 %v1921
      %2072 = vmatprep.subr.mxu0 0.0
      %2073 = vmatpush1.msra.mxu0 %v1920
      %2074 = vmatprep.subr.mxu0 0.0
      %2075 = vmatpush1.msra.mxu0 %v1919
      %2076 = vmatprep.subr.mxu0 0.0
      %2077 = vmatpush1.msra.mxu0 %v1918
      %2078 = vmatprep.subr.mxu0 0.0
      %2079 = vmatpush1.msra.mxu0 %v1917
      %2080 = vmatprep.subr.mxu0 0.0
      %2081 = vmatpush1.msra.mxu0 %v1916
      %2082 = vmatprep.subr.mxu0 0.0
      %2083 = vmatpush1.msra.mxu0 %v1915
      %2084 = vmatprep.subr.mxu0 0.0
      %2085 = vmatpush1.msra.mxu0 %v1914
      %2086 = vmatprep.subr.mxu0 0.0
      %2087 = vmatpush1.msra.mxu0 %v1913
      %2088 = vmatprep.subr.mxu0 0.0
      %2089 = vmatpush1.msra.mxu0 %v1912
      %2090 = vmatprep.subr.mxu0 0.0
      %2091 = vmatpush1.msra.mxu0 %v1911
      %2092 = vmatprep.subr.mxu0 0.0
      %2093 = vmatpush1.msra.mxu0 %v1910
      %2094 = vmatprep.subr.mxu0 0.0
      %2095 = vmatpush1.msra.mxu0 %v1909
      %2096 = vmatprep.subr.mxu0 0.0
      %2097 = vmatpush2.msra.mxu0 0.0
      %2098 = vmatprep.subr.mxu0 0.0
      %2099 = vmatpush2.msra.mxu0 0.0
      %2100 = vmatprep.subr.mxu0 0.0
      %2101 = vmatpush2.msra.mxu0 0.0
      %2102 = vmatprep.subr.mxu0 0.0
      %2103 = vmatpush2.msra.mxu0 0.0
      %2104 = vmatprep.subr.mxu0 0.0
      %2105 = vmatpush2.msra.mxu0 0.0
      %2106 = vmatprep.subr.mxu0 0.0
      %2107 = vmatpush2.msra.mxu0 0.0
      %2108 = vmatprep.subr.mxu0 0.0
      %2109 = vmatpush2.msra.mxu0 0.0
      %2110 = vmatprep.subr.mxu0 0.0
      %2111 = vmatpush2.msra.mxu0 0.0
      %2112 = vmatprep.subr.mxu0 0.0
      %2113 = vmatpush2.msra.mxu0 0.0
      %2114 = vmatprep.subr.mxu0 0.0
      %2115 = vmatpush2.msra.mxu0 0.0
      %2116 = vmatprep.subr.mxu0 0.0
      %2117 = vmatpush2.msra.mxu0 %v1930
      %2118 = vmatprep.subr.mxu0 0.0
      %2119 = vmatpush2.msra.mxu0 %v1929
      %2120 = vmatprep.subr.mxu0 0.0
      %2121 = vmatpush2.msra.mxu0 %v1928
      %2122 = vmatprep.subr.mxu0 0.0
      %2123 = vmatpush2.msra.mxu0 %v1927
      %2124 = vmatprep.subr.mxu0 0.0
      %2125 = vmatpush2.msra.mxu0 %v1926
      %2126 = vmatprep.subr.mxu0 0.0
      %2127 = vmatpush2.msra.mxu0 %v1925
      %2128 = vmatprep.mubr.f32.mxu0 %v1999
      %2129 = vmatmul.mubr.f32.gmra.mxu0 %v1931
      %v2130 = vpop.f32.mrf.mxu0
      %v2131 = vadd.f32 0.0, %v2130
      %v2132 = vpop.f32.mrf.mxu0
      %2133 = vmatprep.mubr.f32.mxu0 %v2002
      %2134 = vmatmul.mubr.f32.gmra.mxu0 %v1933
      %v2135 = vpop.f32.mrf.mxu0
      %v2136 = vadd.f32 0.0, %v2135
      %v2137 = vpop.f32.mrf.mxu0
      %2138 = vmatprep.mubr.f32.mxu0 %v2005
      %2139 = vmatmul.mubr.f32.gmra.mxu0 %v1935
      %v2140 = vpop.f32.mrf.mxu0
      %v2141 = vadd.f32 0.0, %v2140
      %v2142 = vpop.f32.mrf.mxu0
      %2143 = vmatprep.mubr.f32.mxu0 %v2008
      %2144 = vmatmul.mubr.f32.gmra.mxu0 %v1937
      %v2145 = vpop.f32.mrf.mxu0
      %v2146 = vadd.f32 0.0, %v2145
      %v2147 = vpop.f32.mrf.mxu0
      %2148 = vmatprep.mubr.f32.mxu0 %v2011
      %2149 = vmatmul.mubr.f32.gmra.mxu0 %v1939
      %v2150 = vpop.f32.mrf.mxu0
      %v2151 = vadd.f32 0.0, %v2150
      %v2152 = vpop.f32.mrf.mxu0
      %2153 = vmatprep.mubr.f32.mxu0 %v2014
      %2154 = vmatmul.mubr.f32.gmra.mxu0 %v1941
      %v2155 = vpop.f32.mrf.mxu0
      %v2156 = vadd.f32 0.0, %v2155
      %v2157 = vpop.f32.mrf.mxu0
      %2158 = vmatprep.mubr.f32.mxu0 %v2017
      %2159 = vmatmul.mubr.f32.gmra.mxu0 %v1943
      %v2160 = vpop.f32.mrf.mxu0
      %v2161 = vadd.f32 0.0, %v2160
      %v2162 = vpop.f32.mrf.mxu0
      %2163 = vmatprep.mubr.f32.mxu0 %v2020
      %2164 = vmatmul.mubr.f32.gmra.mxu0 %v1945
      %v2165 = vpop.f32.mrf.mxu0
      %v2166 = vadd.f32 0.0, %v2165
      %v2167 = vpop.f32.mrf.mxu0
      %2168 = vmatprep.mubr.f32.mxu0 %v2023
      %2169 = vmatmul.mubr.f32.gmra.mxu0 %v1947
      %v2170 = vpop.f32.mrf.mxu0
      %v2171 = vadd.f32 0.0, %v2170
      %v2172 = vpop.f32.mrf.mxu0
      %2173 = vmatprep.mubr.f32.mxu0 %v2026
      %2174 = vmatmul.mubr.f32.gmra.mxu0 %v1949
      %v2175 = vpop.f32.mrf.mxu0
      %v2176 = vadd.f32 0.0, %v2175
      %v2177 = vpop.f32.mrf.mxu0
      %2178 = vmatprep.mubr.f32.mxu0 %v2029
      %2179 = vmatmul.mubr.f32.gmra.mxu0 %v1951
      %v2180 = vpop.f32.mrf.mxu0
      %v2181 = vadd.f32 0.0, %v2180
      %v2182 = vpop.f32.mrf.mxu0
      %2183 = vmatprep.mubr.f32.mxu0 %v2032
      %2184 = vmatmul.mubr.f32.gmra.mxu0 %v1953
      %v2185 = vpop.f32.mrf.mxu0
      %v2186 = vadd.f32 0.0, %v2185
      %v2187 = vpop.f32.mrf.mxu0
      %2188 = vmatprep.mubr.f32.mxu0 %v2035
      %2189 = vmatmul.mubr.f32.gmra.mxu0 %v1955
      %v2190 = vpop.f32.mrf.mxu0
      %v2191 = vadd.f32 0.0, %v2190
      %v2192 = vpop.f32.mrf.mxu0
      %2193 = vmatprep.mubr.f32.mxu0 %v2038
      %2194 = vmatmul.mubr.f32.gmra.mxu0 %v1957
      %v2195 = vpop.f32.mrf.mxu0
      %v2196 = vadd.f32 0.0, %v2195
      %v2197 = vpop.f32.mrf.mxu0
      %2198 = vmatprep.mubr.f32.mxu0 %v2041
      %2199 = vmatmul.mubr.f32.gmra.mxu0 %v1959
      %v2200 = vpop.f32.mrf.mxu0
      %v2201 = vadd.f32 0.0, %v2200
      %v2202 = vpop.f32.mrf.mxu0
      %2203 = vmatprep.mubr.f32.mxu0 %v2044
      %2204 = vmatmul.mubr.f32.gmra.mxu0 %v1961
      %v2205 = vpop.f32.mrf.mxu0
      %v2206 = vadd.f32 0.0, %v2205
      %v2207 = vpop.f32.mrf.mxu0
      %2208 = vmatprep.mubr.f32.mxu0 %v2047
      %2209 = vmatmul.mubr.f32.gmra.mxu0 %v1963
      %v2210 = vpop.f32.mrf.mxu0
      %v2211 = vadd.f32 0.0, %v2210
      %v2212 = vpop.f32.mrf.mxu0
      %2213 = vmatprep.mubr.f32.mxu0 %v2050
      %2214 = vmatmul.mubr.f32.gmra.mxu0 %v1965
      %v2215 = vpop.f32.mrf.mxu0
      %v2216 = vadd.f32 0.0, %v2215
      %v2217 = vpop.f32.mrf.mxu0
      %2218 = vmatprep.mubr.f32.mxu0 %v2053
      %2219 = vmatmul.mubr.f32.gmra.mxu0 %v1967
      %v2220 = vpop.f32.mrf.mxu0
      %v2221 = vadd.f32 0.0, %v2220
      %v2222 = vpop.f32.mrf.mxu0
      %2223 = vmatprep.mubr.f32.mxu0 %v2056
      %2224 = vmatmul.mubr.f32.gmra.mxu0 %v1969
      %v2225 = vpop.f32.mrf.mxu0
      %v2226 = vadd.f32 0.0, %v2225
      %v2227 = vpop.f32.mrf.mxu0
      %2228 = vmatprep.mubr.f32.mxu0 %v2059
      %2229 = vmatmul.mubr.f32.gmra.mxu0 %v1971
      %v2230 = vpop.f32.mrf.mxu0
      %v2231 = vadd.f32 0.0, %v2230
      %v2232 = vpop.f32.mrf.mxu0
      %2233 = vmatprep.mubr.f32.mxu0 %v2062
      %2234 = vmatmul.mubr.f32.gmra.mxu0 %v1973
      %v2235 = vpop.f32.mrf.mxu0
      %v2236 = vadd.f32 0.0, %v2235
      %v2237 = vpop.f32.mrf.mxu0
      %2238 = vdwg.mxu0
      %v2239 = vmul.f32 %v2131, %v2131
      %v2240 = vmul.f32 %v2136, %v2136
      %v2241 = vmul.f32 %v2141, %v2141
      %v2242 = vmul.f32 %v2146, %v2146
      %v2243 = vmul.f32 %v2151, %v2151
      %v2244 = vmul.f32 %v2156, %v2156
      %v2245 = vmul.f32 %v2161, %v2161
      %v2246 = vmul.f32 %v2166, %v2166
      %v2247 = vmul.f32 %v2171, %v2171
      %v2248 = vmul.f32 %v2176, %v2176
      %v2249 = vmul.f32 %v2181, %v2181
      %v2250 = vsel %vm1336, %v2239, 0.0
      %2251 = vadd.xlane.f32.xlu0 %v2250
      %v2252 = vpop.xlane.xlu0 %2251
      %v2253 = vsel %vm1336, %v2240, 0.0
      %2254 = vadd.xlane.f32.xlu0 %v2253
      %v2255 = vpop.xlane.xlu0 %2254
      %v2256 = vsel %vm1336, %v2241, 0.0
      %2257 = vadd.xlane.f32.xlu0 %v2256
      %v2258 = vpop.xlane.xlu0 %2257
      %v2259 = vsel %vm1336, %v2242, 0.0
      %2260 = vadd.xlane.f32.xlu0 %v2259
      %v2261 = vpop.xlane.xlu0 %2260
      %v2262 = vsel %vm1336, %v2243, 0.0
      %2263 = vadd.xlane.f32.xlu0 %v2262
      %v2264 = vpop.xlane.xlu0 %2263
      %v2265 = vsel %vm1336, %v2244, 0.0
      %2266 = vadd.xlane.f32.xlu0 %v2265
      %v2267 = vpop.xlane.xlu0 %2266
      %v2268 = vsel %vm1336, %v2245, 0.0
      %2269 = vadd.xlane.f32.xlu0 %v2268
      %v2270 = vpop.xlane.xlu0 %2269
      %v2271 = vsel %vm1336, %v2246, 0.0
      %2272 = vadd.xlane.f32.xlu0 %v2271
      %v2273 = vpop.xlane.xlu0 %2272
      %v2274 = vsel %vm1336, %v2247, 0.0
      %2275 = vadd.xlane.f32.xlu0 %v2274
      %v2276 = vpop.xlane.xlu0 %2275
      %v2277 = vsel %vm1336, %v2248, 0.0
      %2278 = vadd.xlane.f32.xlu0 %v2277
      %v2279 = vpop.xlane.xlu0 %2278
      %v2280 = vsel %vm1336, %v2249, 0.0
      %2281 = vadd.xlane.f32.xlu0 %v2280
      %v2282 = vpop.xlane.xlu0 %2281
      %v2283 = vadd.f32 %v2252, 1e-12
      %v2284 = vadd.f32 %v2255, 1e-12
      %v2285 = vadd.f32 %v2258, 1e-12
      %v2286 = vadd.f32 %v2261, 1e-12
      %v2287 = vadd.f32 %v2264, 1e-12
      %v2288 = vadd.f32 %v2267, 1e-12
      %v2289 = vadd.f32 %v2270, 1e-12
      %v2290 = vadd.f32 %v2273, 1e-12
      %v2291 = vadd.f32 %v2276, 1e-12
      %v2292 = vadd.f32 %v2279, 1e-12
      %v2293 = vadd.f32 %v2282, 1e-12
      %v2294 = vrsqrt.pop %v2283
      %v2295 = vrsqrt.pop %v2284
      %v2296 = vrsqrt.pop %v2285
      %v2297 = vrsqrt.pop %v2286
      %v2298 = vrsqrt.pop %v2287
      %v2299 = vrsqrt.pop %v2288
      %v2300 = vrsqrt.pop %v2289
      %v2301 = vrsqrt.pop %v2290
      %v2302 = vrsqrt.pop %v2291
      %v2303 = vrsqrt.pop %v2292
      %v2304 = vrsqrt.pop %v2293
      %v2305 = vmul.f32 %v1986, %v2294
      %v2306 = vmul.f32 %v1987, %v2295
      %v2307 = vmul.f32 %v1988, %v2296
      %v2308 = vmul.f32 %v1989, %v2297
      %v2309 = vmul.f32 %v1990, %v2298
      %v2310 = vmul.f32 %v1991, %v2299
      %v2311 = vmul.f32 %v1992, %v2300
      %v2312 = vmul.f32 %v1993, %v2301
      %v2313 = vmul.f32 %v1994, %v2302
      %v2314 = vmul.f32 %v1995, %v2303
      %v2315 = vmul.f32 %v1996, %v2304
      %v2316 = vadd.f32 %v1975, %v2305
      %v2317 = vadd.f32 %v1976, %v2306
      %v2318 = vadd.f32 %v1977, %v2307
      %v2319 = vadd.f32 %v1978, %v2308
      %v2320 = vadd.f32 %v1979, %v2309
      %v2321 = vadd.f32 %v1980, %v2310
      %v2322 = vadd.f32 %v1981, %v2311
      %v2323 = vadd.f32 %v1982, %v2312
      %v2324 = vadd.f32 %v1983, %v2313
      %v2325 = vadd.f32 %v1984, %v2314
      %v2326 = vadd.f32 %v1985, %v2315
      %2328 = vset.pattern.permute.xlu0 0
      %2329 = vperm.xlu0 %2328, %v2316
      %v2330 = vpop.permute.xlu0 %2329
      %2333 = vset.pattern.permute.xlu0 0
      %2334 = vperm.xlu0 %2333, %v2317
      %v2335 = vpop.permute.xlu0 %2334
      %2338 = vset.pattern.permute.xlu0 0
      %2339 = vperm.xlu0 %2338, %v2318
      %v2340 = vpop.permute.xlu0 %2339
      %2343 = vset.pattern.permute.xlu0 0
      %2344 = vperm.xlu0 %2343, %v2319
      %v2345 = vpop.permute.xlu0 %2344
      %2348 = vset.pattern.permute.xlu0 0
      %2349 = vperm.xlu0 %2348, %v2320
      %v2350 = vpop.permute.xlu0 %2349
      %2353 = vset.pattern.permute.xlu0 0
      %2354 = vperm.xlu0 %2353, %v2321
      %v2355 = vpop.permute.xlu0 %2354
      %2358 = vset.pattern.permute.xlu0 0
      %2359 = vperm.xlu0 %2358, %v2322
      %v2360 = vpop.permute.xlu0 %2359
      %2363 = vset.pattern.permute.xlu0 0
      %2364 = vperm.xlu0 %2363, %v2323
      %v2365 = vpop.permute.xlu0 %2364
      %2368 = vset.pattern.permute.xlu0 0
      %2369 = vperm.xlu0 %2368, %v2324
      %v2370 = vpop.permute.xlu0 %2369
      %2373 = vset.pattern.permute.xlu0 0
      %2374 = vperm.xlu0 %2373, %v2325
      %v2375 = vpop.permute.xlu0 %2374
      %2378 = vset.pattern.permute.xlu0 0
      %2379 = vperm.xlu0 %2378, %v2326
      %v2380 = vpop.permute.xlu0 %2379
      %v2382 = vmul.f32 %v2131, %v2330
      %v2383 = vmul.f32 %v2136, %v2335
      %v2384 = vmul.f32 %v2141, %v2340
      %v2385 = vmul.f32 %v2146, %v2345
      %v2386 = vmul.f32 %v2151, %v2350
      %v2387 = vmul.f32 %v2156, %v2355
      %v2388 = vmul.f32 %v2161, %v2360
      %v2389 = vmul.f32 %v2166, %v2365
      %v2390 = vmul.f32 %v2171, %v2370
      %v2391 = vmul.f32 %v2176, %v2375
      %v2392 = vmul.f32 %v2181, %v2380
      %v2393 = vmul.f32 %v2382, %v2186
      %v2394 = vmul.f32 %v2383, %v2191
      %v2395 = vmul.f32 %v2384, %v2196
      %v2396 = vmul.f32 %v2385, %v2201
      %v2397 = vmul.f32 %v2386, %v2206
      %v2398 = vmul.f32 %v2387, %v2211
      %v2399 = vmul.f32 %v2388, %v2216
      %v2400 = vmul.f32 %v2389, %v2221
      %v2401 = vmul.f32 %v2390, %v2226
      %v2402 = vmul.f32 %v2391, %v2231
      %v2403 = vmul.f32 %v2392, %v2236
      %v2404 = vsel %vm1336, %v2393, 0.0
      %2405 = vadd.xlane.f32.xlu0 %v2404
      %v2406 = vpop.xlane.xlu0 %2405
      %v2407 = vsel %vm1336, %v2394, 0.0
      %2408 = vadd.xlane.f32.xlu0 %v2407
      %v2409 = vpop.xlane.xlu0 %2408
      %v2410 = vsel %vm1336, %v2395, 0.0
      %2411 = vadd.xlane.f32.xlu0 %v2410
      %v2412 = vpop.xlane.xlu0 %2411
      %v2413 = vsel %vm1336, %v2396, 0.0
      %2414 = vadd.xlane.f32.xlu0 %v2413
      %v2415 = vpop.xlane.xlu0 %2414
      %v2416 = vsel %vm1336, %v2397, 0.0
      %2417 = vadd.xlane.f32.xlu0 %v2416
      %v2418 = vpop.xlane.xlu0 %2417
      %v2419 = vsel %vm1336, %v2398, 0.0
      %2420 = vadd.xlane.f32.xlu0 %v2419
      %v2421 = vpop.xlane.xlu0 %2420
      %v2422 = vsel %vm1336, %v2399, 0.0
      %2423 = vadd.xlane.f32.xlu0 %v2422
      %v2424 = vpop.xlane.xlu0 %2423
      %v2425 = vsel %vm1336, %v2400, 0.0
      %2426 = vadd.xlane.f32.xlu0 %v2425
      %v2427 = vpop.xlane.xlu0 %2426
      %v2428 = vsel %vm1336, %v2401, 0.0
      %2429 = vadd.xlane.f32.xlu0 %v2428
      %v2430 = vpop.xlane.xlu0 %2429
      %v2431 = vsel %vm1336, %v2402, 0.0
      %2432 = vadd.xlane.f32.xlu0 %v2431
      %v2433 = vpop.xlane.xlu0 %2432
      %v2434 = vsel %vm1336, %v2403, 0.0
      %2435 = vadd.xlane.f32.xlu0 %v2434
      %v2436 = vpop.xlane.xlu0 %2435
      %v2437 = vmul.f32 %v2186, %v2186
      %v2438 = vmul.f32 %v2191, %v2191
      %v2439 = vmul.f32 %v2196, %v2196
      %v2440 = vmul.f32 %v2201, %v2201
      %v2441 = vmul.f32 %v2206, %v2206
      %v2442 = vmul.f32 %v2211, %v2211
      %v2443 = vmul.f32 %v2216, %v2216
      %v2444 = vmul.f32 %v2221, %v2221
      %v2445 = vmul.f32 %v2226, %v2226
      %v2446 = vmul.f32 %v2231, %v2231
      %v2447 = vmul.f32 %v2236, %v2236
      %v2448 = vsel %vm1336, %v2437, 0.0
      %2449 = vadd.xlane.f32.xlu0 %v2448
      %v2450 = vpop.xlane.xlu0 %2449
      %v2451 = vsel %vm1336, %v2438, 0.0
      %2452 = vadd.xlane.f32.xlu0 %v2451
      %v2453 = vpop.xlane.xlu0 %2452
      %v2454 = vsel %vm1336, %v2439, 0.0
      %2455 = vadd.xlane.f32.xlu0 %v2454
      %v2456 = vpop.xlane.xlu0 %2455
      %v2457 = vsel %vm1336, %v2440, 0.0
      %2458 = vadd.xlane.f32.xlu0 %v2457
      %v2459 = vpop.xlane.xlu0 %2458
      %v2460 = vsel %vm1336, %v2441, 0.0
      %2461 = vadd.xlane.f32.xlu0 %v2460
      %v2462 = vpop.xlane.xlu0 %2461
      %v2463 = vsel %vm1336, %v2442, 0.0
      %2464 = vadd.xlane.f32.xlu0 %v2463
      %v2465 = vpop.xlane.xlu0 %2464
      %v2466 = vsel %vm1336, %v2443, 0.0
      %2467 = vadd.xlane.f32.xlu0 %v2466
      %v2468 = vpop.xlane.xlu0 %2467
      %v2469 = vsel %vm1336, %v2444, 0.0
      %2470 = vadd.xlane.f32.xlu0 %v2469
      %v2471 = vpop.xlane.xlu0 %2470
      %v2472 = vsel %vm1336, %v2445, 0.0
      %2473 = vadd.xlane.f32.xlu0 %v2472
      %v2474 = vpop.xlane.xlu0 %2473
      %v2475 = vsel %vm1336, %v2446, 0.0
      %2476 = vadd.xlane.f32.xlu0 %v2475
      %v2477 = vpop.xlane.xlu0 %2476
      %v2478 = vsel %vm1336, %v2447, 0.0
      %2479 = vadd.xlane.f32.xlu0 %v2478
      %v2480 = vpop.xlane.xlu0 %2479
      %v2481 = vadd.f32 %v2450, 1e-06
      %v2482 = vadd.f32 %v2453, 1e-06
      %v2483 = vadd.f32 %v2456, 1e-06
      %v2484 = vadd.f32 %v2459, 1e-06
      %v2485 = vadd.f32 %v2462, 1e-06
      %v2486 = vadd.f32 %v2465, 1e-06
      %v2487 = vadd.f32 %v2468, 1e-06
      %v2488 = vadd.f32 %v2471, 1e-06
      %v2489 = vadd.f32 %v2474, 1e-06
      %v2490 = vadd.f32 %v2477, 1e-06
      %v2491 = vadd.f32 %v2480, 1e-06
      %v2492 = vrcp.pop %v2481
      %v2493 = vrcp.pop %v2482
      %v2494 = vrcp.pop %v2483
      %v2495 = vrcp.pop %v2484
      %v2496 = vrcp.pop %v2485
      %v2497 = vrcp.pop %v2486
      %v2498 = vrcp.pop %v2487
      %v2499 = vrcp.pop %v2488
      %v2500 = vrcp.pop %v2489
      %v2501 = vrcp.pop %v2490
      %v2502 = vrcp.pop %v2491
      %v2503 = vmul.f32 %v2406, %v2492
      %v2504 = vmul.f32 %v2409, %v2493
      %v2505 = vmul.f32 %v2412, %v2494
      %v2506 = vmul.f32 %v2415, %v2495
      %v2507 = vmul.f32 %v2418, %v2496
      %v2508 = vmul.f32 %v2421, %v2497
      %v2509 = vmul.f32 %v2424, %v2498
      %v2510 = vmul.f32 %v2427, %v2499
      %v2511 = vmul.f32 %v2430, %v2500
      %v2512 = vmul.f32 %v2433, %v2501
      %v2513 = vmul.f32 %v2436, %v2502
      %v2514 = vmin.f32 %v2503, 0.0
      %v2515 = vmin.f32 %v2504, 0.0
      %v2516 = vmin.f32 %v2505, 0.0
      %v2517 = vmin.f32 %v2506, 0.0
      %v2518 = vmin.f32 %v2507, 0.0
      %v2519 = vmin.f32 %v2508, 0.0
      %v2520 = vmin.f32 %v2509, 0.0
      %v2521 = vmin.f32 %v2510, 0.0
      %v2522 = vmin.f32 %v2511, 0.0
      %v2523 = vmin.f32 %v2512, 0.0
      %v2524 = vmin.f32 %v2513, 0.0
      %v2525 = vmul.f32 %v2514, %v2186
      %v2526 = vmul.f32 %v2515, %v2191
      %v2527 = vmul.f32 %v2516, %v2196
      %v2528 = vmul.f32 %v2517, %v2201
      %v2529 = vmul.f32 %v2518, %v2206
      %v2530 = vmul.f32 %v2519, %v2211
      %v2531 = vmul.f32 %v2520, %v2216
      %v2532 = vmul.f32 %v2521, %v2221
      %v2533 = vmul.f32 %v2522, %v2226
      %v2534 = vmul.f32 %v2523, %v2231
      %v2535 = vmul.f32 %v2524, %v2236
      %v2536 = vsub.f32 %v2382, %v2525
      %v2537 = vsub.f32 %v2383, %v2526
      %v2538 = vsub.f32 %v2384, %v2527
      %v2539 = vsub.f32 %v2385, %v2528
      %v2540 = vsub.f32 %v2386, %v2529
      %v2541 = vsub.f32 %v2387, %v2530
      %v2542 = vsub.f32 %v2388, %v2531
      %v2543 = vsub.f32 %v2389, %v2532
      %v2544 = vsub.f32 %v2390, %v2533
      %v2545 = vsub.f32 %v2391, %v2534
      %v2546 = vsub.f32 %v2392, %v2535
      %v2547 = vld [vmem:[%s7] sm:$0xff]
      %v2548 = vld [vmem:[%s7 + $0x8] sm:$0xff]
      %v2549 = vld [vmem:[%s7 + $0x10] sm:$0xff]
      %v2550 = vld [vmem:[%s7 + $0x18] sm:$0xff]
      %v2551 = vld [vmem:[%s7 + $0x20] sm:$0xff]
      %v2552 = vld [vmem:[%s7 + $0x28] sm:$0xff]
      %v2553 = vld [vmem:[%s7 + $0x30] sm:$0xff]
      %v2554 = vld [vmem:[%s7 + $0x38] sm:$0xff]
      %v2556 = vsel %vm611, %v2547, 0
      %v2559 = vsel %vm611, %v2548, 0
      %v2562 = vsel %vm611, %v2549, 0
      %v2565 = vsel %vm611, %v2550, 0
      %v2568 = vsel %vm611, %v2551, 0
      %v2571 = vsel %vm611, %v2552, 0
      %v2574 = vsel %vm611, %v2553, 0
      %v2577 = vsel %vm611, %v2554, 0
      %2579 = vmatprep.subr.mxu0 0.0
      %2580 = vmatpush1.msra.mxu0 0.0
      %2581 = vmatprep.subr.mxu0 0.0
      %2582 = vmatpush1.msra.mxu0 0.0
      %2583 = vmatprep.subr.mxu0 0.0
      %2584 = vmatpush1.msra.mxu0 0.0
      %2585 = vmatprep.subr.mxu0 0.0
      %2586 = vmatpush1.msra.mxu0 0.0
      %2587 = vmatprep.subr.mxu0 0.0
      %2588 = vmatpush1.msra.mxu0 0.0
      %2589 = vmatprep.subr.mxu0 0.0
      %2590 = vmatpush1.msra.mxu0 %v2546
      %2591 = vmatprep.subr.mxu0 0.0
      %2592 = vmatpush1.msra.mxu0 %v2545
      %2593 = vmatprep.subr.mxu0 0.0
      %2594 = vmatpush1.msra.mxu0 %v2544
      %2595 = vmatprep.subr.mxu0 0.0
      %2596 = vmatpush1.msra.mxu0 %v2543
      %2597 = vmatprep.subr.mxu0 0.0
      %2598 = vmatpush1.msra.mxu0 %v2542
      %2599 = vmatprep.subr.mxu0 0.0
      %2600 = vmatpush1.msra.mxu0 %v2541
      %2601 = vmatprep.subr.mxu0 0.0
      %2602 = vmatpush1.msra.mxu0 %v2540
      %2603 = vmatprep.subr.mxu0 0.0
      %2604 = vmatpush1.msra.mxu0 %v2539
      %2605 = vmatprep.subr.mxu0 0.0
      %2606 = vmatpush1.msra.mxu0 %v2538
      %2607 = vmatprep.subr.mxu0 0.0
      %2608 = vmatpush1.msra.mxu0 %v2537
      %2609 = vmatprep.subr.mxu0 0.0
      %2610 = vmatpush1.msra.mxu0 %v2536
      %2611 = vmatprep.subr.mxu0 0.0
      %2612 = vmatpush2.msra.mxu0 0.0
      %2613 = vmatprep.subr.mxu0 0.0
      %2614 = vmatpush2.msra.mxu0 0.0
      %2615 = vmatprep.subr.mxu0 0.0
      %2616 = vmatpush2.msra.mxu0 0.0
      %2617 = vmatprep.subr.mxu0 0.0
      %2618 = vmatpush2.msra.mxu0 0.0
      %2619 = vmatprep.subr.mxu0 0.0
      %2620 = vmatpush2.msra.mxu0 0.0
      %2621 = vmatprep.subr.mxu0 0.0
      %2622 = vmatpush2.msra.mxu0 0.0
      %2623 = vmatprep.subr.mxu0 0.0
      %2624 = vmatpush2.msra.mxu0 0.0
      %2625 = vmatprep.subr.mxu0 0.0
      %2626 = vmatpush2.msra.mxu0 0.0
      %2627 = vmatprep.subr.mxu0 0.0
      %2628 = vmatpush2.msra.mxu0 0.0
      %2629 = vmatprep.subr.mxu0 0.0
      %2630 = vmatpush2.msra.mxu0 0.0
      %2631 = vmatprep.subr.mxu0 0.0
      %2632 = vmatpush2.msra.mxu0 0.0
      %2633 = vmatprep.subr.mxu0 0.0
      %2634 = vmatpush2.msra.mxu0 0.0
      %2635 = vmatprep.subr.mxu0 0.0
      %2636 = vmatpush2.msra.mxu0 0.0
      %2637 = vmatprep.subr.mxu0 0.0
      %2638 = vmatpush2.msra.mxu0 0.0
      %2639 = vmatprep.subr.mxu0 0.0
      %2640 = vmatpush2.msra.mxu0 0.0
      %2641 = vmatprep.subr.mxu0 0.0
      %2642 = vmatpush2.msra.mxu0 0.0
      %2643 = vmatprep.mubr.f32.mxu0 0.0
      %2644 = vmatmul.mubr.f32.gmra.mxu0 %v2556
      %v2645 = vpop.f32.mrf.mxu0
      %v2646 = vadd.f32 0.0, %v2645
      %v2647 = vpop.f32.mrf.mxu0
      %2648 = vmatprep.mubr.f32.mxu0 0.0
      %2649 = vmatmul.mubr.f32.gmra.mxu0 %v2559
      %v2650 = vpop.f32.mrf.mxu0
      %v2651 = vadd.f32 0.0, %v2650
      %v2652 = vpop.f32.mrf.mxu0
      %2653 = vmatprep.mubr.f32.mxu0 0.0
      %2654 = vmatmul.mubr.f32.gmra.mxu0 %v2562
      %v2655 = vpop.f32.mrf.mxu0
      %v2656 = vadd.f32 0.0, %v2655
      %v2657 = vpop.f32.mrf.mxu0
      %2658 = vmatprep.mubr.f32.mxu0 0.0
      %2659 = vmatmul.mubr.f32.gmra.mxu0 %v2565
      %v2660 = vpop.f32.mrf.mxu0
      %v2661 = vadd.f32 0.0, %v2660
      %v2662 = vpop.f32.mrf.mxu0
      %2663 = vmatprep.mubr.f32.mxu0 0.0
      %2664 = vmatmul.mubr.f32.gmra.mxu0 %v2568
      %v2665 = vpop.f32.mrf.mxu0
      %v2666 = vadd.f32 0.0, %v2665
      %v2667 = vpop.f32.mrf.mxu0
      %2668 = vmatprep.mubr.f32.mxu0 0.0
      %2669 = vmatmul.mubr.f32.gmra.mxu0 %v2571
      %v2670 = vpop.f32.mrf.mxu0
      %v2671 = vadd.f32 0.0, %v2670
      %v2672 = vpop.f32.mrf.mxu0
      %2673 = vmatprep.mubr.f32.mxu0 0.0
      %2674 = vmatmul.mubr.f32.gmra.mxu0 %v2574
      %v2675 = vpop.f32.mrf.mxu0
      %v2676 = vadd.f32 0.0, %v2675
      %v2677 = vpop.f32.mrf.mxu0
      %2678 = vmatprep.mubr.f32.mxu0 0.0
      %2679 = vmatmul.mubr.f32.gmra.mxu0 %v2577
      %v2680 = vpop.f32.mrf.mxu0
      %v2681 = vadd.f32 0.0, %v2680
      %v2682 = vpop.f32.mrf.mxu0
      %2683 = vdwg.mxu0
      %2684 = vst.msk [vmem:[%s305] sm:$0xff] %vm1336, %v2646
      %2685 = vst.msk [vmem:[%s305 + $0x8] sm:$0xff] %vm1336, %v2651
      %2686 = vst.msk [vmem:[%s305 + $0x10] sm:$0xff] %vm1336, %v2656
      %2687 = vst.msk [vmem:[%s305 + $0x18] sm:$0xff] %vm1336, %v2661
      %2688 = vst.msk [vmem:[%s305 + $0x20] sm:$0xff] %vm1336, %v2666
      %2689 = vst.msk [vmem:[%s305 + $0x28] sm:$0xff] %vm1336, %v2671
      %2690 = vst.msk [vmem:[%s305 + $0x30] sm:$0xff] %vm1336, %v2676
      %2691 = vst.msk [vmem:[%s305 + $0x38] sm:$0xff] %vm1336, %v2681
      %p2692 = scmp.lt.s32.totalorder %s19, 1
      %s2693 = scalar_select %p2692, %s19, 1
      %s2694 = smul.addr %s2693, 8
      %s2695 = smul.addr %s2694, 8
      %s2696 = scalar_lea.vmem %s8, %s2695
      // Predicated region
      $region53: #{_lambda_.3} parent=51 // pred_check
        %p2697 = pneg %p210
      $region54: #{_lambda_.3} parent=51 // pred_check_branch
        %2699 = sbr.rel (%p2697) target = $region56
      $region55: #{_lambda_.3} parent=51 // pred_region
        _
      $region56: #{_lambda_.3} parent=51 // pred_fallthru
        _
    $region52: #{_lambda_.3} parent=5 // pred_fallthru
      _
    %p2700 = scmp.le.s32.totalorder 2, %s14
    // Predicated region
    $region57: #{_lambda_.3} parent=5 // pred_check
      %p2701 = pneg %p2700
    $region58: #{_lambda_.3} parent=5 // pred_check_branch
      %2703 = sbr.rel (%p2701) target = $region60
    $region59: #{_lambda_.3} parent=5 // pred_region
      %s2704 = ssub.s32 %s14, 2
      // Predicated region
      $region61: #{_lambda_.3} parent=59 // pred_check
        %p2705 = pneg %p216
      $region62: #{_lambda_.3} parent=59 // pred_check_branch
        %2707 = sbr.rel (%p2705) target = $region64
      $region63: #{_lambda_.3} parent=59 // pred_region
        %p2708 = scmp.lt.s32.totalorder %s20, 1
        %s2709 = scalar_select %p2708, %s20, 1
        %s2710 = smul.addr %s2709, 8
        %s2711 = smul.addr %s2710, 8
        %s2712 = scalar_lea.vmem %s8, %s2711
      $region64: #{_lambda_.3} parent=59 // pred_fallthru
        _
    $region60: #{_lambda_.3} parent=5 // pred_fallthru
      _
  $region6: #{_lambda_.3} parent=0 // loop_footer
    %s18 = sadd.s32 1, %s14
  $region7: #{_lambda_.3} parent=0 // loop_footer_branch
    %13 = sbr.rel target = $region3
  $region8: #{_lambda_.3} parent=0 // loop_exit
    _

// kernel: _lambda_.2
$region0: #{_lambda_.2}
  #allocation0 [shape = 'u32[]', space=smem, size = 0x4, offset = 0x4, fixed_abs, tag = 'smem constant byte address 0x4 - core index']
  #allocation1 [shape = 'u32[144,128]{1,0:T(1,128)}', space=vmem, size = 0x12000, scoped, tag = 'internal scratch']
  %s0 = inlined_call_operand.vmem [shape: f32[2,64,3,128], index: 0, kind: input, shape index: {}]
  %s1 = inlined_call_operand.vmem [shape: bf16[48,64], index: 1, kind: input, shape index: {}]
  %s2 = inlined_call_operand.vmem [shape: f32[24,1], index: 2, kind: input, shape index: {}]
  %s3 = inlined_call_operand.vmem [shape: f32[24,1], index: 3, kind: input, shape index: {}]
  %s4 = inlined_call_operand.vmem [shape: bf16[96,24], index: 4, kind: input, shape index: {}]
  %s5 = inlined_call_operand.vmem [shape: f32[48,1], index: 5, kind: input, shape index: {}]
  %s6 = inlined_call_operand.vmem [shape: f32[48,1], index: 6, kind: input, shape index: {}]
  %s7 = inlined_call_operand.vmem [shape: bf16[688,48], index: 7, kind: input, shape index: {}]
  %s8 = inlined_call_operand.vmem [shape: f32[344,1], index: 8, kind: input, shape index: {}]
  %s9 = inlined_call_operand.vmem [shape: f32[344,1], index: 9, kind: input, shape index: {}]
  %s10 = inlined_call_operand.vmem [shape: f32[1,2,344,3], index: 10, kind: output, shape index: {}]
  %s11 = sld [smem:[#allocation0]]
  $region77: #{_lambda_.2} parent=0
    _
  %s13 = ssub.s32 1, %s11
  %s14 = scalar_select 0, %s13, %s11
  loop: start=0, step=1, limit=4
  $region2: #{_lambda_.2} parent=0 // loop_pre_header
    _
  $region3: #{_lambda_.2} parent=0 // loop_header
    %s16 = sphi 0, %s20
    %p17 = scmp.ge.s32.totalorder %s16, 4
    %s23 = sphi 0, %s42
    %s24 = sphi 0, %s38
    %s25 = sphi 0, %s34
    %s26 = sphi 0, %s23
    %s27 = sphi 0, %s24
    %s28 = sphi 0, %s25
    %s29 = sphi 0, %s26
    %s30 = sphi 0, %s27
    %s31 = sphi 0, %s28
    %s49 = sphi 0, %s51
    %s52 = sphi 0, %s49
    %s53 = sphi 0, %s52
    %s69 = sphi 0, %s53
    %s73 = sphi 0, %s73
    %s75 = sphi 0, %s73
    %s76 = sphi 0, %s75
    %s90 = sphi 0, %s76
    %s94 = sphi 0, %s94
    %s96 = sphi 0, %s94
    %s97 = sphi 0, %s96
    %s111 = sphi 0, %s97
    %s115 = sphi 0, %s115
    %s117 = sphi 0, %s115
    %s118 = sphi 0, %s117
    %s132 = sphi 0, %s118
    %s136 = sphi 0, %s136
    %s138 = sphi 0, %s136
    %s139 = sphi 0, %s138
    %s153 = sphi 0, %s139
    %s157 = sphi 0, %s157
    %s159 = sphi 0, %s157
    %s160 = sphi 0, %s159
    %s174 = sphi 0, %s160
    %s178 = sphi 0, %s178
    %s180 = sphi 0, %s178
    %s181 = sphi 0, %s180
    %s195 = sphi 0, %s181
    %s199 = sphi 0, %s199
    %s201 = sphi 0, %s199
    %s202 = sphi 0, %s201
    %s216 = sphi 0, %s202
    %s220 = sphi 0, %s220
    %s222 = sphi 0, %s220
    %s223 = sphi 0, %s222
    %s237 = sphi 0, %s223
    %s241 = sphi 0, %s241
    %s243 = sphi 0, %s241
    %s244 = sphi 0, %s243
    %s258 = sphi 0, %s244
    %s266 = sphi 0, %s268
    %s269 = sphi 0, %s266
    %s270 = sphi 0, %s269
    %s286 = sphi 0, %s270
  $region4: #{_lambda_.2} parent=0 // loop_header_branch
    %19 = sbr.rel (%p17) target = $region8
  $region5: #{_lambda_.2} parent=0 // loop_body
    %s21 = ssub.s32 %s16, 1
    %s22 = ssub.s32 %s16, 2
    %s32 = sadd.s32 1, %s25
    %p33 = scmp.ge.s32.totalorder %s32, 1
    %s34 = scalar_select %p33, 0, %s32
    %s35 = sadd.s32 1, %s24
    %s36 = scalar_select %p33, %s35, %s24
    %p37 = scmp.ge.s32.totalorder %s36, 2
    %s38 = scalar_select %p37, 0, %s36
    %s39 = sadd.s32 1, %s23
    %s40 = scalar_select %p37, %s39, %s23
    %p41 = scmp.ge.s32.totalorder %s40, 1
    %s42 = scalar_select %p41, 0, %s40
    %s43 = sadd.s32 %s23, %s25
    %s44 = sadd.s32 %s42, %s34
    %s45 = ssub.s32 %s24, %s38
    %s46 = ssub.s32 %s43, %s44
    %s47 = sor.u32 %s45, %s46
    %p48 = scmp.eq.s32.totalorder %s47, 0
    %s50 = sadd.s32 %s49, 1
    %s51 = scalar_select %p48, %s49, %s50
    %p54 = pneg %p48
    %p55 = scmp.eq.s32.totalorder %s16, 1
    %p56 = por %p54, %p55
    %p57 = scmp.ne.s32.totalorder %s49, %s52
    %p58 = scmp.eq.s32.totalorder %s16, 0
    %p59 = por %p57, %p58
    %p60 = scmp.ne.s32.totalorder %s49, %s52
    %p61 = scmp.eq.s32.totalorder %s21, 1
    %p62 = por %p60, %p61
    %p63 = scmp.ne.s32.totalorder %s52, %s53
    %p64 = scmp.eq.s32.totalorder %s21, 0
    %p65 = por %p63, %p64
    %p66 = scmp.ne.s32.totalorder %s52, %s53
    %p67 = scmp.eq.s32.totalorder %s22, 1
    %p68 = por %p66, %p67
    %p70 = scmp.ne.s32.totalorder %s53, %s69
    %p71 = scmp.eq.s32.totalorder %s22, 0
    %p72 = por %p70, %p71
    %s74 = sadd.s32 %s73, 1
    %p77 = scmp.eq.s32.totalorder %s16, 1
    %p78 = scmp.ne.s32.totalorder %s73, %s75
    %p79 = scmp.eq.s32.totalorder %s16, 0
    %p80 = por %p78, %p79
    %p81 = scmp.ne.s32.totalorder %s73, %s75
    %p82 = scmp.eq.s32.totalorder %s21, 1
    %p83 = por %p81, %p82
    %p84 = scmp.ne.s32.totalorder %s75, %s76
    %p85 = scmp.eq.s32.totalorder %s21, 0
    %p86 = por %p84, %p85
    %p87 = scmp.ne.s32.totalorder %s75, %s76
    %p88 = scmp.eq.s32.totalorder %s22, 1
    %p89 = por %p87, %p88
    %p91 = scmp.ne.s32.totalorder %s76, %s90
    %p92 = scmp.eq.s32.totalorder %s22, 0
    %p93 = por %p91, %p92
    %s95 = sadd.s32 %s94, 1
    %p98 = scmp.eq.s32.totalorder %s16, 1
    %p99 = scmp.ne.s32.totalorder %s94, %s96
    %p100 = scmp.eq.s32.totalorder %s16, 0
    %p101 = por %p99, %p100
    %p102 = scmp.ne.s32.totalorder %s94, %s96
    %p103 = scmp.eq.s32.totalorder %s21, 1
    %p104 = por %p102, %p103
    %p105 = scmp.ne.s32.totalorder %s96, %s97
    %p106 = scmp.eq.s32.totalorder %s21, 0
    %p107 = por %p105, %p106
    %p108 = scmp.ne.s32.totalorder %s96, %s97
    %p109 = scmp.eq.s32.totalorder %s22, 1
    %p110 = por %p108, %p109
    %p112 = scmp.ne.s32.totalorder %s97, %s111
    %p113 = scmp.eq.s32.totalorder %s22, 0
    %p114 = por %p112, %p113
    %s116 = sadd.s32 %s115, 1
    %p119 = scmp.eq.s32.totalorder %s16, 1
    %p120 = scmp.ne.s32.totalorder %s115, %s117
    %p121 = scmp.eq.s32.totalorder %s16, 0
    %p122 = por %p120, %p121
    %p123 = scmp.ne.s32.totalorder %s115, %s117
    %p124 = scmp.eq.s32.totalorder %s21, 1
    %p125 = por %p123, %p124
    %p126 = scmp.ne.s32.totalorder %s117, %s118
    %p127 = scmp.eq.s32.totalorder %s21, 0
    %p128 = por %p126, %p127
    %p129 = scmp.ne.s32.totalorder %s117, %s118
    %p130 = scmp.eq.s32.totalorder %s22, 1
    %p131 = por %p129, %p130
    %p133 = scmp.ne.s32.totalorder %s118, %s132
    %p134 = scmp.eq.s32.totalorder %s22, 0
    %p135 = por %p133, %p134
    %s137 = sadd.s32 %s136, 1
    %p140 = scmp.eq.s32.totalorder %s16, 1
    %p141 = scmp.ne.s32.totalorder %s136, %s138
    %p142 = scmp.eq.s32.totalorder %s16, 0
    %p143 = por %p141, %p142
    %p144 = scmp.ne.s32.totalorder %s136, %s138
    %p145 = scmp.eq.s32.totalorder %s21, 1
    %p146 = por %p144, %p145
    %p147 = scmp.ne.s32.totalorder %s138, %s139
    %p148 = scmp.eq.s32.totalorder %s21, 0
    %p149 = por %p147, %p148
    %p150 = scmp.ne.s32.totalorder %s138, %s139
    %p151 = scmp.eq.s32.totalorder %s22, 1
    %p152 = por %p150, %p151
    %p154 = scmp.ne.s32.totalorder %s139, %s153
    %p155 = scmp.eq.s32.totalorder %s22, 0
    %p156 = por %p154, %p155
    %s158 = sadd.s32 %s157, 1
    %p161 = scmp.eq.s32.totalorder %s16, 1
    %p162 = scmp.ne.s32.totalorder %s157, %s159
    %p163 = scmp.eq.s32.totalorder %s16, 0
    %p164 = por %p162, %p163
    %p165 = scmp.ne.s32.totalorder %s157, %s159
    %p166 = scmp.eq.s32.totalorder %s21, 1
    %p167 = por %p165, %p166
    %p168 = scmp.ne.s32.totalorder %s159, %s160
    %p169 = scmp.eq.s32.totalorder %s21, 0
    %p170 = por %p168, %p169
    %p171 = scmp.ne.s32.totalorder %s159, %s160
    %p172 = scmp.eq.s32.totalorder %s22, 1
    %p173 = por %p171, %p172
    %p175 = scmp.ne.s32.totalorder %s160, %s174
    %p176 = scmp.eq.s32.totalorder %s22, 0
    %p177 = por %p175, %p176
    %s179 = sadd.s32 %s178, 1
    %p182 = scmp.eq.s32.totalorder %s16, 1
    %p183 = scmp.ne.s32.totalorder %s178, %s180
    %p184 = scmp.eq.s32.totalorder %s16, 0
    %p185 = por %p183, %p184
    %p186 = scmp.ne.s32.totalorder %s178, %s180
    %p187 = scmp.eq.s32.totalorder %s21, 1
    %p188 = por %p186, %p187
    %p189 = scmp.ne.s32.totalorder %s180, %s181
    %p190 = scmp.eq.s32.totalorder %s21, 0
    %p191 = por %p189, %p190
    %p192 = scmp.ne.s32.totalorder %s180, %s181
    %p193 = scmp.eq.s32.totalorder %s22, 1
    %p194 = por %p192, %p193
    %p196 = scmp.ne.s32.totalorder %s181, %s195
    %p197 = scmp.eq.s32.totalorder %s22, 0
    %p198 = por %p196, %p197
    %s200 = sadd.s32 %s199, 1
    %p203 = scmp.eq.s32.totalorder %s16, 1
    %p204 = scmp.ne.s32.totalorder %s199, %s201
    %p205 = scmp.eq.s32.totalorder %s16, 0
    %p206 = por %p204, %p205
    %p207 = scmp.ne.s32.totalorder %s199, %s201
    %p208 = scmp.eq.s32.totalorder %s21, 1
    %p209 = por %p207, %p208
    %p210 = scmp.ne.s32.totalorder %s201, %s202
    %p211 = scmp.eq.s32.totalorder %s21, 0
    %p212 = por %p210, %p211
    %p213 = scmp.ne.s32.totalorder %s201, %s202
    %p214 = scmp.eq.s32.totalorder %s22, 1
    %p215 = por %p213, %p214
    %p217 = scmp.ne.s32.totalorder %s202, %s216
    %p218 = scmp.eq.s32.totalorder %s22, 0
    %p219 = por %p217, %p218
    %s221 = sadd.s32 %s220, 1
    %p224 = scmp.eq.s32.totalorder %s16, 1
    %p225 = scmp.ne.s32.totalorder %s220, %s222
    %p226 = scmp.eq.s32.totalorder %s16, 0
    %p227 = por %p225, %p226
    %p228 = scmp.ne.s32.totalorder %s220, %s222
    %p229 = scmp.eq.s32.totalorder %s21, 1
    %p230 = por %p228, %p229
    %p231 = scmp.ne.s32.totalorder %s222, %s223
    %p232 = scmp.eq.s32.totalorder %s21, 0
    %p233 = por %p231, %p232
    %p234 = scmp.ne.s32.totalorder %s222, %s223
    %p235 = scmp.eq.s32.totalorder %s22, 1
    %p236 = por %p234, %p235
    %p238 = scmp.ne.s32.totalorder %s223, %s237
    %p239 = scmp.eq.s32.totalorder %s22, 0
    %p240 = por %p238, %p239
    %s242 = sadd.s32 %s241, 1
    %p245 = scmp.eq.s32.totalorder %s16, 1
    %p246 = scmp.ne.s32.totalorder %s241, %s243
    %p247 = scmp.eq.s32.totalorder %s16, 0
    %p248 = por %p246, %p247
    %p249 = scmp.ne.s32.totalorder %s241, %s243
    %p250 = scmp.eq.s32.totalorder %s21, 1
    %p251 = por %p249, %p250
    %p252 = scmp.ne.s32.totalorder %s243, %s244
    %p253 = scmp.eq.s32.totalorder %s21, 0
    %p254 = por %p252, %p253
    %p255 = scmp.ne.s32.totalorder %s243, %s244
    %p256 = scmp.eq.s32.totalorder %s22, 1
    %p257 = por %p255, %p256
    %p259 = scmp.ne.s32.totalorder %s244, %s258
    %p260 = scmp.eq.s32.totalorder %s22, 0
    %p261 = por %p259, %p260
    %s262 = ssub.s32 %s23, %s42
    %s263 = ssub.s32 %s24, %s38
    %s264 = sor.u32 %s262, %s263
    %p265 = scmp.eq.s32.totalorder %s264, 0
    %s267 = sadd.s32 %s266, 1
    %s268 = scalar_select %p265, %s266, %s267
    %p271 = pneg %p265
    %p272 = scmp.eq.s32.totalorder %s16, 1
    %p273 = por %p271, %p272
    %p274 = scmp.ne.s32.totalorder %s266, %s269
    %p275 = scmp.eq.s32.totalorder %s16, 0
    %p276 = por %p274, %p275
    %p277 = scmp.ne.s32.totalorder %s266, %s269
    %p278 = scmp.eq.s32.totalorder %s21, 1
    %p279 = por %p277, %p278
    %p280 = scmp.ne.s32.totalorder %s269, %s270
    %p281 = scmp.eq.s32.totalorder %s21, 0
    %p282 = por %p280, %p281
    %p283 = scmp.ne.s32.totalorder %s269, %s270
    %p284 = scmp.eq.s32.totalorder %s22, 1
    %p285 = por %p283, %p284
    %p287 = scmp.ne.s32.totalorder %s270, %s286
    %p288 = scmp.eq.s32.totalorder %s22, 0
    %p289 = por %p287, %p288
    %p290 = scmp.le.s32.totalorder 1, %s16
    %p291 = scmp.lt.s32.totalorder %s16, 3
    %p292 = pnand %p290, %p291
    %p293 = pneg %p292
    // Predicated region
    $region9: #{_lambda_.2} parent=5 // pred_check
      _
    $region10: #{_lambda_.2} parent=5 // pred_check_branch
      %295 = sbr.rel (%p292) target = $region12
    $region11: #{_lambda_.2} parent=5 // pred_region
      %s296 = ssub.s32 %s16, 1
      // Predicated region
      $region13: #{_lambda_.2} parent=11 // pred_check
        %p297 = pneg %p86
      $region14: #{_lambda_.2} parent=11 // pred_check_branch
        %299 = sbr.rel (%p297) target = $region16
      $region15: #{_lambda_.2} parent=11 // pred_region
        _
      $region16: #{_lambda_.2} parent=11 // pred_fallthru
        _
      // Predicated region
      $region17: #{_lambda_.2} parent=11 // pred_check
        %p300 = pneg %p107
      $region18: #{_lambda_.2} parent=11 // pred_check_branch
        %302 = sbr.rel (%p300) target = $region20
      $region19: #{_lambda_.2} parent=11 // pred_region
        _
      $region20: #{_lambda_.2} parent=11 // pred_fallthru
        _
      // Predicated region
      $region21: #{_lambda_.2} parent=11 // pred_check
        %p303 = pneg %p128
      $region22: #{_lambda_.2} parent=11 // pred_check_branch
        %305 = sbr.rel (%p303) target = $region24
      $region23: #{_lambda_.2} parent=11 // pred_region
        _
      $region24: #{_lambda_.2} parent=11 // pred_fallthru
        _
      // Predicated region
      $region25: #{_lambda_.2} parent=11 // pred_check
        %p306 = pneg %p149
      $region26: #{_lambda_.2} parent=11 // pred_check_branch
        %308 = sbr.rel (%p306) target = $region28
      $region27: #{_lambda_.2} parent=11 // pred_region
        _
      $region28: #{_lambda_.2} parent=11 // pred_fallthru
        _
      // Predicated region
      $region29: #{_lambda_.2} parent=11 // pred_check
        %p309 = pneg %p170
      $region30: #{_lambda_.2} parent=11 // pred_check_branch
        %311 = sbr.rel (%p309) target = $region32
      $region31: #{_lambda_.2} parent=11 // pred_region
        _
      $region32: #{_lambda_.2} parent=11 // pred_fallthru
        _
      // Predicated region
      $region33: #{_lambda_.2} parent=11 // pred_check
        %p312 = pneg %p191
      $region34: #{_lambda_.2} parent=11 // pred_check_branch
        %314 = sbr.rel (%p312) target = $region36
      $region35: #{_lambda_.2} parent=11 // pred_region
        _
      $region36: #{_lambda_.2} parent=11 // pred_fallthru
        _
      // Predicated region
      $region37: #{_lambda_.2} parent=11 // pred_check
        %p315 = pneg %p212
      $region38: #{_lambda_.2} parent=11 // pred_check_branch
        %317 = sbr.rel (%p315) target = $region40
      $region39: #{_lambda_.2} parent=11 // pred_region
        _
      $region40: #{_lambda_.2} parent=11 // pred_fallthru
        _
      // Predicated region
      $region41: #{_lambda_.2} parent=11 // pred_check
        %p318 = pneg %p233
      $region42: #{_lambda_.2} parent=11 // pred_check_branch
        %320 = sbr.rel (%p318) target = $region44
      $region43: #{_lambda_.2} parent=11 // pred_region
        _
      $region44: #{_lambda_.2} parent=11 // pred_fallthru
        _
      // Predicated region
      $region45: #{_lambda_.2} parent=11 // pred_check
        %p321 = pneg %p254
      $region46: #{_lambda_.2} parent=11 // pred_check_branch
        %323 = sbr.rel (%p321) target = $region48
      $region47: #{_lambda_.2} parent=11 // pred_region
        _
      $region48: #{_lambda_.2} parent=11 // pred_fallthru
        _
    $region12: #{_lambda_.2} parent=5 // pred_fallthru
      _
    %p324 = scmp.lt.s32.totalorder %s16, 2
    // Predicated region
    $region49: #{_lambda_.2} parent=5 // pred_check
      %p325 = pneg %p324
    $region50: #{_lambda_.2} parent=5 // pred_check_branch
      %327 = sbr.rel (%p325) target = $region52
    $region51: #{_lambda_.2} parent=5 // pred_region
      // Predicated region
      $region53: #{_lambda_.2} parent=51 // pred_check
        %p328 = pneg %p59
      $region54: #{_lambda_.2} parent=51 // pred_check_branch
        %330 = sbr.rel (%p328) target = $region56
      $region55: #{_lambda_.2} parent=51 // pred_region
        %s331 = sadd.s32 %s23, %s25
        %p332 = scmp.lt.s32.totalorder %s24, 1
        %s333 = scalar_select %p332, %s24, 1
        %p334 = scmp.lt.s32.totalorder %s331, 0
        %s335 = scalar_select %p334, %s331, 0
        %s336 = smul.addr %s333, 64
        %s337 = sadd.s32 %s335, %s336
        %s338 = smul.addr %s337, 4
        %s339 = scalar_lea.vmem %s0, %s338
        %s340 = sadd.s32 %s23, %s25
      $region56: #{_lambda_.2} parent=51 // pred_fallthru
        _
    $region52: #{_lambda_.2} parent=5 // pred_fallthru
      _
    %p341 = scmp.le.s32.totalorder 1, %s16
    %p342 = scmp.lt.s32.totalorder %s16, 3
    %p343 = pnand %p341, %p342
    %p344 = pneg %p343
    // Predicated region
    $region57: #{_lambda_.2} parent=5 // pred_check
      _
    $region58: #{_lambda_.2} parent=5 // pred_check_branch
      %346 = sbr.rel (%p343) target = $region60
    $region59: #{_lambda_.2} parent=5 // pred_region
      %s347 = ssub.s32 %s16, 1
      %s348 = sadd.s32 %s26, %s28
      %p349 = scmp.lt.s32.totalorder %s27, 1
      %s350 = scalar_select %p349, %s27, 1
      %p351 = scmp.lt.s32.totalorder %s348, 0
      %s352 = scalar_select %p351, %s348, 0
      %s353 = smul.addr %s350, 64
      %s354 = sadd.s32 %s352, %s353
      %s355 = smul.addr %s354, 4
      %s356 = scalar_lea.vmem %s0, %s355
      %p357 = pneg %p65
      %p358 = pneg %p62
      %p359 = pneg %p86
      %p360 = pneg %p83
      %p361 = pneg %p107
      %p362 = pneg %p104
      %p363 = pneg %p128
      %p364 = pneg %p125
      %p365 = pneg %p149
      %p366 = pneg %p146
      %p367 = pneg %p170
      %p368 = pneg %p167
      %p369 = pneg %p191
      %p370 = pneg %p188
      %p371 = pneg %p212
      %p372 = pneg %p209
      %p373 = pneg %p233
      %p374 = pneg %p230
      %p375 = pneg %p254
      %p376 = pneg %p251
      %p377 = pneg %p282
      %p378 = pneg %p279
      %p379 = scmp.lt.s32.totalorder %s26, 0
      %s380 = scalar_select %p379, %s26, 0
      %p381 = scmp.lt.s32.totalorder %s27, 1
      %s382 = scalar_select %p381, %s27, 1
      %s383 = smul.addr %s382, 43
      %s384 = smul.addr %s380, 86
      %s385 = sadd.s32 %s383, %s384
      %s386 = smul.addr %s385, 8
      %s387 = scalar_lea.vmem %s10, %s386
      %s388 = sadd.s32 %s26, %s28
      %p389 = scmp.lt.s32.totalorder %s27, 1
      %s390 = scalar_select %p389, %s27, 1
      %p391 = scmp.lt.s32.totalorder %s388, 0
      %s392 = scalar_select %p391, %s388, 0
      %s393 = smul.addr %s390, 64
      %s394 = sadd.s32 %s392, %s393
      %s395 = smul.addr %s394, 4
      %s396 = scalar_lea.vmem %s0, %s395
      %s397 = sadd.s32 %s26, %s28
      %p398 = scmp.lt.s32.totalorder %s26, 0
      %s399 = scalar_select %p398, %s26, 0
      %p400 = scmp.lt.s32.totalorder %s27, 1
      %s401 = scalar_select %p400, %s27, 1
      %s402 = smul.addr %s401, 43
      %s403 = smul.addr %s399, 86
      %s404 = sadd.s32 %s402, %s403
      %s405 = smul.addr %s404, 8
      %s406 = scalar_lea.vmem %s10, %s405
      %v408 = vld [vmem:[%s396] sm:$0x7]
      %v409 = vld [vmem:[%s396 + $0x4] sm:$0x7]
      %v410 = vld [vmem:[%s396 + $0x8] sm:$0x7]
      %v411 = vld [vmem:[%s396 + $0xc] sm:$0x7]
      %v412 = vld [vmem:[%s396 + $0x10] sm:$0x7]
      %v413 = vld [vmem:[%s396 + $0x14] sm:$0x7]
      %v414 = vld [vmem:[%s396 + $0x18] sm:$0x7]
      %v415 = vld [vmem:[%s396 + $0x1c] sm:$0x7]
      %v416 = vld [vmem:[%s396 + $0x20] sm:$0x7]
      %v417 = vld [vmem:[%s396 + $0x24] sm:$0x7]
      %v418 = vld [vmem:[%s396 + $0x28] sm:$0x7]
      %v419 = vld [vmem:[%s396 + $0x2c] sm:$0x7]
      %v420 = vld [vmem:[%s396 + $0x30] sm:$0x7]
      %v421 = vld [vmem:[%s396 + $0x34] sm:$0x7]
      %v422 = vld [vmem:[%s396 + $0x38] sm:$0x7]
      %v423 = vld [vmem:[%s396 + $0x3c] sm:$0x7]
      %v424 = vld [vmem:[%s396 + $0x40] sm:$0x7]
      %v425 = vld [vmem:[%s396 + $0x44] sm:$0x7]
      %v426 = vld [vmem:[%s396 + $0x48] sm:$0x7]
      %v427 = vld [vmem:[%s396 + $0x4c] sm:$0x7]
      %v428 = vld [vmem:[%s396 + $0x50] sm:$0x7]
      %v429 = vld [vmem:[%s396 + $0x54] sm:$0x7]
      %v430 = vld [vmem:[%s396 + $0x58] sm:$0x7]
      %v431 = vld [vmem:[%s396 + $0x5c] sm:$0x7]
      %v432 = vld [vmem:[%s396 + $0x60] sm:$0x7]
      %v433 = vld [vmem:[%s396 + $0x64] sm:$0x7]
      %v434 = vld [vmem:[%s396 + $0x68] sm:$0x7]
      %v435 = vld [vmem:[%s396 + $0x6c] sm:$0x7]
      %v436 = vld [vmem:[%s396 + $0x70] sm:$0x7]
      %v437 = vld [vmem:[%s396 + $0x74] sm:$0x7]
      %v438 = vld [vmem:[%s396 + $0x78] sm:$0x7]
      %v439 = vld [vmem:[%s396 + $0x7c] sm:$0x7]
      %v440 = vld [vmem:[%s396 + $0x80] sm:$0x7]
      %v441 = vld [vmem:[%s396 + $0x84] sm:$0x7]
      %v442 = vld [vmem:[%s396 + $0x88] sm:$0x7]
      %v443 = vld [vmem:[%s396 + $0x8c] sm:$0x7]
      %v444 = vld [vmem:[%s396 + $0x90] sm:$0x7]
      %v445 = vld [vmem:[%s396 + $0x94] sm:$0x7]
      %v446 = vld [vmem:[%s396 + $0x98] sm:$0x7]
      %v447 = vld [vmem:[%s396 + $0x9c] sm:$0x7]
      %v448 = vld [vmem:[%s396 + $0xa0] sm:$0x7]
      %v449 = vld [vmem:[%s396 + $0xa4] sm:$0x7]
      %v450 = vld [vmem:[%s396 + $0xa8] sm:$0x7]
      %v451 = vld [vmem:[%s396 + $0xac] sm:$0x7]
      %v452 = vld [vmem:[%s396 + $0xb0] sm:$0x7]
      %v453 = vld [vmem:[%s396 + $0xb4] sm:$0x7]
      %v454 = vld [vmem:[%s396 + $0xb8] sm:$0x7]
      %v455 = vld [vmem:[%s396 + $0xbc] sm:$0x7]
      %v456 = vld [vmem:[%s396 + $0xc0] sm:$0x7]
      %v457 = vld [vmem:[%s396 + $0xc4] sm:$0x7]
      %v458 = vld [vmem:[%s396 + $0xc8] sm:$0x7]
      %v459 = vld [vmem:[%s396 + $0xcc] sm:$0x7]
      %v460 = vld [vmem:[%s396 + $0xd0] sm:$0x7]
      %v461 = vld [vmem:[%s396 + $0xd4] sm:$0x7]
      %v462 = vld [vmem:[%s396 + $0xd8] sm:$0x7]
      %v463 = vld [vmem:[%s396 + $0xdc] sm:$0x7]
      %v464 = vld [vmem:[%s396 + $0xe0] sm:$0x7]
      %v465 = vld [vmem:[%s396 + $0xe4] sm:$0x7]
      %v466 = vld [vmem:[%s396 + $0xe8] sm:$0x7]
      %v467 = vld [vmem:[%s396 + $0xec] sm:$0x7]
      %v468 = vld [vmem:[%s396 + $0xf0] sm:$0x7]
      %v469 = vld [vmem:[%s396 + $0xf4] sm:$0x7]
      %v470 = vld [vmem:[%s396 + $0xf8] sm:$0x7]
      %v471 = vld [vmem:[%s396 + $0xfc] sm:$0x7]
      %v472 = vpack.c.bf16 %v408, %v408
      %v473 = vpack.c.bf16 %v409, %v409
      %v474 = vpack.c.bf16 %v410, %v410
      %v475 = vpack.c.bf16 %v411, %v411
      %v476 = vpack.c.bf16 %v412, %v412
      %v477 = vpack.c.bf16 %v413, %v413
      %v478 = vpack.c.bf16 %v414, %v414
      %v479 = vpack.c.bf16 %v415, %v415
      %v480 = vpack.c.bf16 %v416, %v416
      %v481 = vpack.c.bf16 %v417, %v417
      %v482 = vpack.c.bf16 %v418, %v418
      %v483 = vpack.c.bf16 %v419, %v419
      %v484 = vpack.c.bf16 %v420, %v420
      %v485 = vpack.c.bf16 %v421, %v421
      %v486 = vpack.c.bf16 %v422, %v422
      %v487 = vpack.c.bf16 %v423, %v423
      %v488 = vpack.c.bf16 %v424, %v424
      %v489 = vpack.c.bf16 %v425, %v425
      %v490 = vpack.c.bf16 %v426, %v426
      %v491 = vpack.c.bf16 %v427, %v427
      %v492 = vpack.c.bf16 %v428, %v428
      %v493 = vpack.c.bf16 %v429, %v429
      %v494 = vpack.c.bf16 %v430, %v430
      %v495 = vpack.c.bf16 %v431, %v431
      %v496 = vpack.c.bf16 %v432, %v432
      %v497 = vpack.c.bf16 %v433, %v433
      %v498 = vpack.c.bf16 %v434, %v434
      %v499 = vpack.c.bf16 %v435, %v435
      %v500 = vpack.c.bf16 %v436, %v436
      %v501 = vpack.c.bf16 %v437, %v437
      %v502 = vpack.c.bf16 %v438, %v438
      %v503 = vpack.c.bf16 %v439, %v439
      %v504 = vpack.c.bf16 %v440, %v440
      %v505 = vpack.c.bf16 %v441, %v441
      %v506 = vpack.c.bf16 %v442, %v442
      %v507 = vpack.c.bf16 %v443, %v443
      %v508 = vpack.c.bf16 %v444, %v444
      %v509 = vpack.c.bf16 %v445, %v445
      %v510 = vpack.c.bf16 %v446, %v446
      %v511 = vpack.c.bf16 %v447, %v447
      %v512 = vpack.c.bf16 %v448, %v448
      %v513 = vpack.c.bf16 %v449, %v449
      %v514 = vpack.c.bf16 %v450, %v450
      %v515 = vpack.c.bf16 %v451, %v451
      %v516 = vpack.c.bf16 %v452, %v452
      %v517 = vpack.c.bf16 %v453, %v453
      %v518 = vpack.c.bf16 %v454, %v454
      %v519 = vpack.c.bf16 %v455, %v455
      %v520 = vpack.c.bf16 %v456, %v456
      %v521 = vpack.c.bf16 %v457, %v457
      %v522 = vpack.c.bf16 %v458, %v458
      %v523 = vpack.c.bf16 %v459, %v459
      %v524 = vpack.c.bf16 %v460, %v460
      %v525 = vpack.c.bf16 %v461, %v461
      %v526 = vpack.c.bf16 %v462, %v462
      %v527 = vpack.c.bf16 %v463, %v463
      %v528 = vpack.c.bf16 %v464, %v464
      %v529 = vpack.c.bf16 %v465, %v465
      %v530 = vpack.c.bf16 %v466, %v466
      %v531 = vpack.c.bf16 %v467, %v467
      %v532 = vpack.c.bf16 %v468, %v468
      %v533 = vpack.c.bf16 %v469, %v469
      %v534 = vpack.c.bf16 %v470, %v470
      %v535 = vpack.c.bf16 %v471, %v471
      %v536 = vld [vmem:[%s1] sm:$0xf]
      %v537 = vld [vmem:[%s1 + $0x4] sm:$0xf]
      %v538 = vld [vmem:[%s1 + $0x8] sm:$0xf]
      %v539 = vld [vmem:[%s1 + $0xc] sm:$0xf]
      %v540 = vld [vmem:[%s1 + $0x10] sm:$0xf]
      %v541 = vld [vmem:[%s1 + $0x14] sm:$0xf]
      %v542 = vld [vmem:[%s2] sm:$0xff]
      %v543 = vld [vmem:[%s2 + $0x8] sm:$0xff]
      %v544 = vld [vmem:[%s2 + $0x10] sm:$0xff]
      %v545 = vld [vmem:[%s3] sm:$0xff]
      %v546 = vld [vmem:[%s3 + $0x8] sm:$0xff]
      %v547 = vld [vmem:[%s3 + $0x10] sm:$0xff]
      %v554 = vunpack.c.l.b16 %v536
      %v555 = vunpack.c.l.b16 %v537
      %v556 = vunpack.c.l.b16 %v538
      %v557 = vunpack.c.l.b16 %v539
      %v558 = vunpack.c.l.b16 %v540
      %v559 = vunpack.c.l.b16 %v541
      %v560 = vpack.c.b16 %v555, %v554
      %v561 = vpack.c.b16 %v557, %v556
      %v562 = vpack.c.b16 %v559, %v558
      %v627 = vunpack.c.l.b16 %v472
      %v628 = vunpack.c.l.b16 %v473
      %v629 = vunpack.c.l.b16 %v474
      %v630 = vunpack.c.l.b16 %v475
      %v631 = vunpack.c.l.b16 %v476
      %v632 = vunpack.c.l.b16 %v477
      %v633 = vunpack.c.l.b16 %v478
      %v634 = vunpack.c.l.b16 %v479
      %v635 = vunpack.c.l.b16 %v480
      %v636 = vunpack.c.l.b16 %v481
      %v637 = vunpack.c.l.b16 %v482
      %v638 = vunpack.c.l.b16 %v483
      %v639 = vunpack.c.l.b16 %v484
      %v640 = vunpack.c.l.b16 %v485
      %v641 = vunpack.c.l.b16 %v486
      %v642 = vunpack.c.l.b16 %v487
      %v643 = vunpack.c.l.b16 %v488
      %v644 = vunpack.c.l.b16 %v489
      %v645 = vunpack.c.l.b16 %v490
      %v646 = vunpack.c.l.b16 %v491
      %v647 = vunpack.c.l.b16 %v492
      %v648 = vunpack.c.l.b16 %v493
      %v649 = vunpack.c.l.b16 %v494
      %v650 = vunpack.c.l.b16 %v495
      %v651 = vunpack.c.l.b16 %v496
      %v652 = vunpack.c.l.b16 %v497
      %v653 = vunpack.c.l.b16 %v498
      %v654 = vunpack.c.l.b16 %v499
      %v655 = vunpack.c.l.b16 %v500
      %v656 = vunpack.c.l.b16 %v501
      %v657 = vunpack.c.l.b16 %v502
      %v658 = vunpack.c.l.b16 %v503
      %v659 = vunpack.c.l.b16 %v504
      %v660 = vunpack.c.l.b16 %v505
      %v661 = vunpack.c.l.b16 %v506
      %v662 = vunpack.c.l.b16 %v507
      %v663 = vunpack.c.l.b16 %v508
      %v664 = vunpack.c.l.b16 %v509
      %v665 = vunpack.c.l.b16 %v510
      %v666 = vunpack.c.l.b16 %v511
      %v667 = vunpack.c.l.b16 %v512
      %v668 = vunpack.c.l.b16 %v513
      %v669 = vunpack.c.l.b16 %v514
      %v670 = vunpack.c.l.b16 %v515
      %v671 = vunpack.c.l.b16 %v516
      %v672 = vunpack.c.l.b16 %v517
      %v673 = vunpack.c.l.b16 %v518
      %v674 = vunpack.c.l.b16 %v519
      %v675 = vunpack.c.l.b16 %v520
      %v676 = vunpack.c.l.b16 %v521
      %v677 = vunpack.c.l.b16 %v522
      %v678 = vunpack.c.l.b16 %v523
      %v679 = vunpack.c.l.b16 %v524
      %v680 = vunpack.c.l.b16 %v525
      %v681 = vunpack.c.l.b16 %v526
      %v682 = vunpack.c.l.b16 %v527
      %v683 = vunpack.c.l.b16 %v528
      %v684 = vunpack.c.l.b16 %v529
      %v685 = vunpack.c.l.b16 %v530
      %v686 = vunpack.c.l.b16 %v531
      %v687 = vunpack.c.l.b16 %v532
      %v688 = vunpack.c.l.b16 %v533
      %v689 = vunpack.c.l.b16 %v534
      %v690 = vunpack.c.l.b16 %v535
      %v691 = vrot.slane %v628, 7
      %vm692 = vcmask 1041409
      %v693 = vsel %vm692, %v691, %v627
      %v694 = vrot.slane %v629, 6
      %vm695 = vcmask 1042434
      %v696 = vsel %vm695, %v694, %v693
      %v697 = vrot.slane %v630, 5
      %vm698 = vcmask 1043459
      %v699 = vsel %vm698, %v697, %v696
      %v700 = vrot.slane %v631, 4
      %vm701 = vcmask 1044484
      %v702 = vsel %vm701, %v700, %v699
      %v703 = vrot.slane %v632, 3
      %vm704 = vcmask 1045509
      %v705 = vsel %vm704, %v703, %v702
      %v706 = vrot.slane %v633, 2
      %vm707 = vcmask 1046534
      %v708 = vsel %vm707, %v706, %v705
      %v709 = vrot.slane %v634, 1
      %vm710 = vcmask 1047559
      %v711 = vsel %vm710, %v709, %v708
      %v712 = vrot.slane %v636, 7
      %v713 = vsel %vm692, %v712, %v635
      %v714 = vrot.slane %v637, 6
      %v715 = vsel %vm695, %v714, %v713
      %v716 = vrot.slane %v638, 5
      %v717 = vsel %vm698, %v716, %v715
      %v718 = vrot.slane %v639, 4
      %v719 = vsel %vm701, %v718, %v717
      %v720 = vrot.slane %v640, 3
      %v721 = vsel %vm704, %v720, %v719
      %v722 = vrot.slane %v641, 2
      %v723 = vsel %vm707, %v722, %v721
      %v724 = vrot.slane %v642, 1
      %v725 = vsel %vm710, %v724, %v723
      %v726 = vrot.slane %v644, 7
      %v727 = vsel %vm692, %v726, %v643
      %v728 = vrot.slane %v645, 6
      %v729 = vsel %vm695, %v728, %v727
      %v730 = vrot.slane %v646, 5
      %v731 = vsel %vm698, %v730, %v729
      %v732 = vrot.slane %v647, 4
      %v733 = vsel %vm701, %v732, %v731
      %v734 = vrot.slane %v648, 3
      %v735 = vsel %vm704, %v734, %v733
      %v736 = vrot.slane %v649, 2
      %v737 = vsel %vm707, %v736, %v735
      %v738 = vrot.slane %v650, 1
      %v739 = vsel %vm710, %v738, %v737
      %v740 = vrot.slane %v652, 7
      %v741 = vsel %vm692, %v740, %v651
      %v742 = vrot.slane %v653, 6
      %v743 = vsel %vm695, %v742, %v741
      %v744 = vrot.slane %v654, 5
      %v745 = vsel %vm698, %v744, %v743
      %v746 = vrot.slane %v655, 4
      %v747 = vsel %vm701, %v746, %v745
      %v748 = vrot.slane %v656, 3
      %v749 = vsel %vm704, %v748, %v747
      %v750 = vrot.slane %v657, 2
      %v751 = vsel %vm707, %v750, %v749
      %v752 = vrot.slane %v658, 1
      %v753 = vsel %vm710, %v752, %v751
      %v754 = vrot.slane %v660, 7
      %v755 = vsel %vm692, %v754, %v659
      %v756 = vrot.slane %v661, 6
      %v757 = vsel %vm695, %v756, %v755
      %v758 = vrot.slane %v662, 5
      %v759 = vsel %vm698, %v758, %v757
      %v760 = vrot.slane %v663, 4
      %v761 = vsel %vm701, %v760, %v759
      %v762 = vrot.slane %v664, 3
      %v763 = vsel %vm704, %v762, %v761
      %v764 = vrot.slane %v665, 2
      %v765 = vsel %vm707, %v764, %v763
      %v766 = vrot.slane %v666, 1
      %v767 = vsel %vm710, %v766, %v765
      %v768 = vrot.slane %v668, 7
      %v769 = vsel %vm692, %v768, %v667
      %v770 = vrot.slane %v669, 6
      %v771 = vsel %vm695, %v770, %v769
      %v772 = vrot.slane %v670, 5
      %v773 = vsel %vm698, %v772, %v771
      %v774 = vrot.slane %v671, 4
      %v775 = vsel %vm701, %v774, %v773
      %v776 = vrot.slane %v672, 3
      %v777 = vsel %vm704, %v776, %v775
      %v778 = vrot.slane %v673, 2
      %v779 = vsel %vm707, %v778, %v777
      %v780 = vrot.slane %v674, 1
      %v781 = vsel %vm710, %v780, %v779
      %v782 = vrot.slane %v676, 7
      %v783 = vsel %vm692, %v782, %v675
      %v784 = vrot.slane %v677, 6
      %v785 = vsel %vm695, %v784, %v783
      %v786 = vrot.slane %v678, 5
      %v787 = vsel %vm698, %v786, %v785
      %v788 = vrot.slane %v679, 4
      %v789 = vsel %vm701, %v788, %v787
      %v790 = vrot.slane %v680, 3
      %v791 = vsel %vm704, %v790, %v789
      %v792 = vrot.slane %v681, 2
      %v793 = vsel %vm707, %v792, %v791
      %v794 = vrot.slane %v682, 1
      %v795 = vsel %vm710, %v794, %v793
      %v796 = vrot.slane %v684, 7
      %v797 = vsel %vm692, %v796, %v683
      %v798 = vrot.slane %v685, 6
      %v799 = vsel %vm695, %v798, %v797
      %v800 = vrot.slane %v686, 5
      %v801 = vsel %vm698, %v800, %v799
      %v802 = vrot.slane %v687, 4
      %v803 = vsel %vm701, %v802, %v801
      %v804 = vrot.slane %v688, 3
      %v805 = vsel %vm704, %v804, %v803
      %v806 = vrot.slane %v689, 2
      %v807 = vsel %vm707, %v806, %v805
      %v808 = vrot.slane %v690, 1
      %v809 = vsel %vm710, %v808, %v807
      %v810 = vpack.c.b16 %v725, %v711
      %v811 = vpack.c.b16 %v753, %v739
      %v812 = vpack.c.b16 %v781, %v767
      %v813 = vpack.c.b16 %v809, %v795
      %vm818 = vcmask 523264
      %v820 = vsel %vm818, %v560, 0
      %v823 = vsel %vm818, %v561, 0
      %v826 = vsel %vm818, %v562, 0
      %828 = vmatprep.subr.bf16.mxu0 0
      %829 = vmatpush1.bf16.msra.mxu0 0
      %830 = vmatprep.subr.bf16.mxu0 0
      %831 = vmatpush1.bf16.msra.mxu0 0
      %832 = vmatprep.subr.bf16.mxu0 0
      %833 = vmatpush1.bf16.msra.mxu0 0
      %834 = vmatprep.subr.bf16.mxu0 0
      %835 = vmatpush1.bf16.msra.mxu0 0
      %836 = vmatprep.subr.bf16.mxu0 0
      %837 = vmatpush1.bf16.msra.mxu0 %v813
      %838 = vmatprep.subr.bf16.mxu0 0
      %839 = vmatpush1.bf16.msra.mxu0 %v812
      %840 = vmatprep.subr.bf16.mxu0 0
      %841 = vmatpush1.bf16.msra.mxu0 %v811
      %842 = vmatprep.subr.bf16.mxu0 0
      %843 = vmatpush1.bf16.msra.mxu0 %v810
      %844 = vmatprep.subr.bf16.mxu0 0
      %845 = vmatpush2.bf16.msra.mxu0 0
      %846 = vmatprep.subr.bf16.mxu0 0
      %847 = vmatpush2.bf16.msra.mxu0 0
      %848 = vmatprep.subr.bf16.mxu0 0
      %849 = vmatpush2.bf16.msra.mxu0 0
      %850 = vmatprep.subr.bf16.mxu0 0
      %851 = vmatpush2.bf16.msra.mxu0 0
      %852 = vmatprep.subr.bf16.mxu0 0
      %853 = vmatpush2.bf16.msra.mxu0 0
      %854 = vmatprep.subr.bf16.mxu0 0
      %855 = vmatpush2.bf16.msra.mxu0 0
      %856 = vmatprep.subr.bf16.mxu0 0
      %857 = vmatpush2.bf16.msra.mxu0 0
      %858 = vmatprep.subr.bf16.mxu0 0
      %859 = vmatpush2.bf16.msra.mxu0 0
      %860 = vmatprep.mubr.bf16.mxu0 0
      %861 = vmatmul.mubr.bf16.gmra.mxu0 %v820
      %v862 = vpop.f32.mrf.mxu0
      %v863 = vadd.f32 0.0, %v862
      %v864 = vpop.f32.mrf.mxu0
      %v865 = vpop.f32.mrf.mxu0
      %v866 = vadd.f32 0.0, %v865
      %v867 = vpop.f32.mrf.mxu0
      %868 = vmatprep.mubr.bf16.mxu0 0
      %869 = vmatmul.mubr.bf16.gmra.mxu0 %v823
      %v870 = vpop.f32.mrf.mxu0
      %v871 = vadd.f32 0.0, %v870
      %v872 = vpop.f32.mrf.mxu0
      %v873 = vpop.f32.mrf.mxu0
      %v874 = vadd.f32 0.0, %v873
      %v875 = vpop.f32.mrf.mxu0
      %876 = vmatprep.mubr.bf16.mxu0 0
      %877 = vmatmul.mubr.bf16.gmra.mxu0 %v826
      %v878 = vpop.f32.mrf.mxu0
      %v879 = vadd.f32 0.0, %v878
      %v880 = vpop.f32.mrf.mxu0
      %v881 = vpop.f32.mrf.mxu0
      %v882 = vadd.f32 0.0, %v881
      %v883 = vpop.f32.mrf.mxu0
      %884 = vdwg.mxu0
      %v885 = vrot.slane %v627, 1
      %v886 = vsel %vm692, %v628, %v885
      %v887 = vrot.slane %v629, 7
      %v888 = vsel %vm695, %v887, %v886
      %v889 = vrot.slane %v630, 6
      %v890 = vsel %vm698, %v889, %v888
      %v891 = vrot.slane %v631, 5
      %v892 = vsel %vm701, %v891, %v890
      %v893 = vrot.slane %v632, 4
      %v894 = vsel %vm704, %v893, %v892
      %v895 = vrot.slane %v633, 3
      %v896 = vsel %vm707, %v895, %v894
      %v897 = vrot.slane %v634, 2
      %v898 = vsel %vm710, %v897, %v896
      %v899 = vrot.slane %v635, 1
      %v900 = vsel %vm692, %v636, %v899
      %v901 = vrot.slane %v637, 7
      %v902 = vsel %vm695, %v901, %v900
      %v903 = vrot.slane %v638, 6
      %v904 = vsel %vm698, %v903, %v902
      %v905 = vrot.slane %v639, 5
      %v906 = vsel %vm701, %v905, %v904
      %v907 = vrot.slane %v640, 4
      %v908 = vsel %vm704, %v907, %v906
      %v909 = vrot.slane %v641, 3
      %v910 = vsel %vm707, %v909, %v908
      %v911 = vrot.slane %v642, 2
      %v912 = vsel %vm710, %v911, %v910
      %v913 = vrot.slane %v643, 1
      %v914 = vsel %vm692, %v644, %v913
      %v915 = vrot.slane %v645, 7
      %v916 = vsel %vm695, %v915, %v914
      %v917 = vrot.slane %v646, 6
      %v918 = vsel %vm698, %v917, %v916
      %v919 = vrot.slane %v647, 5
      %v920 = vsel %vm701, %v919, %v918
      %v921 = vrot.slane %v648, 4
      %v922 = vsel %vm704, %v921, %v920
      %v923 = vrot.slane %v649, 3
      %v924 = vsel %vm707, %v923, %v922
      %v925 = vrot.slane %v650, 2
      %v926 = vsel %vm710, %v925, %v924
      %v927 = vrot.slane %v651, 1
      %v928 = vsel %vm692, %v652, %v927
      %v929 = vrot.slane %v653, 7
      %v930 = vsel %vm695, %v929, %v928
      %v931 = vrot.slane %v654, 6
      %v932 = vsel %vm698, %v931, %v930
      %v933 = vrot.slane %v655, 5
      %v934 = vsel %vm701, %v933, %v932
      %v935 = vrot.slane %v656, 4
      %v936 = vsel %vm704, %v935, %v934
      %v937 = vrot.slane %v657, 3
      %v938 = vsel %vm707, %v937, %v936
      %v939 = vrot.slane %v658, 2
      %v940 = vsel %vm710, %v939, %v938
      %v941 = vrot.slane %v659, 1
      %v942 = vsel %vm692, %v660, %v941
      %v943 = vrot.slane %v661, 7
      %v944 = vsel %vm695, %v943, %v942
      %v945 = vrot.slane %v662, 6
      %v946 = vsel %vm698, %v945, %v944
      %v947 = vrot.slane %v663, 5
      %v948 = vsel %vm701, %v947, %v946
      %v949 = vrot.slane %v664, 4
      %v950 = vsel %vm704, %v949, %v948
      %v951 = vrot.slane %v665, 3
      %v952 = vsel %vm707, %v951, %v950
      %v953 = vrot.slane %v666, 2
      %v954 = vsel %vm710, %v953, %v952
      %v955 = vrot.slane %v667, 1
      %v956 = vsel %vm692, %v668, %v955
      %v957 = vrot.slane %v669, 7
      %v958 = vsel %vm695, %v957, %v956
      %v959 = vrot.slane %v670, 6
      %v960 = vsel %vm698, %v959, %v958
      %v961 = vrot.slane %v671, 5
      %v962 = vsel %vm701, %v961, %v960
      %v963 = vrot.slane %v672, 4
      %v964 = vsel %vm704, %v963, %v962
      %v965 = vrot.slane %v673, 3
      %v966 = vsel %vm707, %v965, %v964
      %v967 = vrot.slane %v674, 2
      %v968 = vsel %vm710, %v967, %v966
      %v969 = vrot.slane %v675, 1
      %v970 = vsel %vm692, %v676, %v969
      %v971 = vrot.slane %v677, 7
      %v972 = vsel %vm695, %v971, %v970
      %v973 = vrot.slane %v678, 6
      %v974 = vsel %vm698, %v973, %v972
      %v975 = vrot.slane %v679, 5
      %v976 = vsel %vm701, %v975, %v974
      %v977 = vrot.slane %v680, 4
      %v978 = vsel %vm704, %v977, %v976
      %v979 = vrot.slane %v681, 3
      %v980 = vsel %vm707, %v979, %v978
      %v981 = vrot.slane %v682, 2
      %v982 = vsel %vm710, %v981, %v980
      %v983 = vrot.slane %v683, 1
      %v984 = vsel %vm692, %v684, %v983
      %v985 = vrot.slane %v685, 7
      %v986 = vsel %vm695, %v985, %v984
      %v987 = vrot.slane %v686, 6
      %v988 = vsel %vm698, %v987, %v986
      %v989 = vrot.slane %v687, 5
      %v990 = vsel %vm701, %v989, %v988
      %v991 = vrot.slane %v688, 4
      %v992 = vsel %vm704, %v991, %v990
      %v993 = vrot.slane %v689, 3
      %v994 = vsel %vm707, %v993, %v992
      %v995 = vrot.slane %v690, 2
      %v996 = vsel %vm710, %v995, %v994
      %v997 = vpack.c.b16 %v912, %v898
      %v998 = vpack.c.b16 %v940, %v926
      %v999 = vpack.c.b16 %v968, %v954
      %v1000 = vpack.c.b16 %v996, %v982
      %1005 = vmatprep.subr.bf16.mxu0 0
      %1006 = vmatpush1.bf16.msra.mxu0 0
      %1007 = vmatprep.subr.bf16.mxu0 0
      %1008 = vmatpush1.bf16.msra.mxu0 0
      %1009 = vmatprep.subr.bf16.mxu0 0
      %1010 = vmatpush1.bf16.msra.mxu0 0
      %1011 = vmatprep.subr.bf16.mxu0 0
      %1012 = vmatpush1.bf16.msra.mxu0 0
      %1013 = vmatprep.subr.bf16.mxu0 0
      %1014 = vmatpush1.bf16.msra.mxu0 %v1000
      %1015 = vmatprep.subr.bf16.mxu0 0
      %1016 = vmatpush1.bf16.msra.mxu0 %v999
      %1017 = vmatprep.subr.bf16.mxu0 0
      %1018 = vmatpush1.bf16.msra.mxu0 %v998
      %1019 = vmatprep.subr.bf16.mxu0 0
      %1020 = vmatpush1.bf16.msra.mxu0 %v997
      %1021 = vmatprep.subr.bf16.mxu0 0
      %1022 = vmatpush2.bf16.msra.mxu0 0
      %1023 = vmatprep.subr.bf16.mxu0 0
      %1024 = vmatpush2.bf16.msra.mxu0 0
      %1025 = vmatprep.subr.bf16.mxu0 0
      %1026 = vmatpush2.bf16.msra.mxu0 0
      %1027 = vmatprep.subr.bf16.mxu0 0
      %1028 = vmatpush2.bf16.msra.mxu0 0
      %1029 = vmatprep.subr.bf16.mxu0 0
      %1030 = vmatpush2.bf16.msra.mxu0 0
      %1031 = vmatprep.subr.bf16.mxu0 0
      %1032 = vmatpush2.bf16.msra.mxu0 0
      %1033 = vmatprep.subr.bf16.mxu0 0
      %1034 = vmatpush2.bf16.msra.mxu0 0
      %1035 = vmatprep.subr.bf16.mxu0 0
      %1036 = vmatpush2.bf16.msra.mxu0 0
      %1037 = vmatprep.mubr.bf16.mxu0 0
      %1038 = vmatmul.mubr.bf16.gmra.mxu0 %v820
      %v1039 = vpop.f32.mrf.mxu0
      %v1040 = vadd.f32 0.0, %v1039
      %v1041 = vpop.f32.mrf.mxu0
      %v1042 = vpop.f32.mrf.mxu0
      %v1043 = vadd.f32 0.0, %v1042
      %v1044 = vpop.f32.mrf.mxu0
      %1045 = vmatprep.mubr.bf16.mxu0 0
      %1046 = vmatmul.mubr.bf16.gmra.mxu0 %v823
      %v1047 = vpop.f32.mrf.mxu0
      %v1048 = vadd.f32 0.0, %v1047
      %v1049 = vpop.f32.mrf.mxu0
      %v1050 = vpop.f32.mrf.mxu0
      %v1051 = vadd.f32 0.0, %v1050
      %v1052 = vpop.f32.mrf.mxu0
      %1053 = vmatprep.mubr.bf16.mxu0 0
      %1054 = vmatmul.mubr.bf16.gmra.mxu0 %v826
      %v1055 = vpop.f32.mrf.mxu0
      %v1056 = vadd.f32 0.0, %v1055
      %v1057 = vpop.f32.mrf.mxu0
      %v1058 = vpop.f32.mrf.mxu0
      %v1059 = vadd.f32 0.0, %v1058
      %v1060 = vpop.f32.mrf.mxu0
      %1061 = vdwg.mxu0
      %v1062 = vrot.slane %v627, 2
      %v1063 = vrot.slane %v628, 1
      %v1064 = vsel %vm692, %v1063, %v1062
      %v1065 = vsel %vm695, %v629, %v1064
      %v1066 = vrot.slane %v630, 7
      %v1067 = vsel %vm698, %v1066, %v1065
      %v1068 = vrot.slane %v631, 6
      %v1069 = vsel %vm701, %v1068, %v1067
      %v1070 = vrot.slane %v632, 5
      %v1071 = vsel %vm704, %v1070, %v1069
      %v1072 = vrot.slane %v633, 4
      %v1073 = vsel %vm707, %v1072, %v1071
      %v1074 = vrot.slane %v634, 3
      %v1075 = vsel %vm710, %v1074, %v1073
      %v1076 = vrot.slane %v635, 2
      %v1077 = vrot.slane %v636, 1
      %v1078 = vsel %vm692, %v1077, %v1076
      %v1079 = vsel %vm695, %v637, %v1078
      %v1080 = vrot.slane %v638, 7
      %v1081 = vsel %vm698, %v1080, %v1079
      %v1082 = vrot.slane %v639, 6
      %v1083 = vsel %vm701, %v1082, %v1081
      %v1084 = vrot.slane %v640, 5
      %v1085 = vsel %vm704, %v1084, %v1083
      %v1086 = vrot.slane %v641, 4
      %v1087 = vsel %vm707, %v1086, %v1085
      %v1088 = vrot.slane %v642, 3
      %v1089 = vsel %vm710, %v1088, %v1087
      %v1090 = vrot.slane %v643, 2
      %v1091 = vrot.slane %v644, 1
      %v1092 = vsel %vm692, %v1091, %v1090
      %v1093 = vsel %vm695, %v645, %v1092
      %v1094 = vrot.slane %v646, 7
      %v1095 = vsel %vm698, %v1094, %v1093
      %v1096 = vrot.slane %v647, 6
      %v1097 = vsel %vm701, %v1096, %v1095
      %v1098 = vrot.slane %v648, 5
      %v1099 = vsel %vm704, %v1098, %v1097
      %v1100 = vrot.slane %v649, 4
      %v1101 = vsel %vm707, %v1100, %v1099
      %v1102 = vrot.slane %v650, 3
      %v1103 = vsel %vm710, %v1102, %v1101
      %v1104 = vrot.slane %v651, 2
      %v1105 = vrot.slane %v652, 1
      %v1106 = vsel %vm692, %v1105, %v1104
      %v1107 = vsel %vm695, %v653, %v1106
      %v1108 = vrot.slane %v654, 7
      %v1109 = vsel %vm698, %v1108, %v1107
      %v1110 = vrot.slane %v655, 6
      %v1111 = vsel %vm701, %v1110, %v1109
      %v1112 = vrot.slane %v656, 5
      %v1113 = vsel %vm704, %v1112, %v1111
      %v1114 = vrot.slane %v657, 4
      %v1115 = vsel %vm707, %v1114, %v1113
      %v1116 = vrot.slane %v658, 3
      %v1117 = vsel %vm710, %v1116, %v1115
      %v1118 = vrot.slane %v659, 2
      %v1119 = vrot.slane %v660, 1
      %v1120 = vsel %vm692, %v1119, %v1118
      %v1121 = vsel %vm695, %v661, %v1120
      %v1122 = vrot.slane %v662, 7
      %v1123 = vsel %vm698, %v1122, %v1121
      %v1124 = vrot.slane %v663, 6
      %v1125 = vsel %vm701, %v1124, %v1123
      %v1126 = vrot.slane %v664, 5
      %v1127 = vsel %vm704, %v1126, %v1125
      %v1128 = vrot.slane %v665, 4
      %v1129 = vsel %vm707, %v1128, %v1127
      %v1130 = vrot.slane %v666, 3
      %v1131 = vsel %vm710, %v1130, %v1129
      %v1132 = vrot.slane %v667, 2
      %v1133 = vrot.slane %v668, 1
      %v1134 = vsel %vm692, %v1133, %v1132
      %v1135 = vsel %vm695, %v669, %v1134
      %v1136 = vrot.slane %v670, 7
      %v1137 = vsel %vm698, %v1136, %v1135
      %v1138 = vrot.slane %v671, 6
      %v1139 = vsel %vm701, %v1138, %v1137
      %v1140 = vrot.slane %v672, 5
      %v1141 = vsel %vm704, %v1140, %v1139
      %v1142 = vrot.slane %v673, 4
      %v1143 = vsel %vm707, %v1142, %v1141
      %v1144 = vrot.slane %v674, 3
      %v1145 = vsel %vm710, %v1144, %v1143
      %v1146 = vrot.slane %v675, 2
      %v1147 = vrot.slane %v676, 1
      %v1148 = vsel %vm692, %v1147, %v1146
      %v1149 = vsel %vm695, %v677, %v1148
      %v1150 = vrot.slane %v678, 7
      %v1151 = vsel %vm698, %v1150, %v1149
      %v1152 = vrot.slane %v679, 6
      %v1153 = vsel %vm701, %v1152, %v1151
      %v1154 = vrot.slane %v680, 5
      %v1155 = vsel %vm704, %v1154, %v1153
      %v1156 = vrot.slane %v681, 4
      %v1157 = vsel %vm707, %v1156, %v1155
      %v1158 = vrot.slane %v682, 3
      %v1159 = vsel %vm710, %v1158, %v1157
      %v1160 = vrot.slane %v683, 2
      %v1161 = vrot.slane %v684, 1
      %v1162 = vsel %vm692, %v1161, %v1160
      %v1163 = vsel %vm695, %v685, %v1162
      %v1164 = vrot.slane %v686, 7
      %v1165 = vsel %vm698, %v1164, %v1163
      %v1166 = vrot.slane %v687, 6
      %v1167 = vsel %vm701, %v1166, %v1165
      %v1168 = vrot.slane %v688, 5
      %v1169 = vsel %vm704, %v1168, %v1167
      %v1170 = vrot.slane %v689, 4
      %v1171 = vsel %vm707, %v1170, %v1169
      %v1172 = vrot.slane %v690, 3
      %v1173 = vsel %vm710, %v1172, %v1171
      %v1174 = vpack.c.b16 %v1089, %v1075
      %v1175 = vpack.c.b16 %v1117, %v1103
      %v1176 = vpack.c.b16 %v1145, %v1131
      %v1177 = vpack.c.b16 %v1173, %v1159
      %1182 = vmatprep.subr.bf16.mxu0 0
      %1183 = vmatpush1.bf16.msra.mxu0 0
      %1184 = vmatprep.subr.bf16.mxu0 0
      %1185 = vmatpush1.bf16.msra.mxu0 0
      %1186 = vmatprep.subr.bf16.mxu0 0
      %1187 = vmatpush1.bf16.msra.mxu0 0
      %1188 = vmatprep.subr.bf16.mxu0 0
      %1189 = vmatpush1.bf16.msra.mxu0 0
      %1190 = vmatprep.subr.bf16.mxu0 0
      %1191 = vmatpush1.bf16.msra.mxu0 %v1177
      %1192 = vmatprep.subr.bf16.mxu0 0
      %1193 = vmatpush1.bf16.msra.mxu0 %v1176
      %1194 = vmatprep.subr.bf16.mxu0 0
      %1195 = vmatpush1.bf16.msra.mxu0 %v1175
      %1196 = vmatprep.subr.bf16.mxu0 0
      %1197 = vmatpush1.bf16.msra.mxu0 %v1174
      %1198 = vmatprep.subr.bf16.mxu0 0
      %1199 = vmatpush2.bf16.msra.mxu0 0
      %1200 = vmatprep.subr.bf16.mxu0 0
      %1201 = vmatpush2.bf16.msra.mxu0 0
      %1202 = vmatprep.subr.bf16.mxu0 0
      %1203 = vmatpush2.bf16.msra.mxu0 0
      %1204 = vmatprep.subr.bf16.mxu0 0
      %1205 = vmatpush2.bf16.msra.mxu0 0
      %1206 = vmatprep.subr.bf16.mxu0 0
      %1207 = vmatpush2.bf16.msra.mxu0 0
      %1208 = vmatprep.subr.bf16.mxu0 0
      %1209 = vmatpush2.bf16.msra.mxu0 0
      %1210 = vmatprep.subr.bf16.mxu0 0
      %1211 = vmatpush2.bf16.msra.mxu0 0
      %1212 = vmatprep.subr.bf16.mxu0 0
      %1213 = vmatpush2.bf16.msra.mxu0 0
      %1214 = vmatprep.mubr.bf16.mxu0 0
      %1215 = vmatmul.mubr.bf16.gmra.mxu0 %v820
      %v1216 = vpop.f32.mrf.mxu0
      %v1217 = vadd.f32 0.0, %v1216
      %v1218 = vpop.f32.mrf.mxu0
      %v1219 = vpop.f32.mrf.mxu0
      %v1220 = vadd.f32 0.0, %v1219
      %v1221 = vpop.f32.mrf.mxu0
      %1222 = vmatprep.mubr.bf16.mxu0 0
      %1223 = vmatmul.mubr.bf16.gmra.mxu0 %v823
      %v1224 = vpop.f32.mrf.mxu0
      %v1225 = vadd.f32 0.0, %v1224
      %v1226 = vpop.f32.mrf.mxu0
      %v1227 = vpop.f32.mrf.mxu0
      %v1228 = vadd.f32 0.0, %v1227
      %v1229 = vpop.f32.mrf.mxu0
      %1230 = vmatprep.mubr.bf16.mxu0 0
      %1231 = vmatmul.mubr.bf16.gmra.mxu0 %v826
      %v1232 = vpop.f32.mrf.mxu0
      %v1233 = vadd.f32 0.0, %v1232
      %v1234 = vpop.f32.mrf.mxu0
      %v1235 = vpop.f32.mrf.mxu0
      %v1236 = vadd.f32 0.0, %v1235
      %v1237 = vpop.f32.mrf.mxu0
      %1238 = vdwg.mxu0
      %v1239 = vmul.f32 %v863, %v863
      %v1240 = vmul.f32 %v866, %v866
      %v1241 = vmul.f32 %v871, %v871
      %v1242 = vmul.f32 %v1040, %v1040
      %v1243 = vmul.f32 %v1043, %v1043
      %v1244 = vmul.f32 %v1048, %v1048
      %v1245 = vadd.f32 %v1239, %v1242
      %v1246 = vadd.f32 %v1240, %v1243
      %v1247 = vadd.f32 %v1241, %v1244
      %v1248 = vmul.f32 %v1217, %v1217
      %v1249 = vmul.f32 %v1220, %v1220
      %v1250 = vmul.f32 %v1225, %v1225
      %v1251 = vadd.f32 %v1245, %v1248
      %v1252 = vadd.f32 %v1246, %v1249
      %v1253 = vadd.f32 %v1247, %v1250
      %v1254 = vadd.f32 %v1251, 1e-12
      %v1255 = vadd.f32 %v1252, 1e-12
      %v1256 = vadd.f32 %v1253, 1e-12
      %v1257 = vrsqrt.pop %v1254
      %v1258 = vrsqrt.pop %v1255
      %v1259 = vrsqrt.pop %v1256
      %1261 = vset.pattern.permute.xlu0 0
      %1262 = vperm.xlu0 %1261, %v545
      %v1263 = vpop.permute.xlu0 %1262
      %1266 = vset.pattern.permute.xlu0 0
      %1267 = vperm.xlu0 %1266, %v546
      %v1268 = vpop.permute.xlu0 %1267
      %1271 = vset.pattern.permute.xlu0 0
      %1272 = vperm.xlu0 %1271, %v547
      %v1273 = vpop.permute.xlu0 %1272
      %v1275 = vmul.f32 %v1263, %v1257
      %v1276 = vmul.f32 %v1268, %v1258
      %v1277 = vmul.f32 %v1273, %v1259
      %1279 = vset.pattern.permute.xlu0 0
      %1280 = vperm.xlu0 %1279, %v542
      %v1281 = vpop.permute.xlu0 %1280
      %1284 = vset.pattern.permute.xlu0 0
      %1285 = vperm.xlu0 %1284, %v543
      %v1286 = vpop.permute.xlu0 %1285
      %1289 = vset.pattern.permute.xlu0 0
      %1290 = vperm.xlu0 %1289, %v544
      %v1291 = vpop.permute.xlu0 %1290
      %v1293 = vadd.f32 %v1281, %v1275
      %v1294 = vadd.f32 %v1286, %v1276
      %v1295 = vadd.f32 %v1291, %v1277
      %v1296 = vmul.f32 %v863, %v1293
      %v1297 = vmul.f32 %v866, %v1294
      %v1298 = vmul.f32 %v871, %v1295
      %v1299 = vmul.f32 %v1040, %v1293
      %v1300 = vmul.f32 %v1043, %v1294
      %v1301 = vmul.f32 %v1048, %v1295
      %v1302 = vmul.f32 %v1217, %v1293
      %v1303 = vmul.f32 %v1220, %v1294
      %v1304 = vmul.f32 %v1225, %v1295
      %v1305 = vmul.f32 %v1296, %v874
      %v1306 = vmul.f32 %v1297, %v879
      %v1307 = vmul.f32 %v1298, %v882
      %v1308 = vmul.f32 %v1299, %v1051
      %v1309 = vmul.f32 %v1300, %v1056
      %v1310 = vmul.f32 %v1301, %v1059
      %v1311 = vadd.f32 %v1305, %v1308
      %v1312 = vadd.f32 %v1306, %v1309
      %v1313 = vadd.f32 %v1307, %v1310
      %v1314 = vmul.f32 %v1302, %v1228
      %v1315 = vmul.f32 %v1303, %v1233
      %v1316 = vmul.f32 %v1304, %v1236
      %v1317 = vadd.f32 %v1311, %v1314
      %v1318 = vadd.f32 %v1312, %v1315
      %v1319 = vadd.f32 %v1313, %v1316
      %v1320 = vmul.f32 %v874, %v874
      %v1321 = vmul.f32 %v879, %v879
      %v1322 = vmul.f32 %v882, %v882
      %v1323 = vmul.f32 %v1051, %v1051
      %v1324 = vmul.f32 %v1056, %v1056
      %v1325 = vmul.f32 %v1059, %v1059
      %v1326 = vadd.f32 %v1320, %v1323
      %v1327 = vadd.f32 %v1321, %v1324
      %v1328 = vadd.f32 %v1322, %v1325
      %v1329 = vmul.f32 %v1228, %v1228
      %v1330 = vmul.f32 %v1233, %v1233
      %v1331 = vmul.f32 %v1236, %v1236
      %v1332 = vadd.f32 %v1326, %v1329
      %v1333 = vadd.f32 %v1327, %v1330
      %v1334 = vadd.f32 %v1328, %v1331
      %v1335 = vadd.f32 %v1332, 1e-06
      %v1336 = vadd.f32 %v1333, 1e-06
      %v1337 = vadd.f32 %v1334, 1e-06
      %v1338 = vrcp.pop %v1335
      %v1339 = vrcp.pop %v1336
      %v1340 = vrcp.pop %v1337
      %v1341 = vmul.f32 %v1317, %v1338
      %v1342 = vmul.f32 %v1318, %v1339
      %v1343 = vmul.f32 %v1319, %v1340
      %v1344 = vmin.f32 %v1341, 0.0
      %v1345 = vmin.f32 %v1342, 0.0
      %v1346 = vmin.f32 %v1343, 0.0
      %v1347 = vmul.f32 %v1344, %v874
      %v1348 = vmul.f32 %v1345, %v879
      %v1349 = vmul.f32 %v1346, %v882
      %v1350 = vsub.f32 %v1296, %v1347
      %v1351 = vsub.f32 %v1297, %v1348
      %v1352 = vsub.f32 %v1298, %v1349
      %v1353 = vmul.f32 %v1344, %v1051
      %v1354 = vmul.f32 %v1345, %v1056
      %v1355 = vmul.f32 %v1346, %v1059
      %v1356 = vsub.f32 %v1299, %v1353
      %v1357 = vsub.f32 %v1300, %v1354
      %v1358 = vsub.f32 %v1301, %v1355
      %v1359 = vmul.f32 %v1344, %v1228
      %v1360 = vmul.f32 %v1345, %v1233
      %v1361 = vmul.f32 %v1346, %v1236
      %v1362 = vsub.f32 %v1302, %v1359
      %v1363 = vsub.f32 %v1303, %v1360
      %v1364 = vsub.f32 %v1304, %v1361
      %v1365 = vpack.c.bf16 %v1351, %v1350
      %v1366 = vpack.c.bf16 %v1352, %v1352
      %v1367 = vpack.c.bf16 %v1357, %v1356
      %v1368 = vpack.c.bf16 %v1358, %v1358
      %v1369 = vpack.c.bf16 %v1363, %v1362
      %v1370 = vpack.c.bf16 %v1364, %v1364
      %v1371 = vld [vmem:[%s4] sm:$0xf]
      %v1372 = vld [vmem:[%s4 + $0x4] sm:$0xf]
      %v1373 = vld [vmem:[%s4 + $0x8] sm:$0xf]
      %v1374 = vld [vmem:[%s4 + $0xc] sm:$0xf]
      %v1375 = vld [vmem:[%s4 + $0x10] sm:$0xf]
      %v1376 = vld [vmem:[%s4 + $0x14] sm:$0xf]
      %v1377 = vld [vmem:[%s4 + $0x18] sm:$0xf]
      %v1378 = vld [vmem:[%s4 + $0x1c] sm:$0xf]
      %v1379 = vld [vmem:[%s4 + $0x20] sm:$0xf]
      %v1380 = vld [vmem:[%s4 + $0x24] sm:$0xf]
      %v1381 = vld [vmem:[%s4 + $0x28] sm:$0xf]
      %v1382 = vld [vmem:[%s4 + $0x2c] sm:$0xf]
      %v1383 = vld [vmem:[%s5] sm:$0xff]
      %v1384 = vld [vmem:[%s5 + $0x8] sm:$0xff]
      %v1385 = vld [vmem:[%s5 + $0x10] sm:$0xff]
      %v1386 = vld [vmem:[%s5 + $0x18] sm:$0xff]
      %v1387 = vld [vmem:[%s5 + $0x20] sm:$0xff]
      %v1388 = vld [vmem:[%s5 + $0x28] sm:$0xff]
      %v1389 = vld [vmem:[%s6] sm:$0xff]
      %v1390 = vld [vmem:[%s6 + $0x8] sm:$0xff]
      %v1391 = vld [vmem:[%s6 + $0x10] sm:$0xff]
      %v1392 = vld [vmem:[%s6 + $0x18] sm:$0xff]
      %v1393 = vld [vmem:[%s6 + $0x20] sm:$0xff]
      %v1394 = vld [vmem:[%s6 + $0x28] sm:$0xff]
      %v1407 = vunpack.c.l.b16 %v1371
      %v1408 = vunpack.c.l.b16 %v1372
      %v1409 = vunpack.c.l.b16 %v1373
      %v1410 = vunpack.c.l.b16 %v1374
      %v1411 = vunpack.c.l.b16 %v1375
      %v1412 = vunpack.c.l.b16 %v1376
      %v1413 = vunpack.c.l.b16 %v1377
      %v1414 = vunpack.c.l.b16 %v1378
      %v1415 = vunpack.c.l.b16 %v1379
      %v1416 = vunpack.c.l.b16 %v1380
      %v1417 = vunpack.c.l.b16 %v1381
      %v1418 = vunpack.c.l.b16 %v1382
      %v1419 = vpack.c.b16 %v1408, %v1407
      %v1420 = vpack.c.b16 %v1410, %v1409
      %v1421 = vpack.c.b16 %v1412, %v1411
      %v1422 = vpack.c.b16 %v1414, %v1413
      %v1423 = vpack.c.b16 %v1416, %v1415
      %v1424 = vpack.c.b16 %v1418, %v1417
      %vm1425 = vcmask 195584
      %v1427 = vsel %vm1425, %v1419, 0
      %v1430 = vsel %vm1425, %v1420, 0
      %v1433 = vsel %vm1425, %v1421, 0
      %v1436 = vsel %vm1425, %v1422, 0
      %v1439 = vsel %vm1425, %v1423, 0
      %v1442 = vsel %vm1425, %v1424, 0
      %vm1444 = vcmask 1043456
      %v1446 = vsel %vm1444, %v1366, 0
      %1448 = vmatprep.subr.bf16.mxu0 0
      %1449 = vmatpush1.bf16.msra.mxu0 0
      %1450 = vmatprep.subr.bf16.mxu0 0
      %1451 = vmatpush1.bf16.msra.mxu0 0
      %1452 = vmatprep.subr.bf16.mxu0 0
      %1453 = vmatpush1.bf16.msra.mxu0 0
      %1454 = vmatprep.subr.bf16.mxu0 0
      %1455 = vmatpush1.bf16.msra.mxu0 0
      %1456 = vmatprep.subr.bf16.mxu0 0
      %1457 = vmatpush1.bf16.msra.mxu0 0
      %1458 = vmatprep.subr.bf16.mxu0 0
      %1459 = vmatpush1.bf16.msra.mxu0 0
      %1460 = vmatprep.subr.bf16.mxu0 0
      %1461 = vmatpush1.bf16.msra.mxu0 %v1446
      %1462 = vmatprep.subr.bf16.mxu0 0
      %1463 = vmatpush1.bf16.msra.mxu0 %v1365
      %1464 = vmatprep.subr.bf16.mxu0 0
      %1465 = vmatpush2.bf16.msra.mxu0 0
      %1466 = vmatprep.subr.bf16.mxu0 0
      %1467 = vmatpush2.bf16.msra.mxu0 0
      %1468 = vmatprep.subr.bf16.mxu0 0
      %1469 = vmatpush2.bf16.msra.mxu0 0
      %1470 = vmatprep.subr.bf16.mxu0 0
      %1471 = vmatpush2.bf16.msra.mxu0 0
      %1472 = vmatprep.subr.bf16.mxu0 0
      %1473 = vmatpush2.bf16.msra.mxu0 0
      %1474 = vmatprep.subr.bf16.mxu0 0
      %1475 = vmatpush2.bf16.msra.mxu0 0
      %1476 = vmatprep.subr.bf16.mxu0 0
      %1477 = vmatpush2.bf16.msra.mxu0 0
      %1478 = vmatprep.subr.bf16.mxu0 0
      %1479 = vmatpush2.bf16.msra.mxu0 0
      %1480 = vmatprep.mubr.bf16.mxu0 0
      %1481 = vmatmul.mubr.bf16.gmra.mxu0 %v1427
      %v1482 = vpop.f32.mrf.mxu0
      %v1483 = vadd.f32 0.0, %v1482
      %v1484 = vpop.f32.mrf.mxu0
      %v1485 = vpop.f32.mrf.mxu0
      %v1486 = vadd.f32 0.0, %v1485
      %v1487 = vpop.f32.mrf.mxu0
      %1488 = vmatprep.mubr.bf16.mxu0 0
      %1489 = vmatmul.mubr.bf16.gmra.mxu0 %v1430
      %v1490 = vpop.f32.mrf.mxu0
      %v1491 = vadd.f32 0.0, %v1490
      %v1492 = vpop.f32.mrf.mxu0
      %v1493 = vpop.f32.mrf.mxu0
      %v1494 = vadd.f32 0.0, %v1493
      %v1495 = vpop.f32.mrf.mxu0
      %1496 = vmatprep.mubr.bf16.mxu0 0
      %1497 = vmatmul.mubr.bf16.gmra.mxu0 %v1433
      %v1498 = vpop.f32.mrf.mxu0
      %v1499 = vadd.f32 0.0, %v1498
      %v1500 = vpop.f32.mrf.mxu0
      %v1501 = vpop.f32.mrf.mxu0
      %v1502 = vadd.f32 0.0, %v1501
      %v1503 = vpop.f32.mrf.mxu0
      %1504 = vmatprep.mubr.bf16.mxu0 0
      %1505 = vmatmul.mubr.bf16.gmra.mxu0 %v1436
      %v1506 = vpop.f32.mrf.mxu0
      %v1507 = vadd.f32 0.0, %v1506
      %v1508 = vpop.f32.mrf.mxu0
      %v1509 = vpop.f32.mrf.mxu0
      %v1510 = vadd.f32 0.0, %v1509
      %v1511 = vpop.f32.mrf.mxu0
      %1512 = vmatprep.mubr.bf16.mxu0 0
      %1513 = vmatmul.mubr.bf16.gmra.mxu0 %v1439
      %v1514 = vpop.f32.mrf.mxu0
      %v1515 = vadd.f32 0.0, %v1514
      %v1516 = vpop.f32.mrf.mxu0
      %v1517 = vpop.f32.mrf.mxu0
      %v1518 = vadd.f32 0.0, %v1517
      %v1519 = vpop.f32.mrf.mxu0
      %1520 = vmatprep.mubr.bf16.mxu0 0
      %1521 = vmatmul.mubr.bf16.gmra.mxu0 %v1442
      %v1522 = vpop.f32.mrf.mxu0
      %v1523 = vadd.f32 0.0, %v1522
      %v1524 = vpop.f32.mrf.mxu0
      %v1525 = vpop.f32.mrf.mxu0
      %v1526 = vadd.f32 0.0, %v1525
      %v1527 = vpop.f32.mrf.mxu0
      %1528 = vdwg.mxu0
      %v1530 = vsel %vm1444, %v1368, 0
      %1532 = vmatprep.subr.bf16.mxu0 0
      %1533 = vmatpush1.bf16.msra.mxu0 0
      %1534 = vmatprep.subr.bf16.mxu0 0
      %1535 = vmatpush1.bf16.msra.mxu0 0
      %1536 = vmatprep.subr.bf16.mxu0 0
      %1537 = vmatpush1.bf16.msra.mxu0 0
      %1538 = vmatprep.subr.bf16.mxu0 0
      %1539 = vmatpush1.bf16.msra.mxu0 0
      %1540 = vmatprep.subr.bf16.mxu0 0
      %1541 = vmatpush1.bf16.msra.mxu0 0
      %1542 = vmatprep.subr.bf16.mxu0 0
      %1543 = vmatpush1.bf16.msra.mxu0 0
      %1544 = vmatprep.subr.bf16.mxu0 0
      %1545 = vmatpush1.bf16.msra.mxu0 %v1530
      %1546 = vmatprep.subr.bf16.mxu0 0
      %1547 = vmatpush1.bf16.msra.mxu0 %v1367
      %1548 = vmatprep.subr.bf16.mxu0 0
      %1549 = vmatpush2.bf16.msra.mxu0 0
      %1550 = vmatprep.subr.bf16.mxu0 0
      %1551 = vmatpush2.bf16.msra.mxu0 0
      %1552 = vmatprep.subr.bf16.mxu0 0
      %1553 = vmatpush2.bf16.msra.mxu0 0
      %1554 = vmatprep.subr.bf16.mxu0 0
      %1555 = vmatpush2.bf16.msra.mxu0 0
      %1556 = vmatprep.subr.bf16.mxu0 0
      %1557 = vmatpush2.bf16.msra.mxu0 0
      %1558 = vmatprep.subr.bf16.mxu0 0
      %1559 = vmatpush2.bf16.msra.mxu0 0
      %1560 = vmatprep.subr.bf16.mxu0 0
      %1561 = vmatpush2.bf16.msra.mxu0 0
      %1562 = vmatprep.subr.bf16.mxu0 0
      %1563 = vmatpush2.bf16.msra.mxu0 0
      %1564 = vmatprep.mubr.bf16.mxu0 0
      %1565 = vmatmul.mubr.bf16.gmra.mxu0 %v1427
      %v1566 = vpop.f32.mrf.mxu0
      %v1567 = vadd.f32 0.0, %v1566
      %v1568 = vpop.f32.mrf.mxu0
      %v1569 = vpop.f32.mrf.mxu0
      %v1570 = vadd.f32 0.0, %v1569
      %v1571 = vpop.f32.mrf.mxu0
      %1572 = vmatprep.mubr.bf16.mxu0 0
      %1573 = vmatmul.mubr.bf16.gmra.mxu0 %v1430
      %v1574 = vpop.f32.mrf.mxu0
      %v1575 = vadd.f32 0.0, %v1574
      %v1576 = vpop.f32.mrf.mxu0
      %v1577 = vpop.f32.mrf.mxu0
      %v1578 = vadd.f32 0.0, %v1577
      %v1579 = vpop.f32.mrf.mxu0
      %1580 = vmatprep.mubr.bf16.mxu0 0
      %1581 = vmatmul.mubr.bf16.gmra.mxu0 %v1433
      %v1582 = vpop.f32.mrf.mxu0
      %v1583 = vadd.f32 0.0, %v1582
      %v1584 = vpop.f32.mrf.mxu0
      %v1585 = vpop.f32.mrf.mxu0
      %v1586 = vadd.f32 0.0, %v1585
      %v1587 = vpop.f32.mrf.mxu0
      %1588 = vmatprep.mubr.bf16.mxu0 0
      %1589 = vmatmul.mubr.bf16.gmra.mxu0 %v1436
      %v1590 = vpop.f32.mrf.mxu0
      %v1591 = vadd.f32 0.0, %v1590
      %v1592 = vpop.f32.mrf.mxu0
      %v1593 = vpop.f32.mrf.mxu0
      %v1594 = vadd.f32 0.0, %v1593
      %v1595 = vpop.f32.mrf.mxu0
      %1596 = vmatprep.mubr.bf16.mxu0 0
      %1597 = vmatmul.mubr.bf16.gmra.mxu0 %v1439
      %v1598 = vpop.f32.mrf.mxu0
      %v1599 = vadd.f32 0.0, %v1598
      %v1600 = vpop.f32.mrf.mxu0
      %v1601 = vpop.f32.mrf.mxu0
      %v1602 = vadd.f32 0.0, %v1601
      %v1603 = vpop.f32.mrf.mxu0
      %1604 = vmatprep.mubr.bf16.mxu0 0
      %1605 = vmatmul.mubr.bf16.gmra.mxu0 %v1442
      %v1606 = vpop.f32.mrf.mxu0
      %v1607 = vadd.f32 0.0, %v1606
      %v1608 = vpop.f32.mrf.mxu0
      %v1609 = vpop.f32.mrf.mxu0
      %v1610 = vadd.f32 0.0, %v1609
      %v1611 = vpop.f32.mrf.mxu0
      %1612 = vdwg.mxu0
      %v1614 = vsel %vm1444, %v1370, 0
      %1616 = vmatprep.subr.bf16.mxu0 0
      %1617 = vmatpush1.bf16.msra.mxu0 0
      %1618 = vmatprep.subr.bf16.mxu0 0
      %1619 = vmatpush1.bf16.msra.mxu0 0
      %1620 = vmatprep.subr.bf16.mxu0 0
      %1621 = vmatpush1.bf16.msra.mxu0 0
      %1622 = vmatprep.subr.bf16.mxu0 0
      %1623 = vmatpush1.bf16.msra.mxu0 0
      %1624 = vmatprep.subr.bf16.mxu0 0
      %1625 = vmatpush1.bf16.msra.mxu0 0
      %1626 = vmatprep.subr.bf16.mxu0 0
      %1627 = vmatpush1.bf16.msra.mxu0 0
      %1628 = vmatprep.subr.bf16.mxu0 0
      %1629 = vmatpush1.bf16.msra.mxu0 %v1614
      %1630 = vmatprep.subr.bf16.mxu0 0
      %1631 = vmatpush1.bf16.msra.mxu0 %v1369
      %1632 = vmatprep.subr.bf16.mxu0 0
      %1633 = vmatpush2.bf16.msra.mxu0 0
      %1634 = vmatprep.subr.bf16.mxu0 0
      %1635 = vmatpush2.bf16.msra.mxu0 0
      %1636 = vmatprep.subr.bf16.mxu0 0
      %1637 = vmatpush2.bf16.msra.mxu0 0
      %1638 = vmatprep.subr.bf16.mxu0 0
      %1639 = vmatpush2.bf16.msra.mxu0 0
      %1640 = vmatprep.subr.bf16.mxu0 0
      %1641 = vmatpush2.bf16.msra.mxu0 0
      %1642 = vmatprep.subr.bf16.mxu0 0
      %1643 = vmatpush2.bf16.msra.mxu0 0
      %1644 = vmatprep.subr.bf16.mxu0 0
      %1645 = vmatpush2.bf16.msra.mxu0 0
      %1646 = vmatprep.subr.bf16.mxu0 0
      %1647 = vmatpush2.bf16.msra.mxu0 0
      %1648 = vmatprep.mubr.bf16.mxu0 0
      %1649 = vmatmul.mubr.bf16.gmra.mxu0 %v1427
      %v1650 = vpop.f32.mrf.mxu0
      %v1651 = vadd.f32 0.0, %v1650
      %v1652 = vpop.f32.mrf.mxu0
      %v1653 = vpop.f32.mrf.mxu0
      %v1654 = vadd.f32 0.0, %v1653
      %v1655 = vpop.f32.mrf.mxu0
      %1656 = vmatprep.mubr.bf16.mxu0 0
      %1657 = vmatmul.mubr.bf16.gmra.mxu0 %v1430
      %v1658 = vpop.f32.mrf.mxu0
      %v1659 = vadd.f32 0.0, %v1658
      %v1660 = vpop.f32.mrf.mxu0
      %v1661 = vpop.f32.mrf.mxu0
      %v1662 = vadd.f32 0.0, %v1661
      %v1663 = vpop.f32.mrf.mxu0
      %1664 = vmatprep.mubr.bf16.mxu0 0
      %1665 = vmatmul.mubr.bf16.gmra.mxu0 %v1433
      %v1666 = vpop.f32.mrf.mxu0
      %v1667 = vadd.f32 0.0, %v1666
      %v1668 = vpop.f32.mrf.mxu0
      %v1669 = vpop.f32.mrf.mxu0
      %v1670 = vadd.f32 0.0, %v1669
      %v1671 = vpop.f32.mrf.mxu0
      %1672 = vmatprep.mubr.bf16.mxu0 0
      %1673 = vmatmul.mubr.bf16.gmra.mxu0 %v1436
      %v1674 = vpop.f32.mrf.mxu0
      %v1675 = vadd.f32 0.0, %v1674
      %v1676 = vpop.f32.mrf.mxu0
      %v1677 = vpop.f32.mrf.mxu0
      %v1678 = vadd.f32 0.0, %v1677
      %v1679 = vpop.f32.mrf.mxu0
      %1680 = vmatprep.mubr.bf16.mxu0 0
      %1681 = vmatmul.mubr.bf16.gmra.mxu0 %v1439
      %v1682 = vpop.f32.mrf.mxu0
      %v1683 = vadd.f32 0.0, %v1682
      %v1684 = vpop.f32.mrf.mxu0
      %v1685 = vpop.f32.mrf.mxu0
      %v1686 = vadd.f32 0.0, %v1685
      %v1687 = vpop.f32.mrf.mxu0
      %1688 = vmatprep.mubr.bf16.mxu0 0
      %1689 = vmatmul.mubr.bf16.gmra.mxu0 %v1442
      %v1690 = vpop.f32.mrf.mxu0
      %v1691 = vadd.f32 0.0, %v1690
      %v1692 = vpop.f32.mrf.mxu0
      %v1693 = vpop.f32.mrf.mxu0
      %v1694 = vadd.f32 0.0, %v1693
      %v1695 = vpop.f32.mrf.mxu0
      %1696 = vdwg.mxu0
      %v1697 = vmul.f32 %v1483, %v1483
      %v1698 = vmul.f32 %v1486, %v1486
      %v1699 = vmul.f32 %v1491, %v1491
      %v1700 = vmul.f32 %v1494, %v1494
      %v1701 = vmul.f32 %v1499, %v1499
      %v1702 = vmul.f32 %v1502, %v1502
      %v1703 = vmul.f32 %v1567, %v1567
      %v1704 = vmul.f32 %v1570, %v1570
      %v1705 = vmul.f32 %v1575, %v1575
      %v1706 = vmul.f32 %v1578, %v1578
      %v1707 = vmul.f32 %v1583, %v1583
      %v1708 = vmul.f32 %v1586, %v1586
      %v1709 = vadd.f32 %v1697, %v1703
      %v1710 = vadd.f32 %v1698, %v1704
      %v1711 = vadd.f32 %v1699, %v1705
      %v1712 = vadd.f32 %v1700, %v1706
      %v1713 = vadd.f32 %v1701, %v1707
      %v1714 = vadd.f32 %v1702, %v1708
      %v1715 = vmul.f32 %v1651, %v1651
      %v1716 = vmul.f32 %v1654, %v1654
      %v1717 = vmul.f32 %v1659, %v1659
      %v1718 = vmul.f32 %v1662, %v1662
      %v1719 = vmul.f32 %v1667, %v1667
      %v1720 = vmul.f32 %v1670, %v1670
      %v1721 = vadd.f32 %v1709, %v1715
      %v1722 = vadd.f32 %v1710, %v1716
      %v1723 = vadd.f32 %v1711, %v1717
      %v1724 = vadd.f32 %v1712, %v1718
      %v1725 = vadd.f32 %v1713, %v1719
      %v1726 = vadd.f32 %v1714, %v1720
      %v1727 = vadd.f32 %v1721, 1e-12
      %v1728 = vadd.f32 %v1722, 1e-12
      %v1729 = vadd.f32 %v1723, 1e-12
      %v1730 = vadd.f32 %v1724, 1e-12
      %v1731 = vadd.f32 %v1725, 1e-12
      %v1732 = vadd.f32 %v1726, 1e-12
      %v1733 = vrsqrt.pop %v1727
      %v1734 = vrsqrt.pop %v1728
      %v1735 = vrsqrt.pop %v1729
      %v1736 = vrsqrt.pop %v1730
      %v1737 = vrsqrt.pop %v1731
      %v1738 = vrsqrt.pop %v1732
      %1740 = vset.pattern.permute.xlu0 0
      %1741 = vperm.xlu0 %1740, %v1389
      %v1742 = vpop.permute.xlu0 %1741
      %1745 = vset.pattern.permute.xlu0 0
      %1746 = vperm.xlu0 %1745, %v1390
      %v1747 = vpop.permute.xlu0 %1746
      %1750 = vset.pattern.permute.xlu0 0
      %1751 = vperm.xlu0 %1750, %v1391
      %v1752 = vpop.permute.xlu0 %1751
      %1755 = vset.pattern.permute.xlu0 0
      %1756 = vperm.xlu0 %1755, %v1392
      %v1757 = vpop.permute.xlu0 %1756
      %1760 = vset.pattern.permute.xlu0 0
      %1761 = vperm.xlu0 %1760, %v1393
      %v1762 = vpop.permute.xlu0 %1761
      %1765 = vset.pattern.permute.xlu0 0
      %1766 = vperm.xlu0 %1765, %v1394
      %v1767 = vpop.permute.xlu0 %1766
      %v1769 = vmul.f32 %v1742, %v1733
      %v1770 = vmul.f32 %v1747, %v1734
      %v1771 = vmul.f32 %v1752, %v1735
      %v1772 = vmul.f32 %v1757, %v1736
      %v1773 = vmul.f32 %v1762, %v1737
      %v1774 = vmul.f32 %v1767, %v1738
      %1776 = vset.pattern.permute.xlu0 0
      %1777 = vperm.xlu0 %1776, %v1383
      %v1778 = vpop.permute.xlu0 %1777
      %1781 = vset.pattern.permute.xlu0 0
      %1782 = vperm.xlu0 %1781, %v1384
      %v1783 = vpop.permute.xlu0 %1782
      %1786 = vset.pattern.permute.xlu0 0
      %1787 = vperm.xlu0 %1786, %v1385
      %v1788 = vpop.permute.xlu0 %1787
      %1791 = vset.pattern.permute.xlu0 0
      %1792 = vperm.xlu0 %1791, %v1386
      %v1793 = vpop.permute.xlu0 %1792
      %1796 = vset.pattern.permute.xlu0 0
      %1797 = vperm.xlu0 %1796, %v1387
      %v1798 = vpop.permute.xlu0 %1797
      %1801 = vset.pattern.permute.xlu0 0
      %1802 = vperm.xlu0 %1801, %v1388
      %v1803 = vpop.permute.xlu0 %1802
      %v1805 = vadd.f32 %v1778, %v1769
      %v1806 = vadd.f32 %v1783, %v1770
      %v1807 = vadd.f32 %v1788, %v1771
      %v1808 = vadd.f32 %v1793, %v1772
      %v1809 = vadd.f32 %v1798, %v1773
      %v1810 = vadd.f32 %v1803, %v1774
      %v1811 = vmul.f32 %v1483, %v1805
      %v1812 = vmul.f32 %v1486, %v1806
      %v1813 = vmul.f32 %v1491, %v1807
      %v1814 = vmul.f32 %v1494, %v1808
      %v1815 = vmul.f32 %v1499, %v1809
      %v1816 = vmul.f32 %v1502, %v1810
      %v1817 = vmul.f32 %v1567, %v1805
      %v1818 = vmul.f32 %v1570, %v1806
      %v1819 = vmul.f32 %v1575, %v1807
      %v1820 = vmul.f32 %v1578, %v1808
      %v1821 = vmul.f32 %v1583, %v1809
      %v1822 = vmul.f32 %v1586, %v1810
      %v1823 = vmul.f32 %v1651, %v1805
      %v1824 = vmul.f32 %v1654, %v1806
      %v1825 = vmul.f32 %v1659, %v1807
      %v1826 = vmul.f32 %v1662, %v1808
      %v1827 = vmul.f32 %v1667, %v1809
      %v1828 = vmul.f32 %v1670, %v1810
      %v1829 = vmul.f32 %v1811, %v1507
      %v1830 = vmul.f32 %v1812, %v1510
      %v1831 = vmul.f32 %v1813, %v1515
      %v1832 = vmul.f32 %v1814, %v1518
      %v1833 = vmul.f32 %v1815, %v1523
      %v1834 = vmul.f32 %v1816, %v1526
      %v1835 = vmul.f32 %v1817, %v1591
      %v1836 = vmul.f32 %v1818, %v1594
      %v1837 = vmul.f32 %v1819, %v1599
      %v1838 = vmul.f32 %v1820, %v1602
      %v1839 = vmul.f32 %v1821, %v1607
      %v1840 = vmul.f32 %v1822, %v1610
      %v1841 = vadd.f32 %v1829, %v1835
      %v1842 = vadd.f32 %v1830, %v1836
      %v1843 = vadd.f32 %v1831, %v1837
      %v1844 = vadd.f32 %v1832, %v1838
      %v1845 = vadd.f32 %v1833, %v1839
      %v1846 = vadd.f32 %v1834, %v1840
      %v1847 = vmul.f32 %v1823, %v1675
      %v1848 = vmul.f32 %v1824, %v1678
      %v1849 = vmul.f32 %v1825, %v1683
      %v1850 = vmul.f32 %v1826, %v1686
      %v1851 = vmul.f32 %v1827, %v1691
      %v1852 = vmul.f32 %v1828, %v1694
      %v1853 = vadd.f32 %v1841, %v1847
      %v1854 = vadd.f32 %v1842, %v1848
      %v1855 = vadd.f32 %v1843, %v1849
      %v1856 = vadd.f32 %v1844, %v1850
      %v1857 = vadd.f32 %v1845, %v1851
      %v1858 = vadd.f32 %v1846, %v1852
      %v1859 = vmul.f32 %v1507, %v1507
      %v1860 = vmul.f32 %v1510, %v1510
      %v1861 = vmul.f32 %v1515, %v1515
      %v1862 = vmul.f32 %v1518, %v1518
      %v1863 = vmul.f32 %v1523, %v1523
      %v1864 = vmul.f32 %v1526, %v1526
      %v1865 = vmul.f32 %v1591, %v1591
      %v1866 = vmul.f32 %v1594, %v1594
      %v1867 = vmul.f32 %v1599, %v1599
      %v1868 = vmul.f32 %v1602, %v1602
      %v1869 = vmul.f32 %v1607, %v1607
      %v1870 = vmul.f32 %v1610, %v1610
      %v1871 = vadd.f32 %v1859, %v1865
      %v1872 = vadd.f32 %v1860, %v1866
      %v1873 = vadd.f32 %v1861, %v1867
      %v1874 = vadd.f32 %v1862, %v1868
      %v1875 = vadd.f32 %v1863, %v1869
      %v1876 = vadd.f32 %v1864, %v1870
      %v1877 = vmul.f32 %v1675, %v1675
      %v1878 = vmul.f32 %v1678, %v1678
      %v1879 = vmul.f32 %v1683, %v1683
      %v1880 = vmul.f32 %v1686, %v1686
      %v1881 = vmul.f32 %v1691, %v1691
      %v1882 = vmul.f32 %v1694, %v1694
      %v1883 = vadd.f32 %v1871, %v1877
      %v1884 = vadd.f32 %v1872, %v1878
      %v1885 = vadd.f32 %v1873, %v1879
      %v1886 = vadd.f32 %v1874, %v1880
      %v1887 = vadd.f32 %v1875, %v1881
      %v1888 = vadd.f32 %v1876, %v1882
      %v1889 = vadd.f32 %v1883, 1e-06
      %v1890 = vadd.f32 %v1884, 1e-06
      %v1891 = vadd.f32 %v1885, 1e-06
      %v1892 = vadd.f32 %v1886, 1e-06
      %v1893 = vadd.f32 %v1887, 1e-06
      %v1894 = vadd.f32 %v1888, 1e-06
      %v1895 = vrcp.pop %v1889
      %v1896 = vrcp.pop %v1890
      %v1897 = vrcp.pop %v1891
      %v1898 = vrcp.pop %v1892
      %v1899 = vrcp.pop %v1893
      %v1900 = vrcp.pop %v1894
      %v1901 = vmul.f32 %v1853, %v1895
      %v1902 = vmul.f32 %v1854, %v1896
      %v1903 = vmul.f32 %v1855, %v1897
      %v1904 = vmul.f32 %v1856, %v1898
      %v1905 = vmul.f32 %v1857, %v1899
      %v1906 = vmul.f32 %v1858, %v1900
      %v1907 = vmin.f32 %v1901, 0.0
      %v1908 = vmin.f32 %v1902, 0.0
      %v1909 = vmin.f32 %v1903, 0.0
      %v1910 = vmin.f32 %v1904, 0.0
      %v1911 = vmin.f32 %v1905, 0.0
      %v1912 = vmin.f32 %v1906, 0.0
      %v1913 = vmul.f32 %v1907, %v1507
      %v1914 = vmul.f32 %v1908, %v1510
      %v1915 = vmul.f32 %v1909, %v1515
      %v1916 = vmul.f32 %v1910, %v1518
      %v1917 = vmul.f32 %v1911, %v1523
      %v1918 = vmul.f32 %v1912, %v1526
      %v1919 = vsub.f32 %v1811, %v1913
      %v1920 = vsub.f32 %v1812, %v1914
      %v1921 = vsub.f32 %v1813, %v1915
      %v1922 = vsub.f32 %v1814, %v1916
      %v1923 = vsub.f32 %v1815, %v1917
      %v1924 = vsub.f32 %v1816, %v1918
      %v1925 = vmul.f32 %v1907, %v1591
      %v1926 = vmul.f32 %v1908, %v1594
      %v1927 = vmul.f32 %v1909, %v1599
      %v1928 = vmul.f32 %v1910, %v1602
      %v1929 = vmul.f32 %v1911, %v1607
      %v1930 = vmul.f32 %v1912, %v1610
      %v1931 = vsub.f32 %v1817, %v1925
      %v1932 = vsub.f32 %v1818, %v1926
      %v1933 = vsub.f32 %v1819, %v1927
      %v1934 = vsub.f32 %v1820, %v1928
      %v1935 = vsub.f32 %v1821, %v1929
      %v1936 = vsub.f32 %v1822, %v1930
      %v1937 = vmul.f32 %v1907, %v1675
      %v1938 = vmul.f32 %v1908, %v1678
      %v1939 = vmul.f32 %v1909, %v1683
      %v1940 = vmul.f32 %v1910, %v1686
      %v1941 = vmul.f32 %v1911, %v1691
      %v1942 = vmul.f32 %v1912, %v1694
      %v1943 = vsub.f32 %v1823, %v1937
      %v1944 = vsub.f32 %v1824, %v1938
      %v1945 = vsub.f32 %v1825, %v1939
      %v1946 = vsub.f32 %v1826, %v1940
      %v1947 = vsub.f32 %v1827, %v1941
      %v1948 = vsub.f32 %v1828, %v1942
      %v1949 = vpack.c.bf16 %v1920, %v1919
      %v1950 = vpack.c.bf16 %v1922, %v1921
      %v1951 = vpack.c.bf16 %v1924, %v1923
      %v1952 = vpack.c.bf16 %v1932, %v1931
      %v1953 = vpack.c.bf16 %v1934, %v1933
      %v1954 = vpack.c.bf16 %v1936, %v1935
      %v1955 = vpack.c.bf16 %v1944, %v1943
      %v1956 = vpack.c.bf16 %v1946, %v1945
      %v1957 = vpack.c.bf16 %v1948, %v1947
      %v1958 = vld [vmem:[%s7] sm:$0xf]
      %v1959 = vld [vmem:[%s7 + $0x4] sm:$0xf]
      %v1960 = vld [vmem:[%s7 + $0x8] sm:$0xf]
      %v1961 = vld [vmem:[%s7 + $0xc] sm:$0xf]
      %v1962 = vld [vmem:[%s7 + $0x10] sm:$0xf]
      %v1963 = vld [vmem:[%s7 + $0x14] sm:$0xf]
      %v1964 = vld [vmem:[%s7 + $0x18] sm:$0xf]
      %v1965 = vld [vmem:[%s7 + $0x1c] sm:$0xf]
      %v1966 = vld [vmem:[%s7 + $0x20] sm:$0xf]
      %v1967 = vld [vmem:[%s7 + $0x24] sm:$0xf]
      %v1968 = vld [vmem:[%s7 + $0x28] sm:$0xf]
      %v1969 = vld [vmem:[%s7 + $0x2c] sm:$0xf]
      %v1970 = vld [vmem:[%s7 + $0x30] sm:$0xf]
      %v1971 = vld [vmem:[%s7 + $0x34] sm:$0xf]
      %v1972 = vld [vmem:[%s7 + $0x38] sm:$0xf]
      %v1973 = vld [vmem:[%s7 + $0x3c] sm:$0xf]
      %v1974 = vld [vmem:[%s7 + $0x40] sm:$0xf]
      %v1975 = vld [vmem:[%s7 + $0x44] sm:$0xf]
      %v1976 = vld [vmem:[%s7 + $0x48] sm:$0xf]
      %v1977 = vld [vmem:[%s7 + $0x4c] sm:$0xf]
      %v1978 = vld [vmem:[%s7 + $0x50] sm:$0xf]
      %v1979 = vld [vmem:[%s7 + $0x54] sm:$0xf]
      %v1980 = vld [vmem:[%s7 + $0x58] sm:$0xf]
      %v1981 = vld [vmem:[%s7 + $0x5c] sm:$0xf]
      %v1982 = vld [vmem:[%s7 + $0x60] sm:$0xf]
      %v1983 = vld [vmem:[%s7 + $0x64] sm:$0xf]
      %v1984 = vld [vmem:[%s7 + $0x68] sm:$0xf]
      %v1985 = vld [vmem:[%s7 + $0x6c] sm:$0xf]
      %v1986 = vld [vmem:[%s7 + $0x70] sm:$0xf]
      %v1987 = vld [vmem:[%s7 + $0x74] sm:$0xf]
      %v1988 = vld [vmem:[%s7 + $0x78] sm:$0xf]
      %v1989 = vld [vmem:[%s7 + $0x7c] sm:$0xf]
      %v1990 = vld [vmem:[%s7 + $0x80] sm:$0xf]
      %v1991 = vld [vmem:[%s7 + $0x84] sm:$0xf]
      %v1992 = vld [vmem:[%s7 + $0x88] sm:$0xf]
      %v1993 = vld [vmem:[%s7 + $0x8c] sm:$0xf]
      %v1994 = vld [vmem:[%s7 + $0x90] sm:$0xf]
      %v1995 = vld [vmem:[%s7 + $0x94] sm:$0xf]
      %v1996 = vld [vmem:[%s7 + $0x98] sm:$0xf]
      %v1997 = vld [vmem:[%s7 + $0x9c] sm:$0xf]
      %v1998 = vld [vmem:[%s7 + $0xa0] sm:$0xf]
      %v1999 = vld [vmem:[%s7 + $0xa4] sm:$0xf]
      %v2000 = vld [vmem:[%s7 + $0xa8] sm:$0xf]
      %v2001 = vld [vmem:[%s7 + $0xac] sm:$0xf]
      %v2002 = vld [vmem:[%s7 + $0xb0] sm:$0xf]
      %v2003 = vld [vmem:[%s7 + $0xb4] sm:$0xf]
      %v2004 = vld [vmem:[%s7 + $0xb8] sm:$0xf]
      %v2005 = vld [vmem:[%s7 + $0xbc] sm:$0xf]
      %v2006 = vld [vmem:[%s7 + $0xc0] sm:$0xf]
      %v2007 = vld [vmem:[%s7 + $0xc4] sm:$0xf]
      %v2008 = vld [vmem:[%s7 + $0xc8] sm:$0xf]
      %v2009 = vld [vmem:[%s7 + $0xcc] sm:$0xf]
      %v2010 = vld [vmem:[%s7 + $0xd0] sm:$0xf]
      %v2011 = vld [vmem:[%s7 + $0xd4] sm:$0xf]
      %v2012 = vld [vmem:[%s7 + $0xd8] sm:$0xf]
      %v2013 = vld [vmem:[%s7 + $0xdc] sm:$0xf]
      %v2014 = vld [vmem:[%s7 + $0xe0] sm:$0xf]
      %v2015 = vld [vmem:[%s7 + $0xe4] sm:$0xf]
      %v2016 = vld [vmem:[%s7 + $0xe8] sm:$0xf]
      %v2017 = vld [vmem:[%s7 + $0xec] sm:$0xf]
      %v2018 = vld [vmem:[%s7 + $0xf0] sm:$0xf]
      %v2019 = vld [vmem:[%s7 + $0xf4] sm:$0xf]
      %v2020 = vld [vmem:[%s7 + $0xf8] sm:$0xf]
      %v2021 = vld [vmem:[%s7 + $0xfc] sm:$0xf]
      %v2022 = vld [vmem:[%s7 + $0x100] sm:$0xf]
      %v2023 = vld [vmem:[%s7 + $0x104] sm:$0xf]
      %v2024 = vld [vmem:[%s7 + $0x108] sm:$0xf]
      %v2025 = vld [vmem:[%s7 + $0x10c] sm:$0xf]
      %v2026 = vld [vmem:[%s7 + $0x110] sm:$0xf]
      %v2027 = vld [vmem:[%s7 + $0x114] sm:$0xf]
      %v2028 = vld [vmem:[%s7 + $0x118] sm:$0xf]
      %v2029 = vld [vmem:[%s7 + $0x11c] sm:$0xf]
      %v2030 = vld [vmem:[%s7 + $0x120] sm:$0xf]
      %v2031 = vld [vmem:[%s7 + $0x124] sm:$0xf]
      %v2032 = vld [vmem:[%s7 + $0x128] sm:$0xf]
      %v2033 = vld [vmem:[%s7 + $0x12c] sm:$0xf]
      %v2034 = vld [vmem:[%s7 + $0x130] sm:$0xf]
      %v2035 = vld [vmem:[%s7 + $0x134] sm:$0xf]
      %v2036 = vld [vmem:[%s7 + $0x138] sm:$0xf]
      %v2037 = vld [vmem:[%s7 + $0x13c] sm:$0xf]
      %v2038 = vld [vmem:[%s7 + $0x140] sm:$0xf]
      %v2039 = vld [vmem:[%s7 + $0x144] sm:$0xf]
      %v2040 = vld [vmem:[%s7 + $0x148] sm:$0xf]
      %v2041 = vld [vmem:[%s7 + $0x14c] sm:$0xf]
      %v2042 = vld [vmem:[%s7 + $0x150] sm:$0xf]
      %v2043 = vld [vmem:[%s7 + $0x154] sm:$0xf]
      %v2044 = vld [vmem:[%s8] sm:$0xff]
      %v2045 = vld [vmem:[%s8 + $0x8] sm:$0xff]
      %v2046 = vld [vmem:[%s8 + $0x10] sm:$0xff]
      %v2047 = vld [vmem:[%s8 + $0x18] sm:$0xff]
      %v2048 = vld [vmem:[%s8 + $0x20] sm:$0xff]
      %v2049 = vld [vmem:[%s8 + $0x28] sm:$0xff]
      %v2050 = vld [vmem:[%s8 + $0x30] sm:$0xff]
      %v2051 = vld [vmem:[%s8 + $0x38] sm:$0xff]
      %v2052 = vld [vmem:[%s8 + $0x40] sm:$0xff]
      %v2053 = vld [vmem:[%s8 + $0x48] sm:$0xff]
      %v2054 = vld [vmem:[%s8 + $0x50] sm:$0xff]
      %v2055 = vld [vmem:[%s8 + $0x58] sm:$0xff]
      %v2056 = vld [vmem:[%s8 + $0x60] sm:$0xff]
      %v2057 = vld [vmem:[%s8 + $0x68] sm:$0xff]
      %v2058 = vld [vmem:[%s8 + $0x70] sm:$0xff]
      %v2059 = vld [vmem:[%s8 + $0x78] sm:$0xff]
      %v2060 = vld [vmem:[%s8 + $0x80] sm:$0xff]
      %v2061 = vld [vmem:[%s8 + $0x88] sm:$0xff]
      %v2062 = vld [vmem:[%s8 + $0x90] sm:$0xff]
      %v2063 = vld [vmem:[%s8 + $0x98] sm:$0xff]
      %v2064 = vld [vmem:[%s8 + $0xa0] sm:$0xff]
      %v2065 = vld [vmem:[%s8 + $0xa8] sm:$0xff]
      %v2066 = vld [vmem:[%s8 + $0xb0] sm:$0xff]
      %v2067 = vld [vmem:[%s8 + $0xb8] sm:$0xff]
      %v2068 = vld [vmem:[%s8 + $0xc0] sm:$0xff]
      %v2069 = vld [vmem:[%s8 + $0xc8] sm:$0xff]
      %v2070 = vld [vmem:[%s8 + $0xd0] sm:$0xff]
      %v2071 = vld [vmem:[%s8 + $0xd8] sm:$0xff]
      %v2072 = vld [vmem:[%s8 + $0xe0] sm:$0xff]
      %v2073 = vld [vmem:[%s8 + $0xe8] sm:$0xff]
      %v2074 = vld [vmem:[%s8 + $0xf0] sm:$0xff]
      %v2075 = vld [vmem:[%s8 + $0xf8] sm:$0xff]
      %v2076 = vld [vmem:[%s8 + $0x100] sm:$0xff]
      %v2077 = vld [vmem:[%s8 + $0x108] sm:$0xff]
      %v2078 = vld [vmem:[%s8 + $0x110] sm:$0xff]
      %v2079 = vld [vmem:[%s8 + $0x118] sm:$0xff]
      %v2080 = vld [vmem:[%s8 + $0x120] sm:$0xff]
      %v2081 = vld [vmem:[%s8 + $0x128] sm:$0xff]
      %v2082 = vld [vmem:[%s8 + $0x130] sm:$0xff]
      %v2083 = vld [vmem:[%s8 + $0x138] sm:$0xff]
      %v2084 = vld [vmem:[%s8 + $0x140] sm:$0xff]
      %v2085 = vld [vmem:[%s8 + $0x148] sm:$0xff]
      %v2086 = vld [vmem:[%s8 + $0x150] sm:$0xff]
      %v2087 = vld [vmem:[%s9] sm:$0xff]
      %v2088 = vld [vmem:[%s9 + $0x8] sm:$0xff]
      %v2089 = vld [vmem:[%s9 + $0x10] sm:$0xff]
      %v2090 = vld [vmem:[%s9 + $0x18] sm:$0xff]
      %v2091 = vld [vmem:[%s9 + $0x20] sm:$0xff]
      %v2092 = vld [vmem:[%s9 + $0x28] sm:$0xff]
      %v2093 = vld [vmem:[%s9 + $0x30] sm:$0xff]
      %v2094 = vld [vmem:[%s9 + $0x38] sm:$0xff]
      %v2095 = vld [vmem:[%s9 + $0x40] sm:$0xff]
      %v2096 = vld [vmem:[%s9 + $0x48] sm:$0xff]
      %v2097 = vld [vmem:[%s9 + $0x50] sm:$0xff]
      %v2098 = vld [vmem:[%s9 + $0x58] sm:$0xff]
      %v2099 = vld [vmem:[%s9 + $0x60] sm:$0xff]
      %v2100 = vld [vmem:[%s9 + $0x68] sm:$0xff]
      %v2101 = vld [vmem:[%s9 + $0x70] sm:$0xff]
      %v2102 = vld [vmem:[%s9 + $0x78] sm:$0xff]
      %v2103 = vld [vmem:[%s9 + $0x80] sm:$0xff]
      %v2104 = vld [vmem:[%s9 + $0x88] sm:$0xff]
      %v2105 = vld [vmem:[%s9 + $0x90] sm:$0xff]
      %v2106 = vld [vmem:[%s9 + $0x98] sm:$0xff]
      %v2107 = vld [vmem:[%s9 + $0xa0] sm:$0xff]
      %v2108 = vld [vmem:[%s9 + $0xa8] sm:$0xff]
      %v2109 = vld [vmem:[%s9 + $0xb0] sm:$0xff]
      %v2110 = vld [vmem:[%s9 + $0xb8] sm:$0xff]
      %v2111 = vld [vmem:[%s9 + $0xc0] sm:$0xff]
      %v2112 = vld [vmem:[%s9 + $0xc8] sm:$0xff]
      %v2113 = vld [vmem:[%s9 + $0xd0] sm:$0xff]
      %v2114 = vld [vmem:[%s9 + $0xd8] sm:$0xff]
      %v2115 = vld [vmem:[%s9 + $0xe0] sm:$0xff]
      %v2116 = vld [vmem:[%s9 + $0xe8] sm:$0xff]
      %v2117 = vld [vmem:[%s9 + $0xf0] sm:$0xff]
      %v2118 = vld [vmem:[%s9 + $0xf8] sm:$0xff]
      %v2119 = vld [vmem:[%s9 + $0x100] sm:$0xff]
      %v2120 = vld [vmem:[%s9 + $0x108] sm:$0xff]
      %v2121 = vld [vmem:[%s9 + $0x110] sm:$0xff]
      %v2122 = vld [vmem:[%s9 + $0x118] sm:$0xff]
      %v2123 = vld [vmem:[%s9 + $0x120] sm:$0xff]
      %v2124 = vld [vmem:[%s9 + $0x128] sm:$0xff]
      %v2125 = vld [vmem:[%s9 + $0x130] sm:$0xff]
      %v2126 = vld [vmem:[%s9 + $0x138] sm:$0xff]
      %v2127 = vld [vmem:[%s9 + $0x140] sm:$0xff]
      %v2128 = vld [vmem:[%s9 + $0x148] sm:$0xff]
      %v2129 = vld [vmem:[%s9 + $0x150] sm:$0xff]
      %v2216 = vunpack.c.l.b16 %v1958
      %v2217 = vunpack.c.l.b16 %v1959
      %v2218 = vunpack.c.l.b16 %v1960
      %v2219 = vunpack.c.l.b16 %v1961
      %v2220 = vunpack.c.l.b16 %v1962
      %v2221 = vunpack.c.l.b16 %v1963
      %v2222 = vunpack.c.l.b16 %v1964
      %v2223 = vunpack.c.l.b16 %v1965
      %v2224 = vunpack.c.l.b16 %v1966
      %v2225 = vunpack.c.l.b16 %v1967
      %v2226 = vunpack.c.l.b16 %v1968
      %v2227 = vunpack.c.l.b16 %v1969
      %v2228 = vunpack.c.l.b16 %v1970
      %v2229 = vunpack.c.l.b16 %v1971
      %v2230 = vunpack.c.l.b16 %v1972
      %v2231 = vunpack.c.l.b16 %v1973
      %v2232 = vunpack.c.l.b16 %v1974
      %v2233 = vunpack.c.l.b16 %v1975
      %v2234 = vunpack.c.l.b16 %v1976
      %v2235 = vunpack.c.l.b16 %v1977
      %v2236 = vunpack.c.l.b16 %v1978
      %v2237 = vunpack.c.l.b16 %v1979
      %v2238 = vunpack.c.l.b16 %v1980
      %v2239 = vunpack.c.l.b16 %v1981
      %v2240 = vunpack.c.l.b16 %v1982
      %v2241 = vunpack.c.l.b16 %v1983
      %v2242 = vunpack.c.l.b16 %v1984
      %v2243 = vunpack.c.l.b16 %v1985
      %v2244 = vunpack.c.l.b16 %v1986
      %v2245 = vunpack.c.l.b16 %v1987
      %v2246 = vunpack.c.l.b16 %v1988
      %v2247 = vunpack.c.l.b16 %v1989
      %v2248 = vunpack.c.l.b16 %v1990
      %v2249 = vunpack.c.l.b16 %v1991
      %v2250 = vunpack.c.l.b16 %v1992
      %v2251 = vunpack.c.l.b16 %v1993
      %v2252 = vunpack.c.l.b16 %v1994
      %v2253 = vunpack.c.l.b16 %v1995
      %v2254 = vunpack.c.l.b16 %v1996
      %v2255 = vunpack.c.l.b16 %v1997
      %v2256 = vunpack.c.l.b16 %v1998
      %v2257 = vunpack.c.l.b16 %v1999
      %v2258 = vunpack.c.l.b16 %v2000
      %v2259 = vunpack.c.l.b16 %v2001
      %v2260 = vunpack.c.l.b16 %v2002
      %v2261 = vunpack.c.l.b16 %v2003
      %v2262 = vunpack.c.l.b16 %v2004
      %v2263 = vunpack.c.l.b16 %v2005
      %v2264 = vunpack.c.l.b16 %v2006
      %v2265 = vunpack.c.l.b16 %v2007
      %v2266 = vunpack.c.l.b16 %v2008
      %v2267 = vunpack.c.l.b16 %v2009
      %v2268 = vunpack.c.l.b16 %v2010
      %v2269 = vunpack.c.l.b16 %v2011
      %v2270 = vunpack.c.l.b16 %v2012
      %v2271 = vunpack.c.l.b16 %v2013
      %v2272 = vunpack.c.l.b16 %v2014
      %v2273 = vunpack.c.l.b16 %v2015
      %v2274 = vunpack.c.l.b16 %v2016
      %v2275 = vunpack.c.l.b16 %v2017
      %v2276 = vunpack.c.l.b16 %v2018
      %v2277 = vunpack.c.l.b16 %v2019
      %v2278 = vunpack.c.l.b16 %v2020
      %v2279 = vunpack.c.l.b16 %v2021
      %v2280 = vunpack.c.l.b16 %v2022
      %v2281 = vunpack.c.l.b16 %v2023
      %v2282 = vunpack.c.l.b16 %v2024
      %v2283 = vunpack.c.l.b16 %v2025
      %v2284 = vunpack.c.l.b16 %v2026
      %v2285 = vunpack.c.l.b16 %v2027
      %v2286 = vunpack.c.l.b16 %v2028
      %v2287 = vunpack.c.l.b16 %v2029
      %v2288 = vunpack.c.l.b16 %v2030
      %v2289 = vunpack.c.l.b16 %v2031
      %v2290 = vunpack.c.l.b16 %v2032
      %v2291 = vunpack.c.l.b16 %v2033
      %v2292 = vunpack.c.l.b16 %v2034
      %v2293 = vunpack.c.l.b16 %v2035
      %v2294 = vunpack.c.l.b16 %v2036
      %v2295 = vunpack.c.l.b16 %v2037
      %v2296 = vunpack.c.l.b16 %v2038
      %v2297 = vunpack.c.l.b16 %v2039
      %v2298 = vunpack.c.l.b16 %v2040
      %v2299 = vunpack.c.l.b16 %v2041
      %v2300 = vunpack.c.l.b16 %v2042
      %v2301 = vunpack.c.l.b16 %v2043
      %v2302 = vpack.c.b16 %v2217, %v2216
      %v2303 = vpack.c.b16 %v2219, %v2218
      %v2304 = vpack.c.b16 %v2221, %v2220
      %v2305 = vpack.c.b16 %v2223, %v2222
      %v2306 = vpack.c.b16 %v2225, %v2224
      %v2307 = vpack.c.b16 %v2227, %v2226
      %v2308 = vpack.c.b16 %v2229, %v2228
      %v2309 = vpack.c.b16 %v2231, %v2230
      %v2310 = vpack.c.b16 %v2233, %v2232
      %v2311 = vpack.c.b16 %v2235, %v2234
      %v2312 = vpack.c.b16 %v2237, %v2236
      %v2313 = vpack.c.b16 %v2239, %v2238
      %v2314 = vpack.c.b16 %v2241, %v2240
      %v2315 = vpack.c.b16 %v2243, %v2242
      %v2316 = vpack.c.b16 %v2245, %v2244
      %v2317 = vpack.c.b16 %v2247, %v2246
      %v2318 = vpack.c.b16 %v2249, %v2248
      %v2319 = vpack.c.b16 %v2251, %v2250
      %v2320 = vpack.c.b16 %v2253, %v2252
      %v2321 = vpack.c.b16 %v2255, %v2254
      %v2322 = vpack.c.b16 %v2257, %v2256
      %v2323 = vpack.c.b16 %v2259, %v2258
      %v2324 = vpack.c.b16 %v2261, %v2260
      %v2325 = vpack.c.b16 %v2263, %v2262
      %v2326 = vpack.c.b16 %v2265, %v2264
      %v2327 = vpack.c.b16 %v2267, %v2266
      %v2328 = vpack.c.b16 %v2269, %v2268
      %v2329 = vpack.c.b16 %v2271, %v2270
      %v2330 = vpack.c.b16 %v2273, %v2272
      %v2331 = vpack.c.b16 %v2275, %v2274
      %v2332 = vpack.c.b16 %v2277, %v2276
      %v2333 = vpack.c.b16 %v2279, %v2278
      %v2334 = vpack.c.b16 %v2281, %v2280
      %v2335 = vpack.c.b16 %v2283, %v2282
      %v2336 = vpack.c.b16 %v2285, %v2284
      %v2337 = vpack.c.b16 %v2287, %v2286
      %v2338 = vpack.c.b16 %v2289, %v2288
      %v2339 = vpack.c.b16 %v2291, %v2290
      %v2340 = vpack.c.b16 %v2293, %v2292
      %v2341 = vpack.c.b16 %v2295, %v2294
      %v2342 = vpack.c.b16 %v2297, %v2296
      %v2343 = vpack.c.b16 %v2299, %v2298
      %v2344 = vpack.c.b16 %v2301, %v2300
      %vm2345 = vcmask 392192
      %v2347 = vsel %vm2345, %v2302, 0
      %v2350 = vsel %vm2345, %v2303, 0
      %v2353 = vsel %vm2345, %v2304, 0
      %v2356 = vsel %vm2345, %v2305, 0
      %v2359 = vsel %vm2345, %v2306, 0
      %v2362 = vsel %vm2345, %v2307, 0
      %v2365 = vsel %vm2345, %v2308, 0
      %v2368 = vsel %vm2345, %v2309, 0
      %v2371 = vsel %vm2345, %v2310, 0
      %v2374 = vsel %vm2345, %v2311, 0
      %v2377 = vsel %vm2345, %v2312, 0
      %v2380 = vsel %vm2345, %v2313, 0
      %v2383 = vsel %vm2345, %v2314, 0
      %v2386 = vsel %vm2345, %v2315, 0
      %v2389 = vsel %vm2345, %v2316, 0
      %v2392 = vsel %vm2345, %v2317, 0
      %v2395 = vsel %vm2345, %v2318, 0
      %v2398 = vsel %vm2345, %v2319, 0
      %v2401 = vsel %vm2345, %v2320, 0
      %v2404 = vsel %vm2345, %v2321, 0
      %v2407 = vsel %vm2345, %v2322, 0
      %v2410 = vsel %vm2345, %v2323, 0
      %v2413 = vsel %vm2345, %v2324, 0
      %v2416 = vsel %vm2345, %v2325, 0
      %v2419 = vsel %vm2345, %v2326, 0
      %v2422 = vsel %vm2345, %v2327, 0
      %v2425 = vsel %vm2345, %v2328, 0
      %v2428 = vsel %vm2345, %v2329, 0
      %v2431 = vsel %vm2345, %v2330, 0
      %v2434 = vsel %vm2345, %v2331, 0
      %v2437 = vsel %vm2345, %v2332, 0
      %v2440 = vsel %vm2345, %v2333, 0
      %v2443 = vsel %vm2345, %v2334, 0
      %v2446 = vsel %vm2345, %v2335, 0
      %v2449 = vsel %vm2345, %v2336, 0
      %v2452 = vsel %vm2345, %v2337, 0
      %v2455 = vsel %vm2345, %v2338, 0
      %v2458 = vsel %vm2345, %v2339, 0
      %v2461 = vsel %vm2345, %v2340, 0
      %v2464 = vsel %vm2345, %v2341, 0
      %v2467 = vsel %vm2345, %v2342, 0
      %v2470 = vsel %vm2345, %v2343, 0
      %v2473 = vsel %vm2345, %v2344, 0
      %2475 = vmatprep.subr.bf16.mxu0 0
      %2476 = vmatpush1.bf16.msra.mxu0 0
      %2477 = vmatprep.subr.bf16.mxu0 0
      %2478 = vmatpush1.bf16.msra.mxu0 0
      %2479 = vmatprep.subr.bf16.mxu0 0
      %2480 = vmatpush1.bf16.msra.mxu0 0
      %2481 = vmatprep.subr.bf16.mxu0 0
      %2482 = vmatpush1.bf16.msra.mxu0 0
      %2483 = vmatprep.subr.bf16.mxu0 0
      %2484 = vmatpush1.bf16.msra.mxu0 0
      %2485 = vmatprep.subr.bf16.mxu0 0
      %2486 = vmatpush1.bf16.msra.mxu0 %v1951
      %2487 = vmatprep.subr.bf16.mxu0 0
      %2488 = vmatpush1.bf16.msra.mxu0 %v1950
      %2489 = vmatprep.subr.bf16.mxu0 0
      %2490 = vmatpush1.bf16.msra.mxu0 %v1949
      %2491 = vmatprep.subr.bf16.mxu0 0
      %2492 = vmatpush2.bf16.msra.mxu0 0
      %2493 = vmatprep.subr.bf16.mxu0 0
      %2494 = vmatpush2.bf16.msra.mxu0 0
      %2495 = vmatprep.subr.bf16.mxu0 0
      %2496 = vmatpush2.bf16.msra.mxu0 0
      %2497 = vmatprep.subr.bf16.mxu0 0
      %2498 = vmatpush2.bf16.msra.mxu0 0
      %2499 = vmatprep.subr.bf16.mxu0 0
      %2500 = vmatpush2.bf16.msra.mxu0 0
      %2501 = vmatprep.subr.bf16.mxu0 0
      %2502 = vmatpush2.bf16.msra.mxu0 0
      %2503 = vmatprep.subr.bf16.mxu0 0
      %2504 = vmatpush2.bf16.msra.mxu0 0
      %2505 = vmatprep.subr.bf16.mxu0 0
      %2506 = vmatpush2.bf16.msra.mxu0 0
      %2507 = vmatprep.mubr.bf16.mxu0 0
      %2508 = vmatmul.mubr.bf16.gmra.mxu0 %v2347
      %v2509 = vpop.f32.mrf.mxu0
      %v2510 = vadd.f32 0.0, %v2509
      %v2511 = vpop.f32.mrf.mxu0
      %v2512 = vpop.f32.mrf.mxu0
      %v2513 = vadd.f32 0.0, %v2512
      %v2514 = vpop.f32.mrf.mxu0
      %2515 = vmatprep.mubr.bf16.mxu0 0
      %2516 = vmatmul.mubr.bf16.gmra.mxu0 %v2350
      %v2517 = vpop.f32.mrf.mxu0
      %v2518 = vadd.f32 0.0, %v2517
      %v2519 = vpop.f32.mrf.mxu0
      %v2520 = vpop.f32.mrf.mxu0
      %v2521 = vadd.f32 0.0, %v2520
      %v2522 = vpop.f32.mrf.mxu0
      %2523 = vmatprep.mubr.bf16.mxu0 0
      %2524 = vmatmul.mubr.bf16.gmra.mxu0 %v2353
      %v2525 = vpop.f32.mrf.mxu0
      %v2526 = vadd.f32 0.0, %v2525
      %v2527 = vpop.f32.mrf.mxu0
      %v2528 = vpop.f32.mrf.mxu0
      %v2529 = vadd.f32 0.0, %v2528
      %v2530 = vpop.f32.mrf.mxu0
      %2531 = vmatprep.mubr.bf16.mxu0 0
      %2532 = vmatmul.mubr.bf16.gmra.mxu0 %v2356
      %v2533 = vpop.f32.mrf.mxu0
      %v2534 = vadd.f32 0.0, %v2533
      %v2535 = vpop.f32.mrf.mxu0
      %v2536 = vpop.f32.mrf.mxu0
      %v2537 = vadd.f32 0.0, %v2536
      %v2538 = vpop.f32.mrf.mxu0
      %2539 = vmatprep.mubr.bf16.mxu0 0
      %2540 = vmatmul.mubr.bf16.gmra.mxu0 %v2359
      %v2541 = vpop.f32.mrf.mxu0
      %v2542 = vadd.f32 0.0, %v2541
      %v2543 = vpop.f32.mrf.mxu0
      %v2544 = vpop.f32.mrf.mxu0
      %v2545 = vadd.f32 0.0, %v2544
      %v2546 = vpop.f32.mrf.mxu0
      %2547 = vmatprep.mubr.bf16.mxu0 0
      %2548 = vmatmul.mubr.bf16.gmra.mxu0 %v2362
      %v2549 = vpop.f32.mrf.mxu0
      %v2550 = vadd.f32 0.0, %v2549
      %v2551 = vpop.f32.mrf.mxu0
      %v2552 = vpop.f32.mrf.mxu0
      %v2553 = vadd.f32 0.0, %v2552
      %v2554 = vpop.f32.mrf.mxu0
      %2555 = vmatprep.mubr.bf16.mxu0 0
      %2556 = vmatmul.mubr.bf16.gmra.mxu0 %v2365
      %v2557 = vpop.f32.mrf.mxu0
      %v2558 = vadd.f32 0.0, %v2557
      %v2559 = vpop.f32.mrf.mxu0
      %v2560 = vpop.f32.mrf.mxu0
      %v2561 = vadd.f32 0.0, %v2560
      %v2562 = vpop.f32.mrf.mxu0
      %2563 = vmatprep.mubr.bf16.mxu0 0
      %2564 = vmatmul.mubr.bf16.gmra.mxu0 %v2368
      %v2565 = vpop.f32.mrf.mxu0
      %v2566 = vadd.f32 0.0, %v2565
      %v2567 = vpop.f32.mrf.mxu0
      %v2568 = vpop.f32.mrf.mxu0
      %v2569 = vadd.f32 0.0, %v2568
      %v2570 = vpop.f32.mrf.mxu0
      %2571 = vmatprep.mubr.bf16.mxu0 0
      %2572 = vmatmul.mubr.bf16.gmra.mxu0 %v2371
      %v2573 = vpop.f32.mrf.mxu0
      %v2574 = vadd.f32 0.0, %v2573
      %v2575 = vpop.f32.mrf.mxu0
      %v2576 = vpop.f32.mrf.mxu0
      %v2577 = vadd.f32 0.0, %v2576
      %v2578 = vpop.f32.mrf.mxu0
      %2579 = vmatprep.mubr.bf16.mxu0 0
      %2580 = vmatmul.mubr.bf16.gmra.mxu0 %v2374
      %v2581 = vpop.f32.mrf.mxu0
      %v2582 = vadd.f32 0.0, %v2581
      %v2583 = vpop.f32.mrf.mxu0
      %v2584 = vpop.f32.mrf.mxu0
      %v2585 = vadd.f32 0.0, %v2584
      %v2586 = vpop.f32.mrf.mxu0
      %2587 = vmatprep.mubr.bf16.mxu0 0
      %2588 = vmatmul.mubr.bf16.gmra.mxu0 %v2377
      %v2589 = vpop.f32.mrf.mxu0
      %v2590 = vadd.f32 0.0, %v2589
      %v2591 = vpop.f32.mrf.mxu0
      %v2592 = vpop.f32.mrf.mxu0
      %v2593 = vadd.f32 0.0, %v2592
      %v2594 = vpop.f32.mrf.mxu0
      %2595 = vmatprep.mubr.bf16.mxu0 0
      %2596 = vmatmul.mubr.bf16.gmra.mxu0 %v2380
      %v2597 = vpop.f32.mrf.mxu0
      %v2598 = vadd.f32 0.0, %v2597
      %v2599 = vpop.f32.mrf.mxu0
      %v2600 = vpop.f32.mrf.mxu0
      %v2601 = vadd.f32 0.0, %v2600
      %v2602 = vpop.f32.mrf.mxu0
      %2603 = vmatprep.mubr.bf16.mxu0 0
      %2604 = vmatmul.mubr.bf16.gmra.mxu0 %v2383
      %v2605 = vpop.f32.mrf.mxu0
      %v2606 = vadd.f32 0.0, %v2605
      %v2607 = vpop.f32.mrf.mxu0
      %v2608 = vpop.f32.mrf.mxu0
      %v2609 = vadd.f32 0.0, %v2608
      %v2610 = vpop.f32.mrf.mxu0
      %2611 = vmatprep.mubr.bf16.mxu0 0
      %2612 = vmatmul.mubr.bf16.gmra.mxu0 %v2386
      %v2613 = vpop.f32.mrf.mxu0
      %v2614 = vadd.f32 0.0, %v2613
      %v2615 = vpop.f32.mrf.mxu0
      %v2616 = vpop.f32.mrf.mxu0
      %v2617 = vadd.f32 0.0, %v2616
      %v2618 = vpop.f32.mrf.mxu0
      %2619 = vmatprep.mubr.bf16.mxu0 0
      %2620 = vmatmul.mubr.bf16.gmra.mxu0 %v2389
      %v2621 = vpop.f32.mrf.mxu0
      %v2622 = vadd.f32 0.0, %v2621
      %v2623 = vpop.f32.mrf.mxu0
      %v2624 = vpop.f32.mrf.mxu0
      %v2625 = vadd.f32 0.0, %v2624
      %v2626 = vpop.f32.mrf.mxu0
      %2627 = vmatprep.mubr.bf16.mxu0 0
      %2628 = vmatmul.mubr.bf16.gmra.mxu0 %v2392
      %v2629 = vpop.f32.mrf.mxu0
      %v2630 = vadd.f32 0.0, %v2629
      %v2631 = vpop.f32.mrf.mxu0
      %v2632 = vpop.f32.mrf.mxu0
      %v2633 = vadd.f32 0.0, %v2632
      %v2634 = vpop.f32.mrf.mxu0
      %2635 = vmatprep.mubr.bf16.mxu0 0
      %2636 = vmatmul.mubr.bf16.gmra.mxu0 %v2395
      %v2637 = vpop.f32.mrf.mxu0
      %v2638 = vadd.f32 0.0, %v2637
      %v2639 = vpop.f32.mrf.mxu0
      %v2640 = vpop.f32.mrf.mxu0
      %v2641 = vadd.f32 0.0, %v2640
      %v2642 = vpop.f32.mrf.mxu0
      %2643 = vmatprep.mubr.bf16.mxu0 0
      %2644 = vmatmul.mubr.bf16.gmra.mxu0 %v2398
      %v2645 = vpop.f32.mrf.mxu0
      %v2646 = vadd.f32 0.0, %v2645
      %v2647 = vpop.f32.mrf.mxu0
      %v2648 = vpop.f32.mrf.mxu0
      %v2649 = vadd.f32 0.0, %v2648
      %v2650 = vpop.f32.mrf.mxu0
      %2651 = vmatprep.mubr.bf16.mxu0 0
      %2652 = vmatmul.mubr.bf16.gmra.mxu0 %v2401
      %v2653 = vpop.f32.mrf.mxu0
      %v2654 = vadd.f32 0.0, %v2653
      %v2655 = vpop.f32.mrf.mxu0
      %v2656 = vpop.f32.mrf.mxu0
      %v2657 = vadd.f32 0.0, %v2656
      %v2658 = vpop.f32.mrf.mxu0
      %2659 = vmatprep.mubr.bf16.mxu0 0
      %2660 = vmatmul.mubr.bf16.gmra.mxu0 %v2404
      %v2661 = vpop.f32.mrf.mxu0
      %v2662 = vadd.f32 0.0, %v2661
      %v2663 = vpop.f32.mrf.mxu0
      %v2664 = vpop.f32.mrf.mxu0
      %v2665 = vadd.f32 0.0, %v2664
      %v2666 = vpop.f32.mrf.mxu0
      %2667 = vmatprep.mubr.bf16.mxu0 0
      %2668 = vmatmul.mubr.bf16.gmra.mxu0 %v2407
      %v2669 = vpop.f32.mrf.mxu0
      %v2670 = vadd.f32 0.0, %v2669
      %v2671 = vpop.f32.mrf.mxu0
      %v2672 = vpop.f32.mrf.mxu0
      %v2673 = vadd.f32 0.0, %v2672
      %v2674 = vpop.f32.mrf.mxu0
      %2675 = vmatprep.mubr.bf16.mxu0 0
      %2676 = vmatmul.mubr.bf16.gmra.mxu0 %v2410
      %v2677 = vpop.f32.mrf.mxu0
      %v2678 = vadd.f32 0.0, %v2677
      %v2679 = vpop.f32.mrf.mxu0
      %v2680 = vpop.f32.mrf.mxu0
      %v2681 = vadd.f32 0.0, %v2680
      %v2682 = vpop.f32.mrf.mxu0
      %2683 = vmatprep.mubr.bf16.mxu0 0
      %2684 = vmatmul.mubr.bf16.gmra.mxu0 %v2413
      %v2685 = vpop.f32.mrf.mxu0
      %v2686 = vadd.f32 0.0, %v2685
      %v2687 = vpop.f32.mrf.mxu0
      %v2688 = vpop.f32.mrf.mxu0
      %v2689 = vadd.f32 0.0, %v2688
      %v2690 = vpop.f32.mrf.mxu0
      %2691 = vmatprep.mubr.bf16.mxu0 0
      %2692 = vmatmul.mubr.bf16.gmra.mxu0 %v2416
      %v2693 = vpop.f32.mrf.mxu0
      %v2694 = vadd.f32 0.0, %v2693
      %v2695 = vpop.f32.mrf.mxu0
      %v2696 = vpop.f32.mrf.mxu0
      %v2697 = vadd.f32 0.0, %v2696
      %v2698 = vpop.f32.mrf.mxu0
      %2699 = vmatprep.mubr.bf16.mxu0 0
      %2700 = vmatmul.mubr.bf16.gmra.mxu0 %v2419
      %v2701 = vpop.f32.mrf.mxu0
      %v2702 = vadd.f32 0.0, %v2701
      %v2703 = vpop.f32.mrf.mxu0
      %v2704 = vpop.f32.mrf.mxu0
      %v2705 = vadd.f32 0.0, %v2704
      %v2706 = vpop.f32.mrf.mxu0
      %2707 = vmatprep.mubr.bf16.mxu0 0
      %2708 = vmatmul.mubr.bf16.gmra.mxu0 %v2422
      %v2709 = vpop.f32.mrf.mxu0
      %v2710 = vadd.f32 0.0, %v2709
      %v2711 = vpop.f32.mrf.mxu0
      %v2712 = vpop.f32.mrf.mxu0
      %v2713 = vadd.f32 0.0, %v2712
      %v2714 = vpop.f32.mrf.mxu0
      %2715 = vmatprep.mubr.bf16.mxu0 0
      %2716 = vmatmul.mubr.bf16.gmra.mxu0 %v2425
      %v2717 = vpop.f32.mrf.mxu0
      %v2718 = vadd.f32 0.0, %v2717
      %v2719 = vpop.f32.mrf.mxu0
      %v2720 = vpop.f32.mrf.mxu0
      %v2721 = vadd.f32 0.0, %v2720
      %v2722 = vpop.f32.mrf.mxu0
      %2723 = vmatprep.mubr.bf16.mxu0 0
      %2724 = vmatmul.mubr.bf16.gmra.mxu0 %v2428
      %v2725 = vpop.f32.mrf.mxu0
      %v2726 = vadd.f32 0.0, %v2725
      %v2727 = vpop.f32.mrf.mxu0
      %v2728 = vpop.f32.mrf.mxu0
      %v2729 = vadd.f32 0.0, %v2728
      %v2730 = vpop.f32.mrf.mxu0
      %2731 = vmatprep.mubr.bf16.mxu0 0
      %2732 = vmatmul.mubr.bf16.gmra.mxu0 %v2431
      %v2733 = vpop.f32.mrf.mxu0
      %v2734 = vadd.f32 0.0, %v2733
      %v2735 = vpop.f32.mrf.mxu0
      %v2736 = vpop.f32.mrf.mxu0
      %v2737 = vadd.f32 0.0, %v2736
      %v2738 = vpop.f32.mrf.mxu0
      %2739 = vmatprep.mubr.bf16.mxu0 0
      %2740 = vmatmul.mubr.bf16.gmra.mxu0 %v2434
      %v2741 = vpop.f32.mrf.mxu0
      %v2742 = vadd.f32 0.0, %v2741
      %v2743 = vpop.f32.mrf.mxu0
      %v2744 = vpop.f32.mrf.mxu0
      %v2745 = vadd.f32 0.0, %v2744
      %v2746 = vpop.f32.mrf.mxu0
      %2747 = vmatprep.mubr.bf16.mxu0 0
      %2748 = vmatmul.mubr.bf16.gmra.mxu0 %v2437
      %v2749 = vpop.f32.mrf.mxu0
      %v2750 = vadd.f32 0.0, %v2749
      %v2751 = vpop.f32.mrf.mxu0
      %v2752 = vpop.f32.mrf.mxu0
      %v2753 = vadd.f32 0.0, %v2752
      %v2754 = vpop.f32.mrf.mxu0
      %2755 = vmatprep.mubr.bf16.mxu0 0
      %2756 = vmatmul.mubr.bf16.gmra.mxu0 %v2440
      %v2757 = vpop.f32.mrf.mxu0
      %v2758 = vadd.f32 0.0, %v2757
      %v2759 = vpop.f32.mrf.mxu0
      %v2760 = vpop.f32.mrf.mxu0
      %v2761 = vadd.f32 0.0, %v2760
      %v2762 = vpop.f32.mrf.mxu0
      %2763 = vmatprep.mubr.bf16.mxu0 0
      %2764 = vmatmul.mubr.bf16.gmra.mxu0 %v2443
      %v2765 = vpop.f32.mrf.mxu0
      %v2766 = vadd.f32 0.0, %v2765
      %v2767 = vpop.f32.mrf.mxu0
      %v2768 = vpop.f32.mrf.mxu0
      %v2769 = vadd.f32 0.0, %v2768
      %v2770 = vpop.f32.mrf.mxu0
      %2771 = vmatprep.mubr.bf16.mxu0 0
      %2772 = vmatmul.mubr.bf16.gmra.mxu0 %v2446
      %v2773 = vpop.f32.mrf.mxu0
      %v2774 = vadd.f32 0.0, %v2773
      %v2775 = vpop.f32.mrf.mxu0
      %v2776 = vpop.f32.mrf.mxu0
      %v2777 = vadd.f32 0.0, %v2776
      %v2778 = vpop.f32.mrf.mxu0
      %2779 = vmatprep.mubr.bf16.mxu0 0
      %2780 = vmatmul.mubr.bf16.gmra.mxu0 %v2449
      %v2781 = vpop.f32.mrf.mxu0
      %v2782 = vadd.f32 0.0, %v2781
      %v2783 = vpop.f32.mrf.mxu0
      %v2784 = vpop.f32.mrf.mxu0
      %v2785 = vadd.f32 0.0, %v2784
      %v2786 = vpop.f32.mrf.mxu0
      %2787 = vmatprep.mubr.bf16.mxu0 0
      %2788 = vmatmul.mubr.bf16.gmra.mxu0 %v2452
      %v2789 = vpop.f32.mrf.mxu0
      %v2790 = vadd.f32 0.0, %v2789
      %v2791 = vpop.f32.mrf.mxu0
      %v2792 = vpop.f32.mrf.mxu0
      %v2793 = vadd.f32 0.0, %v2792
      %v2794 = vpop.f32.mrf.mxu0
      %2795 = vmatprep.mubr.bf16.mxu0 0
      %2796 = vmatmul.mubr.bf16.gmra.mxu0 %v2455
      %v2797 = vpop.f32.mrf.mxu0
      %v2798 = vadd.f32 0.0, %v2797
      %v2799 = vpop.f32.mrf.mxu0
      %v2800 = vpop.f32.mrf.mxu0
      %v2801 = vadd.f32 0.0, %v2800
      %v2802 = vpop.f32.mrf.mxu0
      %2803 = vmatprep.mubr.bf16.mxu0 0
      %2804 = vmatmul.mubr.bf16.gmra.mxu0 %v2458
      %v2805 = vpop.f32.mrf.mxu0
      %v2806 = vadd.f32 0.0, %v2805
      %v2807 = vpop.f32.mrf.mxu0
      %v2808 = vpop.f32.mrf.mxu0
      %v2809 = vadd.f32 0.0, %v2808
      %v2810 = vpop.f32.mrf.mxu0
      %2811 = vmatprep.mubr.bf16.mxu0 0
      %2812 = vmatmul.mubr.bf16.gmra.mxu0 %v2461
      %v2813 = vpop.f32.mrf.mxu0
      %v2814 = vadd.f32 0.0, %v2813
      %v2815 = vpop.f32.mrf.mxu0
      %v2816 = vpop.f32.mrf.mxu0
      %v2817 = vadd.f32 0.0, %v2816
      %v2818 = vpop.f32.mrf.mxu0
      %2819 = vmatprep.mubr.bf16.mxu0 0
      %2820 = vmatmul.mubr.bf16.gmra.mxu0 %v2464
      %v2821 = vpop.f32.mrf.mxu0
      %v2822 = vadd.f32 0.0, %v2821
      %v2823 = vpop.f32.mrf.mxu0
      %v2824 = vpop.f32.mrf.mxu0
      %v2825 = vadd.f32 0.0, %v2824
      %v2826 = vpop.f32.mrf.mxu0
      %2827 = vmatprep.mubr.bf16.mxu0 0
      %2828 = vmatmul.mubr.bf16.gmra.mxu0 %v2467
      %v2829 = vpop.f32.mrf.mxu0
      %v2830 = vadd.f32 0.0, %v2829
      %v2831 = vpop.f32.mrf.mxu0
      %v2832 = vpop.f32.mrf.mxu0
      %v2833 = vadd.f32 0.0, %v2832
      %v2834 = vpop.f32.mrf.mxu0
      %2835 = vmatprep.mubr.bf16.mxu0 0
      %2836 = vmatmul.mubr.bf16.gmra.mxu0 %v2470
      %v2837 = vpop.f32.mrf.mxu0
      %v2838 = vadd.f32 0.0, %v2837
      %v2839 = vpop.f32.mrf.mxu0
      %v2840 = vpop.f32.mrf.mxu0
      %v2841 = vadd.f32 0.0, %v2840
      %v2842 = vpop.f32.mrf.mxu0
      %2843 = vmatprep.mubr.bf16.mxu0 0
      %2844 = vmatmul.mubr.bf16.gmra.mxu0 %v2473
      %v2845 = vpop.f32.mrf.mxu0
      %v2846 = vadd.f32 0.0, %v2845
      %v2847 = vpop.f32.mrf.mxu0
      %v2848 = vpop.f32.mrf.mxu0
      %v2849 = vadd.f32 0.0, %v2848
      %v2850 = vpop.f32.mrf.mxu0
      %2851 = vdwg.mxu0
      %2852 = vmatprep.subr.bf16.mxu0 0
      %2853 = vmatpush1.bf16.msra.mxu0 0
      %2854 = vmatprep.subr.bf16.mxu0 0
      %2855 = vmatpush1.bf16.msra.mxu0 0
      %2856 = vmatprep.subr.bf16.mxu0 0
      %2857 = vmatpush1.bf16.msra.mxu0 0
      %2858 = vmatprep.subr.bf16.mxu0 0
      %2859 = vmatpush1.bf16.msra.mxu0 0
      %2860 = vmatprep.subr.bf16.mxu0 0
      %2861 = vmatpush1.bf16.msra.mxu0 0
      %2862 = vmatprep.subr.bf16.mxu0 0
      %2863 = vmatpush1.bf16.msra.mxu0 %v1954
      %2864 = vmatprep.subr.bf16.mxu0 0
      %2865 = vmatpush1.bf16.msra.mxu0 %v1953
      %2866 = vmatprep.subr.bf16.mxu0 0
      %2867 = vmatpush1.bf16.msra.mxu0 %v1952
      %2868 = vmatprep.subr.bf16.mxu0 0
      %2869 = vmatpush2.bf16.msra.mxu0 0
      %2870 = vmatprep.subr.bf16.mxu0 0
      %2871 = vmatpush2.bf16.msra.mxu0 0
      %2872 = vmatprep.subr.bf16.mxu0 0
      %2873 = vmatpush2.bf16.msra.mxu0 0
      %2874 = vmatprep.subr.bf16.mxu0 0
      %2875 = vmatpush2.bf16.msra.mxu0 0
      %2876 = vmatprep.subr.bf16.mxu0 0
      %2877 = vmatpush2.bf16.msra.mxu0 0
      %2878 = vmatprep.subr.bf16.mxu0 0
      %2879 = vmatpush2.bf16.msra.mxu0 0
      %2880 = vmatprep.subr.bf16.mxu0 0
      %2881 = vmatpush2.bf16.msra.mxu0 0
      %2882 = vmatprep.subr.bf16.mxu0 0
      %2883 = vmatpush2.bf16.msra.mxu0 0
      %2884 = vmatprep.mubr.bf16.mxu0 0
      %2885 = vmatmul.mubr.bf16.gmra.mxu0 %v2347
      %v2886 = vpop.f32.mrf.mxu0
      %v2887 = vadd.f32 0.0, %v2886
      %v2888 = vpop.f32.mrf.mxu0
      %v2889 = vpop.f32.mrf.mxu0
      %v2890 = vadd.f32 0.0, %v2889
      %v2891 = vpop.f32.mrf.mxu0
      %2892 = vmatprep.mubr.bf16.mxu0 0
      %2893 = vmatmul.mubr.bf16.gmra.mxu0 %v2350
      %v2894 = vpop.f32.mrf.mxu0
      %v2895 = vadd.f32 0.0, %v2894
      %v2896 = vpop.f32.mrf.mxu0
      %v2897 = vpop.f32.mrf.mxu0
      %v2898 = vadd.f32 0.0, %v2897
      %v2899 = vpop.f32.mrf.mxu0
      %2900 = vmatprep.mubr.bf16.mxu0 0
      %2901 = vmatmul.mubr.bf16.gmra.mxu0 %v2353
      %v2902 = vpop.f32.mrf.mxu0
      %v2903 = vadd.f32 0.0, %v2902
      %v2904 = vpop.f32.mrf.mxu0
      %v2905 = vpop.f32.mrf.mxu0
      %v2906 = vadd.f32 0.0, %v2905
      %v2907 = vpop.f32.mrf.mxu0
      %2908 = vmatprep.mubr.bf16.mxu0 0
      %2909 = vmatmul.mubr.bf16.gmra.mxu0 %v2356
      %v2910 = vpop.f32.mrf.mxu0
      %v2911 = vadd.f32 0.0, %v2910
      %v2912 = vpop.f32.mrf.mxu0
      %v2913 = vpop.f32.mrf.mxu0
      %v2914 = vadd.f32 0.0, %v2913
      %v2915 = vpop.f32.mrf.mxu0
      %2916 = vmatprep.mubr.bf16.mxu0 0
      %2917 = vmatmul.mubr.bf16.gmra.mxu0 %v2359
      %v2918 = vpop.f32.mrf.mxu0
      %v2919 = vadd.f32 0.0, %v2918
      %v2920 = vpop.f32.mrf.mxu0
      %v2921 = vpop.f32.mrf.mxu0
      %v2922 = vadd.f32 0.0, %v2921
      %v2923 = vpop.f32.mrf.mxu0
      %2924 = vmatprep.mubr.bf16.mxu0 0
      %2925 = vmatmul.mubr.bf16.gmra.mxu0 %v2362
      %v2926 = vpop.f32.mrf.mxu0
      %v2927 = vadd.f32 0.0, %v2926
      %v2928 = vpop.f32.mrf.mxu0
      %v2929 = vpop.f32.mrf.mxu0
      %v2930 = vadd.f32 0.0, %v2929
      %v2931 = vpop.f32.mrf.mxu0
      %2932 = vmatprep.mubr.bf16.mxu0 0
      %2933 = vmatmul.mubr.bf16.gmra.mxu0 %v2365
      %v2934 = vpop.f32.mrf.mxu0
      %v2935 = vadd.f32 0.0, %v2934
      %v2936 = vpop.f32.mrf.mxu0
      %v2937 = vpop.f32.mrf.mxu0
      %v2938 = vadd.f32 0.0, %v2937
      %v2939 = vpop.f32.mrf.mxu0
      %2940 = vmatprep.mubr.bf16.mxu0 0
      %2941 = vmatmul.mubr.bf16.gmra.mxu0 %v2368
      %v2942 = vpop.f32.mrf.mxu0
      %v2943 = vadd.f32 0.0, %v2942
      %v2944 = vpop.f32.mrf.mxu0
      %v2945 = vpop.f32.mrf.mxu0
      %v2946 = vadd.f32 0.0, %v2945
      %v2947 = vpop.f32.mrf.mxu0
      %2948 = vmatprep.mubr.bf16.mxu0 0
      %2949 = vmatmul.mubr.bf16.gmra.mxu0 %v2371
      %v2950 = vpop.f32.mrf.mxu0
      %v2951 = vadd.f32 0.0, %v2950
      %v2952 = vpop.f32.mrf.mxu0
      %v2953 = vpop.f32.mrf.mxu0
      %v2954 = vadd.f32 0.0, %v2953
      %v2955 = vpop.f32.mrf.mxu0
      %2956 = vmatprep.mubr.bf16.mxu0 0
      %2957 = vmatmul.mubr.bf16.gmra.mxu0 %v2374
      %v2958 = vpop.f32.mrf.mxu0
      %v2959 = vadd.f32 0.0, %v2958
      %v2960 = vpop.f32.mrf.mxu0
      %v2961 = vpop.f32.mrf.mxu0
      %v2962 = vadd.f32 0.0, %v2961
      %v2963 = vpop.f32.mrf.mxu0
      %2964 = vmatprep.mubr.bf16.mxu0 0
      %2965 = vmatmul.mubr.bf16.gmra.mxu0 %v2377
      %v2966 = vpop.f32.mrf.mxu0
      %v2967 = vadd.f32 0.0, %v2966
      %v2968 = vpop.f32.mrf.mxu0
      %v2969 = vpop.f32.mrf.mxu0
      %v2970 = vadd.f32 0.0, %v2969
      %v2971 = vpop.f32.mrf.mxu0
      %2972 = vmatprep.mubr.bf16.mxu0 0
      %2973 = vmatmul.mubr.bf16.gmra.mxu0 %v2380
      %v2974 = vpop.f32.mrf.mxu0
      %v2975 = vadd.f32 0.0, %v2974
      %v2976 = vpop.f32.mrf.mxu0
      %v2977 = vpop.f32.mrf.mxu0
      %v2978 = vadd.f32 0.0, %v2977
      %v2979 = vpop.f32.mrf.mxu0
      %2980 = vmatprep.mubr.bf16.mxu0 0
      %2981 = vmatmul.mubr.bf16.gmra.mxu0 %v2383
      %v2982 = vpop.f32.mrf.mxu0
      %v2983 = vadd.f32 0.0, %v2982
      %v2984 = vpop.f32.mrf.mxu0
      %v2985 = vpop.f32.mrf.mxu0
      %v2986 = vadd.f32 0.0, %v2985
      %v2987 = vpop.f32.mrf.mxu0
      %2988 = vmatprep.mubr.bf16.mxu0 0
      %2989 = vmatmul.mubr.bf16.gmra.mxu0 %v2386
      %v2990 = vpop.f32.mrf.mxu0
      %v2991 = vadd.f32 0.0, %v2990
      %v2992 = vpop.f32.mrf.mxu0
      %v2993 = vpop.f32.mrf.mxu0
      %v2994 = vadd.f32 0.0, %v2993
      %v2995 = vpop.f32.mrf.mxu0
      %2996 = vmatprep.mubr.bf16.mxu0 0
      %2997 = vmatmul.mubr.bf16.gmra.mxu0 %v2389
      %v2998 = vpop.f32.mrf.mxu0
      %v2999 = vadd.f32 0.0, %v2998
      %v3000 = vpop.f32.mrf.mxu0
      %v3001 = vpop.f32.mrf.mxu0
      %v3002 = vadd.f32 0.0, %v3001
      %v3003 = vpop.f32.mrf.mxu0
      %3004 = vmatprep.mubr.bf16.mxu0 0
      %3005 = vmatmul.mubr.bf16.gmra.mxu0 %v2392
      %v3006 = vpop.f32.mrf.mxu0
      %v3007 = vadd.f32 0.0, %v3006
      %v3008 = vpop.f32.mrf.mxu0
      %v3009 = vpop.f32.mrf.mxu0
      %v3010 = vadd.f32 0.0, %v3009
      %v3011 = vpop.f32.mrf.mxu0
      %3012 = vmatprep.mubr.bf16.mxu0 0
      %3013 = vmatmul.mubr.bf16.gmra.mxu0 %v2395
      %v3014 = vpop.f32.mrf.mxu0
      %v3015 = vadd.f32 0.0, %v3014
      %v3016 = vpop.f32.mrf.mxu0
      %v3017 = vpop.f32.mrf.mxu0
      %v3018 = vadd.f32 0.0, %v3017
      %v3019 = vpop.f32.mrf.mxu0
      %3020 = vmatprep.mubr.bf16.mxu0 0
      %3021 = vmatmul.mubr.bf16.gmra.mxu0 %v2398
      %v3022 = vpop.f32.mrf.mxu0
      %v3023 = vadd.f32 0.0, %v3022
      %v3024 = vpop.f32.mrf.mxu0
      %v3025 = vpop.f32.mrf.mxu0
      %v3026 = vadd.f32 0.0, %v3025
      %v3027 = vpop.f32.mrf.mxu0
      %3028 = vmatprep.mubr.bf16.mxu0 0
      %3029 = vmatmul.mubr.bf16.gmra.mxu0 %v2401
      %v3030 = vpop.f32.mrf.mxu0
      %v3031 = vadd.f32 0.0, %v3030
      %v3032 = vpop.f32.mrf.mxu0
      %v3033 = vpop.f32.mrf.mxu0
      %v3034 = vadd.f32 0.0, %v3033
      %v3035 = vpop.f32.mrf.mxu0
      %3036 = vmatprep.mubr.bf16.mxu0 0
      %3037 = vmatmul.mubr.bf16.gmra.mxu0 %v2404
      %v3038 = vpop.f32.mrf.mxu0
      %v3039 = vadd.f32 0.0, %v3038
      %v3040 = vpop.f32.mrf.mxu0
      %v3041 = vpop.f32.mrf.mxu0
      %v3042 = vadd.f32 0.0, %v3041
      %v3043 = vpop.f32.mrf.mxu0
      %3044 = vmatprep.mubr.bf16.mxu0 0
      %3045 = vmatmul.mubr.bf16.gmra.mxu0 %v2407
      %v3046 = vpop.f32.mrf.mxu0
      %v3047 = vadd.f32 0.0, %v3046
      %v3048 = vpop.f32.mrf.mxu0
      %v3049 = vpop.f32.mrf.mxu0
      %v3050 = vadd.f32 0.0, %v3049
      %v3051 = vpop.f32.mrf.mxu0
      %3052 = vmatprep.mubr.bf16.mxu0 0
      %3053 = vmatmul.mubr.bf16.gmra.mxu0 %v2410
      %v3054 = vpop.f32.mrf.mxu0
      %v3055 = vadd.f32 0.0, %v3054
      %v3056 = vpop.f32.mrf.mxu0
      %v3057 = vpop.f32.mrf.mxu0
      %v3058 = vadd.f32 0.0, %v3057
      %v3059 = vpop.f32.mrf.mxu0
      %3060 = vmatprep.mubr.bf16.mxu0 0
      %3061 = vmatmul.mubr.bf16.gmra.mxu0 %v2413
      %v3062 = vpop.f32.mrf.mxu0
      %v3063 = vadd.f32 0.0, %v3062
      %v3064 = vpop.f32.mrf.mxu0
      %v3065 = vpop.f32.mrf.mxu0
      %v3066 = vadd.f32 0.0, %v3065
      %v3067 = vpop.f32.mrf.mxu0
      %3068 = vmatprep.mubr.bf16.mxu0 0
      %3069 = vmatmul.mubr.bf16.gmra.mxu0 %v2416
      %v3070 = vpop.f32.mrf.mxu0
      %v3071 = vadd.f32 0.0, %v3070
      %v3072 = vpop.f32.mrf.mxu0
      %v3073 = vpop.f32.mrf.mxu0
      %v3074 = vadd.f32 0.0, %v3073
      %v3075 = vpop.f32.mrf.mxu0
      %3076 = vmatprep.mubr.bf16.mxu0 0
      %3077 = vmatmul.mubr.bf16.gmra.mxu0 %v2419
      %v3078 = vpop.f32.mrf.mxu0
      %v3079 = vadd.f32 0.0, %v3078
      %v3080 = vpop.f32.mrf.mxu0
      %v3081 = vpop.f32.mrf.mxu0
      %v3082 = vadd.f32 0.0, %v3081
      %v3083 = vpop.f32.mrf.mxu0
      %3084 = vmatprep.mubr.bf16.mxu0 0
      %3085 = vmatmul.mubr.bf16.gmra.mxu0 %v2422
      %v3086 = vpop.f32.mrf.mxu0
      %v3087 = vadd.f32 0.0, %v3086
      %v3088 = vpop.f32.mrf.mxu0
      %v3089 = vpop.f32.mrf.mxu0
      %v3090 = vadd.f32 0.0, %v3089
      %v3091 = vpop.f32.mrf.mxu0
      %3092 = vmatprep.mubr.bf16.mxu0 0
      %3093 = vmatmul.mubr.bf16.gmra.mxu0 %v2425
      %v3094 = vpop.f32.mrf.mxu0
      %v3095 = vadd.f32 0.0, %v3094
      %v3096 = vpop.f32.mrf.mxu0
      %v3097 = vpop.f32.mrf.mxu0
      %v3098 = vadd.f32 0.0, %v3097
      %v3099 = vpop.f32.mrf.mxu0
      %3100 = vmatprep.mubr.bf16.mxu0 0
      %3101 = vmatmul.mubr.bf16.gmra.mxu0 %v2428
      %v3102 = vpop.f32.mrf.mxu0
      %v3103 = vadd.f32 0.0, %v3102
      %v3104 = vpop.f32.mrf.mxu0
      %v3105 = vpop.f32.mrf.mxu0
      %v3106 = vadd.f32 0.0, %v3105
      %v3107 = vpop.f32.mrf.mxu0
      %3108 = vmatprep.mubr.bf16.mxu0 0
      %3109 = vmatmul.mubr.bf16.gmra.mxu0 %v2431
      %v3110 = vpop.f32.mrf.mxu0
      %v3111 = vadd.f32 0.0, %v3110
      %v3112 = vpop.f32.mrf.mxu0
      %v3113 = vpop.f32.mrf.mxu0
      %v3114 = vadd.f32 0.0, %v3113
      %v3115 = vpop.f32.mrf.mxu0
      %3116 = vmatprep.mubr.bf16.mxu0 0
      %3117 = vmatmul.mubr.bf16.gmra.mxu0 %v2434
      %v3118 = vpop.f32.mrf.mxu0
      %v3119 = vadd.f32 0.0, %v3118
      %v3120 = vpop.f32.mrf.mxu0
      %v3121 = vpop.f32.mrf.mxu0
      %v3122 = vadd.f32 0.0, %v3121
      %v3123 = vpop.f32.mrf.mxu0
      %3124 = vmatprep.mubr.bf16.mxu0 0
      %3125 = vmatmul.mubr.bf16.gmra.mxu0 %v2437
      %v3126 = vpop.f32.mrf.mxu0
      %v3127 = vadd.f32 0.0, %v3126
      %v3128 = vpop.f32.mrf.mxu0
      %v3129 = vpop.f32.mrf.mxu0
      %v3130 = vadd.f32 0.0, %v3129
      %v3131 = vpop.f32.mrf.mxu0
      %3132 = vmatprep.mubr.bf16.mxu0 0
      %3133 = vmatmul.mubr.bf16.gmra.mxu0 %v2440
      %v3134 = vpop.f32.mrf.mxu0
      %v3135 = vadd.f32 0.0, %v3134
      %v3136 = vpop.f32.mrf.mxu0
      %v3137 = vpop.f32.mrf.mxu0
      %v3138 = vadd.f32 0.0, %v3137
      %v3139 = vpop.f32.mrf.mxu0
      %3140 = vmatprep.mubr.bf16.mxu0 0
      %3141 = vmatmul.mubr.bf16.gmra.mxu0 %v2443
      %v3142 = vpop.f32.mrf.mxu0
      %v3143 = vadd.f32 0.0, %v3142
      %v3144 = vpop.f32.mrf.mxu0
      %v3145 = vpop.f32.mrf.mxu0
      %v3146 = vadd.f32 0.0, %v3145
      %v3147 = vpop.f32.mrf.mxu0
      %3148 = vmatprep.mubr.bf16.mxu0 0
      %3149 = vmatmul.mubr.bf16.gmra.mxu0 %v2446
      %v3150 = vpop.f32.mrf.mxu0
      %v3151 = vadd.f32 0.0, %v3150
      %v3152 = vpop.f32.mrf.mxu0
      %v3153 = vpop.f32.mrf.mxu0
      %v3154 = vadd.f32 0.0, %v3153
      %v3155 = vpop.f32.mrf.mxu0
      %3156 = vmatprep.mubr.bf16.mxu0 0
      %3157 = vmatmul.mubr.bf16.gmra.mxu0 %v2449
      %v3158 = vpop.f32.mrf.mxu0
      %v3159 = vadd.f32 0.0, %v3158
      %v3160 = vpop.f32.mrf.mxu0
      %v3161 = vpop.f32.mrf.mxu0
      %v3162 = vadd.f32 0.0, %v3161
      %v3163 = vpop.f32.mrf.mxu0
      %3164 = vmatprep.mubr.bf16.mxu0 0
      %3165 = vmatmul.mubr.bf16.gmra.mxu0 %v2452
      %v3166 = vpop.f32.mrf.mxu0
      %v3167 = vadd.f32 0.0, %v3166
      %v3168 = vpop.f32.mrf.mxu0
      %v3169 = vpop.f32.mrf.mxu0
      %v3170 = vadd.f32 0.0, %v3169
      %v3171 = vpop.f32.mrf.mxu0
      %3172 = vmatprep.mubr.bf16.mxu0 0
      %3173 = vmatmul.mubr.bf16.gmra.mxu0 %v2455
      %v3174 = vpop.f32.mrf.mxu0
      %v3175 = vadd.f32 0.0, %v3174
      %v3176 = vpop.f32.mrf.mxu0
      %v3177 = vpop.f32.mrf.mxu0
      %v3178 = vadd.f32 0.0, %v3177
      %v3179 = vpop.f32.mrf.mxu0
      %3180 = vmatprep.mubr.bf16.mxu0 0
      %3181 = vmatmul.mubr.bf16.gmra.mxu0 %v2458
      %v3182 = vpop.f32.mrf.mxu0
      %v3183 = vadd.f32 0.0, %v3182
      %v3184 = vpop.f32.mrf.mxu0
      %v3185 = vpop.f32.mrf.mxu0
      %v3186 = vadd.f32 0.0, %v3185
      %v3187 = vpop.f32.mrf.mxu0
      %3188 = vmatprep.mubr.bf16.mxu0 0
      %3189 = vmatmul.mubr.bf16.gmra.mxu0 %v2461
      %v3190 = vpop.f32.mrf.mxu0
      %v3191 = vadd.f32 0.0, %v3190
      %v3192 = vpop.f32.mrf.mxu0
      %v3193 = vpop.f32.mrf.mxu0
      %v3194 = vadd.f32 0.0, %v3193
      %v3195 = vpop.f32.mrf.mxu0
      %3196 = vmatprep.mubr.bf16.mxu0 0
      %3197 = vmatmul.mubr.bf16.gmra.mxu0 %v2464
      %v3198 = vpop.f32.mrf.mxu0
      %v3199 = vadd.f32 0.0, %v3198
      %v3200 = vpop.f32.mrf.mxu0
      %v3201 = vpop.f32.mrf.mxu0
      %v3202 = vadd.f32 0.0, %v3201
      %v3203 = vpop.f32.mrf.mxu0
      %3204 = vmatprep.mubr.bf16.mxu0 0
      %3205 = vmatmul.mubr.bf16.gmra.mxu0 %v2467
      %v3206 = vpop.f32.mrf.mxu0
      %v3207 = vadd.f32 0.0, %v3206
      %v3208 = vpop.f32.mrf.mxu0
      %v3209 = vpop.f32.mrf.mxu0
      %v3210 = vadd.f32 0.0, %v3209
      %v3211 = vpop.f32.mrf.mxu0
      %3212 = vmatprep.mubr.bf16.mxu0 0
      %3213 = vmatmul.mubr.bf16.gmra.mxu0 %v2470
      %v3214 = vpop.f32.mrf.mxu0
      %v3215 = vadd.f32 0.0, %v3214
      %v3216 = vpop.f32.mrf.mxu0
      %v3217 = vpop.f32.mrf.mxu0
      %v3218 = vadd.f32 0.0, %v3217
      %v3219 = vpop.f32.mrf.mxu0
      %3220 = vmatprep.mubr.bf16.mxu0 0
      %3221 = vmatmul.mubr.bf16.gmra.mxu0 %v2473
      %v3222 = vpop.f32.mrf.mxu0
      %v3223 = vadd.f32 0.0, %v3222
      %v3224 = vpop.f32.mrf.mxu0
      %v3225 = vpop.f32.mrf.mxu0
      %v3226 = vadd.f32 0.0, %v3225
      %v3227 = vpop.f32.mrf.mxu0
      %3228 = vdwg.mxu0
      %3229 = vmatprep.subr.bf16.mxu0 0
      %3230 = vmatpush1.bf16.msra.mxu0 0
      %3231 = vmatprep.subr.bf16.mxu0 0
      %3232 = vmatpush1.bf16.msra.mxu0 0
      %3233 = vmatprep.subr.bf16.mxu0 0
      %3234 = vmatpush1.bf16.msra.mxu0 0
      %3235 = vmatprep.subr.bf16.mxu0 0
      %3236 = vmatpush1.bf16.msra.mxu0 0
      %3237 = vmatprep.subr.bf16.mxu0 0
      %3238 = vmatpush1.bf16.msra.mxu0 0
      %3239 = vmatprep.subr.bf16.mxu0 0
      %3240 = vmatpush1.bf16.msra.mxu0 %v1957
      %3241 = vmatprep.subr.bf16.mxu0 0
      %3242 = vmatpush1.bf16.msra.mxu0 %v1956
      %3243 = vmatprep.subr.bf16.mxu0 0
      %3244 = vmatpush1.bf16.msra.mxu0 %v1955
      %3245 = vmatprep.subr.bf16.mxu0 0
      %3246 = vmatpush2.bf16.msra.mxu0 0
      %3247 = vmatprep.subr.bf16.mxu0 0
      %3248 = vmatpush2.bf16.msra.mxu0 0
      %3249 = vmatprep.subr.bf16.mxu0 0
      %3250 = vmatpush2.bf16.msra.mxu0 0
      %3251 = vmatprep.subr.bf16.mxu0 0
      %3252 = vmatpush2.bf16.msra.mxu0 0
      %3253 = vmatprep.subr.bf16.mxu0 0
      %3254 = vmatpush2.bf16.msra.mxu0 0
      %3255 = vmatprep.subr.bf16.mxu0 0
      %3256 = vmatpush2.bf16.msra.mxu0 0
      %3257 = vmatprep.subr.bf16.mxu0 0
      %3258 = vmatpush2.bf16.msra.mxu0 0
      %3259 = vmatprep.subr.bf16.mxu0 0
      %3260 = vmatpush2.bf16.msra.mxu0 0
      %3261 = vmatprep.mubr.bf16.mxu0 0
      %3262 = vmatmul.mubr.bf16.gmra.mxu0 %v2347
      %v3263 = vpop.f32.mrf.mxu0
      %v3264 = vadd.f32 0.0, %v3263
      %v3265 = vpop.f32.mrf.mxu0
      %v3266 = vpop.f32.mrf.mxu0
      %v3267 = vadd.f32 0.0, %v3266
      %v3268 = vpop.f32.mrf.mxu0
      %3269 = vmatprep.mubr.bf16.mxu0 0
      %3270 = vmatmul.mubr.bf16.gmra.mxu0 %v2350
      %v3271 = vpop.f32.mrf.mxu0
      %v3272 = vadd.f32 0.0, %v3271
      %v3273 = vpop.f32.mrf.mxu0
      %v3274 = vpop.f32.mrf.mxu0
      %v3275 = vadd.f32 0.0, %v3274
      %v3276 = vpop.f32.mrf.mxu0
      %3277 = vmatprep.mubr.bf16.mxu0 0
      %3278 = vmatmul.mubr.bf16.gmra.mxu0 %v2353
      %v3279 = vpop.f32.mrf.mxu0
      %v3280 = vadd.f32 0.0, %v3279
      %v3281 = vpop.f32.mrf.mxu0
      %v3282 = vpop.f32.mrf.mxu0
      %v3283 = vadd.f32 0.0, %v3282
      %v3284 = vpop.f32.mrf.mxu0
      %3285 = vmatprep.mubr.bf16.mxu0 0
      %3286 = vmatmul.mubr.bf16.gmra.mxu0 %v2356
      %v3287 = vpop.f32.mrf.mxu0
      %v3288 = vadd.f32 0.0, %v3287
      %v3289 = vpop.f32.mrf.mxu0
      %v3290 = vpop.f32.mrf.mxu0
      %v3291 = vadd.f32 0.0, %v3290
      %v3292 = vpop.f32.mrf.mxu0
      %3293 = vmatprep.mubr.bf16.mxu0 0
      %3294 = vmatmul.mubr.bf16.gmra.mxu0 %v2359
      %v3295 = vpop.f32.mrf.mxu0
      %v3296 = vadd.f32 0.0, %v3295
      %v3297 = vpop.f32.mrf.mxu0
      %v3298 = vpop.f32.mrf.mxu0
      %v3299 = vadd.f32 0.0, %v3298
      %v3300 = vpop.f32.mrf.mxu0
      %3301 = vmatprep.mubr.bf16.mxu0 0
      %3302 = vmatmul.mubr.bf16.gmra.mxu0 %v2362
      %v3303 = vpop.f32.mrf.mxu0
      %v3304 = vadd.f32 0.0, %v3303
      %v3305 = vpop.f32.mrf.mxu0
      %v3306 = vpop.f32.mrf.mxu0
      %v3307 = vadd.f32 0.0, %v3306
      %v3308 = vpop.f32.mrf.mxu0
      %3309 = vmatprep.mubr.bf16.mxu0 0
      %3310 = vmatmul.mubr.bf16.gmra.mxu0 %v2365
      %v3311 = vpop.f32.mrf.mxu0
      %v3312 = vadd.f32 0.0, %v3311
      %v3313 = vpop.f32.mrf.mxu0
      %v3314 = vpop.f32.mrf.mxu0
      %v3315 = vadd.f32 0.0, %v3314
      %v3316 = vpop.f32.mrf.mxu0
      %3317 = vmatprep.mubr.bf16.mxu0 0
      %3318 = vmatmul.mubr.bf16.gmra.mxu0 %v2368
      %v3319 = vpop.f32.mrf.mxu0
      %v3320 = vadd.f32 0.0, %v3319
      %v3321 = vpop.f32.mrf.mxu0
      %v3322 = vpop.f32.mrf.mxu0
      %v3323 = vadd.f32 0.0, %v3322
      %v3324 = vpop.f32.mrf.mxu0
      %3325 = vmatprep.mubr.bf16.mxu0 0
      %3326 = vmatmul.mubr.bf16.gmra.mxu0 %v2371
      %v3327 = vpop.f32.mrf.mxu0
      %v3328 = vadd.f32 0.0, %v3327
      %v3329 = vpop.f32.mrf.mxu0
      %v3330 = vpop.f32.mrf.mxu0
      %v3331 = vadd.f32 0.0, %v3330
      %v3332 = vpop.f32.mrf.mxu0
      %3333 = vmatprep.mubr.bf16.mxu0 0
      %3334 = vmatmul.mubr.bf16.gmra.mxu0 %v2374
      %v3335 = vpop.f32.mrf.mxu0
      %v3336 = vadd.f32 0.0, %v3335
      %v3337 = vpop.f32.mrf.mxu0
      %v3338 = vpop.f32.mrf.mxu0
      %v3339 = vadd.f32 0.0, %v3338
      %v3340 = vpop.f32.mrf.mxu0
      %3341 = vmatprep.mubr.bf16.mxu0 0
      %3342 = vmatmul.mubr.bf16.gmra.mxu0 %v2377
      %v3343 = vpop.f32.mrf.mxu0
      %v3344 = vadd.f32 0.0, %v3343
      %v3345 = vpop.f32.mrf.mxu0
      %v3346 = vpop.f32.mrf.mxu0
      %v3347 = vadd.f32 0.0, %v3346
      %v3348 = vpop.f32.mrf.mxu0
      %3349 = vmatprep.mubr.bf16.mxu0 0
      %3350 = vmatmul.mubr.bf16.gmra.mxu0 %v2380
      %v3351 = vpop.f32.mrf.mxu0
      %v3352 = vadd.f32 0.0, %v3351
      %v3353 = vpop.f32.mrf.mxu0
      %v3354 = vpop.f32.mrf.mxu0
      %v3355 = vadd.f32 0.0, %v3354
      %v3356 = vpop.f32.mrf.mxu0
      %3357 = vmatprep.mubr.bf16.mxu0 0
      %3358 = vmatmul.mubr.bf16.gmra.mxu0 %v2383
      %v3359 = vpop.f32.mrf.mxu0
      %v3360 = vadd.f32 0.0, %v3359
      %v3361 = vpop.f32.mrf.mxu0
      %v3362 = vpop.f32.mrf.mxu0
      %v3363 = vadd.f32 0.0, %v3362
      %v3364 = vpop.f32.mrf.mxu0
      %3365 = vmatprep.mubr.bf16.mxu0 0
      %3366 = vmatmul.mubr.bf16.gmra.mxu0 %v2386
      %v3367 = vpop.f32.mrf.mxu0
      %v3368 = vadd.f32 0.0, %v3367
      %v3369 = vpop.f32.mrf.mxu0
      %v3370 = vpop.f32.mrf.mxu0
      %v3371 = vadd.f32 0.0, %v3370
      %v3372 = vpop.f32.mrf.mxu0
      %3373 = vmatprep.mubr.bf16.mxu0 0
      %3374 = vmatmul.mubr.bf16.gmra.mxu0 %v2389
      %v3375 = vpop.f32.mrf.mxu0
      %v3376 = vadd.f32 0.0, %v3375
      %v3377 = vpop.f32.mrf.mxu0
      %v3378 = vpop.f32.mrf.mxu0
      %v3379 = vadd.f32 0.0, %v3378
      %v3380 = vpop.f32.mrf.mxu0
      %3381 = vmatprep.mubr.bf16.mxu0 0
      %3382 = vmatmul.mubr.bf16.gmra.mxu0 %v2392
      %v3383 = vpop.f32.mrf.mxu0
      %v3384 = vadd.f32 0.0, %v3383
      %v3385 = vpop.f32.mrf.mxu0
      %v3386 = vpop.f32.mrf.mxu0
      %v3387 = vadd.f32 0.0, %v3386
      %v3388 = vpop.f32.mrf.mxu0
      %3389 = vmatprep.mubr.bf16.mxu0 0
      %3390 = vmatmul.mubr.bf16.gmra.mxu0 %v2395
      %v3391 = vpop.f32.mrf.mxu0
      %v3392 = vadd.f32 0.0, %v3391
      %v3393 = vpop.f32.mrf.mxu0
      %v3394 = vpop.f32.mrf.mxu0
      %v3395 = vadd.f32 0.0, %v3394
      %v3396 = vpop.f32.mrf.mxu0
      %3397 = vmatprep.mubr.bf16.mxu0 0
      %3398 = vmatmul.mubr.bf16.gmra.mxu0 %v2398
      %v3399 = vpop.f32.mrf.mxu0
      %v3400 = vadd.f32 0.0, %v3399
      %v3401 = vpop.f32.mrf.mxu0
      %v3402 = vpop.f32.mrf.mxu0
      %v3403 = vadd.f32 0.0, %v3402
      %v3404 = vpop.f32.mrf.mxu0
      %3405 = vmatprep.mubr.bf16.mxu0 0
      %3406 = vmatmul.mubr.bf16.gmra.mxu0 %v2401
      %v3407 = vpop.f32.mrf.mxu0
      %v3408 = vadd.f32 0.0, %v3407
      %v3409 = vpop.f32.mrf.mxu0
      %v3410 = vpop.f32.mrf.mxu0
      %v3411 = vadd.f32 0.0, %v3410
      %v3412 = vpop.f32.mrf.mxu0
      %3413 = vmatprep.mubr.bf16.mxu0 0
      %3414 = vmatmul.mubr.bf16.gmra.mxu0 %v2404
      %v3415 = vpop.f32.mrf.mxu0
      %v3416 = vadd.f32 0.0, %v3415
      %v3417 = vpop.f32.mrf.mxu0
      %v3418 = vpop.f32.mrf.mxu0
      %v3419 = vadd.f32 0.0, %v3418
      %v3420 = vpop.f32.mrf.mxu0
      %3421 = vmatprep.mubr.bf16.mxu0 0
      %3422 = vmatmul.mubr.bf16.gmra.mxu0 %v2407
      %v3423 = vpop.f32.mrf.mxu0
      %v3424 = vadd.f32 0.0, %v3423
      %v3425 = vpop.f32.mrf.mxu0
      %v3426 = vpop.f32.mrf.mxu0
      %v3427 = vadd.f32 0.0, %v3426
      %v3428 = vpop.f32.mrf.mxu0
      %3429 = vmatprep.mubr.bf16.mxu0 0
      %3430 = vmatmul.mubr.bf16.gmra.mxu0 %v2410
      %v3431 = vpop.f32.mrf.mxu0
      %v3432 = vadd.f32 0.0, %v3431
      %v3433 = vpop.f32.mrf.mxu0
      %v3434 = vpop.f32.mrf.mxu0
      %v3435 = vadd.f32 0.0, %v3434
      %v3436 = vpop.f32.mrf.mxu0
      %3437 = vmatprep.mubr.bf16.mxu0 0
      %3438 = vmatmul.mubr.bf16.gmra.mxu0 %v2413
      %v3439 = vpop.f32.mrf.mxu0
      %v3440 = vadd.f32 0.0, %v3439
      %v3441 = vpop.f32.mrf.mxu0
      %v3442 = vpop.f32.mrf.mxu0
      %v3443 = vadd.f32 0.0, %v3442
      %v3444 = vpop.f32.mrf.mxu0
      %3445 = vmatprep.mubr.bf16.mxu0 0
      %3446 = vmatmul.mubr.bf16.gmra.mxu0 %v2416
      %v3447 = vpop.f32.mrf.mxu0
      %v3448 = vadd.f32 0.0, %v3447
      %v3449 = vpop.f32.mrf.mxu0
      %v3450 = vpop.f32.mrf.mxu0
      %v3451 = vadd.f32 0.0, %v3450
      %v3452 = vpop.f32.mrf.mxu0
      %3453 = vmatprep.mubr.bf16.mxu0 0
      %3454 = vmatmul.mubr.bf16.gmra.mxu0 %v2419
      %v3455 = vpop.f32.mrf.mxu0
      %v3456 = vadd.f32 0.0, %v3455
      %v3457 = vpop.f32.mrf.mxu0
      %v3458 = vpop.f32.mrf.mxu0
      %v3459 = vadd.f32 0.0, %v3458
      %v3460 = vpop.f32.mrf.mxu0
      %3461 = vmatprep.mubr.bf16.mxu0 0
      %3462 = vmatmul.mubr.bf16.gmra.mxu0 %v2422
      %v3463 = vpop.f32.mrf.mxu0
      %v3464 = vadd.f32 0.0, %v3463
      %v3465 = vpop.f32.mrf.mxu0
      %v3466 = vpop.f32.mrf.mxu0
      %v3467 = vadd.f32 0.0, %v3466
      %v3468 = vpop.f32.mrf.mxu0
      %3469 = vmatprep.mubr.bf16.mxu0 0
      %3470 = vmatmul.mubr.bf16.gmra.mxu0 %v2425
      %v3471 = vpop.f32.mrf.mxu0
      %v3472 = vadd.f32 0.0, %v3471
      %v3473 = vpop.f32.mrf.mxu0
      %v3474 = vpop.f32.mrf.mxu0
      %v3475 = vadd.f32 0.0, %v3474
      %v3476 = vpop.f32.mrf.mxu0
      %3477 = vmatprep.mubr.bf16.mxu0 0
      %3478 = vmatmul.mubr.bf16.gmra.mxu0 %v2428
      %v3479 = vpop.f32.mrf.mxu0
      %v3480 = vadd.f32 0.0, %v3479
      %v3481 = vpop.f32.mrf.mxu0
      %v3482 = vpop.f32.mrf.mxu0
      %v3483 = vadd.f32 0.0, %v3482
      %v3484 = vpop.f32.mrf.mxu0
      %3485 = vmatprep.mubr.bf16.mxu0 0
      %3486 = vmatmul.mubr.bf16.gmra.mxu0 %v2431
      %v3487 = vpop.f32.mrf.mxu0
      %v3488 = vadd.f32 0.0, %v3487
      %v3489 = vpop.f32.mrf.mxu0
      %v3490 = vpop.f32.mrf.mxu0
      %v3491 = vadd.f32 0.0, %v3490
      %v3492 = vpop.f32.mrf.mxu0
      %3493 = vmatprep.mubr.bf16.mxu0 0
      %3494 = vmatmul.mubr.bf16.gmra.mxu0 %v2434
      %v3495 = vpop.f32.mrf.mxu0
      %v3496 = vadd.f32 0.0, %v3495
      %v3497 = vpop.f32.mrf.mxu0
      %v3498 = vpop.f32.mrf.mxu0
      %v3499 = vadd.f32 0.0, %v3498
      %v3500 = vpop.f32.mrf.mxu0
      %3501 = vmatprep.mubr.bf16.mxu0 0
      %3502 = vmatmul.mubr.bf16.gmra.mxu0 %v2437
      %v3503 = vpop.f32.mrf.mxu0
      %v3504 = vadd.f32 0.0, %v3503
      %v3505 = vpop.f32.mrf.mxu0
      %v3506 = vpop.f32.mrf.mxu0
      %v3507 = vadd.f32 0.0, %v3506
      %v3508 = vpop.f32.mrf.mxu0
      %3509 = vmatprep.mubr.bf16.mxu0 0
      %3510 = vmatmul.mubr.bf16.gmra.mxu0 %v2440
      %v3511 = vpop.f32.mrf.mxu0
      %v3512 = vadd.f32 0.0, %v3511
      %v3513 = vpop.f32.mrf.mxu0
      %v3514 = vpop.f32.mrf.mxu0
      %v3515 = vadd.f32 0.0, %v3514
      %v3516 = vpop.f32.mrf.mxu0
      %3517 = vmatprep.mubr.bf16.mxu0 0
      %3518 = vmatmul.mubr.bf16.gmra.mxu0 %v2443
      %v3519 = vpop.f32.mrf.mxu0
      %v3520 = vadd.f32 0.0, %v3519
      %v3521 = vpop.f32.mrf.mxu0
      %v3522 = vpop.f32.mrf.mxu0
      %v3523 = vadd.f32 0.0, %v3522
      %v3524 = vpop.f32.mrf.mxu0
      %3525 = vmatprep.mubr.bf16.mxu0 0
      %3526 = vmatmul.mubr.bf16.gmra.mxu0 %v2446
      %v3527 = vpop.f32.mrf.mxu0
      %v3528 = vadd.f32 0.0, %v3527
      %v3529 = vpop.f32.mrf.mxu0
      %v3530 = vpop.f32.mrf.mxu0
      %v3531 = vadd.f32 0.0, %v3530
      %v3532 = vpop.f32.mrf.mxu0
      %3533 = vmatprep.mubr.bf16.mxu0 0
      %3534 = vmatmul.mubr.bf16.gmra.mxu0 %v2449
      %v3535 = vpop.f32.mrf.mxu0
      %v3536 = vadd.f32 0.0, %v3535
      %v3537 = vpop.f32.mrf.mxu0
      %v3538 = vpop.f32.mrf.mxu0
      %v3539 = vadd.f32 0.0, %v3538
      %v3540 = vpop.f32.mrf.mxu0
      %3541 = vmatprep.mubr.bf16.mxu0 0
      %3542 = vmatmul.mubr.bf16.gmra.mxu0 %v2452
      %v3543 = vpop.f32.mrf.mxu0
      %v3544 = vadd.f32 0.0, %v3543
      %v3545 = vpop.f32.mrf.mxu0
      %v3546 = vpop.f32.mrf.mxu0
      %v3547 = vadd.f32 0.0, %v3546
      %v3548 = vpop.f32.mrf.mxu0
      %3549 = vmatprep.mubr.bf16.mxu0 0
      %3550 = vmatmul.mubr.bf16.gmra.mxu0 %v2455
      %v3551 = vpop.f32.mrf.mxu0
      %v3552 = vadd.f32 0.0, %v3551
      %v3553 = vpop.f32.mrf.mxu0
      %v3554 = vpop.f32.mrf.mxu0
      %v3555 = vadd.f32 0.0, %v3554
      %v3556 = vpop.f32.mrf.mxu0
      %3557 = vmatprep.mubr.bf16.mxu0 0
      %3558 = vmatmul.mubr.bf16.gmra.mxu0 %v2458
      %v3559 = vpop.f32.mrf.mxu0
      %v3560 = vadd.f32 0.0, %v3559
      %v3561 = vpop.f32.mrf.mxu0
      %v3562 = vpop.f32.mrf.mxu0
      %v3563 = vadd.f32 0.0, %v3562
      %v3564 = vpop.f32.mrf.mxu0
      %3565 = vmatprep.mubr.bf16.mxu0 0
      %3566 = vmatmul.mubr.bf16.gmra.mxu0 %v2461
      %v3567 = vpop.f32.mrf.mxu0
      %v3568 = vadd.f32 0.0, %v3567
      %v3569 = vpop.f32.mrf.mxu0
      %v3570 = vpop.f32.mrf.mxu0
      %v3571 = vadd.f32 0.0, %v3570
      %v3572 = vpop.f32.mrf.mxu0
      %3573 = vmatprep.mubr.bf16.mxu0 0
      %3574 = vmatmul.mubr.bf16.gmra.mxu0 %v2464
      %v3575 = vpop.f32.mrf.mxu0
      %v3576 = vadd.f32 0.0, %v3575
      %v3577 = vpop.f32.mrf.mxu0
      %v3578 = vpop.f32.mrf.mxu0
      %v3579 = vadd.f32 0.0, %v3578
      %v3580 = vpop.f32.mrf.mxu0
      %3581 = vmatprep.mubr.bf16.mxu0 0
      %3582 = vmatmul.mubr.bf16.gmra.mxu0 %v2467
      %v3583 = vpop.f32.mrf.mxu0
      %v3584 = vadd.f32 0.0, %v3583
      %v3585 = vpop.f32.mrf.mxu0
      %v3586 = vpop.f32.mrf.mxu0
      %v3587 = vadd.f32 0.0, %v3586
      %v3588 = vpop.f32.mrf.mxu0
      %3589 = vmatprep.mubr.bf16.mxu0 0
      %3590 = vmatmul.mubr.bf16.gmra.mxu0 %v2470
      %v3591 = vpop.f32.mrf.mxu0
      %v3592 = vadd.f32 0.0, %v3591
      %v3593 = vpop.f32.mrf.mxu0
      %v3594 = vpop.f32.mrf.mxu0
      %v3595 = vadd.f32 0.0, %v3594
      %v3596 = vpop.f32.mrf.mxu0
      %3597 = vmatprep.mubr.bf16.mxu0 0
      %3598 = vmatmul.mubr.bf16.gmra.mxu0 %v2473
      %v3599 = vpop.f32.mrf.mxu0
      %v3600 = vadd.f32 0.0, %v3599
      %v3601 = vpop.f32.mrf.mxu0
      %v3602 = vpop.f32.mrf.mxu0
      %v3603 = vadd.f32 0.0, %v3602
      %v3604 = vpop.f32.mrf.mxu0
      %3605 = vdwg.mxu0
      %v3606 = vmul.f32 %v2510, %v2510
      %v3607 = vmul.f32 %v2513, %v2513
      %v3608 = vmul.f32 %v2518, %v2518
      %v3609 = vmul.f32 %v2521, %v2521
      %v3610 = vmul.f32 %v2526, %v2526
      %v3611 = vmul.f32 %v2529, %v2529
      %v3612 = vmul.f32 %v2534, %v2534
      %v3613 = vmul.f32 %v2537, %v2537
      %v3614 = vmul.f32 %v2542, %v2542
      %v3615 = vmul.f32 %v2545, %v2545
      %v3616 = vmul.f32 %v2550, %v2550
      %v3617 = vmul.f32 %v2553, %v2553
      %v3618 = vmul.f32 %v2558, %v2558
      %v3619 = vmul.f32 %v2561, %v2561
      %v3620 = vmul.f32 %v2566, %v2566
      %v3621 = vmul.f32 %v2569, %v2569
      %v3622 = vmul.f32 %v2574, %v2574
      %v3623 = vmul.f32 %v2577, %v2577
      %v3624 = vmul.f32 %v2582, %v2582
      %v3625 = vmul.f32 %v2585, %v2585
      %v3626 = vmul.f32 %v2590, %v2590
      %v3627 = vmul.f32 %v2593, %v2593
      %v3628 = vmul.f32 %v2598, %v2598
      %v3629 = vmul.f32 %v2601, %v2601
      %v3630 = vmul.f32 %v2606, %v2606
      %v3631 = vmul.f32 %v2609, %v2609
      %v3632 = vmul.f32 %v2614, %v2614
      %v3633 = vmul.f32 %v2617, %v2617
      %v3634 = vmul.f32 %v2622, %v2622
      %v3635 = vmul.f32 %v2625, %v2625
      %v3636 = vmul.f32 %v2630, %v2630
      %v3637 = vmul.f32 %v2633, %v2633
      %v3638 = vmul.f32 %v2638, %v2638
      %v3639 = vmul.f32 %v2641, %v2641
      %v3640 = vmul.f32 %v2646, %v2646
      %v3641 = vmul.f32 %v2649, %v2649
      %v3642 = vmul.f32 %v2654, %v2654
      %v3643 = vmul.f32 %v2657, %v2657
      %v3644 = vmul.f32 %v2662, %v2662
      %v3645 = vmul.f32 %v2665, %v2665
      %v3646 = vmul.f32 %v2670, %v2670
      %v3647 = vmul.f32 %v2673, %v2673
      %v3648 = vmul.f32 %v2678, %v2678
      %v3649 = vmul.f32 %v2887, %v2887
      %v3650 = vmul.f32 %v2890, %v2890
      %v3651 = vmul.f32 %v2895, %v2895
      %v3652 = vmul.f32 %v2898, %v2898
      %v3653 = vmul.f32 %v2903, %v2903
      %v3654 = vmul.f32 %v2906, %v2906
      %v3655 = vmul.f32 %v2911, %v2911
      %v3656 = vmul.f32 %v2914, %v2914
      %v3657 = vmul.f32 %v2919, %v2919
      %v3658 = vmul.f32 %v2922, %v2922
      %v3659 = vmul.f32 %v2927, %v2927
      %v3660 = vmul.f32 %v2930, %v2930
      %v3661 = vmul.f32 %v2935, %v2935
      %v3662 = vmul.f32 %v2938, %v2938
      %v3663 = vmul.f32 %v2943, %v2943
      %v3664 = vmul.f32 %v2946, %v2946
      %v3665 = vmul.f32 %v2951, %v2951
      %v3666 = vmul.f32 %v2954, %v2954
      %v3667 = vmul.f32 %v2959, %v2959
      %v3668 = vmul.f32 %v2962, %v2962
      %v3669 = vmul.f32 %v2967, %v2967
      %v3670 = vmul.f32 %v2970, %v2970
      %v3671 = vmul.f32 %v2975, %v2975
      %v3672 = vmul.f32 %v2978, %v2978
      %v3673 = vmul.f32 %v2983, %v2983
      %v3674 = vmul.f32 %v2986, %v2986
      %v3675 = vmul.f32 %v2991, %v2991
      %v3676 = vmul.f32 %v2994, %v2994
      %v3677 = vmul.f32 %v2999, %v2999
      %v3678 = vmul.f32 %v3002, %v3002
      %v3679 = vmul.f32 %v3007, %v3007
      %v3680 = vmul.f32 %v3010, %v3010
      %v3681 = vmul.f32 %v3015, %v3015
      %v3682 = vmul.f32 %v3018, %v3018
      %v3683 = vmul.f32 %v3023, %v3023
      %v3684 = vmul.f32 %v3026, %v3026
      %v3685 = vmul.f32 %v3031, %v3031
      %v3686 = vmul.f32 %v3034, %v3034
      %v3687 = vmul.f32 %v3039, %v3039
      %v3688 = vmul.f32 %v3042, %v3042
      %v3689 = vmul.f32 %v3047, %v3047
      %v3690 = vmul.f32 %v3050, %v3050
      %v3691 = vmul.f32 %v3055, %v3055
      %v3692 = vadd.f32 %v3606, %v3649
      %v3693 = vadd.f32 %v3607, %v3650
      %v3694 = vadd.f32 %v3608, %v3651
      %v3695 = vadd.f32 %v3609, %v3652
      %v3696 = vadd.f32 %v3610, %v3653
      %v3697 = vadd.f32 %v3611, %v3654
      %v3698 = vadd.f32 %v3612, %v3655
      %v3699 = vadd.f32 %v3613, %v3656
      %v3700 = vadd.f32 %v3614, %v3657
      %v3701 = vadd.f32 %v3615, %v3658
      %v3702 = vadd.f32 %v3616, %v3659
      %v3703 = vadd.f32 %v3617, %v3660
      %v3704 = vadd.f32 %v3618, %v3661
      %v3705 = vadd.f32 %v3619, %v3662
      %v3706 = vadd.f32 %v3620, %v3663
      %v3707 = vadd.f32 %v3621, %v3664
      %v3708 = vadd.f32 %v3622, %v3665
      %v3709 = vadd.f32 %v3623, %v3666
      %v3710 = vadd.f32 %v3624, %v3667
      %v3711 = vadd.f32 %v3625, %v3668
      %v3712 = vadd.f32 %v3626, %v3669
      %v3713 = vadd.f32 %v3627, %v3670
      %v3714 = vadd.f32 %v3628, %v3671
      %v3715 = vadd.f32 %v3629, %v3672
      %v3716 = vadd.f32 %v3630, %v3673
      %v3717 = vadd.f32 %v3631, %v3674
      %v3718 = vadd.f32 %v3632, %v3675
      %v3719 = vadd.f32 %v3633, %v3676
      %v3720 = vadd.f32 %v3634, %v3677
      %v3721 = vadd.f32 %v3635, %v3678
      %v3722 = vadd.f32 %v3636, %v3679
      %v3723 = vadd.f32 %v3637, %v3680
      %v3724 = vadd.f32 %v3638, %v3681
      %v3725 = vadd.f32 %v3639, %v3682
      %v3726 = vadd.f32 %v3640, %v3683
      %v3727 = vadd.f32 %v3641, %v3684
      %v3728 = vadd.f32 %v3642, %v3685
      %v3729 = vadd.f32 %v3643, %v3686
      %v3730 = vadd.f32 %v3644, %v3687
      %v3731 = vadd.f32 %v3645, %v3688
      %v3732 = vadd.f32 %v3646, %v3689
      %v3733 = vadd.f32 %v3647, %v3690
      %v3734 = vadd.f32 %v3648, %v3691
      %v3735 = vmul.f32 %v3264, %v3264
      %v3736 = vmul.f32 %v3267, %v3267
      %v3737 = vmul.f32 %v3272, %v3272
      %v3738 = vmul.f32 %v3275, %v3275
      %v3739 = vmul.f32 %v3280, %v3280
      %v3740 = vmul.f32 %v3283, %v3283
      %v3741 = vmul.f32 %v3288, %v3288
      %v3742 = vmul.f32 %v3291, %v3291
      %v3743 = vmul.f32 %v3296, %v3296
      %v3744 = vmul.f32 %v3299, %v3299
      %v3745 = vmul.f32 %v3304, %v3304
      %v3746 = vmul.f32 %v3307, %v3307
      %v3747 = vmul.f32 %v3312, %v3312
      %v3748 = vmul.f32 %v3315, %v3315
      %v3749 = vmul.f32 %v3320, %v3320
      %v3750 = vmul.f32 %v3323, %v3323
      %v3751 = vmul.f32 %v3328, %v3328
      %v3752 = vmul.f32 %v3331, %v3331
      %v3753 = vmul.f32 %v3336, %v3336
      %v3754 = vmul.f32 %v3339, %v3339
      %v3755 = vmul.f32 %v3344, %v3344
      %v3756 = vmul.f32 %v3347, %v3347
      %v3757 = vmul.f32 %v3352, %v3352
      %v3758 = vmul.f32 %v3355, %v3355
      %v3759 = vmul.f32 %v3360, %v3360
      %v3760 = vmul.f32 %v3363, %v3363
      %v3761 = vmul.f32 %v3368, %v3368
      %v3762 = vmul.f32 %v3371, %v3371
      %v3763 = vmul.f32 %v3376, %v3376
      %v3764 = vmul.f32 %v3379, %v3379
      %v3765 = vmul.f32 %v3384, %v3384
      %v3766 = vmul.f32 %v3387, %v3387
      %v3767 = vmul.f32 %v3392, %v3392
      %v3768 = vmul.f32 %v3395, %v3395
      %v3769 = vmul.f32 %v3400, %v3400
      %v3770 = vmul.f32 %v3403, %v3403
      %v3771 = vmul.f32 %v3408, %v3408
      %v3772 = vmul.f32 %v3411, %v3411
      %v3773 = vmul.f32 %v3416, %v3416
      %v3774 = vmul.f32 %v3419, %v3419
      %v3775 = vmul.f32 %v3424, %v3424
      %v3776 = vmul.f32 %v3427, %v3427
      %v3777 = vmul.f32 %v3432, %v3432
      %v3778 = vadd.f32 %v3692, %v3735
      %v3779 = vadd.f32 %v3693, %v3736
      %v3780 = vadd.f32 %v3694, %v3737
      %v3781 = vadd.f32 %v3695, %v3738
      %v3782 = vadd.f32 %v3696, %v3739
      %v3783 = vadd.f32 %v3697, %v3740
      %v3784 = vadd.f32 %v3698, %v3741
      %v3785 = vadd.f32 %v3699, %v3742
      %v3786 = vadd.f32 %v3700, %v3743
      %v3787 = vadd.f32 %v3701, %v3744
      %v3788 = vadd.f32 %v3702, %v3745
      %v3789 = vadd.f32 %v3703, %v3746
      %v3790 = vadd.f32 %v3704, %v3747
      %v3791 = vadd.f32 %v3705, %v3748
      %v3792 = vadd.f32 %v3706, %v3749
      %v3793 = vadd.f32 %v3707, %v3750
      %v3794 = vadd.f32 %v3708, %v3751
      %v3795 = vadd.f32 %v3709, %v3752
      %v3796 = vadd.f32 %v3710, %v3753
      %v3797 = vadd.f32 %v3711, %v3754
      %v3798 = vadd.f32 %v3712, %v3755
      %v3799 = vadd.f32 %v3713, %v3756
      %v3800 = vadd.f32 %v3714, %v3757
      %v3801 = vadd.f32 %v3715, %v3758
      %v3802 = vadd.f32 %v3716, %v3759
      %v3803 = vadd.f32 %v3717, %v3760
      %v3804 = vadd.f32 %v3718, %v3761
      %v3805 = vadd.f32 %v3719, %v3762
      %v3806 = vadd.f32 %v3720, %v3763
      %v3807 = vadd.f32 %v3721, %v3764
      %v3808 = vadd.f32 %v3722, %v3765
      %v3809 = vadd.f32 %v3723, %v3766
      %v3810 = vadd.f32 %v3724, %v3767
      %v3811 = vadd.f32 %v3725, %v3768
      %v3812 = vadd.f32 %v3726, %v3769
      %v3813 = vadd.f32 %v3727, %v3770
      %v3814 = vadd.f32 %v3728, %v3771
      %v3815 = vadd.f32 %v3729, %v3772
      %v3816 = vadd.f32 %v3730, %v3773
      %v3817 = vadd.f32 %v3731, %v3774
      %v3818 = vadd.f32 %v3732, %v3775
      %v3819 = vadd.f32 %v3733, %v3776
      %v3820 = vadd.f32 %v3734, %v3777
      %v3821 = vadd.f32 %v3778, 1e-12
      %v3822 = vadd.f32 %v3779, 1e-12
      %v3823 = vadd.f32 %v3780, 1e-12
      %v3824 = vadd.f32 %v3781, 1e-12
      %v3825 = vadd.f32 %v3782, 1e-12
      %v3826 = vadd.f32 %v3783, 1e-12
      %v3827 = vadd.f32 %v3784, 1e-12
      %v3828 = vadd.f32 %v3785, 1e-12
      %v3829 = vadd.f32 %v3786, 1e-12
      %v3830 = vadd.f32 %v3787, 1e-12
      %v3831 = vadd.f32 %v3788, 1e-12
      %v3832 = vadd.f32 %v3789, 1e-12
      %v3833 = vadd.f32 %v3790, 1e-12
      %v3834 = vadd.f32 %v3791, 1e-12
      %v3835 = vadd.f32 %v3792, 1e-12
      %v3836 = vadd.f32 %v3793, 1e-12
      %v3837 = vadd.f32 %v3794, 1e-12
      %v3838 = vadd.f32 %v3795, 1e-12
      %v3839 = vadd.f32 %v3796, 1e-12
      %v3840 = vadd.f32 %v3797, 1e-12
      %v3841 = vadd.f32 %v3798, 1e-12
      %v3842 = vadd.f32 %v3799, 1e-12
      %v3843 = vadd.f32 %v3800, 1e-12
      %v3844 = vadd.f32 %v3801, 1e-12
      %v3845 = vadd.f32 %v3802, 1e-12
      %v3846 = vadd.f32 %v3803, 1e-12
      %v3847 = vadd.f32 %v3804, 1e-12
      %v3848 = vadd.f32 %v3805, 1e-12
      %v3849 = vadd.f32 %v3806, 1e-12
      %v3850 = vadd.f32 %v3807, 1e-12
      %v3851 = vadd.f32 %v3808, 1e-12
      %v3852 = vadd.f32 %v3809, 1e-12
      %v3853 = vadd.f32 %v3810, 1e-12
      %v3854 = vadd.f32 %v3811, 1e-12
      %v3855 = vadd.f32 %v3812, 1e-12
      %v3856 = vadd.f32 %v3813, 1e-12
      %v3857 = vadd.f32 %v3814, 1e-12
      %v3858 = vadd.f32 %v3815, 1e-12
      %v3859 = vadd.f32 %v3816, 1e-12
      %v3860 = vadd.f32 %v3817, 1e-12
      %v3861 = vadd.f32 %v3818, 1e-12
      %v3862 = vadd.f32 %v3819, 1e-12
      %v3863 = vadd.f32 %v3820, 1e-12
      %v3864 = vrsqrt.pop %v3821
      %v3865 = vrsqrt.pop %v3822
      %v3866 = vrsqrt.pop %v3823
      %v3867 = vrsqrt.pop %v3824
      %v3868 = vrsqrt.pop %v3825
      %v3869 = vrsqrt.pop %v3826
      %v3870 = vrsqrt.pop %v3827
      %v3871 = vrsqrt.pop %v3828
      %v3872 = vrsqrt.pop %v3829
      %v3873 = vrsqrt.pop %v3830
      %v3874 = vrsqrt.pop %v3831
      %v3875 = vrsqrt.pop %v3832
      %v3876 = vrsqrt.pop %v3833
      %v3877 = vrsqrt.pop %v3834
      %v3878 = vrsqrt.pop %v3835
      %v3879 = vrsqrt.pop %v3836
      %v3880 = vrsqrt.pop %v3837
      %v3881 = vrsqrt.pop %v3838
      %v3882 = vrsqrt.pop %v3839
      %v3883 = vrsqrt.pop %v3840
      %v3884 = vrsqrt.pop %v3841
      %v3885 = vrsqrt.pop %v3842
      %v3886 = vrsqrt.pop %v3843
      %v3887 = vrsqrt.pop %v3844
      %v3888 = vrsqrt.pop %v3845
      %v3889 = vrsqrt.pop %v3846
      %v3890 = vrsqrt.pop %v3847
      %v3891 = vrsqrt.pop %v3848
      %v3892 = vrsqrt.pop %v3849
      %v3893 = vrsqrt.pop %v3850
      %v3894 = vrsqrt.pop %v3851
      %v3895 = vrsqrt.pop %v3852
      %v3896 = vrsqrt.pop %v3853
      %v3897 = vrsqrt.pop %v3854
      %v3898 = vrsqrt.pop %v3855
      %v3899 = vrsqrt.pop %v3856
      %v3900 = vrsqrt.pop %v3857
      %v3901 = vrsqrt.pop %v3858
      %v3902 = vrsqrt.pop %v3859
      %v3903 = vrsqrt.pop %v3860
      %v3904 = vrsqrt.pop %v3861
      %v3905 = vrsqrt.pop %v3862
      %v3906 = vrsqrt.pop %v3863
      %3908 = vset.pattern.permute.xlu0 0
      %3909 = vperm.xlu0 %3908, %v2087
      %v3910 = vpop.permute.xlu0 %3909
      %3913 = vset.pattern.permute.xlu0 0
      %3914 = vperm.xlu0 %3913, %v2088
      %v3915 = vpop.permute.xlu0 %3914
      %3918 = vset.pattern.permute.xlu0 0
      %3919 = vperm.xlu0 %3918, %v2089
      %v3920 = vpop.permute.xlu0 %3919
      %3923 = vset.pattern.permute.xlu0 0
      %3924 = vperm.xlu0 %3923, %v2090
      %v3925 = vpop.permute.xlu0 %3924
      %3928 = vset.pattern.permute.xlu0 0
      %3929 = vperm.xlu0 %3928, %v2091
      %v3930 = vpop.permute.xlu0 %3929
      %3933 = vset.pattern.permute.xlu0 0
      %3934 = vperm.xlu0 %3933, %v2092
      %v3935 = vpop.permute.xlu0 %3934
      %3938 = vset.pattern.permute.xlu0 0
      %3939 = vperm.xlu0 %3938, %v2093
      %v3940 = vpop.permute.xlu0 %3939
      %3943 = vset.pattern.permute.xlu0 0
      %3944 = vperm.xlu0 %3943, %v2094
      %v3945 = vpop.permute.xlu0 %3944
      %3948 = vset.pattern.permute.xlu0 0
      %3949 = vperm.xlu0 %3948, %v2095
      %v3950 = vpop.permute.xlu0 %3949
      %3953 = vset.pattern.permute.xlu0 0
      %3954 = vperm.xlu0 %3953, %v2096
      %v3955 = vpop.permute.xlu0 %3954
      %3958 = vset.pattern.permute.xlu0 0
      %3959 = vperm.xlu0 %3958, %v2097
      %v3960 = vpop.permute.xlu0 %3959
      %3963 = vset.pattern.permute.xlu0 0
      %3964 = vperm.xlu0 %3963, %v2098
      %v3965 = vpop.permute.xlu0 %3964
      %3968 = vset.pattern.permute.xlu0 0
      %3969 = vperm.xlu0 %3968, %v2099
      %v3970 = vpop.permute.xlu0 %3969
      %3973 = vset.pattern.permute.xlu0 0
      %3974 = vperm.xlu0 %3973, %v2100
      %v3975 = vpop.permute.xlu0 %3974
      %3978 = vset.pattern.permute.xlu0 0
      %3979 = vperm.xlu0 %3978, %v2101
      %v3980 = vpop.permute.xlu0 %3979
      %3983 = vset.pattern.permute.xlu0 0
      %3984 = vperm.xlu0 %3983, %v2102
      %v3985 = vpop.permute.xlu0 %3984
      %3988 = vset.pattern.permute.xlu0 0
      %3989 = vperm.xlu0 %3988, %v2103
      %v3990 = vpop.permute.xlu0 %3989
      %3993 = vset.pattern.permute.xlu0 0
      %3994 = vperm.xlu0 %3993, %v2104
      %v3995 = vpop.permute.xlu0 %3994
      %3998 = vset.pattern.permute.xlu0 0
      %3999 = vperm.xlu0 %3998, %v2105
      %v4000 = vpop.permute.xlu0 %3999
      %4003 = vset.pattern.permute.xlu0 0
      %4004 = vperm.xlu0 %4003, %v2106
      %v4005 = vpop.permute.xlu0 %4004
      %4008 = vset.pattern.permute.xlu0 0
      %4009 = vperm.xlu0 %4008, %v2107
      %v4010 = vpop.permute.xlu0 %4009
      %4013 = vset.pattern.permute.xlu0 0
      %4014 = vperm.xlu0 %4013, %v2108
      %v4015 = vpop.permute.xlu0 %4014
      %4018 = vset.pattern.permute.xlu0 0
      %4019 = vperm.xlu0 %4018, %v2109
      %v4020 = vpop.permute.xlu0 %4019
      %4023 = vset.pattern.permute.xlu0 0
      %4024 = vperm.xlu0 %4023, %v2110
      %v4025 = vpop.permute.xlu0 %4024
      %4028 = vset.pattern.permute.xlu0 0
      %4029 = vperm.xlu0 %4028, %v2111
      %v4030 = vpop.permute.xlu0 %4029
      %4033 = vset.pattern.permute.xlu0 0
      %4034 = vperm.xlu0 %4033, %v2112
      %v4035 = vpop.permute.xlu0 %4034
      %4038 = vset.pattern.permute.xlu0 0
      %4039 = vperm.xlu0 %4038, %v2113
      %v4040 = vpop.permute.xlu0 %4039
      %4043 = vset.pattern.permute.xlu0 0
      %4044 = vperm.xlu0 %4043, %v2114
      %v4045 = vpop.permute.xlu0 %4044
      %4048 = vset.pattern.permute.xlu0 0
      %4049 = vperm.xlu0 %4048, %v2115
      %v4050 = vpop.permute.xlu0 %4049
      %4053 = vset.pattern.permute.xlu0 0
      %4054 = vperm.xlu0 %4053, %v2116
      %v4055 = vpop.permute.xlu0 %4054
      %4058 = vset.pattern.permute.xlu0 0
      %4059 = vperm.xlu0 %4058, %v2117
      %v4060 = vpop.permute.xlu0 %4059
      %4063 = vset.pattern.permute.xlu0 0
      %4064 = vperm.xlu0 %4063, %v2118
      %v4065 = vpop.permute.xlu0 %4064
      %4068 = vset.pattern.permute.xlu0 0
      %4069 = vperm.xlu0 %4068, %v2119
      %v4070 = vpop.permute.xlu0 %4069
      %4073 = vset.pattern.permute.xlu0 0
      %4074 = vperm.xlu0 %4073, %v2120
      %v4075 = vpop.permute.xlu0 %4074
      %4078 = vset.pattern.permute.xlu0 0
      %4079 = vperm.xlu0 %4078, %v2121
      %v4080 = vpop.permute.xlu0 %4079
      %4083 = vset.pattern.permute.xlu0 0
      %4084 = vperm.xlu0 %4083, %v2122
      %v4085 = vpop.permute.xlu0 %4084
      %4088 = vset.pattern.permute.xlu0 0
      %4089 = vperm.xlu0 %4088, %v2123
      %v4090 = vpop.permute.xlu0 %4089
      %4093 = vset.pattern.permute.xlu0 0
      %4094 = vperm.xlu0 %4093, %v2124
      %v4095 = vpop.permute.xlu0 %4094
      %4098 = vset.pattern.permute.xlu0 0
      %4099 = vperm.xlu0 %4098, %v2125
      %v4100 = vpop.permute.xlu0 %4099
      %4103 = vset.pattern.permute.xlu0 0
      %4104 = vperm.xlu0 %4103, %v2126
      %v4105 = vpop.permute.xlu0 %4104
      %4108 = vset.pattern.permute.xlu0 0
      %4109 = vperm.xlu0 %4108, %v2127
      %v4110 = vpop.permute.xlu0 %4109
      %4113 = vset.pattern.permute.xlu0 0
      %4114 = vperm.xlu0 %4113, %v2128
      %v4115 = vpop.permute.xlu0 %4114
      %4118 = vset.pattern.permute.xlu0 0
      %4119 = vperm.xlu0 %4118, %v2129
      %v4120 = vpop.permute.xlu0 %4119
      %v4122 = vmul.f32 %v3910, %v3864
      %v4123 = vmul.f32 %v3915, %v3865
      %v4124 = vmul.f32 %v3920, %v3866
      %v4125 = vmul.f32 %v3925, %v3867
      %v4126 = vmul.f32 %v3930, %v3868
      %v4127 = vmul.f32 %v3935, %v3869
      %v4128 = vmul.f32 %v3940, %v3870
      %v4129 = vmul.f32 %v3945, %v3871
      %v4130 = vmul.f32 %v3950, %v3872
      %v4131 = vmul.f32 %v3955, %v3873
      %v4132 = vmul.f32 %v3960, %v3874
      %v4133 = vmul.f32 %v3965, %v3875
      %v4134 = vmul.f32 %v3970, %v3876
      %v4135 = vmul.f32 %v3975, %v3877
      %v4136 = vmul.f32 %v3980, %v3878
      %v4137 = vmul.f32 %v3985, %v3879
      %v4138 = vmul.f32 %v3990, %v3880
      %v4139 = vmul.f32 %v3995, %v3881
      %v4140 = vmul.f32 %v4000, %v3882
      %v4141 = vmul.f32 %v4005, %v3883
      %v4142 = vmul.f32 %v4010, %v3884
      %v4143 = vmul.f32 %v4015, %v3885
      %v4144 = vmul.f32 %v4020, %v3886
      %v4145 = vmul.f32 %v4025, %v3887
      %v4146 = vmul.f32 %v4030, %v3888
      %v4147 = vmul.f32 %v4035, %v3889
      %v4148 = vmul.f32 %v4040, %v3890
      %v4149 = vmul.f32 %v4045, %v3891
      %v4150 = vmul.f32 %v4050, %v3892
      %v4151 = vmul.f32 %v4055, %v3893
      %v4152 = vmul.f32 %v4060, %v3894
      %v4153 = vmul.f32 %v4065, %v3895
      %v4154 = vmul.f32 %v4070, %v3896
      %v4155 = vmul.f32 %v4075, %v3897
      %v4156 = vmul.f32 %v4080, %v3898
      %v4157 = vmul.f32 %v4085, %v3899
      %v4158 = vmul.f32 %v4090, %v3900
      %v4159 = vmul.f32 %v4095, %v3901
      %v4160 = vmul.f32 %v4100, %v3902
      %v4161 = vmul.f32 %v4105, %v3903
      %v4162 = vmul.f32 %v4110, %v3904
      %v4163 = vmul.f32 %v4115, %v3905
      %v4164 = vmul.f32 %v4120, %v3906
      %4166 = vset.pattern.permute.xlu0 0
      %4167 = vperm.xlu0 %4166, %v2044
      %v4168 = vpop.permute.xlu0 %4167
      %4171 = vset.pattern.permute.xlu0 0
      %4172 = vperm.xlu0 %4171, %v2045
      %v4173 = vpop.permute.xlu0 %4172
      %4176 = vset.pattern.permute.xlu0 0
      %4177 = vperm.xlu0 %4176, %v2046
      %v4178 = vpop.permute.xlu0 %4177
      %4181 = vset.pattern.permute.xlu0 0
      %4182 = vperm.xlu0 %4181, %v2047
      %v4183 = vpop.permute.xlu0 %4182
      %4186 = vset.pattern.permute.xlu0 0
      %4187 = vperm.xlu0 %4186, %v2048
      %v4188 = vpop.permute.xlu0 %4187
      %4191 = vset.pattern.permute.xlu0 0
      %4192 = vperm.xlu0 %4191, %v2049
      %v4193 = vpop.permute.xlu0 %4192
      %4196 = vset.pattern.permute.xlu0 0
      %4197 = vperm.xlu0 %4196, %v2050
      %v4198 = vpop.permute.xlu0 %4197
      %4201 = vset.pattern.permute.xlu0 0
      %4202 = vperm.xlu0 %4201, %v2051
      %v4203 = vpop.permute.xlu0 %4202
      %4206 = vset.pattern.permute.xlu0 0
      %4207 = vperm.xlu0 %4206, %v2052
      %v4208 = vpop.permute.xlu0 %4207
      %4211 = vset.pattern.permute.xlu0 0
      %4212 = vperm.xlu0 %4211, %v2053
      %v4213 = vpop.permute.xlu0 %4212
      %4216 = vset.pattern.permute.xlu0 0
      %4217 = vperm.xlu0 %4216, %v2054
      %v4218 = vpop.permute.xlu0 %4217
      %4221 = vset.pattern.permute.xlu0 0
      %4222 = vperm.xlu0 %4221, %v2055
      %v4223 = vpop.permute.xlu0 %4222
      %4226 = vset.pattern.permute.xlu0 0
      %4227 = vperm.xlu0 %4226, %v2056
      %v4228 = vpop.permute.xlu0 %4227
      %4231 = vset.pattern.permute.xlu0 0
      %4232 = vperm.xlu0 %4231, %v2057
      %v4233 = vpop.permute.xlu0 %4232
      %4236 = vset.pattern.permute.xlu0 0
      %4237 = vperm.xlu0 %4236, %v2058
      %v4238 = vpop.permute.xlu0 %4237
      %4241 = vset.pattern.permute.xlu0 0
      %4242 = vperm.xlu0 %4241, %v2059
      %v4243 = vpop.permute.xlu0 %4242
      %4246 = vset.pattern.permute.xlu0 0
      %4247 = vperm.xlu0 %4246, %v2060
      %v4248 = vpop.permute.xlu0 %4247
      %4251 = vset.pattern.permute.xlu0 0
      %4252 = vperm.xlu0 %4251, %v2061
      %v4253 = vpop.permute.xlu0 %4252
      %4256 = vset.pattern.permute.xlu0 0
      %4257 = vperm.xlu0 %4256, %v2062
      %v4258 = vpop.permute.xlu0 %4257
      %4261 = vset.pattern.permute.xlu0 0
      %4262 = vperm.xlu0 %4261, %v2063
      %v4263 = vpop.permute.xlu0 %4262
      %4266 = vset.pattern.permute.xlu0 0
      %4267 = vperm.xlu0 %4266, %v2064
      %v4268 = vpop.permute.xlu0 %4267
      %4271 = vset.pattern.permute.xlu0 0
      %4272 = vperm.xlu0 %4271, %v2065
      %v4273 = vpop.permute.xlu0 %4272
      %4276 = vset.pattern.permute.xlu0 0
      %4277 = vperm.xlu0 %4276, %v2066
      %v4278 = vpop.permute.xlu0 %4277
      %4281 = vset.pattern.permute.xlu0 0
      %4282 = vperm.xlu0 %4281, %v2067
      %v4283 = vpop.permute.xlu0 %4282
      %4286 = vset.pattern.permute.xlu0 0
      %4287 = vperm.xlu0 %4286, %v2068
      %v4288 = vpop.permute.xlu0 %4287
      %4291 = vset.pattern.permute.xlu0 0
      %4292 = vperm.xlu0 %4291, %v2069
      %v4293 = vpop.permute.xlu0 %4292
      %4296 = vset.pattern.permute.xlu0 0
      %4297 = vperm.xlu0 %4296, %v2070
      %v4298 = vpop.permute.xlu0 %4297
      %4301 = vset.pattern.permute.xlu0 0
      %4302 = vperm.xlu0 %4301, %v2071
      %v4303 = vpop.permute.xlu0 %4302
      %4306 = vset.pattern.permute.xlu0 0
      %4307 = vperm.xlu0 %4306, %v2072
      %v4308 = vpop.permute.xlu0 %4307
      %4311 = vset.pattern.permute.xlu0 0
      %4312 = vperm.xlu0 %4311, %v2073
      %v4313 = vpop.permute.xlu0 %4312
      %4316 = vset.pattern.permute.xlu0 0
      %4317 = vperm.xlu0 %4316, %v2074
      %v4318 = vpop.permute.xlu0 %4317
      %4321 = vset.pattern.permute.xlu0 0
      %4322 = vperm.xlu0 %4321, %v2075
      %v4323 = vpop.permute.xlu0 %4322
      %4326 = vset.pattern.permute.xlu0 0
      %4327 = vperm.xlu0 %4326, %v2076
      %v4328 = vpop.permute.xlu0 %4327
      %4331 = vset.pattern.permute.xlu0 0
      %4332 = vperm.xlu0 %4331, %v2077
      %v4333 = vpop.permute.xlu0 %4332
      %4336 = vset.pattern.permute.xlu0 0
      %4337 = vperm.xlu0 %4336, %v2078
      %v4338 = vpop.permute.xlu0 %4337
      %4341 = vset.pattern.permute.xlu0 0
      %4342 = vperm.xlu0 %4341, %v2079
      %v4343 = vpop.permute.xlu0 %4342
      %4346 = vset.pattern.permute.xlu0 0
      %4347 = vperm.xlu0 %4346, %v2080
      %v4348 = vpop.permute.xlu0 %4347
      %4351 = vset.pattern.permute.xlu0 0
      %4352 = vperm.xlu0 %4351, %v2081
      %v4353 = vpop.permute.xlu0 %4352
      %4356 = vset.pattern.permute.xlu0 0
      %4357 = vperm.xlu0 %4356, %v2082
      %v4358 = vpop.permute.xlu0 %4357
      %4361 = vset.pattern.permute.xlu0 0
      %4362 = vperm.xlu0 %4361, %v2083
      %v4363 = vpop.permute.xlu0 %4362
      %4366 = vset.pattern.permute.xlu0 0
      %4367 = vperm.xlu0 %4366, %v2084
      %v4368 = vpop.permute.xlu0 %4367
      %4371 = vset.pattern.permute.xlu0 0
      %4372 = vperm.xlu0 %4371, %v2085
      %v4373 = vpop.permute.xlu0 %4372
      %4376 = vset.pattern.permute.xlu0 0
      %4377 = vperm.xlu0 %4376, %v2086
      %v4378 = vpop.permute.xlu0 %4377
      %v4380 = vadd.f32 %v4168, %v4122
      %v4381 = vadd.f32 %v4173, %v4123
      %v4382 = vadd.f32 %v4178, %v4124
      %v4383 = vadd.f32 %v4183, %v4125
      %v4384 = vadd.f32 %v4188, %v4126
      %v4385 = vadd.f32 %v4193, %v4127
      %v4386 = vadd.f32 %v4198, %v4128
      %v4387 = vadd.f32 %v4203, %v4129
      %v4388 = vadd.f32 %v4208, %v4130
      %v4389 = vadd.f32 %v4213, %v4131
      %v4390 = vadd.f32 %v4218, %v4132
      %v4391 = vadd.f32 %v4223, %v4133
      %v4392 = vadd.f32 %v4228, %v4134
      %v4393 = vadd.f32 %v4233, %v4135
      %v4394 = vadd.f32 %v4238, %v4136
      %v4395 = vadd.f32 %v4243, %v4137
      %v4396 = vadd.f32 %v4248, %v4138
      %v4397 = vadd.f32 %v4253, %v4139
      %v4398 = vadd.f32 %v4258, %v4140
      %v4399 = vadd.f32 %v4263, %v4141
      %v4400 = vadd.f32 %v4268, %v4142
      %v4401 = vadd.f32 %v4273, %v4143
      %v4402 = vadd.f32 %v4278, %v4144
      %v4403 = vadd.f32 %v4283, %v4145
      %v4404 = vadd.f32 %v4288, %v4146
      %v4405 = vadd.f32 %v4293, %v4147
      %v4406 = vadd.f32 %v4298, %v4148
      %v4407 = vadd.f32 %v4303, %v4149
      %v4408 = vadd.f32 %v4308, %v4150
      %v4409 = vadd.f32 %v4313, %v4151
      %v4410 = vadd.f32 %v4318, %v4152
      %v4411 = vadd.f32 %v4323, %v4153
      %v4412 = vadd.f32 %v4328, %v4154
      %v4413 = vadd.f32 %v4333, %v4155
      %v4414 = vadd.f32 %v4338, %v4156
      %v4415 = vadd.f32 %v4343, %v4157
      %v4416 = vadd.f32 %v4348, %v4158
      %v4417 = vadd.f32 %v4353, %v4159
      %v4418 = vadd.f32 %v4358, %v4160
      %v4419 = vadd.f32 %v4363, %v4161
      %v4420 = vadd.f32 %v4368, %v4162
      %v4421 = vadd.f32 %v4373, %v4163
      %v4422 = vadd.f32 %v4378, %v4164
      %v4423 = vmul.f32 %v2510, %v4380
      %v4424 = vmul.f32 %v2513, %v4381
      %v4425 = vmul.f32 %v2518, %v4382
      %v4426 = vmul.f32 %v2521, %v4383
      %v4427 = vmul.f32 %v2526, %v4384
      %v4428 = vmul.f32 %v2529, %v4385
      %v4429 = vmul.f32 %v2534, %v4386
      %v4430 = vmul.f32 %v2537, %v4387
      %v4431 = vmul.f32 %v2542, %v4388
      %v4432 = vmul.f32 %v2545, %v4389
      %v4433 = vmul.f32 %v2550, %v4390
      %v4434 = vmul.f32 %v2553, %v4391
      %v4435 = vmul.f32 %v2558, %v4392
      %v4436 = vmul.f32 %v2561, %v4393
      %v4437 = vmul.f32 %v2566, %v4394
      %v4438 = vmul.f32 %v2569, %v4395
      %v4439 = vmul.f32 %v2574, %v4396
      %v4440 = vmul.f32 %v2577, %v4397
      %v4441 = vmul.f32 %v2582, %v4398
      %v4442 = vmul.f32 %v2585, %v4399
      %v4443 = vmul.f32 %v2590, %v4400
      %v4444 = vmul.f32 %v2593, %v4401
      %v4445 = vmul.f32 %v2598, %v4402
      %v4446 = vmul.f32 %v2601, %v4403
      %v4447 = vmul.f32 %v2606, %v4404
      %v4448 = vmul.f32 %v2609, %v4405
      %v4449 = vmul.f32 %v2614, %v4406
      %v4450 = vmul.f32 %v2617, %v4407
      %v4451 = vmul.f32 %v2622, %v4408
      %v4452 = vmul.f32 %v2625, %v4409
      %v4453 = vmul.f32 %v2630, %v4410
      %v4454 = vmul.f32 %v2633, %v4411
      %v4455 = vmul.f32 %v2638, %v4412
      %v4456 = vmul.f32 %v2641, %v4413
      %v4457 = vmul.f32 %v2646, %v4414
      %v4458 = vmul.f32 %v2649, %v4415
      %v4459 = vmul.f32 %v2654, %v4416
      %v4460 = vmul.f32 %v2657, %v4417
      %v4461 = vmul.f32 %v2662, %v4418
      %v4462 = vmul.f32 %v2665, %v4419
      %v4463 = vmul.f32 %v2670, %v4420
      %v4464 = vmul.f32 %v2673, %v4421
      %v4465 = vmul.f32 %v2678, %v4422
      %v4466 = vmul.f32 %v2887, %v4380
      %v4467 = vmul.f32 %v2890, %v4381
      %v4468 = vmul.f32 %v2895, %v4382
      %v4469 = vmul.f32 %v2898, %v4383
      %v4470 = vmul.f32 %v2903, %v4384
      %v4471 = vmul.f32 %v2906, %v4385
      %v4472 = vmul.f32 %v2911, %v4386
      %v4473 = vmul.f32 %v2914, %v4387
      %v4474 = vmul.f32 %v2919, %v4388
      %v4475 = vmul.f32 %v2922, %v4389
      %v4476 = vmul.f32 %v2927, %v4390
      %v4477 = vmul.f32 %v2930, %v4391
      %v4478 = vmul.f32 %v2935, %v4392
      %v4479 = vmul.f32 %v2938, %v4393
      %v4480 = vmul.f32 %v2943, %v4394
      %v4481 = vmul.f32 %v2946, %v4395
      %v4482 = vmul.f32 %v2951, %v4396
      %v4483 = vmul.f32 %v2954, %v4397
      %v4484 = vmul.f32 %v2959, %v4398
      %v4485 = vmul.f32 %v2962, %v4399
      %v4486 = vmul.f32 %v2967, %v4400
      %v4487 = vmul.f32 %v2970, %v4401
      %v4488 = vmul.f32 %v2975, %v4402
      %v4489 = vmul.f32 %v2978, %v4403
      %v4490 = vmul.f32 %v2983, %v4404
      %v4491 = vmul.f32 %v2986, %v4405
      %v4492 = vmul.f32 %v2991, %v4406
      %v4493 = vmul.f32 %v2994, %v4407
      %v4494 = vmul.f32 %v2999, %v4408
      %v4495 = vmul.f32 %v3002, %v4409
      %v4496 = vmul.f32 %v3007, %v4410
      %v4497 = vmul.f32 %v3010, %v4411
      %v4498 = vmul.f32 %v3015, %v4412
      %v4499 = vmul.f32 %v3018, %v4413
      %v4500 = vmul.f32 %v3023, %v4414
      %v4501 = vmul.f32 %v3026, %v4415
      %v4502 = vmul.f32 %v3031, %v4416
      %v4503 = vmul.f32 %v3034, %v4417
      %v4504 = vmul.f32 %v3039, %v4418
      %v4505 = vmul.f32 %v3042, %v4419
      %v4506 = vmul.f32 %v3047, %v4420
      %v4507 = vmul.f32 %v3050, %v4421
      %v4508 = vmul.f32 %v3055, %v4422
      %v4509 = vmul.f32 %v3264, %v4380
      %v4510 = vmul.f32 %v3267, %v4381
      %v4511 = vmul.f32 %v3272, %v4382
      %v4512 = vmul.f32 %v3275, %v4383
      %v4513 = vmul.f32 %v3280, %v4384
      %v4514 = vmul.f32 %v3283, %v4385
      %v4515 = vmul.f32 %v3288, %v4386
      %v4516 = vmul.f32 %v3291, %v4387
      %v4517 = vmul.f32 %v3296, %v4388
      %v4518 = vmul.f32 %v3299, %v4389
      %v4519 = vmul.f32 %v3304, %v4390
      %v4520 = vmul.f32 %v3307, %v4391
      %v4521 = vmul.f32 %v3312, %v4392
      %v4522 = vmul.f32 %v3315, %v4393
      %v4523 = vmul.f32 %v3320, %v4394
      %v4524 = vmul.f32 %v3323, %v4395
      %v4525 = vmul.f32 %v3328, %v4396
      %v4526 = vmul.f32 %v3331, %v4397
      %v4527 = vmul.f32 %v3336, %v4398
      %v4528 = vmul.f32 %v3339, %v4399
      %v4529 = vmul.f32 %v3344, %v4400
      %v4530 = vmul.f32 %v3347, %v4401
      %v4531 = vmul.f32 %v3352, %v4402
      %v4532 = vmul.f32 %v3355, %v4403
      %v4533 = vmul.f32 %v3360, %v4404
      %v4534 = vmul.f32 %v3363, %v4405
      %v4535 = vmul.f32 %v3368, %v4406
      %v4536 = vmul.f32 %v3371, %v4407
      %v4537 = vmul.f32 %v3376, %v4408
      %v4538 = vmul.f32 %v3379, %v4409
      %v4539 = vmul.f32 %v3384, %v4410
      %v4540 = vmul.f32 %v3387, %v4411
      %v4541 = vmul.f32 %v3392, %v4412
      %v4542 = vmul.f32 %v3395, %v4413
      %v4543 = vmul.f32 %v3400, %v4414
      %v4544 = vmul.f32 %v3403, %v4415
      %v4545 = vmul.f32 %v3408, %v4416
      %v4546 = vmul.f32 %v3411, %v4417
      %v4547 = vmul.f32 %v3416, %v4418
      %v4548 = vmul.f32 %v3419, %v4419
      %v4549 = vmul.f32 %v3424, %v4420
      %v4550 = vmul.f32 %v3427, %v4421
      %v4551 = vmul.f32 %v3432, %v4422
      %v4552 = vmul.f32 %v4423, %v2681
      %v4553 = vmul.f32 %v4424, %v2686
      %v4554 = vmul.f32 %v4425, %v2689
      %v4555 = vmul.f32 %v4426, %v2694
      %v4556 = vmul.f32 %v4427, %v2697
      %v4557 = vmul.f32 %v4428, %v2702
      %v4558 = vmul.f32 %v4429, %v2705
      %v4559 = vmul.f32 %v4430, %v2710
      %v4560 = vmul.f32 %v4431, %v2713
      %v4561 = vmul.f32 %v4432, %v2718
      %v4562 = vmul.f32 %v4433, %v2721
      %v4563 = vmul.f32 %v4434, %v2726
      %v4564 = vmul.f32 %v4435, %v2729
      %v4565 = vmul.f32 %v4436, %v2734
      %v4566 = vmul.f32 %v4437, %v2737
      %v4567 = vmul.f32 %v4438, %v2742
      %v4568 = vmul.f32 %v4439, %v2745
      %v4569 = vmul.f32 %v4440, %v2750
      %v4570 = vmul.f32 %v4441, %v2753
      %v4571 = vmul.f32 %v4442, %v2758
      %v4572 = vmul.f32 %v4443, %v2761
      %v4573 = vmul.f32 %v4444, %v2766
      %v4574 = vmul.f32 %v4445, %v2769
      %v4575 = vmul.f32 %v4446, %v2774
      %v4576 = vmul.f32 %v4447, %v2777
      %v4577 = vmul.f32 %v4448, %v2782
      %v4578 = vmul.f32 %v4449, %v2785
      %v4579 = vmul.f32 %v4450, %v2790
      %v4580 = vmul.f32 %v4451, %v2793
      %v4581 = vmul.f32 %v4452, %v2798
      %v4582 = vmul.f32 %v4453, %v2801
      %v4583 = vmul.f32 %v4454, %v2806
      %v4584 = vmul.f32 %v4455, %v2809
      %v4585 = vmul.f32 %v4456, %v2814
      %v4586 = vmul.f32 %v4457, %v2817
      %v4587 = vmul.f32 %v4458, %v2822
      %v4588 = vmul.f32 %v4459, %v2825
      %v4589 = vmul.f32 %v4460, %v2830
      %v4590 = vmul.f32 %v4461, %v2833
      %v4591 = vmul.f32 %v4462, %v2838
      %v4592 = vmul.f32 %v4463, %v2841
      %v4593 = vmul.f32 %v4464, %v2846
      %v4594 = vmul.f32 %v4465, %v2849
      %v4595 = vmul.f32 %v4466, %v3058
      %v4596 = vmul.f32 %v4467, %v3063
      %v4597 = vmul.f32 %v4468, %v3066
      %v4598 = vmul.f32 %v4469, %v3071
      %v4599 = vmul.f32 %v4470, %v3074
      %v4600 = vmul.f32 %v4471, %v3079
      %v4601 = vmul.f32 %v4472, %v3082
      %v4602 = vmul.f32 %v4473, %v3087
      %v4603 = vmul.f32 %v4474, %v3090
      %v4604 = vmul.f32 %v4475, %v3095
      %v4605 = vmul.f32 %v4476, %v3098
      %v4606 = vmul.f32 %v4477, %v3103
      %v4607 = vmul.f32 %v4478, %v3106
      %v4608 = vmul.f32 %v4479, %v3111
      %v4609 = vmul.f32 %v4480, %v3114
      %v4610 = vmul.f32 %v4481, %v3119
      %v4611 = vmul.f32 %v4482, %v3122
      %v4612 = vmul.f32 %v4483, %v3127
      %v4613 = vmul.f32 %v4484, %v3130
      %v4614 = vmul.f32 %v4485, %v3135
      %v4615 = vmul.f32 %v4486, %v3138
      %v4616 = vmul.f32 %v4487, %v3143
      %v4617 = vmul.f32 %v4488, %v3146
      %v4618 = vmul.f32 %v4489, %v3151
      %v4619 = vmul.f32 %v4490, %v3154
      %v4620 = vmul.f32 %v4491, %v3159
      %v4621 = vmul.f32 %v4492, %v3162
      %v4622 = vmul.f32 %v4493, %v3167
      %v4623 = vmul.f32 %v4494, %v3170
      %v4624 = vmul.f32 %v4495, %v3175
      %v4625 = vmul.f32 %v4496, %v3178
      %v4626 = vmul.f32 %v4497, %v3183
      %v4627 = vmul.f32 %v4498, %v3186
      %v4628 = vmul.f32 %v4499, %v3191
      %v4629 = vmul.f32 %v4500, %v3194
      %v4630 = vmul.f32 %v4501, %v3199
      %v4631 = vmul.f32 %v4502, %v3202
      %v4632 = vmul.f32 %v4503, %v3207
      %v4633 = vmul.f32 %v4504, %v3210
      %v4634 = vmul.f32 %v4505, %v3215
      %v4635 = vmul.f32 %v4506, %v3218
      %v4636 = vmul.f32 %v4507, %v3223
      %v4637 = vmul.f32 %v4508, %v3226
      %v4638 = vadd.f32 %v4552, %v4595
      %v4639 = vadd.f32 %v4553, %v4596
      %v4640 = vadd.f32 %v4554, %v4597
      %v4641 = vadd.f32 %v4555, %v4598
      %v4642 = vadd.f32 %v4556, %v4599
      %v4643 = vadd.f32 %v4557, %v4600
      %v4644 = vadd.f32 %v4558, %v4601
      %v4645 = vadd.f32 %v4559, %v4602
      %v4646 = vadd.f32 %v4560, %v4603
      %v4647 = vadd.f32 %v4561, %v4604
      %v4648 = vadd.f32 %v4562, %v4605
      %v4649 = vadd.f32 %v4563, %v4606
      %v4650 = vadd.f32 %v4564, %v4607
      %v4651 = vadd.f32 %v4565, %v4608
      %v4652 = vadd.f32 %v4566, %v4609
      %v4653 = vadd.f32 %v4567, %v4610
      %v4654 = vadd.f32 %v4568, %v4611
      %v4655 = vadd.f32 %v4569, %v4612
      %v4656 = vadd.f32 %v4570, %v4613
      %v4657 = vadd.f32 %v4571, %v4614
      %v4658 = vadd.f32 %v4572, %v4615
      %v4659 = vadd.f32 %v4573, %v4616
      %v4660 = vadd.f32 %v4574, %v4617
      %v4661 = vadd.f32 %v4575, %v4618
      %v4662 = vadd.f32 %v4576, %v4619
      %v4663 = vadd.f32 %v4577, %v4620
      %v4664 = vadd.f32 %v4578, %v4621
      %v4665 = vadd.f32 %v4579, %v4622
      %v4666 = vadd.f32 %v4580, %v4623
      %v4667 = vadd.f32 %v4581, %v4624
      %v4668 = vadd.f32 %v4582, %v4625
      %v4669 = vadd.f32 %v4583, %v4626
      %v4670 = vadd.f32 %v4584, %v4627
      %v4671 = vadd.f32 %v4585, %v4628
      %v4672 = vadd.f32 %v4586, %v4629
      %v4673 = vadd.f32 %v4587, %v4630
      %v4674 = vadd.f32 %v4588, %v4631
      %v4675 = vadd.f32 %v4589, %v4632
      %v4676 = vadd.f32 %v4590, %v4633
      %v4677 = vadd.f32 %v4591, %v4634
      %v4678 = vadd.f32 %v4592, %v4635
      %v4679 = vadd.f32 %v4593, %v4636
      %v4680 = vadd.f32 %v4594, %v4637
      %v4681 = vmul.f32 %v4509, %v3435
      %v4682 = vmul.f32 %v4510, %v3440
      %v4683 = vmul.f32 %v4511, %v3443
      %v4684 = vmul.f32 %v4512, %v3448
      %v4685 = vmul.f32 %v4513, %v3451
      %v4686 = vmul.f32 %v4514, %v3456
      %v4687 = vmul.f32 %v4515, %v3459
      %v4688 = vmul.f32 %v4516, %v3464
      %v4689 = vmul.f32 %v4517, %v3467
      %v4690 = vmul.f32 %v4518, %v3472
      %v4691 = vmul.f32 %v4519, %v3475
      %v4692 = vmul.f32 %v4520, %v3480
      %v4693 = vmul.f32 %v4521, %v3483
      %v4694 = vmul.f32 %v4522, %v3488
      %v4695 = vmul.f32 %v4523, %v3491
      %v4696 = vmul.f32 %v4524, %v3496
      %v4697 = vmul.f32 %v4525, %v3499
      %v4698 = vmul.f32 %v4526, %v3504
      %v4699 = vmul.f32 %v4527, %v3507
      %v4700 = vmul.f32 %v4528, %v3512
      %v4701 = vmul.f32 %v4529, %v3515
      %v4702 = vmul.f32 %v4530, %v3520
      %v4703 = vmul.f32 %v4531, %v3523
      %v4704 = vmul.f32 %v4532, %v3528
      %v4705 = vmul.f32 %v4533, %v3531
      %v4706 = vmul.f32 %v4534, %v3536
      %v4707 = vmul.f32 %v4535, %v3539
      %v4708 = vmul.f32 %v4536, %v3544
      %v4709 = vmul.f32 %v4537, %v3547
      %v4710 = vmul.f32 %v4538, %v3552
      %v4711 = vmul.f32 %v4539, %v3555
      %v4712 = vmul.f32 %v4540, %v3560
      %v4713 = vmul.f32 %v4541, %v3563
      %v4714 = vmul.f32 %v4542, %v3568
      %v4715 = vmul.f32 %v4543, %v3571
      %v4716 = vmul.f32 %v4544, %v3576
      %v4717 = vmul.f32 %v4545, %v3579
      %v4718 = vmul.f32 %v4546, %v3584
      %v4719 = vmul.f32 %v4547, %v3587
      %v4720 = vmul.f32 %v4548, %v3592
      %v4721 = vmul.f32 %v4549, %v3595
      %v4722 = vmul.f32 %v4550, %v3600
      %v4723 = vmul.f32 %v4551, %v3603
      %v4724 = vadd.f32 %v4638, %v4681
      %v4725 = vadd.f32 %v4639, %v4682
      %v4726 = vadd.f32 %v4640, %v4683
      %v4727 = vadd.f32 %v4641, %v4684
      %v4728 = vadd.f32 %v4642, %v4685
      %v4729 = vadd.f32 %v4643, %v4686
      %v4730 = vadd.f32 %v4644, %v4687
      %v4731 = vadd.f32 %v4645, %v4688
      %v4732 = vadd.f32 %v4646, %v4689
      %v4733 = vadd.f32 %v4647, %v4690
      %v4734 = vadd.f32 %v4648, %v4691
      %v4735 = vadd.f32 %v4649, %v4692
      %v4736 = vadd.f32 %v4650, %v4693
      %v4737 = vadd.f32 %v4651, %v4694
      %v4738 = vadd.f32 %v4652, %v4695
      %v4739 = vadd.f32 %v4653, %v4696
      %v4740 = vadd.f32 %v4654, %v4697
      %v4741 = vadd.f32 %v4655, %v4698
      %v4742 = vadd.f32 %v4656, %v4699
      %v4743 = vadd.f32 %v4657, %v4700
      %v4744 = vadd.f32 %v4658, %v4701
      %v4745 = vadd.f32 %v4659, %v4702
      %v4746 = vadd.f32 %v4660, %v4703
      %v4747 = vadd.f32 %v4661, %v4704
      %v4748 = vadd.f32 %v4662, %v4705
      %v4749 = vadd.f32 %v4663, %v4706
      %v4750 = vadd.f32 %v4664, %v4707
      %v4751 = vadd.f32 %v4665, %v4708
      %v4752 = vadd.f32 %v4666, %v4709
      %v4753 = vadd.f32 %v4667, %v4710
      %v4754 = vadd.f32 %v4668, %v4711
      %v4755 = vadd.f32 %v4669, %v4712
      %v4756 = vadd.f32 %v4670, %v4713
      %v4757 = vadd.f32 %v4671, %v4714
      %v4758 = vadd.f32 %v4672, %v4715
      %v4759 = vadd.f32 %v4673, %v4716
      %v4760 = vadd.f32 %v4674, %v4717
      %v4761 = vadd.f32 %v4675, %v4718
      %v4762 = vadd.f32 %v4676, %v4719
      %v4763 = vadd.f32 %v4677, %v4720
      %v4764 = vadd.f32 %v4678, %v4721
      %v4765 = vadd.f32 %v4679, %v4722
      %v4766 = vadd.f32 %v4680, %v4723
      %v4767 = vmul.f32 %v2681, %v2681
      %v4768 = vmul.f32 %v2686, %v2686
      %v4769 = vmul.f32 %v2689, %v2689
      %v4770 = vmul.f32 %v2694, %v2694
      %v4771 = vmul.f32 %v2697, %v2697
      %v4772 = vmul.f32 %v2702, %v2702
      %v4773 = vmul.f32 %v2705, %v2705
      %v4774 = vmul.f32 %v2710, %v2710
      %v4775 = vmul.f32 %v2713, %v2713
      %v4776 = vmul.f32 %v2718, %v2718
      %v4777 = vmul.f32 %v2721, %v2721
      %v4778 = vmul.f32 %v2726, %v2726
      %v4779 = vmul.f32 %v2729, %v2729
      %v4780 = vmul.f32 %v2734, %v2734
      %v4781 = vmul.f32 %v2737, %v2737
      %v4782 = vmul.f32 %v2742, %v2742
      %v4783 = vmul.f32 %v2745, %v2745
      %v4784 = vmul.f32 %v2750, %v2750
      %v4785 = vmul.f32 %v2753, %v2753
      %v4786 = vmul.f32 %v2758, %v2758
      %v4787 = vmul.f32 %v2761, %v2761
      %v4788 = vmul.f32 %v2766, %v2766
      %v4789 = vmul.f32 %v2769, %v2769
      %v4790 = vmul.f32 %v2774, %v2774
      %v4791 = vmul.f32 %v2777, %v2777
      %v4792 = vmul.f32 %v2782, %v2782
      %v4793 = vmul.f32 %v2785, %v2785
      %v4794 = vmul.f32 %v2790, %v2790
      %v4795 = vmul.f32 %v2793, %v2793
      %v4796 = vmul.f32 %v2798, %v2798
      %v4797 = vmul.f32 %v2801, %v2801
      %v4798 = vmul.f32 %v2806, %v2806
      %v4799 = vmul.f32 %v2809, %v2809
      %v4800 = vmul.f32 %v2814, %v2814
      %v4801 = vmul.f32 %v2817, %v2817
      %v4802 = vmul.f32 %v2822, %v2822
      %v4803 = vmul.f32 %v2825, %v2825
      %v4804 = vmul.f32 %v2830, %v2830
      %v4805 = vmul.f32 %v2833, %v2833
      %v4806 = vmul.f32 %v2838, %v2838
      %v4807 = vmul.f32 %v2841, %v2841
      %v4808 = vmul.f32 %v2846, %v2846
      %v4809 = vmul.f32 %v2849, %v2849
      %v4810 = vmul.f32 %v3058, %v3058
      %v4811 = vmul.f32 %v3063, %v3063
      %v4812 = vmul.f32 %v3066, %v3066
      %v4813 = vmul.f32 %v3071, %v3071
      %v4814 = vmul.f32 %v3074, %v3074
      %v4815 = vmul.f32 %v3079, %v3079
      %v4816 = vmul.f32 %v3082, %v3082
      %v4817 = vmul.f32 %v3087, %v3087
      %v4818 = vmul.f32 %v3090, %v3090
      %v4819 = vmul.f32 %v3095, %v3095
      %v4820 = vmul.f32 %v3098, %v3098
      %v4821 = vmul.f32 %v3103, %v3103
      %v4822 = vmul.f32 %v3106, %v3106
      %v4823 = vmul.f32 %v3111, %v3111
      %v4824 = vmul.f32 %v3114, %v3114
      %v4825 = vmul.f32 %v3119, %v3119
      %v4826 = vmul.f32 %v3122, %v3122
      %v4827 = vmul.f32 %v3127, %v3127
      %v4828 = vmul.f32 %v3130, %v3130
      %v4829 = vmul.f32 %v3135, %v3135
      %v4830 = vmul.f32 %v3138, %v3138
      %v4831 = vmul.f32 %v3143, %v3143
      %v4832 = vmul.f32 %v3146, %v3146
      %v4833 = vmul.f32 %v3151, %v3151
      %v4834 = vmul.f32 %v3154, %v3154
      %v4835 = vmul.f32 %v3159, %v3159
      %v4836 = vmul.f32 %v3162, %v3162
      %v4837 = vmul.f32 %v3167, %v3167
      %v4838 = vmul.f32 %v3170, %v3170
      %v4839 = vmul.f32 %v3175, %v3175
      %v4840 = vmul.f32 %v3178, %v3178
      %v4841 = vmul.f32 %v3183, %v3183
      %v4842 = vmul.f32 %v3186, %v3186
      %v4843 = vmul.f32 %v3191, %v3191
      %v4844 = vmul.f32 %v3194, %v3194
      %v4845 = vmul.f32 %v3199, %v3199
      %v4846 = vmul.f32 %v3202, %v3202
      %v4847 = vmul.f32 %v3207, %v3207
      %v4848 = vmul.f32 %v3210, %v3210
      %v4849 = vmul.f32 %v3215, %v3215
      %v4850 = vmul.f32 %v3218, %v3218
      %v4851 = vmul.f32 %v3223, %v3223
      %v4852 = vmul.f32 %v3226, %v3226
      %v4853 = vadd.f32 %v4767, %v4810
      %v4854 = vadd.f32 %v4768, %v4811
      %v4855 = vadd.f32 %v4769, %v4812
      %v4856 = vadd.f32 %v4770, %v4813
      %v4857 = vadd.f32 %v4771, %v4814
      %v4858 = vadd.f32 %v4772, %v4815
      %v4859 = vadd.f32 %v4773, %v4816
      %v4860 = vadd.f32 %v4774, %v4817
      %v4861 = vadd.f32 %v4775, %v4818
      %v4862 = vadd.f32 %v4776, %v4819
      %v4863 = vadd.f32 %v4777, %v4820
      %v4864 = vadd.f32 %v4778, %v4821
      %v4865 = vadd.f32 %v4779, %v4822
      %v4866 = vadd.f32 %v4780, %v4823
      %v4867 = vadd.f32 %v4781, %v4824
      %v4868 = vadd.f32 %v4782, %v4825
      %v4869 = vadd.f32 %v4783, %v4826
      %v4870 = vadd.f32 %v4784, %v4827
      %v4871 = vadd.f32 %v4785, %v4828
      %v4872 = vadd.f32 %v4786, %v4829
      %v4873 = vadd.f32 %v4787, %v4830
      %v4874 = vadd.f32 %v4788, %v4831
      %v4875 = vadd.f32 %v4789, %v4832
      %v4876 = vadd.f32 %v4790, %v4833
      %v4877 = vadd.f32 %v4791, %v4834
      %v4878 = vadd.f32 %v4792, %v4835
      %v4879 = vadd.f32 %v4793, %v4836
      %v4880 = vadd.f32 %v4794, %v4837
      %v4881 = vadd.f32 %v4795, %v4838
      %v4882 = vadd.f32 %v4796, %v4839
      %v4883 = vadd.f32 %v4797, %v4840
      %v4884 = vadd.f32 %v4798, %v4841
      %v4885 = vadd.f32 %v4799, %v4842
      %v4886 = vadd.f32 %v4800, %v4843
      %v4887 = vadd.f32 %v4801, %v4844
      %v4888 = vadd.f32 %v4802, %v4845
      %v4889 = vadd.f32 %v4803, %v4846
      %v4890 = vadd.f32 %v4804, %v4847
      %v4891 = vadd.f32 %v4805, %v4848
      %v4892 = vadd.f32 %v4806, %v4849
      %v4893 = vadd.f32 %v4807, %v4850
      %v4894 = vadd.f32 %v4808, %v4851
      %v4895 = vadd.f32 %v4809, %v4852
      %v4896 = vmul.f32 %v3435, %v3435
      %v4897 = vmul.f32 %v3440, %v3440
      %v4898 = vmul.f32 %v3443, %v3443
      %v4899 = vmul.f32 %v3448, %v3448
      %v4900 = vmul.f32 %v3451, %v3451
      %v4901 = vmul.f32 %v3456, %v3456
      %v4902 = vmul.f32 %v3459, %v3459
      %v4903 = vmul.f32 %v3464, %v3464
      %v4904 = vmul.f32 %v3467, %v3467
      %v4905 = vmul.f32 %v3472, %v3472
      %v4906 = vmul.f32 %v3475, %v3475
      %v4907 = vmul.f32 %v3480, %v3480
      %v4908 = vmul.f32 %v3483, %v3483
      %v4909 = vmul.f32 %v3488, %v3488
      %v4910 = vmul.f32 %v3491, %v3491
      %v4911 = vmul.f32 %v3496, %v3496
      %v4912 = vmul.f32 %v3499, %v3499
      %v4913 = vmul.f32 %v3504, %v3504
      %v4914 = vmul.f32 %v3507, %v3507
      %v4915 = vmul.f32 %v3512, %v3512
      %v4916 = vmul.f32 %v3515, %v3515
      %v4917 = vmul.f32 %v3520, %v3520
      %v4918 = vmul.f32 %v3523, %v3523
      %v4919 = vmul.f32 %v3528, %v3528
      %v4920 = vmul.f32 %v3531, %v3531
      %v4921 = vmul.f32 %v3536, %v3536
      %v4922 = vmul.f32 %v3539, %v3539
      %v4923 = vmul.f32 %v3544, %v3544
      %v4924 = vmul.f32 %v3547, %v3547
      %v4925 = vmul.f32 %v3552, %v3552
      %v4926 = vmul.f32 %v3555, %v3555
      %v4927 = vmul.f32 %v3560, %v3560
      %v4928 = vmul.f32 %v3563, %v3563
      %v4929 = vmul.f32 %v3568, %v3568
      %v4930 = vmul.f32 %v3571, %v3571
      %v4931 = vmul.f32 %v3576, %v3576
      %v4932 = vmul.f32 %v3579, %v3579
      %v4933 = vmul.f32 %v3584, %v3584
      %v4934 = vmul.f32 %v3587, %v3587
      %v4935 = vmul.f32 %v3592, %v3592
      %v4936 = vmul.f32 %v3595, %v3595
      %v4937 = vmul.f32 %v3600, %v3600
      %v4938 = vmul.f32 %v3603, %v3603
      %v4939 = vadd.f32 %v4853, %v4896
      %v4940 = vadd.f32 %v4854, %v4897
      %v4941 = vadd.f32 %v4855, %v4898
      %v4942 = vadd.f32 %v4856, %v4899
      %v4943 = vadd.f32 %v4857, %v4900
      %v4944 = vadd.f32 %v4858, %v4901
      %v4945 = vadd.f32 %v4859, %v4902
      %v4946 = vadd.f32 %v4860, %v4903
      %v4947 = vadd.f32 %v4861, %v4904
      %v4948 = vadd.f32 %v4862, %v4905
      %v4949 = vadd.f32 %v4863, %v4906
      %v4950 = vadd.f32 %v4864, %v4907
      %v4951 = vadd.f32 %v4865, %v4908
      %v4952 = vadd.f32 %v4866, %v4909
      %v4953 = vadd.f32 %v4867, %v4910
      %v4954 = vadd.f32 %v4868, %v4911
      %v4955 = vadd.f32 %v4869, %v4912
      %v4956 = vadd.f32 %v4870, %v4913
      %v4957 = vadd.f32 %v4871, %v4914
      %v4958 = vadd.f32 %v4872, %v4915
      %v4959 = vadd.f32 %v4873, %v4916
      %v4960 = vadd.f32 %v4874, %v4917
      %v4961 = vadd.f32 %v4875, %v4918
      %v4962 = vadd.f32 %v4876, %v4919
      %v4963 = vadd.f32 %v4877, %v4920
      %v4964 = vadd.f32 %v4878, %v4921
      %v4965 = vadd.f32 %v4879, %v4922
      %v4966 = vadd.f32 %v4880, %v4923
      %v4967 = vadd.f32 %v4881, %v4924
      %v4968 = vadd.f32 %v4882, %v4925
      %v4969 = vadd.f32 %v4883, %v4926
      %v4970 = vadd.f32 %v4884, %v4927
      %v4971 = vadd.f32 %v4885, %v4928
      %v4972 = vadd.f32 %v4886, %v4929
      %v4973 = vadd.f32 %v4887, %v4930
      %v4974 = vadd.f32 %v4888, %v4931
      %v4975 = vadd.f32 %v4889, %v4932
      %v4976 = vadd.f32 %v4890, %v4933
      %v4977 = vadd.f32 %v4891, %v4934
      %v4978 = vadd.f32 %v4892, %v4935
      %v4979 = vadd.f32 %v4893, %v4936
      %v4980 = vadd.f32 %v4894, %v4937
      %v4981 = vadd.f32 %v4895, %v4938
      %v4982 = vadd.f32 %v4939, 1e-06
      %v4983 = vadd.f32 %v4940, 1e-06
      %v4984 = vadd.f32 %v4941, 1e-06
      %v4985 = vadd.f32 %v4942, 1e-06
      %v4986 = vadd.f32 %v4943, 1e-06
      %v4987 = vadd.f32 %v4944, 1e-06
      %v4988 = vadd.f32 %v4945, 1e-06
      %v4989 = vadd.f32 %v4946, 1e-06
      %v4990 = vadd.f32 %v4947, 1e-06
      %v4991 = vadd.f32 %v4948, 1e-06
      %v4992 = vadd.f32 %v4949, 1e-06
      %v4993 = vadd.f32 %v4950, 1e-06
      %v4994 = vadd.f32 %v4951, 1e-06
      %v4995 = vadd.f32 %v4952, 1e-06
      %v4996 = vadd.f32 %v4953, 1e-06
      %v4997 = vadd.f32 %v4954, 1e-06
      %v4998 = vadd.f32 %v4955, 1e-06
      %v4999 = vadd.f32 %v4956, 1e-06
      %v5000 = vadd.f32 %v4957, 1e-06
      %v5001 = vadd.f32 %v4958, 1e-06
      %v5002 = vadd.f32 %v4959, 1e-06
      %v5003 = vadd.f32 %v4960, 1e-06
      %v5004 = vadd.f32 %v4961, 1e-06
      %v5005 = vadd.f32 %v4962, 1e-06
      %v5006 = vadd.f32 %v4963, 1e-06
      %v5007 = vadd.f32 %v4964, 1e-06
      %v5008 = vadd.f32 %v4965, 1e-06
      %v5009 = vadd.f32 %v4966, 1e-06
      %v5010 = vadd.f32 %v4967, 1e-06
      %v5011 = vadd.f32 %v4968, 1e-06
      %v5012 = vadd.f32 %v4969, 1e-06
      %v5013 = vadd.f32 %v4970, 1e-06
      %v5014 = vadd.f32 %v4971, 1e-06
      %v5015 = vadd.f32 %v4972, 1e-06
      %v5016 = vadd.f32 %v4973, 1e-06
      %v5017 = vadd.f32 %v4974, 1e-06
      %v5018 = vadd.f32 %v4975, 1e-06
      %v5019 = vadd.f32 %v4976, 1e-06
      %v5020 = vadd.f32 %v4977, 1e-06
      %v5021 = vadd.f32 %v4978, 1e-06
      %v5022 = vadd.f32 %v4979, 1e-06
      %v5023 = vadd.f32 %v4980, 1e-06
      %v5024 = vadd.f32 %v4981, 1e-06
      %v5025 = vrcp.pop %v4982
      %v5026 = vrcp.pop %v4983
      %v5027 = vrcp.pop %v4984
      %v5028 = vrcp.pop %v4985
      %v5029 = vrcp.pop %v4986
      %v5030 = vrcp.pop %v4987
      %v5031 = vrcp.pop %v4988
      %v5032 = vrcp.pop %v4989
      %v5033 = vrcp.pop %v4990
      %v5034 = vrcp.pop %v4991
      %v5035 = vrcp.pop %v4992
      %v5036 = vrcp.pop %v4993
      %v5037 = vrcp.pop %v4994
      %v5038 = vrcp.pop %v4995
      %v5039 = vrcp.pop %v4996
      %v5040 = vrcp.pop %v4997
      %v5041 = vrcp.pop %v4998
      %v5042 = vrcp.pop %v4999
      %v5043 = vrcp.pop %v5000
      %v5044 = vrcp.pop %v5001
      %v5045 = vrcp.pop %v5002
      %v5046 = vrcp.pop %v5003
      %v5047 = vrcp.pop %v5004
      %v5048 = vrcp.pop %v5005
      %v5049 = vrcp.pop %v5006
      %v5050 = vrcp.pop %v5007
      %v5051 = vrcp.pop %v5008
      %v5052 = vrcp.pop %v5009
      %v5053 = vrcp.pop %v5010
      %v5054 = vrcp.pop %v5011
      %v5055 = vrcp.pop %v5012
      %v5056 = vrcp.pop %v5013
      %v5057 = vrcp.pop %v5014
      %v5058 = vrcp.pop %v5015
      %v5059 = vrcp.pop %v5016
      %v5060 = vrcp.pop %v5017
      %v5061 = vrcp.pop %v5018
      %v5062 = vrcp.pop %v5019
      %v5063 = vrcp.pop %v5020
      %v5064 = vrcp.pop %v5021
      %v5065 = vrcp.pop %v5022
      %v5066 = vrcp.pop %v5023
      %v5067 = vrcp.pop %v5024
      %v5068 = vmul.f32 %v4724, %v5025
      %v5069 = vmul.f32 %v4725, %v5026
      %v5070 = vmul.f32 %v4726, %v5027
      %v5071 = vmul.f32 %v4727, %v5028
      %v5072 = vmul.f32 %v4728, %v5029
      %v5073 = vmul.f32 %v4729, %v5030
      %v5074 = vmul.f32 %v4730, %v5031
      %v5075 = vmul.f32 %v4731, %v5032
      %v5076 = vmul.f32 %v4732, %v5033
      %v5077 = vmul.f32 %v4733, %v5034
      %v5078 = vmul.f32 %v4734, %v5035
      %v5079 = vmul.f32 %v4735, %v5036
      %v5080 = vmul.f32 %v4736, %v5037
      %v5081 = vmul.f32 %v4737, %v5038
      %v5082 = vmul.f32 %v4738, %v5039
      %v5083 = vmul.f32 %v4739, %v5040
      %v5084 = vmul.f32 %v4740, %v5041
      %v5085 = vmul.f32 %v4741, %v5042
      %v5086 = vmul.f32 %v4742, %v5043
      %v5087 = vmul.f32 %v4743, %v5044
      %v5088 = vmul.f32 %v4744, %v5045
      %v5089 = vmul.f32 %v4745, %v5046
      %v5090 = vmul.f32 %v4746, %v5047
      %v5091 = vmul.f32 %v4747, %v5048
      %v5092 = vmul.f32 %v4748, %v5049
      %v5093 = vmul.f32 %v4749, %v5050
      %v5094 = vmul.f32 %v4750, %v5051
      %v5095 = vmul.f32 %v4751, %v5052
      %v5096 = vmul.f32 %v4752, %v5053
      %v5097 = vmul.f32 %v4753, %v5054
      %v5098 = vmul.f32 %v4754, %v5055
      %v5099 = vmul.f32 %v4755, %v5056
      %v5100 = vmul.f32 %v4756, %v5057
      %v5101 = vmul.f32 %v4757, %v5058
      %v5102 = vmul.f32 %v4758, %v5059
      %v5103 = vmul.f32 %v4759, %v5060
      %v5104 = vmul.f32 %v4760, %v5061
      %v5105 = vmul.f32 %v4761, %v5062
      %v5106 = vmul.f32 %v4762, %v5063
      %v5107 = vmul.f32 %v4763, %v5064
      %v5108 = vmul.f32 %v4764, %v5065
      %v5109 = vmul.f32 %v4765, %v5066
      %v5110 = vmul.f32 %v4766, %v5067
      %v5111 = vmin.f32 %v5068, 0.0
      %v5112 = vmin.f32 %v5069, 0.0
      %v5113 = vmin.f32 %v5070, 0.0
      %v5114 = vmin.f32 %v5071, 0.0
      %v5115 = vmin.f32 %v5072, 0.0
      %v5116 = vmin.f32 %v5073, 0.0
      %v5117 = vmin.f32 %v5074, 0.0
      %v5118 = vmin.f32 %v5075, 0.0
      %v5119 = vmin.f32 %v5076, 0.0
      %v5120 = vmin.f32 %v5077, 0.0
      %v5121 = vmin.f32 %v5078, 0.0
      %v5122 = vmin.f32 %v5079, 0.0
      %v5123 = vmin.f32 %v5080, 0.0
      %v5124 = vmin.f32 %v5081, 0.0
      %v5125 = vmin.f32 %v5082, 0.0
      %v5126 = vmin.f32 %v5083, 0.0
      %v5127 = vmin.f32 %v5084, 0.0
      %v5128 = vmin.f32 %v5085, 0.0
      %v5129 = vmin.f32 %v5086, 0.0
      %v5130 = vmin.f32 %v5087, 0.0
      %v5131 = vmin.f32 %v5088, 0.0
      %v5132 = vmin.f32 %v5089, 0.0
      %v5133 = vmin.f32 %v5090, 0.0
      %v5134 = vmin.f32 %v5091, 0.0
      %v5135 = vmin.f32 %v5092, 0.0
      %v5136 = vmin.f32 %v5093, 0.0
      %v5137 = vmin.f32 %v5094, 0.0
      %v5138 = vmin.f32 %v5095, 0.0
      %v5139 = vmin.f32 %v5096, 0.0
      %v5140 = vmin.f32 %v5097, 0.0
      %v5141 = vmin.f32 %v5098, 0.0
      %v5142 = vmin.f32 %v5099, 0.0
      %v5143 = vmin.f32 %v5100, 0.0
      %v5144 = vmin.f32 %v5101, 0.0
      %v5145 = vmin.f32 %v5102, 0.0
      %v5146 = vmin.f32 %v5103, 0.0
      %v5147 = vmin.f32 %v5104, 0.0
      %v5148 = vmin.f32 %v5105, 0.0
      %v5149 = vmin.f32 %v5106, 0.0
      %v5150 = vmin.f32 %v5107, 0.0
      %v5151 = vmin.f32 %v5108, 0.0
      %v5152 = vmin.f32 %v5109, 0.0
      %v5153 = vmin.f32 %v5110, 0.0
      %v5154 = vmul.f32 %v5111, %v2681
      %v5155 = vmul.f32 %v5112, %v2686
      %v5156 = vmul.f32 %v5113, %v2689
      %v5157 = vmul.f32 %v5114, %v2694
      %v5158 = vmul.f32 %v5115, %v2697
      %v5159 = vmul.f32 %v5116, %v2702
      %v5160 = vmul.f32 %v5117, %v2705
      %v5161 = vmul.f32 %v5118, %v2710
      %v5162 = vmul.f32 %v5119, %v2713
      %v5163 = vmul.f32 %v5120, %v2718
      %v5164 = vmul.f32 %v5121, %v2721
      %v5165 = vmul.f32 %v5122, %v2726
      %v5166 = vmul.f32 %v5123, %v2729
      %v5167 = vmul.f32 %v5124, %v2734
      %v5168 = vmul.f32 %v5125, %v2737
      %v5169 = vmul.f32 %v5126, %v2742
      %v5170 = vmul.f32 %v5127, %v2745
      %v5171 = vmul.f32 %v5128, %v2750
      %v5172 = vmul.f32 %v5129, %v2753
      %v5173 = vmul.f32 %v5130, %v2758
      %v5174 = vmul.f32 %v5131, %v2761
      %v5175 = vmul.f32 %v5132, %v2766
      %v5176 = vmul.f32 %v5133, %v2769
      %v5177 = vmul.f32 %v5134, %v2774
      %v5178 = vmul.f32 %v5135, %v2777
      %v5179 = vmul.f32 %v5136, %v2782
      %v5180 = vmul.f32 %v5137, %v2785
      %v5181 = vmul.f32 %v5138, %v2790
      %v5182 = vmul.f32 %v5139, %v2793
      %v5183 = vmul.f32 %v5140, %v2798
      %v5184 = vmul.f32 %v5141, %v2801
      %v5185 = vmul.f32 %v5142, %v2806
      %v5186 = vmul.f32 %v5143, %v2809
      %v5187 = vmul.f32 %v5144, %v2814
      %v5188 = vmul.f32 %v5145, %v2817
      %v5189 = vmul.f32 %v5146, %v2822
      %v5190 = vmul.f32 %v5147, %v2825
      %v5191 = vmul.f32 %v5148, %v2830
      %v5192 = vmul.f32 %v5149, %v2833
      %v5193 = vmul.f32 %v5150, %v2838
      %v5194 = vmul.f32 %v5151, %v2841
      %v5195 = vmul.f32 %v5152, %v2846
      %v5196 = vmul.f32 %v5153, %v2849
      %v5197 = vsub.f32 %v4423, %v5154
      %v5198 = vsub.f32 %v4424, %v5155
      %v5199 = vsub.f32 %v4425, %v5156
      %v5200 = vsub.f32 %v4426, %v5157
      %v5201 = vsub.f32 %v4427, %v5158
      %v5202 = vsub.f32 %v4428, %v5159
      %v5203 = vsub.f32 %v4429, %v5160
      %v5204 = vsub.f32 %v4430, %v5161
      %v5205 = vsub.f32 %v4431, %v5162
      %v5206 = vsub.f32 %v4432, %v5163
      %v5207 = vsub.f32 %v4433, %v5164
      %v5208 = vsub.f32 %v4434, %v5165
      %v5209 = vsub.f32 %v4435, %v5166
      %v5210 = vsub.f32 %v4436, %v5167
      %v5211 = vsub.f32 %v4437, %v5168
      %v5212 = vsub.f32 %v4438, %v5169
      %v5213 = vsub.f32 %v4439, %v5170
      %v5214 = vsub.f32 %v4440, %v5171
      %v5215 = vsub.f32 %v4441, %v5172
      %v5216 = vsub.f32 %v4442, %v5173
      %v5217 = vsub.f32 %v4443, %v5174
      %v5218 = vsub.f32 %v4444, %v5175
      %v5219 = vsub.f32 %v4445, %v5176
      %v5220 = vsub.f32 %v4446, %v5177
      %v5221 = vsub.f32 %v4447, %v5178
      %v5222 = vsub.f32 %v4448, %v5179
      %v5223 = vsub.f32 %v4449, %v5180
      %v5224 = vsub.f32 %v4450, %v5181
      %v5225 = vsub.f32 %v4451, %v5182
      %v5226 = vsub.f32 %v4452, %v5183
      %v5227 = vsub.f32 %v4453, %v5184
      %v5228 = vsub.f32 %v4454, %v5185
      %v5229 = vsub.f32 %v4455, %v5186
      %v5230 = vsub.f32 %v4456, %v5187
      %v5231 = vsub.f32 %v4457, %v5188
      %v5232 = vsub.f32 %v4458, %v5189
      %v5233 = vsub.f32 %v4459, %v5190
      %v5234 = vsub.f32 %v4460, %v5191
      %v5235 = vsub.f32 %v4461, %v5192
      %v5236 = vsub.f32 %v4462, %v5193
      %v5237 = vsub.f32 %v4463, %v5194
      %v5238 = vsub.f32 %v4464, %v5195
      %v5239 = vsub.f32 %v4465, %v5196
      %v5240 = vmul.f32 %v5111, %v3058
      %v5241 = vmul.f32 %v5112, %v3063
      %v5242 = vmul.f32 %v5113, %v3066
      %v5243 = vmul.f32 %v5114, %v3071
      %v5244 = vmul.f32 %v5115, %v3074
      %v5245 = vmul.f32 %v5116, %v3079
      %v5246 = vmul.f32 %v5117, %v3082
      %v5247 = vmul.f32 %v5118, %v3087
      %v5248 = vmul.f32 %v5119, %v3090
      %v5249 = vmul.f32 %v5120, %v3095
      %v5250 = vmul.f32 %v5121, %v3098
      %v5251 = vmul.f32 %v5122, %v3103
      %v5252 = vmul.f32 %v5123, %v3106
      %v5253 = vmul.f32 %v5124, %v3111
      %v5254 = vmul.f32 %v5125, %v3114
      %v5255 = vmul.f32 %v5126, %v3119
      %v5256 = vmul.f32 %v5127, %v3122
      %v5257 = vmul.f32 %v5128, %v3127
      %v5258 = vmul.f32 %v5129, %v3130
      %v5259 = vmul.f32 %v5130, %v3135
      %v5260 = vmul.f32 %v5131, %v3138
      %v5261 = vmul.f32 %v5132, %v3143
      %v5262 = vmul.f32 %v5133, %v3146
      %v5263 = vmul.f32 %v5134, %v3151
      %v5264 = vmul.f32 %v5135, %v3154
      %v5265 = vmul.f32 %v5136, %v3159
      %v5266 = vmul.f32 %v5137, %v3162
      %v5267 = vmul.f32 %v5138, %v3167
      %v5268 = vmul.f32 %v5139, %v3170
      %v5269 = vmul.f32 %v5140, %v3175
      %v5270 = vmul.f32 %v5141, %v3178
      %v5271 = vmul.f32 %v5142, %v3183
      %v5272 = vmul.f32 %v5143, %v3186
      %v5273 = vmul.f32 %v5144, %v3191
      %v5274 = vmul.f32 %v5145, %v3194
      %v5275 = vmul.f32 %v5146, %v3199
      %v5276 = vmul.f32 %v5147, %v3202
      %v5277 = vmul.f32 %v5148, %v3207
      %v5278 = vmul.f32 %v5149, %v3210
      %v5279 = vmul.f32 %v5150, %v3215
      %v5280 = vmul.f32 %v5151, %v3218
      %v5281 = vmul.f32 %v5152, %v3223
      %v5282 = vmul.f32 %v5153, %v3226
      %v5283 = vsub.f32 %v4466, %v5240
      %v5284 = vsub.f32 %v4467, %v5241
      %v5285 = vsub.f32 %v4468, %v5242
      %v5286 = vsub.f32 %v4469, %v5243
      %v5287 = vsub.f32 %v4470, %v5244
      %v5288 = vsub.f32 %v4471, %v5245
      %v5289 = vsub.f32 %v4472, %v5246
      %v5290 = vsub.f32 %v4473, %v5247
      %v5291 = vsub.f32 %v4474, %v5248
      %v5292 = vsub.f32 %v4475, %v5249
      %v5293 = vsub.f32 %v4476, %v5250
      %v5294 = vsub.f32 %v4477, %v5251
      %v5295 = vsub.f32 %v4478, %v5252
      %v5296 = vsub.f32 %v4479, %v5253
      %v5297 = vsub.f32 %v4480, %v5254
      %v5298 = vsub.f32 %v4481, %v5255
      %v5299 = vsub.f32 %v4482, %v5256
      %v5300 = vsub.f32 %v4483, %v5257
      %v5301 = vsub.f32 %v4484, %v5258
      %v5302 = vsub.f32 %v4485, %v5259
      %v5303 = vsub.f32 %v4486, %v5260
      %v5304 = vsub.f32 %v4487, %v5261
      %v5305 = vsub.f32 %v4488, %v5262
      %v5306 = vsub.f32 %v4489, %v5263
      %v5307 = vsub.f32 %v4490, %v5264
      %v5308 = vsub.f32 %v4491, %v5265
      %v5309 = vsub.f32 %v4492, %v5266
      %v5310 = vsub.f32 %v4493, %v5267
      %v5311 = vsub.f32 %v4494, %v5268
      %v5312 = vsub.f32 %v4495, %v5269
      %v5313 = vsub.f32 %v4496, %v5270
      %v5314 = vsub.f32 %v4497, %v5271
      %v5315 = vsub.f32 %v4498, %v5272
      %v5316 = vsub.f32 %v4499, %v5273
      %v5317 = vsub.f32 %v4500, %v5274
      %v5318 = vsub.f32 %v4501, %v5275
      %v5319 = vsub.f32 %v4502, %v5276
      %v5320 = vsub.f32 %v4503, %v5277
      %v5321 = vsub.f32 %v4504, %v5278
      %v5322 = vsub.f32 %v4505, %v5279
      %v5323 = vsub.f32 %v4506, %v5280
      %v5324 = vsub.f32 %v4507, %v5281
      %v5325 = vsub.f32 %v4508, %v5282
      %v5326 = vmul.f32 %v5111, %v3435
      %v5327 = vmul.f32 %v5112, %v3440
      %v5328 = vmul.f32 %v5113, %v3443
      %v5329 = vmul.f32 %v5114, %v3448
      %v5330 = vmul.f32 %v5115, %v3451
      %v5331 = vmul.f32 %v5116, %v3456
      %v5332 = vmul.f32 %v5117, %v3459
      %v5333 = vmul.f32 %v5118, %v3464
      %v5334 = vmul.f32 %v5119, %v3467
      %v5335 = vmul.f32 %v5120, %v3472
      %v5336 = vmul.f32 %v5121, %v3475
      %v5337 = vmul.f32 %v5122, %v3480
      %v5338 = vmul.f32 %v5123, %v3483
      %v5339 = vmul.f32 %v5124, %v3488
      %v5340 = vmul.f32 %v5125, %v3491
      %v5341 = vmul.f32 %v5126, %v3496
      %v5342 = vmul.f32 %v5127, %v3499
      %v5343 = vmul.f32 %v5128, %v3504
      %v5344 = vmul.f32 %v5129, %v3507
      %v5345 = vmul.f32 %v5130, %v3512
      %v5346 = vmul.f32 %v5131, %v3515
      %v5347 = vmul.f32 %v5132, %v3520
      %v5348 = vmul.f32 %v5133, %v3523
      %v5349 = vmul.f32 %v5134, %v3528
      %v5350 = vmul.f32 %v5135, %v3531
      %v5351 = vmul.f32 %v5136, %v3536
      %v5352 = vmul.f32 %v5137, %v3539
      %v5353 = vmul.f32 %v5138, %v3544
      %v5354 = vmul.f32 %v5139, %v3547
      %v5355 = vmul.f32 %v5140, %v3552
      %v5356 = vmul.f32 %v5141, %v3555
      %v5357 = vmul.f32 %v5142, %v3560
      %v5358 = vmul.f32 %v5143, %v3563
      %v5359 = vmul.f32 %v5144, %v3568
      %v5360 = vmul.f32 %v5145, %v3571
      %v5361 = vmul.f32 %v5146, %v3576
      %v5362 = vmul.f32 %v5147, %v3579
      %v5363 = vmul.f32 %v5148, %v3584
      %v5364 = vmul.f32 %v5149, %v3587
      %v5365 = vmul.f32 %v5150, %v3592
      %v5366 = vmul.f32 %v5151, %v3595
      %v5367 = vmul.f32 %v5152, %v3600
      %v5368 = vmul.f32 %v5153, %v3603
      %v5369 = vsub.f32 %v4509, %v5326
      %v5370 = vsub.f32 %v4510, %v5327
      %v5371 = vsub.f32 %v4511, %v5328
      %v5372 = vsub.f32 %v4512, %v5329
      %v5373 = vsub.f32 %v4513, %v5330
      %v5374 = vsub.f32 %v4514, %v5331
      %v5375 = vsub.f32 %v4515, %v5332
      %v5376 = vsub.f32 %v4516, %v5333
      %v5377 = vsub.f32 %v4517, %v5334
      %v5378 = vsub.f32 %v4518, %v5335
      %v5379 = vsub.f32 %v4519, %v5336
      %v5380 = vsub.f32 %v4520, %v5337
      %v5381 = vsub.f32 %v4521, %v5338
      %v5382 = vsub.f32 %v4522, %v5339
      %v5383 = vsub.f32 %v4523, %v5340
      %v5384 = vsub.f32 %v4524, %v5341
      %v5385 = vsub.f32 %v4525, %v5342
      %v5386 = vsub.f32 %v4526, %v5343
      %v5387 = vsub.f32 %v4527, %v5344
      %v5388 = vsub.f32 %v4528, %v5345
      %v5389 = vsub.f32 %v4529, %v5346
      %v5390 = vsub.f32 %v4530, %v5347
      %v5391 = vsub.f32 %v4531, %v5348
      %v5392 = vsub.f32 %v4532, %v5349
      %v5393 = vsub.f32 %v4533, %v5350
      %v5394 = vsub.f32 %v4534, %v5351
      %v5395 = vsub.f32 %v4535, %v5352
      %v5396 = vsub.f32 %v4536, %v5353
      %v5397 = vsub.f32 %v4537, %v5354
      %v5398 = vsub.f32 %v4538, %v5355
      %v5399 = vsub.f32 %v4539, %v5356
      %v5400 = vsub.f32 %v4540, %v5357
      %v5401 = vsub.f32 %v4541, %v5358
      %v5402 = vsub.f32 %v4542, %v5359
      %v5403 = vsub.f32 %v4543, %v5360
      %v5404 = vsub.f32 %v4544, %v5361
      %v5405 = vsub.f32 %v4545, %v5362
      %v5406 = vsub.f32 %v4546, %v5363
      %v5407 = vsub.f32 %v4547, %v5364
      %v5408 = vsub.f32 %v4548, %v5365
      %v5409 = vsub.f32 %v4549, %v5366
      %v5410 = vsub.f32 %v4550, %v5367
      %v5411 = vsub.f32 %v4551, %v5368
      %5412 = vadd.xlane.f32.xlu0 %v5197
      %v5413 = vpop.xlane.xlu0 %5412
      %5414 = vadd.xlane.f32.xlu0 %v5198
      %v5415 = vpop.xlane.xlu0 %5414
      %5416 = vadd.xlane.f32.xlu0 %v5199
      %v5417 = vpop.xlane.xlu0 %5416
      %5418 = vadd.xlane.f32.xlu0 %v5200
      %v5419 = vpop.xlane.xlu0 %5418
      %5420 = vadd.xlane.f32.xlu0 %v5201
      %v5421 = vpop.xlane.xlu0 %5420
      %5422 = vadd.xlane.f32.xlu0 %v5202
      %v5423 = vpop.xlane.xlu0 %5422
      %5424 = vadd.xlane.f32.xlu0 %v5203
      %v5425 = vpop.xlane.xlu0 %5424
      %5426 = vadd.xlane.f32.xlu0 %v5204
      %v5427 = vpop.xlane.xlu0 %5426
      %5428 = vadd.xlane.f32.xlu0 %v5205
      %v5429 = vpop.xlane.xlu0 %5428
      %5430 = vadd.xlane.f32.xlu0 %v5206
      %v5431 = vpop.xlane.xlu0 %5430
      %5432 = vadd.xlane.f32.xlu0 %v5207
      %v5433 = vpop.xlane.xlu0 %5432
      %5434 = vadd.xlane.f32.xlu0 %v5208
      %v5435 = vpop.xlane.xlu0 %5434
      %5436 = vadd.xlane.f32.xlu0 %v5209
      %v5437 = vpop.xlane.xlu0 %5436
      %5438 = vadd.xlane.f32.xlu0 %v5210
      %v5439 = vpop.xlane.xlu0 %5438
      %5440 = vadd.xlane.f32.xlu0 %v5211
      %v5441 = vpop.xlane.xlu0 %5440
      %5442 = vadd.xlane.f32.xlu0 %v5212
      %v5443 = vpop.xlane.xlu0 %5442
      %5444 = vadd.xlane.f32.xlu0 %v5213
      %v5445 = vpop.xlane.xlu0 %5444
      %5446 = vadd.xlane.f32.xlu0 %v5214
      %v5447 = vpop.xlane.xlu0 %5446
      %5448 = vadd.xlane.f32.xlu0 %v5215
      %v5449 = vpop.xlane.xlu0 %5448
      %5450 = vadd.xlane.f32.xlu0 %v5216
      %v5451 = vpop.xlane.xlu0 %5450
      %5452 = vadd.xlane.f32.xlu0 %v5217
      %v5453 = vpop.xlane.xlu0 %5452
      %5454 = vadd.xlane.f32.xlu0 %v5218
      %v5455 = vpop.xlane.xlu0 %5454
      %5456 = vadd.xlane.f32.xlu0 %v5219
      %v5457 = vpop.xlane.xlu0 %5456
      %5458 = vadd.xlane.f32.xlu0 %v5220
      %v5459 = vpop.xlane.xlu0 %5458
      %5460 = vadd.xlane.f32.xlu0 %v5221
      %v5461 = vpop.xlane.xlu0 %5460
      %5462 = vadd.xlane.f32.xlu0 %v5222
      %v5463 = vpop.xlane.xlu0 %5462
      %5464 = vadd.xlane.f32.xlu0 %v5223
      %v5465 = vpop.xlane.xlu0 %5464
      %5466 = vadd.xlane.f32.xlu0 %v5224
      %v5467 = vpop.xlane.xlu0 %5466
      %5468 = vadd.xlane.f32.xlu0 %v5225
      %v5469 = vpop.xlane.xlu0 %5468
      %5470 = vadd.xlane.f32.xlu0 %v5226
      %v5471 = vpop.xlane.xlu0 %5470
      %5472 = vadd.xlane.f32.xlu0 %v5227
      %v5473 = vpop.xlane.xlu0 %5472
      %5474 = vadd.xlane.f32.xlu0 %v5228
      %v5475 = vpop.xlane.xlu0 %5474
      %5476 = vadd.xlane.f32.xlu0 %v5229
      %v5477 = vpop.xlane.xlu0 %5476
      %5478 = vadd.xlane.f32.xlu0 %v5230
      %v5479 = vpop.xlane.xlu0 %5478
      %5480 = vadd.xlane.f32.xlu0 %v5231
      %v5481 = vpop.xlane.xlu0 %5480
      %5482 = vadd.xlane.f32.xlu0 %v5232
      %v5483 = vpop.xlane.xlu0 %5482
      %5484 = vadd.xlane.f32.xlu0 %v5233
      %v5485 = vpop.xlane.xlu0 %5484
      %5486 = vadd.xlane.f32.xlu0 %v5234
      %v5487 = vpop.xlane.xlu0 %5486
      %5488 = vadd.xlane.f32.xlu0 %v5235
      %v5489 = vpop.xlane.xlu0 %5488
      %5490 = vadd.xlane.f32.xlu0 %v5236
      %v5491 = vpop.xlane.xlu0 %5490
      %5492 = vadd.xlane.f32.xlu0 %v5237
      %v5493 = vpop.xlane.xlu0 %5492
      %5494 = vadd.xlane.f32.xlu0 %v5238
      %v5495 = vpop.xlane.xlu0 %5494
      %5496 = vadd.xlane.f32.xlu0 %v5239
      %v5497 = vpop.xlane.xlu0 %5496
      %5498 = vadd.xlane.f32.xlu0 %v5283
      %v5499 = vpop.xlane.xlu0 %5498
      %5500 = vadd.xlane.f32.xlu0 %v5284
      %v5501 = vpop.xlane.xlu0 %5500
      %5502 = vadd.xlane.f32.xlu0 %v5285
      %v5503 = vpop.xlane.xlu0 %5502
      %5504 = vadd.xlane.f32.xlu0 %v5286
      %v5505 = vpop.xlane.xlu0 %5504
      %5506 = vadd.xlane.f32.xlu0 %v5287
      %v5507 = vpop.xlane.xlu0 %5506
      %5508 = vadd.xlane.f32.xlu0 %v5288
      %v5509 = vpop.xlane.xlu0 %5508
      %5510 = vadd.xlane.f32.xlu0 %v5289
      %v5511 = vpop.xlane.xlu0 %5510
      %5512 = vadd.xlane.f32.xlu0 %v5290
      %v5513 = vpop.xlane.xlu0 %5512
      %5514 = vadd.xlane.f32.xlu0 %v5291
      %v5515 = vpop.xlane.xlu0 %5514
      %5516 = vadd.xlane.f32.xlu0 %v5292
      %v5517 = vpop.xlane.xlu0 %5516
      %5518 = vadd.xlane.f32.xlu0 %v5293
      %v5519 = vpop.xlane.xlu0 %5518
      %5520 = vadd.xlane.f32.xlu0 %v5294
      %v5521 = vpop.xlane.xlu0 %5520
      %5522 = vadd.xlane.f32.xlu0 %v5295
      %v5523 = vpop.xlane.xlu0 %5522
      %5524 = vadd.xlane.f32.xlu0 %v5296
      %v5525 = vpop.xlane.xlu0 %5524
      %5526 = vadd.xlane.f32.xlu0 %v5297
      %v5527 = vpop.xlane.xlu0 %5526
      %5528 = vadd.xlane.f32.xlu0 %v5298
      %v5529 = vpop.xlane.xlu0 %5528
      %5530 = vadd.xlane.f32.xlu0 %v5299
      %v5531 = vpop.xlane.xlu0 %5530
      %5532 = vadd.xlane.f32.xlu0 %v5300
      %v5533 = vpop.xlane.xlu0 %5532
      %5534 = vadd.xlane.f32.xlu0 %v5301
      %v5535 = vpop.xlane.xlu0 %5534
      %5536 = vadd.xlane.f32.xlu0 %v5302
      %v5537 = vpop.xlane.xlu0 %5536
      %5538 = vadd.xlane.f32.xlu0 %v5303
      %v5539 = vpop.xlane.xlu0 %5538
      %5540 = vadd.xlane.f32.xlu0 %v5304
      %v5541 = vpop.xlane.xlu0 %5540
      %5542 = vadd.xlane.f32.xlu0 %v5305
      %v5543 = vpop.xlane.xlu0 %5542
      %5544 = vadd.xlane.f32.xlu0 %v5306
      %v5545 = vpop.xlane.xlu0 %5544
      %5546 = vadd.xlane.f32.xlu0 %v5307
      %v5547 = vpop.xlane.xlu0 %5546
      %5548 = vadd.xlane.f32.xlu0 %v5308
      %v5549 = vpop.xlane.xlu0 %5548
      %5550 = vadd.xlane.f32.xlu0 %v5309
      %v5551 = vpop.xlane.xlu0 %5550
      %5552 = vadd.xlane.f32.xlu0 %v5310
      %v5553 = vpop.xlane.xlu0 %5552
      %5554 = vadd.xlane.f32.xlu0 %v5311
      %v5555 = vpop.xlane.xlu0 %5554
      %5556 = vadd.xlane.f32.xlu0 %v5312
      %v5557 = vpop.xlane.xlu0 %5556
      %5558 = vadd.xlane.f32.xlu0 %v5313
      %v5559 = vpop.xlane.xlu0 %5558
      %5560 = vadd.xlane.f32.xlu0 %v5314
      %v5561 = vpop.xlane.xlu0 %5560
      %5562 = vadd.xlane.f32.xlu0 %v5315
      %v5563 = vpop.xlane.xlu0 %5562
      %5564 = vadd.xlane.f32.xlu0 %v5316
      %v5565 = vpop.xlane.xlu0 %5564
      %5566 = vadd.xlane.f32.xlu0 %v5317
      %v5567 = vpop.xlane.xlu0 %5566
      %5568 = vadd.xlane.f32.xlu0 %v5318
      %v5569 = vpop.xlane.xlu0 %5568
      %5570 = vadd.xlane.f32.xlu0 %v5319
      %v5571 = vpop.xlane.xlu0 %5570
      %5572 = vadd.xlane.f32.xlu0 %v5320
      %v5573 = vpop.xlane.xlu0 %5572
      %5574 = vadd.xlane.f32.xlu0 %v5321
      %v5575 = vpop.xlane.xlu0 %5574
      %5576 = vadd.xlane.f32.xlu0 %v5322
      %v5577 = vpop.xlane.xlu0 %5576
      %5578 = vadd.xlane.f32.xlu0 %v5323
      %v5579 = vpop.xlane.xlu0 %5578
      %5580 = vadd.xlane.f32.xlu0 %v5324
      %v5581 = vpop.xlane.xlu0 %5580
      %5582 = vadd.xlane.f32.xlu0 %v5325
      %v5583 = vpop.xlane.xlu0 %5582
      %5584 = vadd.xlane.f32.xlu0 %v5369
      %v5585 = vpop.xlane.xlu0 %5584
      %5586 = vadd.xlane.f32.xlu0 %v5370
      %v5587 = vpop.xlane.xlu0 %5586
      %5588 = vadd.xlane.f32.xlu0 %v5371
      %v5589 = vpop.xlane.xlu0 %5588
      %5590 = vadd.xlane.f32.xlu0 %v5372
      %v5591 = vpop.xlane.xlu0 %5590
      %5592 = vadd.xlane.f32.xlu0 %v5373
      %v5593 = vpop.xlane.xlu0 %5592
      %5594 = vadd.xlane.f32.xlu0 %v5374
      %v5595 = vpop.xlane.xlu0 %5594
      %5596 = vadd.xlane.f32.xlu0 %v5375
      %v5597 = vpop.xlane.xlu0 %5596
      %5598 = vadd.xlane.f32.xlu0 %v5376
      %v5599 = vpop.xlane.xlu0 %5598
      %5600 = vadd.xlane.f32.xlu0 %v5377
      %v5601 = vpop.xlane.xlu0 %5600
      %5602 = vadd.xlane.f32.xlu0 %v5378
      %v5603 = vpop.xlane.xlu0 %5602
      %5604 = vadd.xlane.f32.xlu0 %v5379
      %v5605 = vpop.xlane.xlu0 %5604
      %5606 = vadd.xlane.f32.xlu0 %v5380
      %v5607 = vpop.xlane.xlu0 %5606
      %5608 = vadd.xlane.f32.xlu0 %v5381
      %v5609 = vpop.xlane.xlu0 %5608
      %5610 = vadd.xlane.f32.xlu0 %v5382
      %v5611 = vpop.xlane.xlu0 %5610
      %5612 = vadd.xlane.f32.xlu0 %v5383
      %v5613 = vpop.xlane.xlu0 %5612
      %5614 = vadd.xlane.f32.xlu0 %v5384
      %v5615 = vpop.xlane.xlu0 %5614
      %5616 = vadd.xlane.f32.xlu0 %v5385
      %v5617 = vpop.xlane.xlu0 %5616
      %5618 = vadd.xlane.f32.xlu0 %v5386
      %v5619 = vpop.xlane.xlu0 %5618
      %5620 = vadd.xlane.f32.xlu0 %v5387
      %v5621 = vpop.xlane.xlu0 %5620
      %5622 = vadd.xlane.f32.xlu0 %v5388
      %v5623 = vpop.xlane.xlu0 %5622
      %5624 = vadd.xlane.f32.xlu0 %v5389
      %v5625 = vpop.xlane.xlu0 %5624
      %5626 = vadd.xlane.f32.xlu0 %v5390
      %v5627 = vpop.xlane.xlu0 %5626
      %5628 = vadd.xlane.f32.xlu0 %v5391
      %v5629 = vpop.xlane.xlu0 %5628
      %5630 = vadd.xlane.f32.xlu0 %v5392
      %v5631 = vpop.xlane.xlu0 %5630
      %5632 = vadd.xlane.f32.xlu0 %v5393
      %v5633 = vpop.xlane.xlu0 %5632
      %5634 = vadd.xlane.f32.xlu0 %v5394
      %v5635 = vpop.xlane.xlu0 %5634
      %5636 = vadd.xlane.f32.xlu0 %v5395
      %v5637 = vpop.xlane.xlu0 %5636
      %5638 = vadd.xlane.f32.xlu0 %v5396
      %v5639 = vpop.xlane.xlu0 %5638
      %5640 = vadd.xlane.f32.xlu0 %v5397
      %v5641 = vpop.xlane.xlu0 %5640
      %5642 = vadd.xlane.f32.xlu0 %v5398
      %v5643 = vpop.xlane.xlu0 %5642
      %5644 = vadd.xlane.f32.xlu0 %v5399
      %v5645 = vpop.xlane.xlu0 %5644
      %5646 = vadd.xlane.f32.xlu0 %v5400
      %v5647 = vpop.xlane.xlu0 %5646
      %5648 = vadd.xlane.f32.xlu0 %v5401
      %v5649 = vpop.xlane.xlu0 %5648
      %5650 = vadd.xlane.f32.xlu0 %v5402
      %v5651 = vpop.xlane.xlu0 %5650
      %5652 = vadd.xlane.f32.xlu0 %v5403
      %v5653 = vpop.xlane.xlu0 %5652
      %5654 = vadd.xlane.f32.xlu0 %v5404
      %v5655 = vpop.xlane.xlu0 %5654
      %5656 = vadd.xlane.f32.xlu0 %v5405
      %v5657 = vpop.xlane.xlu0 %5656
      %5658 = vadd.xlane.f32.xlu0 %v5406
      %v5659 = vpop.xlane.xlu0 %5658
      %5660 = vadd.xlane.f32.xlu0 %v5407
      %v5661 = vpop.xlane.xlu0 %5660
      %5662 = vadd.xlane.f32.xlu0 %v5408
      %v5663 = vpop.xlane.xlu0 %5662
      %5664 = vadd.xlane.f32.xlu0 %v5409
      %v5665 = vpop.xlane.xlu0 %5664
      %5666 = vadd.xlane.f32.xlu0 %v5410
      %v5667 = vpop.xlane.xlu0 %5666
      %5668 = vadd.xlane.f32.xlu0 %v5411
      %v5669 = vpop.xlane.xlu0 %5668
      %vm5670 = vcmask 7168
      %v5671 = vsel %vm5670, %v5413, %v5499
      %v5672 = vsel %vm5670, %v5415, %v5501
      %v5673 = vsel %vm5670, %v5417, %v5503
      %v5674 = vsel %vm5670, %v5419, %v5505
      %v5675 = vsel %vm5670, %v5421, %v5507
      %v5676 = vsel %vm5670, %v5423, %v5509
      %v5677 = vsel %vm5670, %v5425, %v5511
      %v5678 = vsel %vm5670, %v5427, %v5513
      %v5679 = vsel %vm5670, %v5429, %v5515
      %v5680 = vsel %vm5670, %v5431, %v5517
      %v5681 = vsel %vm5670, %v5433, %v5519
      %v5682 = vsel %vm5670, %v5435, %v5521
      %v5683 = vsel %vm5670, %v5437, %v5523
      %v5684 = vsel %vm5670, %v5439, %v5525
      %v5685 = vsel %vm5670, %v5441, %v5527
      %v5686 = vsel %vm5670, %v5443, %v5529
      %v5687 = vsel %vm5670, %v5445, %v5531
      %v5688 = vsel %vm5670, %v5447, %v5533
      %v5689 = vsel %vm5670, %v5449, %v5535
      %v5690 = vsel %vm5670, %v5451, %v5537
      %v5691 = vsel %vm5670, %v5453, %v5539
      %v5692 = vsel %vm5670, %v5455, %v5541
      %v5693 = vsel %vm5670, %v5457, %v5543
      %v5694 = vsel %vm5670, %v5459, %v5545
      %v5695 = vsel %vm5670, %v5461, %v5547
      %v5696 = vsel %vm5670, %v5463, %v5549
      %v5697 = vsel %vm5670, %v5465, %v5551
      %v5698 = vsel %vm5670, %v5467, %v5553
      %v5699 = vsel %vm5670, %v5469, %v5555
      %v5700 = vsel %vm5670, %v5471, %v5557
      %v5701 = vsel %vm5670, %v5473, %v5559
      %v5702 = vsel %vm5670, %v5475, %v5561
      %v5703 = vsel %vm5670, %v5477, %v5563
      %v5704 = vsel %vm5670, %v5479, %v5565
      %v5705 = vsel %vm5670, %v5481, %v5567
      %v5706 = vsel %vm5670, %v5483, %v5569
      %v5707 = vsel %vm5670, %v5485, %v5571
      %v5708 = vsel %vm5670, %v5487, %v5573
      %v5709 = vsel %vm5670, %v5489, %v5575
      %v5710 = vsel %vm5670, %v5491, %v5577
      %v5711 = vsel %vm5670, %v5493, %v5579
      %v5712 = vsel %vm5670, %v5495, %v5581
      %v5713 = vsel %vm5670, %v5497, %v5583
      %vm5714 = vcmask 15360
      %v5715 = vsel %vm5714, %v5671, %v5585
      %v5716 = vsel %vm5714, %v5672, %v5587
      %v5717 = vsel %vm5714, %v5673, %v5589
      %v5718 = vsel %vm5714, %v5674, %v5591
      %v5719 = vsel %vm5714, %v5675, %v5593
      %v5720 = vsel %vm5714, %v5676, %v5595
      %v5721 = vsel %vm5714, %v5677, %v5597
      %v5722 = vsel %vm5714, %v5678, %v5599
      %v5723 = vsel %vm5714, %v5679, %v5601
      %v5724 = vsel %vm5714, %v5680, %v5603
      %v5725 = vsel %vm5714, %v5681, %v5605
      %v5726 = vsel %vm5714, %v5682, %v5607
      %v5727 = vsel %vm5714, %v5683, %v5609
      %v5728 = vsel %vm5714, %v5684, %v5611
      %v5729 = vsel %vm5714, %v5685, %v5613
      %v5730 = vsel %vm5714, %v5686, %v5615
      %v5731 = vsel %vm5714, %v5687, %v5617
      %v5732 = vsel %vm5714, %v5688, %v5619
      %v5733 = vsel %vm5714, %v5689, %v5621
      %v5734 = vsel %vm5714, %v5690, %v5623
      %v5735 = vsel %vm5714, %v5691, %v5625
      %v5736 = vsel %vm5714, %v5692, %v5627
      %v5737 = vsel %vm5714, %v5693, %v5629
      %v5738 = vsel %vm5714, %v5694, %v5631
      %v5739 = vsel %vm5714, %v5695, %v5633
      %v5740 = vsel %vm5714, %v5696, %v5635
      %v5741 = vsel %vm5714, %v5697, %v5637
      %v5742 = vsel %vm5714, %v5698, %v5639
      %v5743 = vsel %vm5714, %v5699, %v5641
      %v5744 = vsel %vm5714, %v5700, %v5643
      %v5745 = vsel %vm5714, %v5701, %v5645
      %v5746 = vsel %vm5714, %v5702, %v5647
      %v5747 = vsel %vm5714, %v5703, %v5649
      %v5748 = vsel %vm5714, %v5704, %v5651
      %v5749 = vsel %vm5714, %v5705, %v5653
      %v5750 = vsel %vm5714, %v5706, %v5655
      %v5751 = vsel %vm5714, %v5707, %v5657
      %v5752 = vsel %vm5714, %v5708, %v5659
      %v5753 = vsel %vm5714, %v5709, %v5661
      %v5754 = vsel %vm5714, %v5710, %v5663
      %v5755 = vsel %vm5714, %v5711, %v5665
      %v5756 = vsel %vm5714, %v5712, %v5667
      %v5757 = vsel %vm5714, %v5713, %v5669
      %p5758 = scmp.eq.s32.totalorder %s28, 0
      // Predicated region
      $region61: #{_lambda_.2} parent=59 // pred_check
        %p5759 = pneg %p5758
      $region62: #{_lambda_.2} parent=59 // pred_check_branch
        %5761 = sbr.rel (%p5759) target = $region64
      $region63: #{_lambda_.2} parent=59 // pred_region
        %vm5762 = vcmask 23552
        %5763 = vst.msk [vmem:[%s406] sm:$0xff] %vm5762, 0.0
        %5764 = vst.msk [vmem:[%s406 + $0x8] sm:$0xff] %vm5762, 0.0
        %5765 = vst.msk [vmem:[%s406 + $0x10] sm:$0xff] %vm5762, 0.0
        %5766 = vst.msk [vmem:[%s406 + $0x18] sm:$0xff] %vm5762, 0.0
        %5767 = vst.msk [vmem:[%s406 + $0x20] sm:$0xff] %vm5762, 0.0
        %5768 = vst.msk [vmem:[%s406 + $0x28] sm:$0xff] %vm5762, 0.0
        %5769 = vst.msk [vmem:[%s406 + $0x30] sm:$0xff] %vm5762, 0.0
        %5770 = vst.msk [vmem:[%s406 + $0x38] sm:$0xff] %vm5762, 0.0
        %5771 = vst.msk [vmem:[%s406 + $0x40] sm:$0xff] %vm5762, 0.0
        %5772 = vst.msk [vmem:[%s406 + $0x48] sm:$0xff] %vm5762, 0.0
        %5773 = vst.msk [vmem:[%s406 + $0x50] sm:$0xff] %vm5762, 0.0
        %5774 = vst.msk [vmem:[%s406 + $0x58] sm:$0xff] %vm5762, 0.0
        %5775 = vst.msk [vmem:[%s406 + $0x60] sm:$0xff] %vm5762, 0.0
        %5776 = vst.msk [vmem:[%s406 + $0x68] sm:$0xff] %vm5762, 0.0
        %5777 = vst.msk [vmem:[%s406 + $0x70] sm:$0xff] %vm5762, 0.0
        %5778 = vst.msk [vmem:[%s406 + $0x78] sm:$0xff] %vm5762, 0.0
        %5779 = vst.msk [vmem:[%s406 + $0x80] sm:$0xff] %vm5762, 0.0
        %5780 = vst.msk [vmem:[%s406 + $0x88] sm:$0xff] %vm5762, 0.0
        %5781 = vst.msk [vmem:[%s406 + $0x90] sm:$0xff] %vm5762, 0.0
        %5782 = vst.msk [vmem:[%s406 + $0x98] sm:$0xff] %vm5762, 0.0
        %5783 = vst.msk [vmem:[%s406 + $0xa0] sm:$0xff] %vm5762, 0.0
        %5784 = vst.msk [vmem:[%s406 + $0xa8] sm:$0xff] %vm5762, 0.0
        %5785 = vst.msk [vmem:[%s406 + $0xb0] sm:$0xff] %vm5762, 0.0
        %5786 = vst.msk [vmem:[%s406 + $0xb8] sm:$0xff] %vm5762, 0.0
        %5787 = vst.msk [vmem:[%s406 + $0xc0] sm:$0xff] %vm5762, 0.0
        %5788 = vst.msk [vmem:[%s406 + $0xc8] sm:$0xff] %vm5762, 0.0
        %5789 = vst.msk [vmem:[%s406 + $0xd0] sm:$0xff] %vm5762, 0.0
        %5790 = vst.msk [vmem:[%s406 + $0xd8] sm:$0xff] %vm5762, 0.0
        %5791 = vst.msk [vmem:[%s406 + $0xe0] sm:$0xff] %vm5762, 0.0
        %5792 = vst.msk [vmem:[%s406 + $0xe8] sm:$0xff] %vm5762, 0.0
        %5793 = vst.msk [vmem:[%s406 + $0xf0] sm:$0xff] %vm5762, 0.0
        %5794 = vst.msk [vmem:[%s406 + $0xf8] sm:$0xff] %vm5762, 0.0
        %5795 = vst.msk [vmem:[%s406 + $0x100] sm:$0xff] %vm5762, 0.0
        %5796 = vst.msk [vmem:[%s406 + $0x108] sm:$0xff] %vm5762, 0.0
        %5797 = vst.msk [vmem:[%s406 + $0x110] sm:$0xff] %vm5762, 0.0
        %5798 = vst.msk [vmem:[%s406 + $0x118] sm:$0xff] %vm5762, 0.0
        %5799 = vst.msk [vmem:[%s406 + $0x120] sm:$0xff] %vm5762, 0.0
        %5800 = vst.msk [vmem:[%s406 + $0x128] sm:$0xff] %vm5762, 0.0
        %5801 = vst.msk [vmem:[%s406 + $0x130] sm:$0xff] %vm5762, 0.0
        %5802 = vst.msk [vmem:[%s406 + $0x138] sm:$0xff] %vm5762, 0.0
        %5803 = vst.msk [vmem:[%s406 + $0x140] sm:$0xff] %vm5762, 0.0
        %5804 = vst.msk [vmem:[%s406 + $0x148] sm:$0xff] %vm5762, 0.0
        %5805 = vst.msk [vmem:[%s406 + $0x150] sm:$0xff] %vm5762, 0.0
      $region64: #{_lambda_.2} parent=59 // pred_fallthru
        _
      %v5806 = vld [vmem:[%s406] sm:$0xff]
      %v5807 = vld [vmem:[%s406 + $0x8] sm:$0xff]
      %v5808 = vld [vmem:[%s406 + $0x10] sm:$0xff]
      %v5809 = vld [vmem:[%s406 + $0x18] sm:$0xff]
      %v5810 = vld [vmem:[%s406 + $0x20] sm:$0xff]
      %v5811 = vld [vmem:[%s406 + $0x28] sm:$0xff]
      %v5812 = vld [vmem:[%s406 + $0x30] sm:$0xff]
      %v5813 = vld [vmem:[%s406 + $0x38] sm:$0xff]
      %v5814 = vld [vmem:[%s406 + $0x40] sm:$0xff]
      %v5815 = vld [vmem:[%s406 + $0x48] sm:$0xff]
      %v5816 = vld [vmem:[%s406 + $0x50] sm:$0xff]
      %v5817 = vld [vmem:[%s406 + $0x58] sm:$0xff]
      %v5818 = vld [vmem:[%s406 + $0x60] sm:$0xff]
      %v5819 = vld [vmem:[%s406 + $0x68] sm:$0xff]
      %v5820 = vld [vmem:[%s406 + $0x70] sm:$0xff]
      %v5821 = vld [vmem:[%s406 + $0x78] sm:$0xff]
      %v5822 = vld [vmem:[%s406 + $0x80] sm:$0xff]
      %v5823 = vld [vmem:[%s406 + $0x88] sm:$0xff]
      %v5824 = vld [vmem:[%s406 + $0x90] sm:$0xff]
      %v5825 = vld [vmem:[%s406 + $0x98] sm:$0xff]
      %v5826 = vld [vmem:[%s406 + $0xa0] sm:$0xff]
      %v5827 = vld [vmem:[%s406 + $0xa8] sm:$0xff]
      %v5828 = vld [vmem:[%s406 + $0xb0] sm:$0xff]
      %v5829 = vld [vmem:[%s406 + $0xb8] sm:$0xff]
      %v5830 = vld [vmem:[%s406 + $0xc0] sm:$0xff]
      %v5831 = vld [vmem:[%s406 + $0xc8] sm:$0xff]
      %v5832 = vld [vmem:[%s406 + $0xd0] sm:$0xff]
      %v5833 = vld [vmem:[%s406 + $0xd8] sm:$0xff]
      %v5834 = vld [vmem:[%s406 + $0xe0] sm:$0xff]
      %v5835 = vld [vmem:[%s406 + $0xe8] sm:$0xff]
      %v5836 = vld [vmem:[%s406 + $0xf0] sm:$0xff]
      %v5837 = vld [vmem:[%s406 + $0xf8] sm:$0xff]
      %v5838 = vld [vmem:[%s406 + $0x100] sm:$0xff]
      %v5839 = vld [vmem:[%s406 + $0x108] sm:$0xff]
      %v5840 = vld [vmem:[%s406 + $0x110] sm:$0xff]
      %v5841 = vld [vmem:[%s406 + $0x118] sm:$0xff]
      %v5842 = vld [vmem:[%s406 + $0x120] sm:$0xff]
      %v5843 = vld [vmem:[%s406 + $0x128] sm:$0xff]
      %v5844 = vld [vmem:[%s406 + $0x130] sm:$0xff]
      %v5845 = vld [vmem:[%s406 + $0x138] sm:$0xff]
      %v5846 = vld [vmem:[%s406 + $0x140] sm:$0xff]
      %v5847 = vld [vmem:[%s406 + $0x148] sm:$0xff]
      %v5848 = vld [vmem:[%s406 + $0x150] sm:$0xff]
      %v5849 = vadd.f32 %v5806, %v5715
      %v5850 = vadd.f32 %v5807, %v5716
      %v5851 = vadd.f32 %v5808, %v5717
      %v5852 = vadd.f32 %v5809, %v5718
      %v5853 = vadd.f32 %v5810, %v5719
      %v5854 = vadd.f32 %v5811, %v5720
      %v5855 = vadd.f32 %v5812, %v5721
      %v5856 = vadd.f32 %v5813, %v5722
      %v5857 = vadd.f32 %v5814, %v5723
      %v5858 = vadd.f32 %v5815, %v5724
      %v5859 = vadd.f32 %v5816, %v5725
      %v5860 = vadd.f32 %v5817, %v5726
      %v5861 = vadd.f32 %v5818, %v5727
      %v5862 = vadd.f32 %v5819, %v5728
      %v5863 = vadd.f32 %v5820, %v5729
      %v5864 = vadd.f32 %v5821, %v5730
      %v5865 = vadd.f32 %v5822, %v5731
      %v5866 = vadd.f32 %v5823, %v5732
      %v5867 = vadd.f32 %v5824, %v5733
      %v5868 = vadd.f32 %v5825, %v5734
      %v5869 = vadd.f32 %v5826, %v5735
      %v5870 = vadd.f32 %v5827, %v5736
      %v5871 = vadd.f32 %v5828, %v5737
      %v5872 = vadd.f32 %v5829, %v5738
      %v5873 = vadd.f32 %v5830, %v5739
      %v5874 = vadd.f32 %v5831, %v5740
      %v5875 = vadd.f32 %v5832, %v5741
      %v5876 = vadd.f32 %v5833, %v5742
      %v5877 = vadd.f32 %v5834, %v5743
      %v5878 = vadd.f32 %v5835, %v5744
      %v5879 = vadd.f32 %v5836, %v5745
      %v5880 = vadd.f32 %v5837, %v5746
      %v5881 = vadd.f32 %v5838, %v5747
      %v5882 = vadd.f32 %v5839, %v5748
      %v5883 = vadd.f32 %v5840, %v5749
      %v5884 = vadd.f32 %v5841, %v5750
      %v5885 = vadd.f32 %v5842, %v5751
      %v5886 = vadd.f32 %v5843, %v5752
      %v5887 = vadd.f32 %v5844, %v5753
      %v5888 = vadd.f32 %v5845, %v5754
      %v5889 = vadd.f32 %v5846, %v5755
      %v5890 = vadd.f32 %v5847, %v5756
      %v5891 = vadd.f32 %v5848, %v5757
      %vm5892 = vcmask 23552
      %5893 = vst.msk [vmem:[%s406] sm:$0xff] %vm5892, %v5849
      %5894 = vst.msk [vmem:[%s406 + $0x8] sm:$0xff] %vm5892, %v5850
      %5895 = vst.msk [vmem:[%s406 + $0x10] sm:$0xff] %vm5892, %v5851
      %5896 = vst.msk [vmem:[%s406 + $0x18] sm:$0xff] %vm5892, %v5852
      %5897 = vst.msk [vmem:[%s406 + $0x20] sm:$0xff] %vm5892, %v5853
      %5898 = vst.msk [vmem:[%s406 + $0x28] sm:$0xff] %vm5892, %v5854
      %5899 = vst.msk [vmem:[%s406 + $0x30] sm:$0xff] %vm5892, %v5855
      %5900 = vst.msk [vmem:[%s406 + $0x38] sm:$0xff] %vm5892, %v5856
      %5901 = vst.msk [vmem:[%s406 + $0x40] sm:$0xff] %vm5892, %v5857
      %5902 = vst.msk [vmem:[%s406 + $0x48] sm:$0xff] %vm5892, %v5858
      %5903 = vst.msk [vmem:[%s406 + $0x50] sm:$0xff] %vm5892, %v5859
      %5904 = vst.msk [vmem:[%s406 + $0x58] sm:$0xff] %vm5892, %v5860
      %5905 = vst.msk [vmem:[%s406 + $0x60] sm:$0xff] %vm5892, %v5861
      %5906 = vst.msk [vmem:[%s406 + $0x68] sm:$0xff] %vm5892, %v5862
      %5907 = vst.msk [vmem:[%s406 + $0x70] sm:$0xff] %vm5892, %v5863
      %5908 = vst.msk [vmem:[%s406 + $0x78] sm:$0xff] %vm5892, %v5864
      %5909 = vst.msk [vmem:[%s406 + $0x80] sm:$0xff] %vm5892, %v5865
      %5910 = vst.msk [vmem:[%s406 + $0x88] sm:$0xff] %vm5892, %v5866
      %5911 = vst.msk [vmem:[%s406 + $0x90] sm:$0xff] %vm5892, %v5867
      %5912 = vst.msk [vmem:[%s406 + $0x98] sm:$0xff] %vm5892, %v5868
      %5913 = vst.msk [vmem:[%s406 + $0xa0] sm:$0xff] %vm5892, %v5869
      %5914 = vst.msk [vmem:[%s406 + $0xa8] sm:$0xff] %vm5892, %v5870
      %5915 = vst.msk [vmem:[%s406 + $0xb0] sm:$0xff] %vm5892, %v5871
      %5916 = vst.msk [vmem:[%s406 + $0xb8] sm:$0xff] %vm5892, %v5872
      %5917 = vst.msk [vmem:[%s406 + $0xc0] sm:$0xff] %vm5892, %v5873
      %5918 = vst.msk [vmem:[%s406 + $0xc8] sm:$0xff] %vm5892, %v5874
      %5919 = vst.msk [vmem:[%s406 + $0xd0] sm:$0xff] %vm5892, %v5875
      %5920 = vst.msk [vmem:[%s406 + $0xd8] sm:$0xff] %vm5892, %v5876
      %5921 = vst.msk [vmem:[%s406 + $0xe0] sm:$0xff] %vm5892, %v5877
      %5922 = vst.msk [vmem:[%s406 + $0xe8] sm:$0xff] %vm5892, %v5878
      %5923 = vst.msk [vmem:[%s406 + $0xf0] sm:$0xff] %vm5892, %v5879
      %5924 = vst.msk [vmem:[%s406 + $0xf8] sm:$0xff] %vm5892, %v5880
      %5925 = vst.msk [vmem:[%s406 + $0x100] sm:$0xff] %vm5892, %v5881
      %5926 = vst.msk [vmem:[%s406 + $0x108] sm:$0xff] %vm5892, %v5882
      %5927 = vst.msk [vmem:[%s406 + $0x110] sm:$0xff] %vm5892, %v5883
      %5928 = vst.msk [vmem:[%s406 + $0x118] sm:$0xff] %vm5892, %v5884
      %5929 = vst.msk [vmem:[%s406 + $0x120] sm:$0xff] %vm5892, %v5885
      %5930 = vst.msk [vmem:[%s406 + $0x128] sm:$0xff] %vm5892, %v5886
      %5931 = vst.msk [vmem:[%s406 + $0x130] sm:$0xff] %vm5892, %v5887
      %5932 = vst.msk [vmem:[%s406 + $0x138] sm:$0xff] %vm5892, %v5888
      %5933 = vst.msk [vmem:[%s406 + $0x140] sm:$0xff] %vm5892, %v5889
      %5934 = vst.msk [vmem:[%s406 + $0x148] sm:$0xff] %vm5892, %v5890
      %5935 = vst.msk [vmem:[%s406 + $0x150] sm:$0xff] %vm5892, %v5891
      %p5936 = scmp.lt.s32.totalorder %s26, 0
      %s5937 = scalar_select %p5936, %s26, 0
      %p5938 = scmp.lt.s32.totalorder %s27, 1
      %s5939 = scalar_select %p5938, %s27, 1
      %s5940 = smul.addr %s5939, 43
      %s5941 = smul.addr %s5937, 86
      %s5942 = sadd.s32 %s5940, %s5941
      %s5943 = smul.addr %s5942, 8
      %s5944 = scalar_lea.vmem %s10, %s5943
      // Predicated region
      $region65: #{_lambda_.2} parent=59 // pred_check
        %p5945 = pneg %p279
      $region66: #{_lambda_.2} parent=59 // pred_check_branch
        %5947 = sbr.rel (%p5945) target = $region68
      $region67: #{_lambda_.2} parent=59 // pred_region
        _
      $region68: #{_lambda_.2} parent=59 // pred_fallthru
        _
    $region60: #{_lambda_.2} parent=5 // pred_fallthru
      _
    %p5948 = scmp.le.s32.totalorder 2, %s16
    // Predicated region
    $region69: #{_lambda_.2} parent=5 // pred_check
      %p5949 = pneg %p5948
    $region70: #{_lambda_.2} parent=5 // pred_check_branch
      %5951 = sbr.rel (%p5949) target = $region72
    $region71: #{_lambda_.2} parent=5 // pred_region
      %s5952 = ssub.s32 %s16, 2
      // Predicated region
      $region73: #{_lambda_.2} parent=71 // pred_check
        %p5953 = pneg %p285
      $region74: #{_lambda_.2} parent=71 // pred_check_branch
        %5955 = sbr.rel (%p5953) target = $region76
      $region75: #{_lambda_.2} parent=71 // pred_region
        %p5956 = scmp.lt.s32.totalorder %s29, 0
        %s5957 = scalar_select %p5956, %s29, 0
        %p5958 = scmp.lt.s32.totalorder %s30, 1
        %s5959 = scalar_select %p5958, %s30, 1
        %s5960 = smul.addr %s5959, 43
        %s5961 = smul.addr %s5957, 86
        %s5962 = sadd.s32 %s5960, %s5961
        %s5963 = smul.addr %s5962, 8
        %s5964 = scalar_lea.vmem %s10, %s5963
      $region76: #{_lambda_.2} parent=71 // pred_fallthru
        _
    $region72: #{_lambda_.2} parent=5 // pred_fallthru
      _
  $region6: #{_lambda_.2} parent=0 // loop_footer
    %s20 = sadd.s32 1, %s16
  $region7: #{_lambda_.2} parent=0 // loop_footer_branch
    %15 = sbr.rel target = $region3
  $region8: #{_lambda_.2} parent=0 // loop_exit
    _

</llo_original>
